<compile_context>
chip_gen: v7x
topology: tpu7x:2x2x1
jax: 0.10.0
libtpu: 0.0.40
codegen_flags: <defaults>
</compile_context>

<pallas_src>
import functools

import jax
import jax.numpy as jnp
from jax.experimental import pallas as pl
from jax.experimental.pallas import tpu as pltpu


_INVALID_KEY = 0x7F000000     # > any packed in-radius distance key; low bits 0
_SUPPRESSED_KEY = 0x7FFFFFFF  # int32 max: knocks out already-selected lanes


def _round_up(x, m):
    return ((x + m - 1) // m) * m


def _vmem_limit_bytes():
    """96 MiB on 128-MiB parts (v5e/v6e), 48 MiB on 64-MiB parts (v7x)."""
    try:
        cap = pltpu.get_tpu_info().vmem_capacity_bytes
    except Exception:                       # query unavailable -> conservative
        cap = 64 * 1024 * 1024
    return 96 * 1024 * 1024 if cap >= 128 * 1024 * 1024 else 48 * 1024 * 1024


# ----------------------------------------------------------------------------
# Kernel 1: streaming K-nearest-within-radius selection (N tiled, best-K carry)
# ----------------------------------------------------------------------------
def _knn_select_kernel(q_ref, pt_ref, pidx_ref, bd_ref, bi_ref, *, radius_sq):
    """
    q_ref   : (TS, 3)  f32  sample positions (constant along the N axis)
    pt_ref  : (3, TN)  f32  point-position tile (transposed)
    pidx_ref: (TS, K)  i32  output neighbour indices (-1 == none); resident
                            across the N axis, written only on the last N step
    bd_ref  : (TS, K)  i32  scratch: packed (truncated) distance bits, sorted
    bi_ref  : (TS, K)  i32  scratch: global point indices, sorted with bd
    """
    n_step = pl.program_id(1)
    TS = q_ref.shape[0]
    TN = pt_ref.shape[1]
    K = pidx_ref.shape[1]
    idx_mask = TN - 1                              # TN is a power of two

    @pl.when(n_step == 0)
    def _():
        bd_ref[...] = jnp.full((TS, K), _INVALID_KEY, jnp.int32)
        bi_ref[...] = jnp.full((TS, K), jnp.iinfo(jnp.int32).max, jnp.int32)

    q = q_ref[...]
    pt = pt_ref[...]
    # Squared distance directly on the VPU (3 sub + 3 mul + 2 add per element).
    dx = q[:, 0:1] - pt[0:1, :]
    dy = q[:, 1:2] - pt[1:2, :]
    dz = q[:, 2:3] - pt[2:3, :]
    dist = dx * dx + dy * dy + dz * dz                              # (TS, TN)

    lane_iota = jax.lax.broadcasted_iota(jnp.int32, (TS, TN), 1)
    # Pack distance + lane index into one int32 key: non-negative f32 bit
    # patterns order monotonically as int32, and the low log2(TN) mantissa bits
    # are replaced by the lane index (gives smallest-index tie-break, matching
    # torch argmin).  One cross-lane reduction per selection round instead of
    # two.  Out-of-radius lanes are masked once, up front.
    key = (pltpu.bitcast(dist, jnp.int32) & jnp.int32(~idx_mask)) | lane_iota
    key = jnp.where(dist <= radius_sq, key, jnp.int32(_INVALID_KEY))

    n_base = n_step * TN
    bdv = bd_ref[...]
    biv = bi_ref[...]
    bd = [bdv[:, j:j + 1] for j in range(K)]        # sorted best-K list
    bi = [biv[:, j:j + 1] for j in range(K)]

    for _ in range(K):                              # K candidates per tile
        kmin = jnp.min(key, axis=1, keepdims=True)  # single XLU reduction
        local = kmin & idx_mask
        cd = kmin & jnp.int32(~idx_mask)            # truncated distance bits
        ci = local + n_base                         # global point index
        key = jnp.where(lane_iota == local, jnp.int32(_SUPPRESSED_KEY), key)
        # Bubble-insert (cd, ci) into the sorted running best-K list.
        for j in range(K):
            better = (cd < bd[j]) | ((cd == bd[j]) & (ci < bi[j]))
            nd = jnp.where(better, cd, bd[j])
            ni = jnp.where(better, ci, bi[j])
            cd = jnp.where(better, bd[j], cd)
            ci = jnp.where(better, bi[j], ci)
            bd[j], bi[j] = nd, ni

    best_d = jnp.concatenate(bd, axis=1)
    best_i = jnp.concatenate(bi, axis=1)
    bd_ref[...] = best_d
    bi_ref[...] = best_i

    @pl.when(n_step == pl.num_programs(1) - 1)
    def _():
        valid = best_d < _INVALID_KEY               # radius test done up front
        pidx_ref[...] = jnp.where(valid, best_i, -1)


# ----------------------------------------------------------------------------
# Kernel 2: per-k one-hot MXU gather, streamed over N tiles
# ----------------------------------------------------------------------------
def _gather_kernel(gidx_ref, feat_ref, sfeat_ref):
    """
    gidx_ref : (TS, K)    i32  clamp(pidx, 0) gather indices (global)
    feat_ref : (TN, Fp)   f32  feature tile
    sfeat_ref: (TS, K*Fp) f32  resident accumulator (lane-dense full stores)
    """
    n_step = pl.program_id(1)
    TS, K = gidx_ref.shape
    TN, Fp = feat_ref.shape
    n_base = n_step * TN

    @pl.when(n_step == 0)
    def _():
        sfeat_ref[...] = jnp.zeros_like(sfeat_ref)

    feat = feat_ref[...]
    gidx = gidx_ref[...]
    row_iota = jax.lax.broadcasted_iota(jnp.int32, (TS, TN), 1) + n_base
    parts = []
    for k in range(K):                  # per-k (TS,TN)x(TN,Fp) one-hot matmul
        onehot = (row_iota == gidx[:, k:k + 1]).astype(feat.dtype)
        parts.append(jnp.dot(onehot, feat, preferred_element_type=jnp.float32))
    sfeat_ref[...] += jnp.concatenate(parts, axis=1)


# ----------------------------------------------------------------------------
# Wrapper: padding, tiling and the two pallas_calls
# ----------------------------------------------------------------------------
def query_and_gather(sample_pos, points_pos, feat_padded, radius, K,
                     tile_s=256, tile_n=2048):
    """sample_pos (S,3), points_pos (N,3), feat_padded (N,Fp)
       -> pidx (S,K) i32, sfeat (S,K,Fp) f32."""
    S = sample_pos.shape[0]
    N = points_pos.shape[0]
    Fp = feat_padded.shape[1]
    assert N >= 1, "point cloud must be non-empty for the querier"
    assert (K * Fp) % 128 == 0 and Fp % 8 == 0
    assert tile_n >= 128 and (tile_n & (tile_n - 1)) == 0

    # Sample tile: keep >= 2 grid steps along samples (keeps both v7x TCs busy).
    TS = max(8, min(tile_s, _round_up(S, 8)))
    while TS > 8 and pl.cdiv(S, TS) < 2:
        TS = max(8, _round_up(TS // 2, 8))
    S_pad = _round_up(S, TS)

    # N tile: power of two (for low-bit index packing), >= 128 lanes.
    TN = min(tile_n, max(128, pl.next_power_of_2(N)))
    N_pad = _round_up(N, TN)

    q = jnp.pad(sample_pos.astype(jnp.float32), ((0, S_pad - S), (0, 0)))
    # Padded point rows sit at far-away sentinel coords -> never within radius.
    pt = jnp.pad(points_pos.astype(jnp.float32), ((0, N_pad - N), (0, 0)),
                 constant_values=1e9)
    feat = jnp.pad(feat_padded.astype(jnp.float32), ((0, N_pad - N), (0, 0)))
    pt_t = jnp.transpose(pt)                                     # (3, N_pad)

    grid = (S_pad // TS, N_pad // TN)
    vmem_limit = _vmem_limit_bytes()

    pidx = pl.pallas_call(
        functools.partial(_knn_select_kernel, radius_sq=float(radius) ** 2),
        out_shape=jax.ShapeDtypeStruct((S_pad, K), jnp.int32),
        grid_spec=pltpu.PrefetchScalarGridSpec(
            num_scalar_prefetch=0,
            grid=grid,
            in_specs=[
                pl.BlockSpec((TS, 3), lambda i, n: (i, 0)),
                pl.BlockSpec((3, TN), lambda i, n: (0, n)),
            ],
            out_specs=pl.BlockSpec((TS, K), lambda i, n: (i, 0)),
            scratch_shapes=[pltpu.VMEM((TS, K), jnp.int32),
                            pltpu.VMEM((TS, K), jnp.int32)]),
        compiler_params=pltpu.CompilerParams(
            dimension_semantics=("parallel", "arbitrary"),
            vmem_limit_bytes=vmem_limit),
    )(q, pt_t)

    gidx = jnp.maximum(pidx, 0)          # torch.clamp(sample_pidx, min=0)

    sfeat = pl.pallas_call(
        _gather_kernel,
        out_shape=jax.ShapeDtypeStruct((S_pad, K * Fp), jnp.float32),
        grid_spec=pltpu.PrefetchScalarGridSpec(
            num_scalar_prefetch=0,
            grid=grid,
            in_specs=[
                pl.BlockSpec((TS, K), lambda i, n: (i, 0)),
                pl.BlockSpec((TN, Fp), lambda i, n: (n, 0)),
            ],
            out_specs=pl.BlockSpec((TS, K * Fp), lambda i, n: (i, 0))),
        compiler_params=pltpu.CompilerParams(
            dimension_semantics=("parallel", "arbitrary"),
            vmem_limit_bytes=vmem_limit),
    )(gidx, feat)

    return pidx[:S], sfeat[:S].reshape(S, K, Fp)


# ----------------------------------------------------------------------------
# Plain-JAX glue reproducing the module's bookkeeping
# ----------------------------------------------------------------------------
def incre_points_jax(exist, incre, min_xyz, voxel_size):
    """Voxel-dedup merge of existing+incoming points (sort-based, O(N log N)).
    Every point is mapped to its voxel's minimum-index representative so output
    shapes stay static."""
    # TODO(synk): the real incre_points compacts to the unique-voxel set
    # (dynamic output size); here duplicates remain (each maps to its voxel
    # representative) so downstream K-NN may return repeated physical points.
    all_pos = jnp.concatenate([exist['pos'], incre['pos']], axis=0)
    all_emb = jnp.concatenate([exist['emb'], incre['emb']], axis=0)
    all_color = jnp.concatenate([exist['color'], incre['color']], axis=0)
    all_dir = jnp.concatenate([exist['dir'], incre['dir']], axis=0)

    vox = jnp.floor((all_pos - min_xyz) / voxel_size).astype(jnp.int32)  # (N,3)
    key = (vox[:, 0] * 73856093) ^ (vox[:, 1] * 19349663) ^ (vox[:, 2] * 83492791)

    order = jnp.argsort(key, stable=True)               # stable: min idx first
    skey = key[order]
    first = jnp.searchsorted(skey, key, side='left')    # first occurrence
    rep = order[first]                                   # (N,) representative

    return (all_pos[rep], all_emb[rep], all_color[rep], all_dir[rep])


class NeuralPointsSimpleIncre:
    """JAX port of NeuralPoints_Simple_Incre (forward pass)."""

    def __init__(self, min_xyz, voxel_size, query_radius, K=4, SR=8, emb_dim=32):
        self.min_xyz = jnp.asarray(min_xyz, jnp.float32)
        self.voxel_size = jnp.asarray(voxel_size, jnp.float32)
        self.query_radius = float(query_radius)
        self.K = K
        self.SR = SR
        self.emb_dim = emb_dim
        self.reset_points()

    def reset_points(self):
        self.points_pos = jnp.zeros((0, 3), jnp.float32)
        self.points_emb = jnp.zeros((0, self.emb_dim), jnp.float32)
        self.points_color = jnp.zeros((0, 3), jnp.float32)
        self.points_dir = jnp.zeros((0, 3), jnp.float32)

    def register_points(self, pos, emb, color, dirs):
        self.points_pos, self.points_emb = pos, emb
        self.points_color, self.points_dir = color, dirs

    def forward(self, inputs):
        if inputs['reset_points']:
            self.reset_points()

        pinfo = inputs['points_info']
        exist = {'pos': self.points_pos.reshape(-1, 3), 'emb': self.points_emb,
                 'color': self.points_color, 'dir': self.points_dir}
        incre = {'pos': pinfo['points_position'], 'emb': pinfo['points_embeddings'],
                 'color': pinfo['points_color'], 'dir': pinfo['points_dir']}
        combined_pos, combined_emb, c_color, c_dir = incre_points_jax(
            exist, incre, self.min_xyz, self.voxel_size)

        emb_dim = combined_emb.shape[-1]

        # ---- ray marching (simplified lighting_fast_querier_w) -------------
        # TODO(synk): the CUDA querier does voxel-grid occupancy culling;
        # approximated here as a radius-limited K-NN per ray sample.
        raydir_cam = inputs['raydir'][0]          # (R, 3)  camera-frame dirs
        camrot = inputs['camrotc2w'][0]           # (3, 3)
        campos = inputs['campos'][0]              # (3,)
        near = float(inputs['near'])
        far = float(inputs['far'])
        R = raydir_cam.shape[0]
        SR, K = self.SR, self.K

        ray_dirs_w = raydir_cam @ camrot.T                               # (R,3)
        t = jnp.linspace(near, far, SR, dtype=jnp.float32)               # (SR,)
        raypos = campos[None, None, :] + ray_dirs_w[:, None, :] * t[None, :, None]
        sample_loc_cam = raydir_cam[:, None, :] * t[None, :, None]       # (R,SR,3)
        sample_pos_flat = raypos.reshape(R * SR, 3)

        # ---- feature slab: [pos | emb | color | dir], padded to Fp=64 ------
        feat = jnp.concatenate([combined_pos, combined_emb, c_color, c_dir],
                               axis=-1)                                  # (N, 41)
        F = feat.shape[-1]
        Fp = 64                                   # K*Fp = 256 stays lane-dense
        feat_pad = jnp.pad(feat, ((0, 0), (0, Fp - F)))

        # ---- Pallas hot path: neighbour query + streamed one-hot gather -----
        pidx, sfeat = query_and_gather(sample_pos_flat, combined_pos,
                                       feat_pad, self.query_radius, K)

        sample_pidx = pidx.reshape(1, R, SR, K)
        sfeat = sfeat.reshape(1, R, SR, K, Fp)

        sampled_xyz = sfeat[..., 0:3]
        sampled_embedding = sfeat[..., 3:3 + emb_dim]
        sampled_color = sfeat[..., 3 + emb_dim:6 + emb_dim]
        sampled_dir = sfeat[..., 6 + emb_dim:9 + emb_dim]
        sample_pnt_mask = sample_pidx >= 0
        ray_mask = jnp.any(sample_pnt_mask.reshape(1, R, SR * K), axis=-1)

        out = {
            'sampled_color': sampled_color,
            'sampled_dir': sampled_dir,
            'sampled_conf': None,
            'sampled_embedding': sampled_embedding,
            'sampled_xyz': sampled_xyz,
            'sampled_pnt_mask': sample_pnt_mask,
            'sample_loc_cam_coor': sample_loc_cam[None],                 # (1,R,SR,3)
            'sample_loc_w_coor': raypos[None],                           # (1,R,SR,3)
            'sample_ray_dirs': jnp.broadcast_to(ray_dirs_w[None, :, None, :],
                                                (1, R, SR, 3)),
            'ray_mask_tensor': ray_mask,
            'raypos_tensor': raypos[None],
            'vsize_np': tuple(float(v) for v in self.voxel_size),
        }

        if inputs['register_flag']:
            self.register_points(combined_pos[None], combined_emb, c_color, c_dir)
        return out


# ----------------------------------------------------------------------------
if __name__ == "__main__":
    key = jax.random.PRNGKey(0)
    N, R, SR, K, EMB = 128, 64, 8, 4, 32
    k0, k1, k2, k3, k4 = jax.random.split(key, 5)

    points_pos = jax.random.uniform(k0, (N, 3), jnp.float32)               # in [0,1]^3
    points_emb = jax.random.normal(k1, (N, EMB), jnp.float32)
    points_color = jax.random.uniform(k2, (N, 3), jnp.float32)
    pdir = jax.random.normal(k3, (N, 3), jnp.float32)
    points_dir = pdir / jnp.linalg.norm(pdir, axis=-1, keepdims=True)

    # camera at z=-1 looking toward +z through the unit-cube point cloud
    dxy = jax.random.uniform(k4, (R, 2), jnp.float32, -0.3, 0.3)
    raydir_cam = jnp.concatenate([dxy, jnp.ones((R, 1), jnp.float32)], axis=-1)
    raydir_cam = raydir_cam / jnp.linalg.norm(raydir_cam, axis=-1, keepdims=True)

    inputs = {
        'reset_points': True,
        'register_flag': True,
        'points_info': {
            'points_position': points_pos,
            'points_embeddings': points_emb,
            'points_color': points_color,
            'points_dir': points_dir,
        },
        'raydir': raydir_cam[None],                        # (1, R, 3)
        'camrotc2w': jnp.eye(3, dtype=jnp.float32)[None],  # (1, 3, 3)
        'campos': jnp.array([[0.5, 0.5, -1.0]], jnp.float32),
        'near': 0.5,
        'far': 2.5,
        'intrinsic': jnp.eye(3, dtype=jnp.float32)[None],
    }

    model = NeuralPointsSimpleIncre(
        min_xyz=[-1.0, -1.0, -1.0],
        voxel_size=[0.05, 0.05, 0.05],
        query_radius=0.2,
        K=K, SR=SR, emb_dim=EMB,
    )

    out = model.forward(inputs)
    jax.block_until_ready((out['sampled_embedding'], out['sampled_xyz'],
                           out['sampled_color'], out['sampled_dir'],
                           out['sampled_pnt_mask'], out['ray_mask_tensor']))

    assert out['sampled_embedding'].shape == (1, R, SR, K, EMB)
    assert out['sampled_xyz'].shape == (1, R, SR, K, 3)
    assert out['sampled_color'].shape == (1, R, SR, K, 3)
    assert out['sampled_dir'].shape == (1, R, SR, K, 3)
    assert out['sampled_pnt_mask'].shape == (1, R, SR, K)
    assert out['ray_mask_tensor'].shape == (1, R)
    print("KERNEL_OK")
</pallas_src>

<mosaic_0001>
module attributes {stable_mosaic.version = 11 : i64} {
  func.func @_knn_select_kernel(%arg0: i32, %arg1: i32, %arg2: memref<256x3xf32, #tpu.memory_space<vmem>>, %arg3: memref<3x128xf32, #tpu.memory_space<vmem>>, %arg4: memref<256x4xi32, #tpu.memory_space<vmem>>, %arg5: memref<256x4xi32, #tpu.memory_space<vmem>>, %arg6: memref<256x4xi32, #tpu.memory_space<vmem>>) attributes {dimension_semantics = [#tpu.dimension_semantics<parallel>, #tpu.dimension_semantics<arbitrary>], iteration_bounds = array<i64: 2, 1>, scalar_prefetch = 0 : i64, scratch_operands = 2 : i64, tpu.core_type = #tpu.core_type<tc>, window_params = [{transform_indices = @transform_0, window_bounds = array<i64: 256, 3>}, {transform_indices = @transform_1, window_bounds = array<i64: 3, 128>}, {transform_indices = @transform_2, window_bounds = array<i64: 256, 4>}]} {
    %c0_i32 = arith.constant 0 : i32
    %0 = arith.cmpi eq, %arg1, %c0_i32 : i32
    %1 = arith.extui %0 : i1 to i32
    %c0_i32_0 = arith.constant 0 : i32
    %2 = arith.cmpi ne, %1, %c0_i32_0 : i32
    scf.if %2 {
      %c2130706432_i32_27 = arith.constant 2130706432 : i32
      %232 = vector.broadcast %c2130706432_i32_27 : i32 to vector<256x4xi32>
      %c0_28 = arith.constant 0 : index
      %c0_29 = arith.constant 0 : index
      %233 = vector.load %arg5[%c0_28, %c0_29] : memref<256x4xi32, #tpu.memory_space<vmem>>, vector<256x4xi32>
      tpu.vector_store %arg5[%c0_28, %c0_29], %232 {strides = array<i32>} : memref<256x4xi32, #tpu.memory_space<vmem>>, vector<256x4xi32>,
      %c2147483647_i32_30 = arith.constant 2147483647 : i32
      %234 = vector.broadcast %c2147483647_i32_30 : i32 to vector<256x4xi32>
      %c0_31 = arith.constant 0 : index
      %c0_32 = arith.constant 0 : index
      %235 = vector.load %arg6[%c0_31, %c0_32] : memref<256x4xi32, #tpu.memory_space<vmem>>, vector<256x4xi32>
      tpu.vector_store %arg6[%c0_31, %c0_32], %234 {strides = array<i32>} : memref<256x4xi32, #tpu.memory_space<vmem>>, vector<256x4xi32>,
    } else {
    }
    %c0 = arith.constant 0 : index
    %c0_1 = arith.constant 0 : index
    %3 = vector.load %arg2[%c0, %c0_1] : memref<256x3xf32, #tpu.memory_space<vmem>>, vector<256x3xf32>
    %c0_2 = arith.constant 0 : index
    %c0_3 = arith.constant 0 : index
    %4 = vector.load %arg3[%c0_2, %c0_3] : memref<3x128xf32, #tpu.memory_space<vmem>>, vector<3x128xf32>
    %5 = vector.extract_strided_slice %3 {offsets = [0, 0], sizes = [256, 1], strides = [1, 1]} : vector<256x3xf32> to vector<256x1xf32>
    %6 = vector.extract_strided_slice %4 {offsets = [0, 0], sizes = [1, 128], strides = [1, 1]} : vector<3x128xf32> to vector<1x128xf32>
    %7 = vector.broadcast %5 : vector<256x1xf32> to vector<256x128xf32>
    %8 = vector.broadcast %6 : vector<1x128xf32> to vector<256x128xf32>
    %9 = arith.subf %7, %8 : vector<256x128xf32>
    %10 = vector.extract_strided_slice %3 {offsets = [0, 1], sizes = [256, 1], strides = [1, 1]} : vector<256x3xf32> to vector<256x1xf32>
    %11 = vector.extract_strided_slice %4 {offsets = [1, 0], sizes = [1, 128], strides = [1, 1]} : vector<3x128xf32> to vector<1x128xf32>
    %12 = vector.broadcast %10 : vector<256x1xf32> to vector<256x128xf32>
    %13 = vector.broadcast %11 : vector<1x128xf32> to vector<256x128xf32>
    %14 = arith.subf %12, %13 : vector<256x128xf32>
    %15 = vector.extract_strided_slice %3 {offsets = [0, 2], sizes = [256, 1], strides = [1, 1]} : vector<256x3xf32> to vector<256x1xf32>
    %16 = vector.extract_strided_slice %4 {offsets = [2, 0], sizes = [1, 128], strides = [1, 1]} : vector<3x128xf32> to vector<1x128xf32>
    %17 = vector.broadcast %15 : vector<256x1xf32> to vector<256x128xf32>
    %18 = vector.broadcast %16 : vector<1x128xf32> to vector<256x128xf32>
    %19 = arith.subf %17, %18 : vector<256x128xf32>
    %20 = arith.mulf %9, %9 : vector<256x128xf32>
    %21 = arith.mulf %14, %14 : vector<256x128xf32>
    %22 = arith.addf %20, %21 : vector<256x128xf32>
    %23 = arith.mulf %19, %19 : vector<256x128xf32>
    %24 = arith.addf %22, %23 : vector<256x128xf32>
    %25 = tpu.iota {dimensions = array<i32: 1>} : vector<256x128xi32>
    %26 = tpu.bitcast %24 : vector<256x128xf32> -> vector<256x128xi32>
    %c-128_i32 = arith.constant -128 : i32
    %27 = vector.broadcast %c-128_i32 : i32 to vector<256x128xi32>
    %28 = arith.andi %26, %27 : vector<256x128xi32>
    %29 = arith.ori %28, %25 : vector<256x128xi32>
    %cst = arith.constant 4.000000e-02 : f32
    %30 = vector.broadcast %cst : f32 to vector<256x128xf32>
    %31 = arith.cmpf ole, %24, %30 : vector<256x128xf32>
    %c2130706432_i32 = arith.constant 2130706432 : i32
    %32 = vector.broadcast %c2130706432_i32 : i32 to vector<256x128xi32>
    %33 = arith.select %31, %29, %32 : vector<256x128xi1>, vector<256x128xi32>
    %c128_i32 = arith.constant 128 : i32
    %34 = arith.muli %arg1, %c128_i32 : i32
    %c0_4 = arith.constant 0 : index
    %c0_5 = arith.constant 0 : index
    %35 = vector.load %arg5[%c0_4, %c0_5] : memref<256x4xi32, #tpu.memory_space<vmem>>, vector<256x4xi32>
    %c0_6 = arith.constant 0 : index
    %c0_7 = arith.constant 0 : index
    %36 = vector.load %arg6[%c0_6, %c0_7] : memref<256x4xi32, #tpu.memory_space<vmem>>, vector<256x4xi32>
    %37 = vector.extract_strided_slice %35 {offsets = [0, 0], sizes = [256, 1], strides = [1, 1]} : vector<256x4xi32> to vector<256x1xi32>
    %38 = vector.extract_strided_slice %35 {offsets = [0, 1], sizes = [256, 1], strides = [1, 1]} : vector<256x4xi32> to vector<256x1xi32>
    %39 = vector.extract_strided_slice %35 {offsets = [0, 2], sizes = [256, 1], strides = [1, 1]} : vector<256x4xi32> to vector<256x1xi32>
    %40 = vector.extract_strided_slice %35 {offsets = [0, 3], sizes = [256, 1], strides = [1, 1]} : vector<256x4xi32> to vector<256x1xi32>
    %41 = vector.extract_strided_slice %36 {offsets = [0, 0], sizes = [256, 1], strides = [1, 1]} : vector<256x4xi32> to vector<256x1xi32>
    %42 = vector.extract_strided_slice %36 {offsets = [0, 1], sizes = [256, 1], strides = [1, 1]} : vector<256x4xi32> to vector<256x1xi32>
    %43 = vector.extract_strided_slice %36 {offsets = [0, 2], sizes = [256, 1], strides = [1, 1]} : vector<256x4xi32> to vector<256x1xi32>
    %44 = vector.extract_strided_slice %36 {offsets = [0, 3], sizes = [256, 1], strides = [1, 1]} : vector<256x4xi32> to vector<256x1xi32>
    %cst_8 = arith.constant dense<2147483647> : vector<256xi32>
    %45 = vector.multi_reduction <minsi>, %33, %cst_8 [1] : vector<256x128xi32> to vector<256xi32>
    %46 = vector.shape_cast %45 : vector<256xi32> to vector<256x1xi32>
    %c127_i32 = arith.constant 127 : i32
    %47 = vector.broadcast %c127_i32 : i32 to vector<256x1xi32>
    %48 = arith.andi %46, %47 : vector<256x1xi32>
    %c-128_i32_9 = arith.constant -128 : i32
    %49 = vector.broadcast %c-128_i32_9 : i32 to vector<256x1xi32>
    %50 = arith.andi %46, %49 : vector<256x1xi32>
    %51 = vector.broadcast %34 : i32 to vector<256x1xi32>
    %52 = arith.addi %48, %51 : vector<256x1xi32>
    %53 = vector.broadcast %48 : vector<256x1xi32> to vector<256x128xi32>
    %54 = arith.cmpi eq, %25, %53 : vector<256x128xi32>
    %c2147483647_i32 = arith.constant 2147483647 : i32
    %55 = vector.broadcast %c2147483647_i32 : i32 to vector<256x128xi32>
    %56 = arith.select %54, %55, %33 : vector<256x128xi1>, vector<256x128xi32>
    %57 = arith.cmpi slt, %50, %37 : vector<256x1xi32>
    %58 = arith.cmpi eq, %50, %37 : vector<256x1xi32>
    %59 = arith.cmpi slt, %52, %41 : vector<256x1xi32>
    %60 = arith.andi %58, %59 : vector<256x1xi1>
    %61 = arith.ori %57, %60 : vector<256x1xi1>
    %62 = arith.select %61, %50, %37 : vector<256x1xi1>, vector<256x1xi32>
    %63 = arith.select %61, %52, %41 : vector<256x1xi1>, vector<256x1xi32>
    %64 = arith.select %61, %37, %50 : vector<256x1xi1>, vector<256x1xi32>
    %65 = arith.select %61, %41, %52 : vector<256x1xi1>, vector<256x1xi32>
    %66 = arith.cmpi slt, %64, %38 : vector<256x1xi32>
    %67 = arith.cmpi eq, %64, %38 : vector<256x1xi32>
    %68 = arith.cmpi slt, %65, %42 : vector<256x1xi32>
    %69 = arith.andi %67, %68 : vector<256x1xi1>
    %70 = arith.ori %66, %69 : vector<256x1xi1>
    %71 = arith.select %70, %64, %38 : vector<256x1xi1>, vector<256x1xi32>
    %72 = arith.select %70, %65, %42 : vector<256x1xi1>, vector<256x1xi32>
    %73 = arith.select %70, %38, %64 : vector<256x1xi1>, vector<256x1xi32>
    %74 = arith.select %70, %42, %65 : vector<256x1xi1>, vector<256x1xi32>
    %75 = arith.cmpi slt, %73, %39 : vector<256x1xi32>
    %76 = arith.cmpi eq, %73, %39 : vector<256x1xi32>
    %77 = arith.cmpi slt, %74, %43 : vector<256x1xi32>
    %78 = arith.andi %76, %77 : vector<256x1xi1>
    %79 = arith.ori %75, %78 : vector<256x1xi1>
    %80 = arith.select %79, %73, %39 : vector<256x1xi1>, vector<256x1xi32>
    %81 = arith.select %79, %74, %43 : vector<256x1xi1>, vector<256x1xi32>
    %82 = arith.select %79, %39, %73 : vector<256x1xi1>, vector<256x1xi32>
    %83 = arith.select %79, %43, %74 : vector<256x1xi1>, vector<256x1xi32>
    %84 = arith.cmpi slt, %82, %40 : vector<256x1xi32>
    %85 = arith.cmpi eq, %82, %40 : vector<256x1xi32>
    %86 = arith.cmpi slt, %83, %44 : vector<256x1xi32>
    %87 = arith.andi %85, %86 : vector<256x1xi1>
    %88 = arith.ori %84, %87 : vector<256x1xi1>
    %89 = arith.select %88, %82, %40 : vector<256x1xi1>, vector<256x1xi32>
    %90 = arith.select %88, %83, %44 : vector<256x1xi1>, vector<256x1xi32>
    %cst_10 = arith.constant dense<2147483647> : vector<256xi32>
    %91 = vector.multi_reduction <minsi>, %56, %cst_10 [1] : vector<256x128xi32> to vector<256xi32>
    %92 = vector.shape_cast %91 : vector<256xi32> to vector<256x1xi32>
    %c127_i32_11 = arith.constant 127 : i32
    %93 = vector.broadcast %c127_i32_11 : i32 to vector<256x1xi32>
    %94 = arith.andi %92, %93 : vector<256x1xi32>
    %c-128_i32_12 = arith.constant -128 : i32
    %95 = vector.broadcast %c-128_i32_12 : i32 to vector<256x1xi32>
    %96 = arith.andi %92, %95 : vector<256x1xi32>
    %97 = vector.broadcast %34 : i32 to vector<256x1xi32>
    %98 = arith.addi %94, %97 : vector<256x1xi32>
    %99 = vector.broadcast %94 : vector<256x1xi32> to vector<256x128xi32>
    %100 = arith.cmpi eq, %25, %99 : vector<256x128xi32>
    %c2147483647_i32_13 = arith.constant 2147483647 : i32
    %101 = vector.broadcast %c2147483647_i32_13 : i32 to vector<256x128xi32>
    %102 = arith.select %100, %101, %56 : vector<256x128xi1>, vector<256x128xi32>
    %103 = arith.cmpi slt, %96, %62 : vector<256x1xi32>
    %104 = arith.cmpi eq, %96, %62 : vector<256x1xi32>
    %105 = arith.cmpi slt, %98, %63 : vector<256x1xi32>
    %106 = arith.andi %104, %105 : vector<256x1xi1>
    %107 = arith.ori %103, %106 : vector<256x1xi1>
    %108 = arith.select %107, %96, %62 : vector<256x1xi1>, vector<256x1xi32>
    %109 = arith.select %107, %98, %63 : vector<256x1xi1>, vector<256x1xi32>
    %110 = arith.select %107, %62, %96 : vector<256x1xi1>, vector<256x1xi32>
    %111 = arith.select %107, %63, %98 : vector<256x1xi1>, vector<256x1xi32>
    %112 = arith.cmpi slt, %110, %71 : vector<256x1xi32>
    %113 = arith.cmpi eq, %110, %71 : vector<256x1xi32>
    %114 = arith.cmpi slt, %111, %72 : vector<256x1xi32>
    %115 = arith.andi %113, %114 : vector<256x1xi1>
    %116 = arith.ori %112, %115 : vector<256x1xi1>
    %117 = arith.select %116, %110, %71 : vector<256x1xi1>, vector<256x1xi32>
    %118 = arith.select %116, %111, %72 : vector<256x1xi1>, vector<256x1xi32>
    %119 = arith.select %116, %71, %110 : vector<256x1xi1>, vector<256x1xi32>
    %120 = arith.select %116, %72, %111 : vector<256x1xi1>, vector<256x1xi32>
    %121 = arith.cmpi slt, %119, %80 : vector<256x1xi32>
    %122 = arith.cmpi eq, %119, %80 : vector<256x1xi32>
    %123 = arith.cmpi slt, %120, %81 : vector<256x1xi32>
    %124 = arith.andi %122, %123 : vector<256x1xi1>
    %125 = arith.ori %121, %124 : vector<256x1xi1>
    %126 = arith.select %125, %119, %80 : vector<256x1xi1>, vector<256x1xi32>
    %127 = arith.select %125, %120, %81 : vector<256x1xi1>, vector<256x1xi32>
    %128 = arith.select %125, %80, %119 : vector<256x1xi1>, vector<256x1xi32>
    %129 = arith.select %125, %81, %120 : vector<256x1xi1>, vector<256x1xi32>
    %130 = arith.cmpi slt, %128, %89 : vector<256x1xi32>
    %131 = arith.cmpi eq, %128, %89 : vector<256x1xi32>
    %132 = arith.cmpi slt, %129, %90 : vector<256x1xi32>
    %133 = arith.andi %131, %132 : vector<256x1xi1>
    %134 = arith.ori %130, %133 : vector<256x1xi1>
    %135 = arith.select %134, %128, %89 : vector<256x1xi1>, vector<256x1xi32>
    %136 = arith.select %134, %129, %90 : vector<256x1xi1>, vector<256x1xi32>
    %cst_14 = arith.constant dense<2147483647> : vector<256xi32>
    %137 = vector.multi_reduction <minsi>, %102, %cst_14 [1] : vector<256x128xi32> to vector<256xi32>
    %138 = vector.shape_cast %137 : vector<256xi32> to vector<256x1xi32>
    %c127_i32_15 = arith.constant 127 : i32
    %139 = vector.broadcast %c127_i32_15 : i32 to vector<256x1xi32>
    %140 = arith.andi %138, %139 : vector<256x1xi32>
    %c-128_i32_16 = arith.constant -128 : i32
    %141 = vector.broadcast %c-128_i32_16 : i32 to vector<256x1xi32>
    %142 = arith.andi %138, %141 : vector<256x1xi32>
    %143 = vector.broadcast %34 : i32 to vector<256x1xi32>
    %144 = arith.addi %140, %143 : vector<256x1xi32>
    %145 = vector.broadcast %140 : vector<256x1xi32> to vector<256x128xi32>
    %146 = arith.cmpi eq, %25, %145 : vector<256x128xi32>
    %c2147483647_i32_17 = arith.constant 2147483647 : i32
    %147 = vector.broadcast %c2147483647_i32_17 : i32 to vector<256x128xi32>
    %148 = arith.select %146, %147, %102 : vector<256x128xi1>, vector<256x128xi32>
    %149 = arith.cmpi slt, %142, %108 : vector<256x1xi32>
    %150 = arith.cmpi eq, %142, %108 : vector<256x1xi32>
    %151 = arith.cmpi slt, %144, %109 : vector<256x1xi32>
    %152 = arith.andi %150, %151 : vector<256x1xi1>
    %153 = arith.ori %149, %152 : vector<256x1xi1>
    %154 = arith.select %153, %142, %108 : vector<256x1xi1>, vector<256x1xi32>
    %155 = arith.select %153, %144, %109 : vector<256x1xi1>, vector<256x1xi32>
    %156 = arith.select %153, %108, %142 : vector<256x1xi1>, vector<256x1xi32>
    %157 = arith.select %153, %109, %144 : vector<256x1xi1>, vector<256x1xi32>
    %158 = arith.cmpi slt, %156, %117 : vector<256x1xi32>
    %159 = arith.cmpi eq, %156, %117 : vector<256x1xi32>
    %160 = arith.cmpi slt, %157, %118 : vector<256x1xi32>
    %161 = arith.andi %159, %160 : vector<256x1xi1>
    %162 = arith.ori %158, %161 : vector<256x1xi1>
    %163 = arith.select %162, %156, %117 : vector<256x1xi1>, vector<256x1xi32>
    %164 = arith.select %162, %157, %118 : vector<256x1xi1>, vector<256x1xi32>
    %165 = arith.select %162, %117, %156 : vector<256x1xi1>, vector<256x1xi32>
    %166 = arith.select %162, %118, %157 : vector<256x1xi1>, vector<256x1xi32>
    %167 = arith.cmpi slt, %165, %126 : vector<256x1xi32>
    %168 = arith.cmpi eq, %165, %126 : vector<256x1xi32>
    %169 = arith.cmpi slt, %166, %127 : vector<256x1xi32>
    %170 = arith.andi %168, %169 : vector<256x1xi1>
    %171 = arith.ori %167, %170 : vector<256x1xi1>
    %172 = arith.select %171, %165, %126 : vector<256x1xi1>, vector<256x1xi32>
    %173 = arith.select %171, %166, %127 : vector<256x1xi1>, vector<256x1xi32>
    %174 = arith.select %171, %126, %165 : vector<256x1xi1>, vector<256x1xi32>
    %175 = arith.select %171, %127, %166 : vector<256x1xi1>, vector<256x1xi32>
    %176 = arith.cmpi slt, %174, %135 : vector<256x1xi32>
    %177 = arith.cmpi eq, %174, %135 : vector<256x1xi32>
    %178 = arith.cmpi slt, %175, %136 : vector<256x1xi32>
    %179 = arith.andi %177, %178 : vector<256x1xi1>
    %180 = arith.ori %176, %179 : vector<256x1xi1>
    %181 = arith.select %180, %174, %135 : vector<256x1xi1>, vector<256x1xi32>
    %182 = arith.select %180, %175, %136 : vector<256x1xi1>, vector<256x1xi32>
    %cst_18 = arith.constant dense<2147483647> : vector<256xi32>
    %183 = vector.multi_reduction <minsi>, %148, %cst_18 [1] : vector<256x128xi32> to vector<256xi32>
    %184 = vector.shape_cast %183 : vector<256xi32> to vector<256x1xi32>
    %c127_i32_19 = arith.constant 127 : i32
    %185 = vector.broadcast %c127_i32_19 : i32 to vector<256x1xi32>
    %186 = arith.andi %184, %185 : vector<256x1xi32>
    %c-128_i32_20 = arith.constant -128 : i32
    %187 = vector.broadcast %c-128_i32_20 : i32 to vector<256x1xi32>
    %188 = arith.andi %184, %187 : vector<256x1xi32>
    %189 = vector.broadcast %34 : i32 to vector<256x1xi32>
    %190 = arith.addi %186, %189 : vector<256x1xi32>
    %191 = arith.cmpi slt, %188, %154 : vector<256x1xi32>
    %192 = arith.cmpi eq, %188, %154 : vector<256x1xi32>
    %193 = arith.cmpi slt, %190, %155 : vector<256x1xi32>
    %194 = arith.andi %192, %193 : vector<256x1xi1>
    %195 = arith.ori %191, %194 : vector<256x1xi1>
    %196 = arith.select %195, %188, %154 : vector<256x1xi1>, vector<256x1xi32>
    %197 = arith.select %195, %190, %155 : vector<256x1xi1>, vector<256x1xi32>
    %198 = arith.select %195, %154, %188 : vector<256x1xi1>, vector<256x1xi32>
    %199 = arith.select %195, %155, %190 : vector<256x1xi1>, vector<256x1xi32>
    %200 = arith.cmpi slt, %198, %163 : vector<256x1xi32>
    %201 = arith.cmpi eq, %198, %163 : vector<256x1xi32>
    %202 = arith.cmpi slt, %199, %164 : vector<256x1xi32>
    %203 = arith.andi %201, %202 : vector<256x1xi1>
    %204 = arith.ori %200, %203 : vector<256x1xi1>
    %205 = arith.select %204, %198, %163 : vector<256x1xi1>, vector<256x1xi32>
    %206 = arith.select %204, %199, %164 : vector<256x1xi1>, vector<256x1xi32>
    %207 = arith.select %204, %163, %198 : vector<256x1xi1>, vector<256x1xi32>
    %208 = arith.select %204, %164, %199 : vector<256x1xi1>, vector<256x1xi32>
    %209 = arith.cmpi slt, %207, %172 : vector<256x1xi32>
    %210 = arith.cmpi eq, %207, %172 : vector<256x1xi32>
    %211 = arith.cmpi slt, %208, %173 : vector<256x1xi32>
    %212 = arith.andi %210, %211 : vector<256x1xi1>
    %213 = arith.ori %209, %212 : vector<256x1xi1>
    %214 = arith.select %213, %207, %172 : vector<256x1xi1>, vector<256x1xi32>
    %215 = arith.select %213, %208, %173 : vector<256x1xi1>, vector<256x1xi32>
    %216 = arith.select %213, %172, %207 : vector<256x1xi1>, vector<256x1xi32>
    %217 = arith.select %213, %173, %208 : vector<256x1xi1>, vector<256x1xi32>
    %218 = arith.cmpi slt, %216, %181 : vector<256x1xi32>
    %219 = arith.cmpi eq, %216, %181 : vector<256x1xi32>
    %220 = arith.cmpi slt, %217, %182 : vector<256x1xi32>
    %221 = arith.andi %219, %220 : vector<256x1xi1>
    %222 = arith.ori %218, %221 : vector<256x1xi1>
    %223 = arith.select %222, %216, %181 : vector<256x1xi1>, vector<256x1xi32>
    %224 = arith.select %222, %217, %182 : vector<256x1xi1>, vector<256x1xi32>
    %225 = tpu.concatenate %196, %205, %214, %223 in 1 : vector<256x1xi32>, vector<256x1xi32>, vector<256x1xi32>, vector<256x1xi32> -> vector<256x4xi32>
    %226 = tpu.concatenate %197, %206, %215, %224 in 1 : vector<256x1xi32>, vector<256x1xi32>, vector<256x1xi32>, vector<256x1xi32> -> vector<256x4xi32>
    %c0_21 = arith.constant 0 : index
    %c0_22 = arith.constant 0 : index
    %227 = vector.load %arg5[%c0_21, %c0_22] : memref<256x4xi32, #tpu.memory_space<vmem>>, vector<256x4xi32>
    tpu.vector_store %arg5[%c0_21, %c0_22], %225 {strides = array<i32>} : memref<256x4xi32, #tpu.memory_space<vmem>>, vector<256x4xi32>,
    %c0_23 = arith.constant 0 : index
    %c0_24 = arith.constant 0 : index
    %228 = vector.load %arg6[%c0_23, %c0_24] : memref<256x4xi32, #tpu.memory_space<vmem>>, vector<256x4xi32>
    tpu.vector_store %arg6[%c0_23, %c0_24], %226 {strides = array<i32>} : memref<256x4xi32, #tpu.memory_space<vmem>>, vector<256x4xi32>,
    %c0_i32_25 = arith.constant 0 : i32
    %229 = arith.cmpi eq, %arg1, %c0_i32_25 : i32
    %230 = arith.extui %229 : i1 to i32
    %c0_i32_26 = arith.constant 0 : i32
    %231 = arith.cmpi ne, %230, %c0_i32_26 : i32
    scf.if %231 {
      %c2130706432_i32_27 = arith.constant 2130706432 : i32
      %232 = vector.broadcast %c2130706432_i32_27 : i32 to vector<256x4xi32>
      %233 = arith.cmpi slt, %225, %232 : vector<256x4xi32>
      %c-1_i32 = arith.constant -1 : i32
      %234 = vector.broadcast %c-1_i32 : i32 to vector<256x4xi32>
      %235 = arith.select %233, %226, %234 : vector<256x4xi1>, vector<256x4xi32>
      %c0_28 = arith.constant 0 : index
      %c0_29 = arith.constant 0 : index
      %236 = vector.load %arg4[%c0_28, %c0_29] : memref<256x4xi32, #tpu.memory_space<vmem>>, vector<256x4xi32>
      tpu.vector_store %arg4[%c0_28, %c0_29], %235 {strides = array<i32>} : memref<256x4xi32, #tpu.memory_space<vmem>>, vector<256x4xi32>,
    } else {
    }
    return
  }
  func.func @transform_0(%arg0: i32, %arg1: i32) -> (i32, i32) {
    %c0_i32 = arith.constant 0 : i32
    %c0_i32_0 = arith.constant 0 : i32
    return %arg0, %c0_i32 : i32, i32
  }
  func.func @transform_1(%arg0: i32, %arg1: i32) -> (i32, i32) {
    %c0_i32 = arith.constant 0 : i32
    %c0_i32_0 = arith.constant 0 : i32
    return %c0_i32, %arg1 : i32, i32
  }
  func.func @transform_2(%arg0: i32, %arg1: i32) -> (i32, i32) {
    %c0_i32 = arith.constant 0 : i32
    %c0_i32_0 = arith.constant 0 : i32
    return %arg0, %c0_i32 : i32, i32
  }
}

</mosaic_0001>

<llo_original>
// kernel: tpu_custom_call.1
$region0: #{tpu_custom_call.1}
  #allocation0 [shape = 'u32[]', space=smem, size = 0x4, offset = 0x4, fixed_abs, tag = 'smem constant byte address 0x4 - core index']
  #allocation1 [shape = 'u32[144,128]{1,0:T(1,128)}', space=vmem, size = 0x12000, scoped, tag = 'internal scratch']
  #allocation2 [shape = 's32[256,4]{1,0:T(8,128)}', space=vmem, size = 0x20000, scoped, tag = 'scratch operand']
  #allocation3 [shape = 's32[256,4]{1,0:T(8,128)}', space=vmem, size = 0x20000, scoped, tag = 'scratch operand']
  %s0 = inlined_call_operand.vmem [shape: f32[512,3], index: 0, kind: input, shape index: {}]
  %s1 = inlined_call_operand.vmem [shape: f32[3,128], index: 1, kind: input, shape index: {}]
  %s2 = inlined_call_operand.vmem [shape: s32[512,4], index: 2, kind: output, shape index: {}]
  %s3 = sld [smem:[#allocation0]]
  $region49: #{tpu_custom_call.1} parent=0
    _
  %s5 = ssub.s32 1, %s3
  %s6 = scalar_select 0, %s5, %s3
  loop: start=0, step=1, limit=4
  $region2: #{tpu_custom_call.1} parent=0 // loop_pre_header
    _
  $region3: #{tpu_custom_call.1} parent=0 // loop_header
    %s8 = sphi 0, %s12
    %p9 = scmp.ge.s32.totalorder %s8, 4
    %s15 = sphi 0, %s27
    %s16 = sphi 0, %s23
    %s17 = sphi 0, %s15
    %s18 = sphi 0, %s16
    %s19 = sphi 0, %s17
    %s20 = sphi 0, %s18
    %s30 = sphi 0, %s32
    %s33 = sphi 0, %s30
    %s34 = sphi 0, %s33
    %s50 = sphi 0, %s34
    %s56 = sphi 0, %s58
    %s59 = sphi 0, %s56
    %s60 = sphi 0, %s59
    %s76 = sphi 0, %s60
    %s82 = sphi 0, %s84
    %s85 = sphi 0, %s82
    %s86 = sphi 0, %s85
    %s102 = sphi 0, %s86
  $region4: #{tpu_custom_call.1} parent=0 // loop_header_branch
    %11 = sbr.rel (%p9) target = $region8
  $region5: #{tpu_custom_call.1} parent=0 // loop_body
    %s13 = ssub.s32 %s8, 1
    %s14 = ssub.s32 %s8, 2
    %s21 = sadd.s32 1, %s16
    %p22 = scmp.ge.s32.totalorder %s21, 1
    %s23 = scalar_select %p22, 0, %s21
    %s24 = sadd.s32 1, %s15
    %s25 = scalar_select %p22, %s24, %s15
    %p26 = scmp.ge.s32.totalorder %s25, 2
    %s27 = scalar_select %p26, 0, %s25
    %s28 = ssub.s32 %s15, %s27
    %p29 = scmp.eq.s32.totalorder %s28, 0
    %s31 = sadd.s32 %s30, 1
    %s32 = scalar_select %p29, %s30, %s31
    %p35 = pneg %p29
    %p36 = scmp.eq.s32.totalorder %s8, 1
    %p37 = por %p35, %p36
    %p38 = scmp.ne.s32.totalorder %s30, %s33
    %p39 = scmp.eq.s32.totalorder %s8, 0
    %p40 = por %p38, %p39
    %p41 = scmp.ne.s32.totalorder %s30, %s33
    %p42 = scmp.eq.s32.totalorder %s13, 1
    %p43 = por %p41, %p42
    %p44 = scmp.ne.s32.totalorder %s33, %s34
    %p45 = scmp.eq.s32.totalorder %s13, 0
    %p46 = por %p44, %p45
    %p47 = scmp.ne.s32.totalorder %s33, %s34
    %p48 = scmp.eq.s32.totalorder %s14, 1
    %p49 = por %p47, %p48
    %p51 = scmp.ne.s32.totalorder %s34, %s50
    %p52 = scmp.eq.s32.totalorder %s14, 0
    %p53 = por %p51, %p52
    %s54 = ssub.s32 %s16, %s23
    %p55 = scmp.eq.s32.totalorder %s54, 0
    %s57 = sadd.s32 %s56, 1
    %s58 = scalar_select %p55, %s56, %s57
    %p61 = pneg %p55
    %p62 = scmp.eq.s32.totalorder %s8, 1
    %p63 = por %p61, %p62
    %p64 = scmp.ne.s32.totalorder %s56, %s59
    %p65 = scmp.eq.s32.totalorder %s8, 0
    %p66 = por %p64, %p65
    %p67 = scmp.ne.s32.totalorder %s56, %s59
    %p68 = scmp.eq.s32.totalorder %s13, 1
    %p69 = por %p67, %p68
    %p70 = scmp.ne.s32.totalorder %s59, %s60
    %p71 = scmp.eq.s32.totalorder %s13, 0
    %p72 = por %p70, %p71
    %p73 = scmp.ne.s32.totalorder %s59, %s60
    %p74 = scmp.eq.s32.totalorder %s14, 1
    %p75 = por %p73, %p74
    %p77 = scmp.ne.s32.totalorder %s60, %s76
    %p78 = scmp.eq.s32.totalorder %s14, 0
    %p79 = por %p77, %p78
    %s80 = ssub.s32 %s15, %s27
    %p81 = scmp.eq.s32.totalorder %s80, 0
    %s83 = sadd.s32 %s82, 1
    %s84 = scalar_select %p81, %s82, %s83
    %p87 = pneg %p81
    %p88 = scmp.eq.s32.totalorder %s8, 1
    %p89 = por %p87, %p88
    %p90 = scmp.ne.s32.totalorder %s82, %s85
    %p91 = scmp.eq.s32.totalorder %s8, 0
    %p92 = por %p90, %p91
    %p93 = scmp.ne.s32.totalorder %s82, %s85
    %p94 = scmp.eq.s32.totalorder %s13, 1
    %p95 = por %p93, %p94
    %p96 = scmp.ne.s32.totalorder %s85, %s86
    %p97 = scmp.eq.s32.totalorder %s13, 0
    %p98 = por %p96, %p97
    %p99 = scmp.ne.s32.totalorder %s85, %s86
    %p100 = scmp.eq.s32.totalorder %s14, 1
    %p101 = por %p99, %p100
    %p103 = scmp.ne.s32.totalorder %s86, %s102
    %p104 = scmp.eq.s32.totalorder %s14, 0
    %p105 = por %p103, %p104
    %p106 = scmp.le.s32.totalorder 1, %s8
    %p107 = scmp.lt.s32.totalorder %s8, 3
    %p108 = pnand %p106, %p107
    %p109 = pneg %p108
    // Predicated region
    $region9: #{tpu_custom_call.1} parent=5 // pred_check
      _
    $region10: #{tpu_custom_call.1} parent=5 // pred_check_branch
      %111 = sbr.rel (%p108) target = $region12
    $region11: #{tpu_custom_call.1} parent=5 // pred_region
      %s112 = ssub.s32 %s8, 1
      // Predicated region
      $region13: #{tpu_custom_call.1} parent=11 // pred_check
        %p113 = pneg %p72
      $region14: #{tpu_custom_call.1} parent=11 // pred_check_branch
        %115 = sbr.rel (%p113) target = $region16
      $region15: #{tpu_custom_call.1} parent=11 // pred_region
        %p116 = scmp.lt.s32.totalorder %s18, 0
        %s117 = scalar_select %p116, %s18, 0
        %s118 = smul.addr %s117, 4
        %s119 = scalar_lea.vmem %s1, %s118
      $region16: #{tpu_custom_call.1} parent=11 // pred_fallthru
        _
    $region12: #{tpu_custom_call.1} parent=5 // pred_fallthru
      _
    %p120 = scmp.lt.s32.totalorder %s8, 2
    // Predicated region
    $region17: #{tpu_custom_call.1} parent=5 // pred_check
      %p121 = pneg %p120
    $region18: #{tpu_custom_call.1} parent=5 // pred_check_branch
      %123 = sbr.rel (%p121) target = $region20
    $region19: #{tpu_custom_call.1} parent=5 // pred_region
      // Predicated region
      $region21: #{tpu_custom_call.1} parent=19 // pred_check
        %p124 = pneg %p40
      $region22: #{tpu_custom_call.1} parent=19 // pred_check_branch
        %126 = sbr.rel (%p124) target = $region24
      $region23: #{tpu_custom_call.1} parent=19 // pred_region
        %s127 = smul.u32 32, %s15
        %p128 = scmp.lt.s32.totalorder %s127, 63
        %s129 = scalar_select %p128, %s127, 63
        %s130 = smul.addr %s129, 8
        %s131 = scalar_lea.vmem %s0, %s130
        %s132 = smul.u32 32, %s15
      $region24: #{tpu_custom_call.1} parent=19 // pred_fallthru
        _
    $region20: #{tpu_custom_call.1} parent=5 // pred_fallthru
      _
    %p133 = scmp.le.s32.totalorder 1, %s8
    %p134 = scmp.lt.s32.totalorder %s8, 3
    %p135 = pnand %p133, %p134
    %p136 = pneg %p135
    // Predicated region
    $region25: #{tpu_custom_call.1} parent=5 // pred_check
      _
    $region26: #{tpu_custom_call.1} parent=5 // pred_check_branch
      %138 = sbr.rel (%p135) target = $region28
    $region27: #{tpu_custom_call.1} parent=5 // pred_region
      %s139 = ssub.s32 %s8, 1
      %s140 = smul.u32 32, %s17
      %p141 = scmp.lt.s32.totalorder %s140, 63
      %s142 = scalar_select %p141, %s140, 63
      %s143 = smul.addr %s142, 8
      %s144 = scalar_lea.vmem %s0, %s143
      %p145 = pneg %p46
      %p146 = pneg %p43
      %p147 = scmp.lt.s32.totalorder %s18, 0
      %s148 = scalar_select %p147, %s18, 0
      %s149 = smul.addr %s148, 4
      %s150 = scalar_lea.vmem %s1, %s149
      %p151 = pneg %p72
      %p152 = pneg %p69
      %p153 = pneg %p98
      %p154 = pneg %p95
      %s155 = smul.u32 32, %s17
      %p156 = scmp.lt.s32.totalorder %s155, 63
      %s157 = scalar_select %p156, %s155, 63
      %s158 = smul.addr %s157, 8
      %s159 = scalar_lea.vmem %s2, %s158
      %s160 = smul.u32 32, %s17
      %p161 = scmp.lt.s32.totalorder %s160, 63
      %s162 = scalar_select %p161, %s160, 63
      %s163 = smul.addr %s162, 8
      %s164 = scalar_lea.vmem %s0, %s163
      %s165 = smul.u32 32, %s17
      %p166 = scmp.lt.s32.totalorder %s18, 0
      %s167 = scalar_select %p166, %s18, 0
      %s168 = smul.addr %s167, 4
      %s169 = scalar_lea.vmem %s1, %s168
      %s170 = smul.u32 32, %s17
      %p171 = scmp.lt.s32.totalorder %s170, 63
      %s172 = scalar_select %p171, %s170, 63
      %s173 = smul.addr %s172, 8
      %s174 = scalar_lea.vmem %s2, %s173
      %s175 = smul.u32 32, %s17
      %p176 = scmp.eq.s32.totalorder %s18, 0
      // Predicated region
      $region29: #{tpu_custom_call.1} parent=27 // pred_check
        %p177 = pneg %p176
      $region30: #{tpu_custom_call.1} parent=27 // pred_check_branch
        %179 = sbr.rel (%p177) target = $region32
      $region31: #{tpu_custom_call.1} parent=27 // pred_region
        %vm180 = vcmask 31744
        %181 = vst.msk [vmem:[#allocation2] sm:$0xff] %vm180, 2130706432
        %182 = vst.msk [vmem:[#allocation2 + $0x8] sm:$0xff] %vm180, 2130706432
        %183 = vst.msk [vmem:[#allocation2 + $0x10] sm:$0xff] %vm180, 2130706432
        %184 = vst.msk [vmem:[#allocation2 + $0x18] sm:$0xff] %vm180, 2130706432
        %185 = vst.msk [vmem:[#allocation2 + $0x20] sm:$0xff] %vm180, 2130706432
        %186 = vst.msk [vmem:[#allocation2 + $0x28] sm:$0xff] %vm180, 2130706432
        %187 = vst.msk [vmem:[#allocation2 + $0x30] sm:$0xff] %vm180, 2130706432
        %188 = vst.msk [vmem:[#allocation2 + $0x38] sm:$0xff] %vm180, 2130706432
        %189 = vst.msk [vmem:[#allocation2 + $0x40] sm:$0xff] %vm180, 2130706432
        %190 = vst.msk [vmem:[#allocation2 + $0x48] sm:$0xff] %vm180, 2130706432
        %191 = vst.msk [vmem:[#allocation2 + $0x50] sm:$0xff] %vm180, 2130706432
        %192 = vst.msk [vmem:[#allocation2 + $0x58] sm:$0xff] %vm180, 2130706432
        %193 = vst.msk [vmem:[#allocation2 + $0x60] sm:$0xff] %vm180, 2130706432
        %194 = vst.msk [vmem:[#allocation2 + $0x68] sm:$0xff] %vm180, 2130706432
        %195 = vst.msk [vmem:[#allocation2 + $0x70] sm:$0xff] %vm180, 2130706432
        %196 = vst.msk [vmem:[#allocation2 + $0x78] sm:$0xff] %vm180, 2130706432
        %197 = vst.msk [vmem:[#allocation2 + $0x80] sm:$0xff] %vm180, 2130706432
        %198 = vst.msk [vmem:[#allocation2 + $0x88] sm:$0xff] %vm180, 2130706432
        %199 = vst.msk [vmem:[#allocation2 + $0x90] sm:$0xff] %vm180, 2130706432
        %200 = vst.msk [vmem:[#allocation2 + $0x98] sm:$0xff] %vm180, 2130706432
        %201 = vst.msk [vmem:[#allocation2 + $0xa0] sm:$0xff] %vm180, 2130706432
        %202 = vst.msk [vmem:[#allocation2 + $0xa8] sm:$0xff] %vm180, 2130706432
        %203 = vst.msk [vmem:[#allocation2 + $0xb0] sm:$0xff] %vm180, 2130706432
        %204 = vst.msk [vmem:[#allocation2 + $0xb8] sm:$0xff] %vm180, 2130706432
        %205 = vst.msk [vmem:[#allocation2 + $0xc0] sm:$0xff] %vm180, 2130706432
        %206 = vst.msk [vmem:[#allocation2 + $0xc8] sm:$0xff] %vm180, 2130706432
        %207 = vst.msk [vmem:[#allocation2 + $0xd0] sm:$0xff] %vm180, 2130706432
        %208 = vst.msk [vmem:[#allocation2 + $0xd8] sm:$0xff] %vm180, 2130706432
        %209 = vst.msk [vmem:[#allocation2 + $0xe0] sm:$0xff] %vm180, 2130706432
        %210 = vst.msk [vmem:[#allocation2 + $0xe8] sm:$0xff] %vm180, 2130706432
        %211 = vst.msk [vmem:[#allocation2 + $0xf0] sm:$0xff] %vm180, 2130706432
        %212 = vst.msk [vmem:[#allocation2 + $0xf8] sm:$0xff] %vm180, 2130706432
        %213 = vst.msk [vmem:[#allocation3] sm:$0xff] %vm180, 2147483647
        %214 = vst.msk [vmem:[#allocation3 + $0x8] sm:$0xff] %vm180, 2147483647
        %215 = vst.msk [vmem:[#allocation3 + $0x10] sm:$0xff] %vm180, 2147483647
        %216 = vst.msk [vmem:[#allocation3 + $0x18] sm:$0xff] %vm180, 2147483647
        %217 = vst.msk [vmem:[#allocation3 + $0x20] sm:$0xff] %vm180, 2147483647
        %218 = vst.msk [vmem:[#allocation3 + $0x28] sm:$0xff] %vm180, 2147483647
        %219 = vst.msk [vmem:[#allocation3 + $0x30] sm:$0xff] %vm180, 2147483647
        %220 = vst.msk [vmem:[#allocation3 + $0x38] sm:$0xff] %vm180, 2147483647
        %221 = vst.msk [vmem:[#allocation3 + $0x40] sm:$0xff] %vm180, 2147483647
        %222 = vst.msk [vmem:[#allocation3 + $0x48] sm:$0xff] %vm180, 2147483647
        %223 = vst.msk [vmem:[#allocation3 + $0x50] sm:$0xff] %vm180, 2147483647
        %224 = vst.msk [vmem:[#allocation3 + $0x58] sm:$0xff] %vm180, 2147483647
        %225 = vst.msk [vmem:[#allocation3 + $0x60] sm:$0xff] %vm180, 2147483647
        %226 = vst.msk [vmem:[#allocation3 + $0x68] sm:$0xff] %vm180, 2147483647
        %227 = vst.msk [vmem:[#allocation3 + $0x70] sm:$0xff] %vm180, 2147483647
        %228 = vst.msk [vmem:[#allocation3 + $0x78] sm:$0xff] %vm180, 2147483647
        %229 = vst.msk [vmem:[#allocation3 + $0x80] sm:$0xff] %vm180, 2147483647
        %230 = vst.msk [vmem:[#allocation3 + $0x88] sm:$0xff] %vm180, 2147483647
        %231 = vst.msk [vmem:[#allocation3 + $0x90] sm:$0xff] %vm180, 2147483647
        %232 = vst.msk [vmem:[#allocation3 + $0x98] sm:$0xff] %vm180, 2147483647
        %233 = vst.msk [vmem:[#allocation3 + $0xa0] sm:$0xff] %vm180, 2147483647
        %234 = vst.msk [vmem:[#allocation3 + $0xa8] sm:$0xff] %vm180, 2147483647
        %235 = vst.msk [vmem:[#allocation3 + $0xb0] sm:$0xff] %vm180, 2147483647
        %236 = vst.msk [vmem:[#allocation3 + $0xb8] sm:$0xff] %vm180, 2147483647
        %237 = vst.msk [vmem:[#allocation3 + $0xc0] sm:$0xff] %vm180, 2147483647
        %238 = vst.msk [vmem:[#allocation3 + $0xc8] sm:$0xff] %vm180, 2147483647
        %239 = vst.msk [vmem:[#allocation3 + $0xd0] sm:$0xff] %vm180, 2147483647
        %240 = vst.msk [vmem:[#allocation3 + $0xd8] sm:$0xff] %vm180, 2147483647
        %241 = vst.msk [vmem:[#allocation3 + $0xe0] sm:$0xff] %vm180, 2147483647
        %242 = vst.msk [vmem:[#allocation3 + $0xe8] sm:$0xff] %vm180, 2147483647
        %243 = vst.msk [vmem:[#allocation3 + $0xf0] sm:$0xff] %vm180, 2147483647
        %244 = vst.msk [vmem:[#allocation3 + $0xf8] sm:$0xff] %vm180, 2147483647
      $region32: #{tpu_custom_call.1} parent=27 // pred_fallthru
        _
      %v245 = vld [vmem:[%s164] sm:$0xff]
      %v246 = vld [vmem:[%s164 + $0x8] sm:$0xff]
      %v247 = vld [vmem:[%s164 + $0x10] sm:$0xff]
      %v248 = vld [vmem:[%s164 + $0x18] sm:$0xff]
      %v249 = vld [vmem:[%s164 + $0x20] sm:$0xff]
      %v250 = vld [vmem:[%s164 + $0x28] sm:$0xff]
      %v251 = vld [vmem:[%s164 + $0x30] sm:$0xff]
      %v252 = vld [vmem:[%s164 + $0x38] sm:$0xff]
      %v253 = vld [vmem:[%s164 + $0x40] sm:$0xff]
      %v254 = vld [vmem:[%s164 + $0x48] sm:$0xff]
      %v255 = vld [vmem:[%s164 + $0x50] sm:$0xff]
      %v256 = vld [vmem:[%s164 + $0x58] sm:$0xff]
      %v257 = vld [vmem:[%s164 + $0x60] sm:$0xff]
      %v258 = vld [vmem:[%s164 + $0x68] sm:$0xff]
      %v259 = vld [vmem:[%s164 + $0x70] sm:$0xff]
      %v260 = vld [vmem:[%s164 + $0x78] sm:$0xff]
      %v261 = vld [vmem:[%s164 + $0x80] sm:$0xff]
      %v262 = vld [vmem:[%s164 + $0x88] sm:$0xff]
      %v263 = vld [vmem:[%s164 + $0x90] sm:$0xff]
      %v264 = vld [vmem:[%s164 + $0x98] sm:$0xff]
      %v265 = vld [vmem:[%s164 + $0xa0] sm:$0xff]
      %v266 = vld [vmem:[%s164 + $0xa8] sm:$0xff]
      %v267 = vld [vmem:[%s164 + $0xb0] sm:$0xff]
      %v268 = vld [vmem:[%s164 + $0xb8] sm:$0xff]
      %v269 = vld [vmem:[%s164 + $0xc0] sm:$0xff]
      %v270 = vld [vmem:[%s164 + $0xc8] sm:$0xff]
      %v271 = vld [vmem:[%s164 + $0xd0] sm:$0xff]
      %v272 = vld [vmem:[%s164 + $0xd8] sm:$0xff]
      %v273 = vld [vmem:[%s164 + $0xe0] sm:$0xff]
      %v274 = vld [vmem:[%s164 + $0xe8] sm:$0xff]
      %v275 = vld [vmem:[%s164 + $0xf0] sm:$0xff]
      %v276 = vld [vmem:[%s164 + $0xf8] sm:$0xff]
      %v277 = vld [vmem:[%s169] sm:$0x7]
      %279 = vset.pattern.permute.xlu0 0
      %280 = vperm.xlu0 %279, %v245
      %v281 = vpop.permute.xlu0 %280
      %284 = vset.pattern.permute.xlu0 0
      %285 = vperm.xlu0 %284, %v246
      %v286 = vpop.permute.xlu0 %285
      %289 = vset.pattern.permute.xlu0 0
      %290 = vperm.xlu0 %289, %v247
      %v291 = vpop.permute.xlu0 %290
      %294 = vset.pattern.permute.xlu0 0
      %295 = vperm.xlu0 %294, %v248
      %v296 = vpop.permute.xlu0 %295
      %299 = vset.pattern.permute.xlu0 0
      %300 = vperm.xlu0 %299, %v249
      %v301 = vpop.permute.xlu0 %300
      %304 = vset.pattern.permute.xlu0 0
      %305 = vperm.xlu0 %304, %v250
      %v306 = vpop.permute.xlu0 %305
      %309 = vset.pattern.permute.xlu0 0
      %310 = vperm.xlu0 %309, %v251
      %v311 = vpop.permute.xlu0 %310
      %314 = vset.pattern.permute.xlu0 0
      %315 = vperm.xlu0 %314, %v252
      %v316 = vpop.permute.xlu0 %315
      %319 = vset.pattern.permute.xlu0 0
      %320 = vperm.xlu0 %319, %v253
      %v321 = vpop.permute.xlu0 %320
      %324 = vset.pattern.permute.xlu0 0
      %325 = vperm.xlu0 %324, %v254
      %v326 = vpop.permute.xlu0 %325
      %329 = vset.pattern.permute.xlu0 0
      %330 = vperm.xlu0 %329, %v255
      %v331 = vpop.permute.xlu0 %330
      %334 = vset.pattern.permute.xlu0 0
      %335 = vperm.xlu0 %334, %v256
      %v336 = vpop.permute.xlu0 %335
      %339 = vset.pattern.permute.xlu0 0
      %340 = vperm.xlu0 %339, %v257
      %v341 = vpop.permute.xlu0 %340
      %344 = vset.pattern.permute.xlu0 0
      %345 = vperm.xlu0 %344, %v258
      %v346 = vpop.permute.xlu0 %345
      %349 = vset.pattern.permute.xlu0 0
      %350 = vperm.xlu0 %349, %v259
      %v351 = vpop.permute.xlu0 %350
      %354 = vset.pattern.permute.xlu0 0
      %355 = vperm.xlu0 %354, %v260
      %v356 = vpop.permute.xlu0 %355
      %359 = vset.pattern.permute.xlu0 0
      %360 = vperm.xlu0 %359, %v261
      %v361 = vpop.permute.xlu0 %360
      %364 = vset.pattern.permute.xlu0 0
      %365 = vperm.xlu0 %364, %v262
      %v366 = vpop.permute.xlu0 %365
      %369 = vset.pattern.permute.xlu0 0
      %370 = vperm.xlu0 %369, %v263
      %v371 = vpop.permute.xlu0 %370
      %374 = vset.pattern.permute.xlu0 0
      %375 = vperm.xlu0 %374, %v264
      %v376 = vpop.permute.xlu0 %375
      %379 = vset.pattern.permute.xlu0 0
      %380 = vperm.xlu0 %379, %v265
      %v381 = vpop.permute.xlu0 %380
      %384 = vset.pattern.permute.xlu0 0
      %385 = vperm.xlu0 %384, %v266
      %v386 = vpop.permute.xlu0 %385
      %389 = vset.pattern.permute.xlu0 0
      %390 = vperm.xlu0 %389, %v267
      %v391 = vpop.permute.xlu0 %390
      %394 = vset.pattern.permute.xlu0 0
      %395 = vperm.xlu0 %394, %v268
      %v396 = vpop.permute.xlu0 %395
      %399 = vset.pattern.permute.xlu0 0
      %400 = vperm.xlu0 %399, %v269
      %v401 = vpop.permute.xlu0 %400
      %404 = vset.pattern.permute.xlu0 0
      %405 = vperm.xlu0 %404, %v270
      %v406 = vpop.permute.xlu0 %405
      %409 = vset.pattern.permute.xlu0 0
      %410 = vperm.xlu0 %409, %v271
      %v411 = vpop.permute.xlu0 %410
      %414 = vset.pattern.permute.xlu0 0
      %415 = vperm.xlu0 %414, %v272
      %v416 = vpop.permute.xlu0 %415
      %419 = vset.pattern.permute.xlu0 0
      %420 = vperm.xlu0 %419, %v273
      %v421 = vpop.permute.xlu0 %420
      %424 = vset.pattern.permute.xlu0 0
      %425 = vperm.xlu0 %424, %v274
      %v426 = vpop.permute.xlu0 %425
      %429 = vset.pattern.permute.xlu0 0
      %430 = vperm.xlu0 %429, %v275
      %v431 = vpop.permute.xlu0 %430
      %434 = vset.pattern.permute.xlu0 0
      %435 = vperm.xlu0 %434, %v276
      %v436 = vpop.permute.xlu0 %435
      %v438 = vlaneseq
      %v439 = vshrl.u32 %v438, 7
      %v440 = vsub.s32 0, %v439
      %v441 = vrot.slane %v277, %v440
      %v442 = vsub.f32 %v281, %v441
      %v443 = vsub.f32 %v286, %v441
      %v444 = vsub.f32 %v291, %v441
      %v445 = vsub.f32 %v296, %v441
      %v446 = vsub.f32 %v301, %v441
      %v447 = vsub.f32 %v306, %v441
      %v448 = vsub.f32 %v311, %v441
      %v449 = vsub.f32 %v316, %v441
      %v450 = vsub.f32 %v321, %v441
      %v451 = vsub.f32 %v326, %v441
      %v452 = vsub.f32 %v331, %v441
      %v453 = vsub.f32 %v336, %v441
      %v454 = vsub.f32 %v341, %v441
      %v455 = vsub.f32 %v346, %v441
      %v456 = vsub.f32 %v351, %v441
      %v457 = vsub.f32 %v356, %v441
      %v458 = vsub.f32 %v361, %v441
      %v459 = vsub.f32 %v366, %v441
      %v460 = vsub.f32 %v371, %v441
      %v461 = vsub.f32 %v376, %v441
      %v462 = vsub.f32 %v381, %v441
      %v463 = vsub.f32 %v386, %v441
      %v464 = vsub.f32 %v391, %v441
      %v465 = vsub.f32 %v396, %v441
      %v466 = vsub.f32 %v401, %v441
      %v467 = vsub.f32 %v406, %v441
      %v468 = vsub.f32 %v411, %v441
      %v469 = vsub.f32 %v416, %v441
      %v470 = vsub.f32 %v421, %v441
      %v471 = vsub.f32 %v426, %v441
      %v472 = vsub.f32 %v431, %v441
      %v473 = vsub.f32 %v436, %v441
      %474 = vset.pattern.permute.xlu0 1
      %475 = vperm.xlu0 %474, %v245
      %v476 = vpop.permute.xlu0 %475
      %478 = vset.pattern.permute.xlu0 1
      %479 = vperm.xlu0 %478, %v246
      %v480 = vpop.permute.xlu0 %479
      %482 = vset.pattern.permute.xlu0 1
      %483 = vperm.xlu0 %482, %v247
      %v484 = vpop.permute.xlu0 %483
      %486 = vset.pattern.permute.xlu0 1
      %487 = vperm.xlu0 %486, %v248
      %v488 = vpop.permute.xlu0 %487
      %490 = vset.pattern.permute.xlu0 1
      %491 = vperm.xlu0 %490, %v249
      %v492 = vpop.permute.xlu0 %491
      %494 = vset.pattern.permute.xlu0 1
      %495 = vperm.xlu0 %494, %v250
      %v496 = vpop.permute.xlu0 %495
      %498 = vset.pattern.permute.xlu0 1
      %499 = vperm.xlu0 %498, %v251
      %v500 = vpop.permute.xlu0 %499
      %502 = vset.pattern.permute.xlu0 1
      %503 = vperm.xlu0 %502, %v252
      %v504 = vpop.permute.xlu0 %503
      %506 = vset.pattern.permute.xlu0 1
      %507 = vperm.xlu0 %506, %v253
      %v508 = vpop.permute.xlu0 %507
      %510 = vset.pattern.permute.xlu0 1
      %511 = vperm.xlu0 %510, %v254
      %v512 = vpop.permute.xlu0 %511
      %514 = vset.pattern.permute.xlu0 1
      %515 = vperm.xlu0 %514, %v255
      %v516 = vpop.permute.xlu0 %515
      %518 = vset.pattern.permute.xlu0 1
      %519 = vperm.xlu0 %518, %v256
      %v520 = vpop.permute.xlu0 %519
      %522 = vset.pattern.permute.xlu0 1
      %523 = vperm.xlu0 %522, %v257
      %v524 = vpop.permute.xlu0 %523
      %526 = vset.pattern.permute.xlu0 1
      %527 = vperm.xlu0 %526, %v258
      %v528 = vpop.permute.xlu0 %527
      %530 = vset.pattern.permute.xlu0 1
      %531 = vperm.xlu0 %530, %v259
      %v532 = vpop.permute.xlu0 %531
      %534 = vset.pattern.permute.xlu0 1
      %535 = vperm.xlu0 %534, %v260
      %v536 = vpop.permute.xlu0 %535
      %538 = vset.pattern.permute.xlu0 1
      %539 = vperm.xlu0 %538, %v261
      %v540 = vpop.permute.xlu0 %539
      %542 = vset.pattern.permute.xlu0 1
      %543 = vperm.xlu0 %542, %v262
      %v544 = vpop.permute.xlu0 %543
      %546 = vset.pattern.permute.xlu0 1
      %547 = vperm.xlu0 %546, %v263
      %v548 = vpop.permute.xlu0 %547
      %550 = vset.pattern.permute.xlu0 1
      %551 = vperm.xlu0 %550, %v264
      %v552 = vpop.permute.xlu0 %551
      %554 = vset.pattern.permute.xlu0 1
      %555 = vperm.xlu0 %554, %v265
      %v556 = vpop.permute.xlu0 %555
      %558 = vset.pattern.permute.xlu0 1
      %559 = vperm.xlu0 %558, %v266
      %v560 = vpop.permute.xlu0 %559
      %562 = vset.pattern.permute.xlu0 1
      %563 = vperm.xlu0 %562, %v267
      %v564 = vpop.permute.xlu0 %563
      %566 = vset.pattern.permute.xlu0 1
      %567 = vperm.xlu0 %566, %v268
      %v568 = vpop.permute.xlu0 %567
      %570 = vset.pattern.permute.xlu0 1
      %571 = vperm.xlu0 %570, %v269
      %v572 = vpop.permute.xlu0 %571
      %574 = vset.pattern.permute.xlu0 1
      %575 = vperm.xlu0 %574, %v270
      %v576 = vpop.permute.xlu0 %575
      %578 = vset.pattern.permute.xlu0 1
      %579 = vperm.xlu0 %578, %v271
      %v580 = vpop.permute.xlu0 %579
      %582 = vset.pattern.permute.xlu0 1
      %583 = vperm.xlu0 %582, %v272
      %v584 = vpop.permute.xlu0 %583
      %586 = vset.pattern.permute.xlu0 1
      %587 = vperm.xlu0 %586, %v273
      %v588 = vpop.permute.xlu0 %587
      %590 = vset.pattern.permute.xlu0 1
      %591 = vperm.xlu0 %590, %v274
      %v592 = vpop.permute.xlu0 %591
      %594 = vset.pattern.permute.xlu0 1
      %595 = vperm.xlu0 %594, %v275
      %v596 = vpop.permute.xlu0 %595
      %598 = vset.pattern.permute.xlu0 1
      %599 = vperm.xlu0 %598, %v276
      %v600 = vpop.permute.xlu0 %599
      %v602 = vlaneseq
      %v603 = vshrl.u32 %v602, 7
      %v604 = vsub.s32 1, %v603
      %v605 = vrot.slane %v277, %v604
      %v606 = vsub.f32 %v476, %v605
      %v607 = vsub.f32 %v480, %v605
      %v608 = vsub.f32 %v484, %v605
      %v609 = vsub.f32 %v488, %v605
      %v610 = vsub.f32 %v492, %v605
      %v611 = vsub.f32 %v496, %v605
      %v612 = vsub.f32 %v500, %v605
      %v613 = vsub.f32 %v504, %v605
      %v614 = vsub.f32 %v508, %v605
      %v615 = vsub.f32 %v512, %v605
      %v616 = vsub.f32 %v516, %v605
      %v617 = vsub.f32 %v520, %v605
      %v618 = vsub.f32 %v524, %v605
      %v619 = vsub.f32 %v528, %v605
      %v620 = vsub.f32 %v532, %v605
      %v621 = vsub.f32 %v536, %v605
      %v622 = vsub.f32 %v540, %v605
      %v623 = vsub.f32 %v544, %v605
      %v624 = vsub.f32 %v548, %v605
      %v625 = vsub.f32 %v552, %v605
      %v626 = vsub.f32 %v556, %v605
      %v627 = vsub.f32 %v560, %v605
      %v628 = vsub.f32 %v564, %v605
      %v629 = vsub.f32 %v568, %v605
      %v630 = vsub.f32 %v572, %v605
      %v631 = vsub.f32 %v576, %v605
      %v632 = vsub.f32 %v580, %v605
      %v633 = vsub.f32 %v584, %v605
      %v634 = vsub.f32 %v588, %v605
      %v635 = vsub.f32 %v592, %v605
      %v636 = vsub.f32 %v596, %v605
      %v637 = vsub.f32 %v600, %v605
      %638 = vset.pattern.permute.xlu0 2
      %639 = vperm.xlu0 %638, %v245
      %v640 = vpop.permute.xlu0 %639
      %642 = vset.pattern.permute.xlu0 2
      %643 = vperm.xlu0 %642, %v246
      %v644 = vpop.permute.xlu0 %643
      %646 = vset.pattern.permute.xlu0 2
      %647 = vperm.xlu0 %646, %v247
      %v648 = vpop.permute.xlu0 %647
      %650 = vset.pattern.permute.xlu0 2
      %651 = vperm.xlu0 %650, %v248
      %v652 = vpop.permute.xlu0 %651
      %654 = vset.pattern.permute.xlu0 2
      %655 = vperm.xlu0 %654, %v249
      %v656 = vpop.permute.xlu0 %655
      %658 = vset.pattern.permute.xlu0 2
      %659 = vperm.xlu0 %658, %v250
      %v660 = vpop.permute.xlu0 %659
      %662 = vset.pattern.permute.xlu0 2
      %663 = vperm.xlu0 %662, %v251
      %v664 = vpop.permute.xlu0 %663
      %666 = vset.pattern.permute.xlu0 2
      %667 = vperm.xlu0 %666, %v252
      %v668 = vpop.permute.xlu0 %667
      %670 = vset.pattern.permute.xlu0 2
      %671 = vperm.xlu0 %670, %v253
      %v672 = vpop.permute.xlu0 %671
      %674 = vset.pattern.permute.xlu0 2
      %675 = vperm.xlu0 %674, %v254
      %v676 = vpop.permute.xlu0 %675
      %678 = vset.pattern.permute.xlu0 2
      %679 = vperm.xlu0 %678, %v255
      %v680 = vpop.permute.xlu0 %679
      %682 = vset.pattern.permute.xlu0 2
      %683 = vperm.xlu0 %682, %v256
      %v684 = vpop.permute.xlu0 %683
      %686 = vset.pattern.permute.xlu0 2
      %687 = vperm.xlu0 %686, %v257
      %v688 = vpop.permute.xlu0 %687
      %690 = vset.pattern.permute.xlu0 2
      %691 = vperm.xlu0 %690, %v258
      %v692 = vpop.permute.xlu0 %691
      %694 = vset.pattern.permute.xlu0 2
      %695 = vperm.xlu0 %694, %v259
      %v696 = vpop.permute.xlu0 %695
      %698 = vset.pattern.permute.xlu0 2
      %699 = vperm.xlu0 %698, %v260
      %v700 = vpop.permute.xlu0 %699
      %702 = vset.pattern.permute.xlu0 2
      %703 = vperm.xlu0 %702, %v261
      %v704 = vpop.permute.xlu0 %703
      %706 = vset.pattern.permute.xlu0 2
      %707 = vperm.xlu0 %706, %v262
      %v708 = vpop.permute.xlu0 %707
      %710 = vset.pattern.permute.xlu0 2
      %711 = vperm.xlu0 %710, %v263
      %v712 = vpop.permute.xlu0 %711
      %714 = vset.pattern.permute.xlu0 2
      %715 = vperm.xlu0 %714, %v264
      %v716 = vpop.permute.xlu0 %715
      %718 = vset.pattern.permute.xlu0 2
      %719 = vperm.xlu0 %718, %v265
      %v720 = vpop.permute.xlu0 %719
      %722 = vset.pattern.permute.xlu0 2
      %723 = vperm.xlu0 %722, %v266
      %v724 = vpop.permute.xlu0 %723
      %726 = vset.pattern.permute.xlu0 2
      %727 = vperm.xlu0 %726, %v267
      %v728 = vpop.permute.xlu0 %727
      %730 = vset.pattern.permute.xlu0 2
      %731 = vperm.xlu0 %730, %v268
      %v732 = vpop.permute.xlu0 %731
      %734 = vset.pattern.permute.xlu0 2
      %735 = vperm.xlu0 %734, %v269
      %v736 = vpop.permute.xlu0 %735
      %738 = vset.pattern.permute.xlu0 2
      %739 = vperm.xlu0 %738, %v270
      %v740 = vpop.permute.xlu0 %739
      %742 = vset.pattern.permute.xlu0 2
      %743 = vperm.xlu0 %742, %v271
      %v744 = vpop.permute.xlu0 %743
      %746 = vset.pattern.permute.xlu0 2
      %747 = vperm.xlu0 %746, %v272
      %v748 = vpop.permute.xlu0 %747
      %750 = vset.pattern.permute.xlu0 2
      %751 = vperm.xlu0 %750, %v273
      %v752 = vpop.permute.xlu0 %751
      %754 = vset.pattern.permute.xlu0 2
      %755 = vperm.xlu0 %754, %v274
      %v756 = vpop.permute.xlu0 %755
      %758 = vset.pattern.permute.xlu0 2
      %759 = vperm.xlu0 %758, %v275
      %v760 = vpop.permute.xlu0 %759
      %762 = vset.pattern.permute.xlu0 2
      %763 = vperm.xlu0 %762, %v276
      %v764 = vpop.permute.xlu0 %763
      %v766 = vlaneseq
      %v767 = vshrl.u32 %v766, 7
      %v768 = vsub.s32 2, %v767
      %v769 = vrot.slane %v277, %v768
      %v770 = vsub.f32 %v640, %v769
      %v771 = vsub.f32 %v644, %v769
      %v772 = vsub.f32 %v648, %v769
      %v773 = vsub.f32 %v652, %v769
      %v774 = vsub.f32 %v656, %v769
      %v775 = vsub.f32 %v660, %v769
      %v776 = vsub.f32 %v664, %v769
      %v777 = vsub.f32 %v668, %v769
      %v778 = vsub.f32 %v672, %v769
      %v779 = vsub.f32 %v676, %v769
      %v780 = vsub.f32 %v680, %v769
      %v781 = vsub.f32 %v684, %v769
      %v782 = vsub.f32 %v688, %v769
      %v783 = vsub.f32 %v692, %v769
      %v784 = vsub.f32 %v696, %v769
      %v785 = vsub.f32 %v700, %v769
      %v786 = vsub.f32 %v704, %v769
      %v787 = vsub.f32 %v708, %v769
      %v788 = vsub.f32 %v712, %v769
      %v789 = vsub.f32 %v716, %v769
      %v790 = vsub.f32 %v720, %v769
      %v791 = vsub.f32 %v724, %v769
      %v792 = vsub.f32 %v728, %v769
      %v793 = vsub.f32 %v732, %v769
      %v794 = vsub.f32 %v736, %v769
      %v795 = vsub.f32 %v740, %v769
      %v796 = vsub.f32 %v744, %v769
      %v797 = vsub.f32 %v748, %v769
      %v798 = vsub.f32 %v752, %v769
      %v799 = vsub.f32 %v756, %v769
      %v800 = vsub.f32 %v760, %v769
      %v801 = vsub.f32 %v764, %v769
      %v802 = vmul.f32 %v442, %v442
      %v803 = vmul.f32 %v443, %v443
      %v804 = vmul.f32 %v444, %v444
      %v805 = vmul.f32 %v445, %v445
      %v806 = vmul.f32 %v446, %v446
      %v807 = vmul.f32 %v447, %v447
      %v808 = vmul.f32 %v448, %v448
      %v809 = vmul.f32 %v449, %v449
      %v810 = vmul.f32 %v450, %v450
      %v811 = vmul.f32 %v451, %v451
      %v812 = vmul.f32 %v452, %v452
      %v813 = vmul.f32 %v453, %v453
      %v814 = vmul.f32 %v454, %v454
      %v815 = vmul.f32 %v455, %v455
      %v816 = vmul.f32 %v456, %v456
      %v817 = vmul.f32 %v457, %v457
      %v818 = vmul.f32 %v458, %v458
      %v819 = vmul.f32 %v459, %v459
      %v820 = vmul.f32 %v460, %v460
      %v821 = vmul.f32 %v461, %v461
      %v822 = vmul.f32 %v462, %v462
      %v823 = vmul.f32 %v463, %v463
      %v824 = vmul.f32 %v464, %v464
      %v825 = vmul.f32 %v465, %v465
      %v826 = vmul.f32 %v466, %v466
      %v827 = vmul.f32 %v467, %v467
      %v828 = vmul.f32 %v468, %v468
      %v829 = vmul.f32 %v469, %v469
      %v830 = vmul.f32 %v470, %v470
      %v831 = vmul.f32 %v471, %v471
      %v832 = vmul.f32 %v472, %v472
      %v833 = vmul.f32 %v473, %v473
      %v834 = vmul.f32 %v606, %v606
      %v835 = vmul.f32 %v607, %v607
      %v836 = vmul.f32 %v608, %v608
      %v837 = vmul.f32 %v609, %v609
      %v838 = vmul.f32 %v610, %v610
      %v839 = vmul.f32 %v611, %v611
      %v840 = vmul.f32 %v612, %v612
      %v841 = vmul.f32 %v613, %v613
      %v842 = vmul.f32 %v614, %v614
      %v843 = vmul.f32 %v615, %v615
      %v844 = vmul.f32 %v616, %v616
      %v845 = vmul.f32 %v617, %v617
      %v846 = vmul.f32 %v618, %v618
      %v847 = vmul.f32 %v619, %v619
      %v848 = vmul.f32 %v620, %v620
      %v849 = vmul.f32 %v621, %v621
      %v850 = vmul.f32 %v622, %v622
      %v851 = vmul.f32 %v623, %v623
      %v852 = vmul.f32 %v624, %v624
      %v853 = vmul.f32 %v625, %v625
      %v854 = vmul.f32 %v626, %v626
      %v855 = vmul.f32 %v627, %v627
      %v856 = vmul.f32 %v628, %v628
      %v857 = vmul.f32 %v629, %v629
      %v858 = vmul.f32 %v630, %v630
      %v859 = vmul.f32 %v631, %v631
      %v860 = vmul.f32 %v632, %v632
      %v861 = vmul.f32 %v633, %v633
      %v862 = vmul.f32 %v634, %v634
      %v863 = vmul.f32 %v635, %v635
      %v864 = vmul.f32 %v636, %v636
      %v865 = vmul.f32 %v637, %v637
      %v866 = vadd.f32 %v802, %v834
      %v867 = vadd.f32 %v803, %v835
      %v868 = vadd.f32 %v804, %v836
      %v869 = vadd.f32 %v805, %v837
      %v870 = vadd.f32 %v806, %v838
      %v871 = vadd.f32 %v807, %v839
      %v872 = vadd.f32 %v808, %v840
      %v873 = vadd.f32 %v809, %v841
      %v874 = vadd.f32 %v810, %v842
      %v875 = vadd.f32 %v811, %v843
      %v876 = vadd.f32 %v812, %v844
      %v877 = vadd.f32 %v813, %v845
      %v878 = vadd.f32 %v814, %v846
      %v879 = vadd.f32 %v815, %v847
      %v880 = vadd.f32 %v816, %v848
      %v881 = vadd.f32 %v817, %v849
      %v882 = vadd.f32 %v818, %v850
      %v883 = vadd.f32 %v819, %v851
      %v884 = vadd.f32 %v820, %v852
      %v885 = vadd.f32 %v821, %v853
      %v886 = vadd.f32 %v822, %v854
      %v887 = vadd.f32 %v823, %v855
      %v888 = vadd.f32 %v824, %v856
      %v889 = vadd.f32 %v825, %v857
      %v890 = vadd.f32 %v826, %v858
      %v891 = vadd.f32 %v827, %v859
      %v892 = vadd.f32 %v828, %v860
      %v893 = vadd.f32 %v829, %v861
      %v894 = vadd.f32 %v830, %v862
      %v895 = vadd.f32 %v831, %v863
      %v896 = vadd.f32 %v832, %v864
      %v897 = vadd.f32 %v833, %v865
      %v898 = vmul.f32 %v770, %v770
      %v899 = vmul.f32 %v771, %v771
      %v900 = vmul.f32 %v772, %v772
      %v901 = vmul.f32 %v773, %v773
      %v902 = vmul.f32 %v774, %v774
      %v903 = vmul.f32 %v775, %v775
      %v904 = vmul.f32 %v776, %v776
      %v905 = vmul.f32 %v777, %v777
      %v906 = vmul.f32 %v778, %v778
      %v907 = vmul.f32 %v779, %v779
      %v908 = vmul.f32 %v780, %v780
      %v909 = vmul.f32 %v781, %v781
      %v910 = vmul.f32 %v782, %v782
      %v911 = vmul.f32 %v783, %v783
      %v912 = vmul.f32 %v784, %v784
      %v913 = vmul.f32 %v785, %v785
      %v914 = vmul.f32 %v786, %v786
      %v915 = vmul.f32 %v787, %v787
      %v916 = vmul.f32 %v788, %v788
      %v917 = vmul.f32 %v789, %v789
      %v918 = vmul.f32 %v790, %v790
      %v919 = vmul.f32 %v791, %v791
      %v920 = vmul.f32 %v792, %v792
      %v921 = vmul.f32 %v793, %v793
      %v922 = vmul.f32 %v794, %v794
      %v923 = vmul.f32 %v795, %v795
      %v924 = vmul.f32 %v796, %v796
      %v925 = vmul.f32 %v797, %v797
      %v926 = vmul.f32 %v798, %v798
      %v927 = vmul.f32 %v799, %v799
      %v928 = vmul.f32 %v800, %v800
      %v929 = vmul.f32 %v801, %v801
      %v930 = vadd.f32 %v866, %v898
      %v931 = vadd.f32 %v867, %v899
      %v932 = vadd.f32 %v868, %v900
      %v933 = vadd.f32 %v869, %v901
      %v934 = vadd.f32 %v870, %v902
      %v935 = vadd.f32 %v871, %v903
      %v936 = vadd.f32 %v872, %v904
      %v937 = vadd.f32 %v873, %v905
      %v938 = vadd.f32 %v874, %v906
      %v939 = vadd.f32 %v875, %v907
      %v940 = vadd.f32 %v876, %v908
      %v941 = vadd.f32 %v877, %v909
      %v942 = vadd.f32 %v878, %v910
      %v943 = vadd.f32 %v879, %v911
      %v944 = vadd.f32 %v880, %v912
      %v945 = vadd.f32 %v881, %v913
      %v946 = vadd.f32 %v882, %v914
      %v947 = vadd.f32 %v883, %v915
      %v948 = vadd.f32 %v884, %v916
      %v949 = vadd.f32 %v885, %v917
      %v950 = vadd.f32 %v886, %v918
      %v951 = vadd.f32 %v887, %v919
      %v952 = vadd.f32 %v888, %v920
      %v953 = vadd.f32 %v889, %v921
      %v954 = vadd.f32 %v890, %v922
      %v955 = vadd.f32 %v891, %v923
      %v956 = vadd.f32 %v892, %v924
      %v957 = vadd.f32 %v893, %v925
      %v958 = vadd.f32 %v894, %v926
      %v959 = vadd.f32 %v895, %v927
      %v960 = vadd.f32 %v896, %v928
      %v961 = vadd.f32 %v897, %v929
      %v962 = vlaneseq
      %v963 = vand.u32 %v962, 127
      %v996 = vand.u32 %v930, 4294967168
      %v997 = vand.u32 %v931, 4294967168
      %v998 = vand.u32 %v932, 4294967168
      %v999 = vand.u32 %v933, 4294967168
      %v1000 = vand.u32 %v934, 4294967168
      %v1001 = vand.u32 %v935, 4294967168
      %v1002 = vand.u32 %v936, 4294967168
      %v1003 = vand.u32 %v937, 4294967168
      %v1004 = vand.u32 %v938, 4294967168
      %v1005 = vand.u32 %v939, 4294967168
      %v1006 = vand.u32 %v940, 4294967168
      %v1007 = vand.u32 %v941, 4294967168
      %v1008 = vand.u32 %v942, 4294967168
      %v1009 = vand.u32 %v943, 4294967168
      %v1010 = vand.u32 %v944, 4294967168
      %v1011 = vand.u32 %v945, 4294967168
      %v1012 = vand.u32 %v946, 4294967168
      %v1013 = vand.u32 %v947, 4294967168
      %v1014 = vand.u32 %v948, 4294967168
      %v1015 = vand.u32 %v949, 4294967168
      %v1016 = vand.u32 %v950, 4294967168
      %v1017 = vand.u32 %v951, 4294967168
      %v1018 = vand.u32 %v952, 4294967168
      %v1019 = vand.u32 %v953, 4294967168
      %v1020 = vand.u32 %v954, 4294967168
      %v1021 = vand.u32 %v955, 4294967168
      %v1022 = vand.u32 %v956, 4294967168
      %v1023 = vand.u32 %v957, 4294967168
      %v1024 = vand.u32 %v958, 4294967168
      %v1025 = vand.u32 %v959, 4294967168
      %v1026 = vand.u32 %v960, 4294967168
      %v1027 = vand.u32 %v961, 4294967168
      %v1028 = vor.u32 %v996, %v963
      %v1029 = vor.u32 %v997, %v963
      %v1030 = vor.u32 %v998, %v963
      %v1031 = vor.u32 %v999, %v963
      %v1032 = vor.u32 %v1000, %v963
      %v1033 = vor.u32 %v1001, %v963
      %v1034 = vor.u32 %v1002, %v963
      %v1035 = vor.u32 %v1003, %v963
      %v1036 = vor.u32 %v1004, %v963
      %v1037 = vor.u32 %v1005, %v963
      %v1038 = vor.u32 %v1006, %v963
      %v1039 = vor.u32 %v1007, %v963
      %v1040 = vor.u32 %v1008, %v963
      %v1041 = vor.u32 %v1009, %v963
      %v1042 = vor.u32 %v1010, %v963
      %v1043 = vor.u32 %v1011, %v963
      %v1044 = vor.u32 %v1012, %v963
      %v1045 = vor.u32 %v1013, %v963
      %v1046 = vor.u32 %v1014, %v963
      %v1047 = vor.u32 %v1015, %v963
      %v1048 = vor.u32 %v1016, %v963
      %v1049 = vor.u32 %v1017, %v963
      %v1050 = vor.u32 %v1018, %v963
      %v1051 = vor.u32 %v1019, %v963
      %v1052 = vor.u32 %v1020, %v963
      %v1053 = vor.u32 %v1021, %v963
      %v1054 = vor.u32 %v1022, %v963
      %v1055 = vor.u32 %v1023, %v963
      %v1056 = vor.u32 %v1024, %v963
      %v1057 = vor.u32 %v1025, %v963
      %v1058 = vor.u32 %v1026, %v963
      %v1059 = vor.u32 %v1027, %v963
      %vm1060 = vcmp.le.f32.partialorder %v930, 0.04
      %vm1061 = vcmp.le.f32.partialorder %v931, 0.04
      %vm1062 = vcmp.le.f32.partialorder %v932, 0.04
      %vm1063 = vcmp.le.f32.partialorder %v933, 0.04
      %vm1064 = vcmp.le.f32.partialorder %v934, 0.04
      %vm1065 = vcmp.le.f32.partialorder %v935, 0.04
      %vm1066 = vcmp.le.f32.partialorder %v936, 0.04
      %vm1067 = vcmp.le.f32.partialorder %v937, 0.04
      %vm1068 = vcmp.le.f32.partialorder %v938, 0.04
      %vm1069 = vcmp.le.f32.partialorder %v939, 0.04
      %vm1070 = vcmp.le.f32.partialorder %v940, 0.04
      %vm1071 = vcmp.le.f32.partialorder %v941, 0.04
      %vm1072 = vcmp.le.f32.partialorder %v942, 0.04
      %vm1073 = vcmp.le.f32.partialorder %v943, 0.04
      %vm1074 = vcmp.le.f32.partialorder %v944, 0.04
      %vm1075 = vcmp.le.f32.partialorder %v945, 0.04
      %vm1076 = vcmp.le.f32.partialorder %v946, 0.04
      %vm1077 = vcmp.le.f32.partialorder %v947, 0.04
      %vm1078 = vcmp.le.f32.partialorder %v948, 0.04
      %vm1079 = vcmp.le.f32.partialorder %v949, 0.04
      %vm1080 = vcmp.le.f32.partialorder %v950, 0.04
      %vm1081 = vcmp.le.f32.partialorder %v951, 0.04
      %vm1082 = vcmp.le.f32.partialorder %v952, 0.04
      %vm1083 = vcmp.le.f32.partialorder %v953, 0.04
      %vm1084 = vcmp.le.f32.partialorder %v954, 0.04
      %vm1085 = vcmp.le.f32.partialorder %v955, 0.04
      %vm1086 = vcmp.le.f32.partialorder %v956, 0.04
      %vm1087 = vcmp.le.f32.partialorder %v957, 0.04
      %vm1088 = vcmp.le.f32.partialorder %v958, 0.04
      %vm1089 = vcmp.le.f32.partialorder %v959, 0.04
      %vm1090 = vcmp.le.f32.partialorder %v960, 0.04
      %vm1091 = vcmp.le.f32.partialorder %v961, 0.04
      %v1092 = vsel %vm1060, %v1028, 2130706432
      %v1093 = vsel %vm1061, %v1029, 2130706432
      %v1094 = vsel %vm1062, %v1030, 2130706432
      %v1095 = vsel %vm1063, %v1031, 2130706432
      %v1096 = vsel %vm1064, %v1032, 2130706432
      %v1097 = vsel %vm1065, %v1033, 2130706432
      %v1098 = vsel %vm1066, %v1034, 2130706432
      %v1099 = vsel %vm1067, %v1035, 2130706432
      %v1100 = vsel %vm1068, %v1036, 2130706432
      %v1101 = vsel %vm1069, %v1037, 2130706432
      %v1102 = vsel %vm1070, %v1038, 2130706432
      %v1103 = vsel %vm1071, %v1039, 2130706432
      %v1104 = vsel %vm1072, %v1040, 2130706432
      %v1105 = vsel %vm1073, %v1041, 2130706432
      %v1106 = vsel %vm1074, %v1042, 2130706432
      %v1107 = vsel %vm1075, %v1043, 2130706432
      %v1108 = vsel %vm1076, %v1044, 2130706432
      %v1109 = vsel %vm1077, %v1045, 2130706432
      %v1110 = vsel %vm1078, %v1046, 2130706432
      %v1111 = vsel %vm1079, %v1047, 2130706432
      %v1112 = vsel %vm1080, %v1048, 2130706432
      %v1113 = vsel %vm1081, %v1049, 2130706432
      %v1114 = vsel %vm1082, %v1050, 2130706432
      %v1115 = vsel %vm1083, %v1051, 2130706432
      %v1116 = vsel %vm1084, %v1052, 2130706432
      %v1117 = vsel %vm1085, %v1053, 2130706432
      %v1118 = vsel %vm1086, %v1054, 2130706432
      %v1119 = vsel %vm1087, %v1055, 2130706432
      %v1120 = vsel %vm1088, %v1056, 2130706432
      %v1121 = vsel %vm1089, %v1057, 2130706432
      %v1122 = vsel %vm1090, %v1058, 2130706432
      %v1123 = vsel %vm1091, %v1059, 2130706432
      %s1124 = smul.u32 %s18, 128
      %v1125 = vld [vmem:[#allocation2] sm:$0xff]
      %v1126 = vld [vmem:[#allocation2 + $0x8] sm:$0xff]
      %v1127 = vld [vmem:[#allocation2 + $0x10] sm:$0xff]
      %v1128 = vld [vmem:[#allocation2 + $0x18] sm:$0xff]
      %v1129 = vld [vmem:[#allocation2 + $0x20] sm:$0xff]
      %v1130 = vld [vmem:[#allocation2 + $0x28] sm:$0xff]
      %v1131 = vld [vmem:[#allocation2 + $0x30] sm:$0xff]
      %v1132 = vld [vmem:[#allocation2 + $0x38] sm:$0xff]
      %v1133 = vld [vmem:[#allocation2 + $0x40] sm:$0xff]
      %v1134 = vld [vmem:[#allocation2 + $0x48] sm:$0xff]
      %v1135 = vld [vmem:[#allocation2 + $0x50] sm:$0xff]
      %v1136 = vld [vmem:[#allocation2 + $0x58] sm:$0xff]
      %v1137 = vld [vmem:[#allocation2 + $0x60] sm:$0xff]
      %v1138 = vld [vmem:[#allocation2 + $0x68] sm:$0xff]
      %v1139 = vld [vmem:[#allocation2 + $0x70] sm:$0xff]
      %v1140 = vld [vmem:[#allocation2 + $0x78] sm:$0xff]
      %v1141 = vld [vmem:[#allocation2 + $0x80] sm:$0xff]
      %v1142 = vld [vmem:[#allocation2 + $0x88] sm:$0xff]
      %v1143 = vld [vmem:[#allocation2 + $0x90] sm:$0xff]
      %v1144 = vld [vmem:[#allocation2 + $0x98] sm:$0xff]
      %v1145 = vld [vmem:[#allocation2 + $0xa0] sm:$0xff]
      %v1146 = vld [vmem:[#allocation2 + $0xa8] sm:$0xff]
      %v1147 = vld [vmem:[#allocation2 + $0xb0] sm:$0xff]
      %v1148 = vld [vmem:[#allocation2 + $0xb8] sm:$0xff]
      %v1149 = vld [vmem:[#allocation2 + $0xc0] sm:$0xff]
      %v1150 = vld [vmem:[#allocation2 + $0xc8] sm:$0xff]
      %v1151 = vld [vmem:[#allocation2 + $0xd0] sm:$0xff]
      %v1152 = vld [vmem:[#allocation2 + $0xd8] sm:$0xff]
      %v1153 = vld [vmem:[#allocation2 + $0xe0] sm:$0xff]
      %v1154 = vld [vmem:[#allocation2 + $0xe8] sm:$0xff]
      %v1155 = vld [vmem:[#allocation2 + $0xf0] sm:$0xff]
      %v1156 = vld [vmem:[#allocation2 + $0xf8] sm:$0xff]
      %v1157 = vld [vmem:[#allocation3] sm:$0xff]
      %v1158 = vld [vmem:[#allocation3 + $0x8] sm:$0xff]
      %v1159 = vld [vmem:[#allocation3 + $0x10] sm:$0xff]
      %v1160 = vld [vmem:[#allocation3 + $0x18] sm:$0xff]
      %v1161 = vld [vmem:[#allocation3 + $0x20] sm:$0xff]
      %v1162 = vld [vmem:[#allocation3 + $0x28] sm:$0xff]
      %v1163 = vld [vmem:[#allocation3 + $0x30] sm:$0xff]
      %v1164 = vld [vmem:[#allocation3 + $0x38] sm:$0xff]
      %v1165 = vld [vmem:[#allocation3 + $0x40] sm:$0xff]
      %v1166 = vld [vmem:[#allocation3 + $0x48] sm:$0xff]
      %v1167 = vld [vmem:[#allocation3 + $0x50] sm:$0xff]
      %v1168 = vld [vmem:[#allocation3 + $0x58] sm:$0xff]
      %v1169 = vld [vmem:[#allocation3 + $0x60] sm:$0xff]
      %v1170 = vld [vmem:[#allocation3 + $0x68] sm:$0xff]
      %v1171 = vld [vmem:[#allocation3 + $0x70] sm:$0xff]
      %v1172 = vld [vmem:[#allocation3 + $0x78] sm:$0xff]
      %v1173 = vld [vmem:[#allocation3 + $0x80] sm:$0xff]
      %v1174 = vld [vmem:[#allocation3 + $0x88] sm:$0xff]
      %v1175 = vld [vmem:[#allocation3 + $0x90] sm:$0xff]
      %v1176 = vld [vmem:[#allocation3 + $0x98] sm:$0xff]
      %v1177 = vld [vmem:[#allocation3 + $0xa0] sm:$0xff]
      %v1178 = vld [vmem:[#allocation3 + $0xa8] sm:$0xff]
      %v1179 = vld [vmem:[#allocation3 + $0xb0] sm:$0xff]
      %v1180 = vld [vmem:[#allocation3 + $0xb8] sm:$0xff]
      %v1181 = vld [vmem:[#allocation3 + $0xc0] sm:$0xff]
      %v1182 = vld [vmem:[#allocation3 + $0xc8] sm:$0xff]
      %v1183 = vld [vmem:[#allocation3 + $0xd0] sm:$0xff]
      %v1184 = vld [vmem:[#allocation3 + $0xd8] sm:$0xff]
      %v1185 = vld [vmem:[#allocation3 + $0xe0] sm:$0xff]
      %v1186 = vld [vmem:[#allocation3 + $0xe8] sm:$0xff]
      %v1187 = vld [vmem:[#allocation3 + $0xf0] sm:$0xff]
      %v1188 = vld [vmem:[#allocation3 + $0xf8] sm:$0xff]
      %v1189 = vand.u32 %v1092, 65535
      %v1190 = vshra.s32 %v1092, 16
      %v1191 = vcvt.s32.f32 %v1189
      %v1192 = vcvt.s32.f32 %v1190
      %1193 = vmin.xlane.f32.xlu0 %v1192
      %v1194 = vpop.xlane.xlu0 %1193
      %vm1195 = vcmp.eq.f32.partialorder %v1192, %v1194
      %v1196 = vsel %vm1195, %v1191, inf
      %1197 = vmin.xlane.f32.xlu0 %v1196
      %v1198 = vpop.xlane.xlu0 %1197
      %v1199 = vcvt.f32.s32 %v1198
      %v1200 = vcvt.f32.s32 %v1194
      %v1201 = vshll.u32 %v1200, 16
      %v1202 = vadd.s32 %v1201, %v1199
      %v1203 = vand.u32 %v1093, 65535
      %v1204 = vshra.s32 %v1093, 16
      %v1205 = vcvt.s32.f32 %v1203
      %v1206 = vcvt.s32.f32 %v1204
      %1207 = vmin.xlane.f32.xlu0 %v1206
      %v1208 = vpop.xlane.xlu0 %1207
      %vm1209 = vcmp.eq.f32.partialorder %v1206, %v1208
      %v1210 = vsel %vm1209, %v1205, inf
      %1211 = vmin.xlane.f32.xlu0 %v1210
      %v1212 = vpop.xlane.xlu0 %1211
      %v1213 = vcvt.f32.s32 %v1212
      %v1214 = vcvt.f32.s32 %v1208
      %v1215 = vshll.u32 %v1214, 16
      %v1216 = vadd.s32 %v1215, %v1213
      %v1217 = vand.u32 %v1094, 65535
      %v1218 = vshra.s32 %v1094, 16
      %v1219 = vcvt.s32.f32 %v1217
      %v1220 = vcvt.s32.f32 %v1218
      %1221 = vmin.xlane.f32.xlu0 %v1220
      %v1222 = vpop.xlane.xlu0 %1221
      %vm1223 = vcmp.eq.f32.partialorder %v1220, %v1222
      %v1224 = vsel %vm1223, %v1219, inf
      %1225 = vmin.xlane.f32.xlu0 %v1224
      %v1226 = vpop.xlane.xlu0 %1225
      %v1227 = vcvt.f32.s32 %v1226
      %v1228 = vcvt.f32.s32 %v1222
      %v1229 = vshll.u32 %v1228, 16
      %v1230 = vadd.s32 %v1229, %v1227
      %v1231 = vand.u32 %v1095, 65535
      %v1232 = vshra.s32 %v1095, 16
      %v1233 = vcvt.s32.f32 %v1231
      %v1234 = vcvt.s32.f32 %v1232
      %1235 = vmin.xlane.f32.xlu0 %v1234
      %v1236 = vpop.xlane.xlu0 %1235
      %vm1237 = vcmp.eq.f32.partialorder %v1234, %v1236
      %v1238 = vsel %vm1237, %v1233, inf
      %1239 = vmin.xlane.f32.xlu0 %v1238
      %v1240 = vpop.xlane.xlu0 %1239
      %v1241 = vcvt.f32.s32 %v1240
      %v1242 = vcvt.f32.s32 %v1236
      %v1243 = vshll.u32 %v1242, 16
      %v1244 = vadd.s32 %v1243, %v1241
      %v1245 = vand.u32 %v1096, 65535
      %v1246 = vshra.s32 %v1096, 16
      %v1247 = vcvt.s32.f32 %v1245
      %v1248 = vcvt.s32.f32 %v1246
      %1249 = vmin.xlane.f32.xlu0 %v1248
      %v1250 = vpop.xlane.xlu0 %1249
      %vm1251 = vcmp.eq.f32.partialorder %v1248, %v1250
      %v1252 = vsel %vm1251, %v1247, inf
      %1253 = vmin.xlane.f32.xlu0 %v1252
      %v1254 = vpop.xlane.xlu0 %1253
      %v1255 = vcvt.f32.s32 %v1254
      %v1256 = vcvt.f32.s32 %v1250
      %v1257 = vshll.u32 %v1256, 16
      %v1258 = vadd.s32 %v1257, %v1255
      %v1259 = vand.u32 %v1097, 65535
      %v1260 = vshra.s32 %v1097, 16
      %v1261 = vcvt.s32.f32 %v1259
      %v1262 = vcvt.s32.f32 %v1260
      %1263 = vmin.xlane.f32.xlu0 %v1262
      %v1264 = vpop.xlane.xlu0 %1263
      %vm1265 = vcmp.eq.f32.partialorder %v1262, %v1264
      %v1266 = vsel %vm1265, %v1261, inf
      %1267 = vmin.xlane.f32.xlu0 %v1266
      %v1268 = vpop.xlane.xlu0 %1267
      %v1269 = vcvt.f32.s32 %v1268
      %v1270 = vcvt.f32.s32 %v1264
      %v1271 = vshll.u32 %v1270, 16
      %v1272 = vadd.s32 %v1271, %v1269
      %v1273 = vand.u32 %v1098, 65535
      %v1274 = vshra.s32 %v1098, 16
      %v1275 = vcvt.s32.f32 %v1273
      %v1276 = vcvt.s32.f32 %v1274
      %1277 = vmin.xlane.f32.xlu0 %v1276
      %v1278 = vpop.xlane.xlu0 %1277
      %vm1279 = vcmp.eq.f32.partialorder %v1276, %v1278
      %v1280 = vsel %vm1279, %v1275, inf
      %1281 = vmin.xlane.f32.xlu0 %v1280
      %v1282 = vpop.xlane.xlu0 %1281
      %v1283 = vcvt.f32.s32 %v1282
      %v1284 = vcvt.f32.s32 %v1278
      %v1285 = vshll.u32 %v1284, 16
      %v1286 = vadd.s32 %v1285, %v1283
      %v1287 = vand.u32 %v1099, 65535
      %v1288 = vshra.s32 %v1099, 16
      %v1289 = vcvt.s32.f32 %v1287
      %v1290 = vcvt.s32.f32 %v1288
      %1291 = vmin.xlane.f32.xlu0 %v1290
      %v1292 = vpop.xlane.xlu0 %1291
      %vm1293 = vcmp.eq.f32.partialorder %v1290, %v1292
      %v1294 = vsel %vm1293, %v1289, inf
      %1295 = vmin.xlane.f32.xlu0 %v1294
      %v1296 = vpop.xlane.xlu0 %1295
      %v1297 = vcvt.f32.s32 %v1296
      %v1298 = vcvt.f32.s32 %v1292
      %v1299 = vshll.u32 %v1298, 16
      %v1300 = vadd.s32 %v1299, %v1297
      %v1301 = vand.u32 %v1100, 65535
      %v1302 = vshra.s32 %v1100, 16
      %v1303 = vcvt.s32.f32 %v1301
      %v1304 = vcvt.s32.f32 %v1302
      %1305 = vmin.xlane.f32.xlu0 %v1304
      %v1306 = vpop.xlane.xlu0 %1305
      %vm1307 = vcmp.eq.f32.partialorder %v1304, %v1306
      %v1308 = vsel %vm1307, %v1303, inf
      %1309 = vmin.xlane.f32.xlu0 %v1308
      %v1310 = vpop.xlane.xlu0 %1309
      %v1311 = vcvt.f32.s32 %v1310
      %v1312 = vcvt.f32.s32 %v1306
      %v1313 = vshll.u32 %v1312, 16
      %v1314 = vadd.s32 %v1313, %v1311
      %v1315 = vand.u32 %v1101, 65535
      %v1316 = vshra.s32 %v1101, 16
      %v1317 = vcvt.s32.f32 %v1315
      %v1318 = vcvt.s32.f32 %v1316
      %1319 = vmin.xlane.f32.xlu0 %v1318
      %v1320 = vpop.xlane.xlu0 %1319
      %vm1321 = vcmp.eq.f32.partialorder %v1318, %v1320
      %v1322 = vsel %vm1321, %v1317, inf
      %1323 = vmin.xlane.f32.xlu0 %v1322
      %v1324 = vpop.xlane.xlu0 %1323
      %v1325 = vcvt.f32.s32 %v1324
      %v1326 = vcvt.f32.s32 %v1320
      %v1327 = vshll.u32 %v1326, 16
      %v1328 = vadd.s32 %v1327, %v1325
      %v1329 = vand.u32 %v1102, 65535
      %v1330 = vshra.s32 %v1102, 16
      %v1331 = vcvt.s32.f32 %v1329
      %v1332 = vcvt.s32.f32 %v1330
      %1333 = vmin.xlane.f32.xlu0 %v1332
      %v1334 = vpop.xlane.xlu0 %1333
      %vm1335 = vcmp.eq.f32.partialorder %v1332, %v1334
      %v1336 = vsel %vm1335, %v1331, inf
      %1337 = vmin.xlane.f32.xlu0 %v1336
      %v1338 = vpop.xlane.xlu0 %1337
      %v1339 = vcvt.f32.s32 %v1338
      %v1340 = vcvt.f32.s32 %v1334
      %v1341 = vshll.u32 %v1340, 16
      %v1342 = vadd.s32 %v1341, %v1339
      %v1343 = vand.u32 %v1103, 65535
      %v1344 = vshra.s32 %v1103, 16
      %v1345 = vcvt.s32.f32 %v1343
      %v1346 = vcvt.s32.f32 %v1344
      %1347 = vmin.xlane.f32.xlu0 %v1346
      %v1348 = vpop.xlane.xlu0 %1347
      %vm1349 = vcmp.eq.f32.partialorder %v1346, %v1348
      %v1350 = vsel %vm1349, %v1345, inf
      %1351 = vmin.xlane.f32.xlu0 %v1350
      %v1352 = vpop.xlane.xlu0 %1351
      %v1353 = vcvt.f32.s32 %v1352
      %v1354 = vcvt.f32.s32 %v1348
      %v1355 = vshll.u32 %v1354, 16
      %v1356 = vadd.s32 %v1355, %v1353
      %v1357 = vand.u32 %v1104, 65535
      %v1358 = vshra.s32 %v1104, 16
      %v1359 = vcvt.s32.f32 %v1357
      %v1360 = vcvt.s32.f32 %v1358
      %1361 = vmin.xlane.f32.xlu0 %v1360
      %v1362 = vpop.xlane.xlu0 %1361
      %vm1363 = vcmp.eq.f32.partialorder %v1360, %v1362
      %v1364 = vsel %vm1363, %v1359, inf
      %1365 = vmin.xlane.f32.xlu0 %v1364
      %v1366 = vpop.xlane.xlu0 %1365
      %v1367 = vcvt.f32.s32 %v1366
      %v1368 = vcvt.f32.s32 %v1362
      %v1369 = vshll.u32 %v1368, 16
      %v1370 = vadd.s32 %v1369, %v1367
      %v1371 = vand.u32 %v1105, 65535
      %v1372 = vshra.s32 %v1105, 16
      %v1373 = vcvt.s32.f32 %v1371
      %v1374 = vcvt.s32.f32 %v1372
      %1375 = vmin.xlane.f32.xlu0 %v1374
      %v1376 = vpop.xlane.xlu0 %1375
      %vm1377 = vcmp.eq.f32.partialorder %v1374, %v1376
      %v1378 = vsel %vm1377, %v1373, inf
      %1379 = vmin.xlane.f32.xlu0 %v1378
      %v1380 = vpop.xlane.xlu0 %1379
      %v1381 = vcvt.f32.s32 %v1380
      %v1382 = vcvt.f32.s32 %v1376
      %v1383 = vshll.u32 %v1382, 16
      %v1384 = vadd.s32 %v1383, %v1381
      %v1385 = vand.u32 %v1106, 65535
      %v1386 = vshra.s32 %v1106, 16
      %v1387 = vcvt.s32.f32 %v1385
      %v1388 = vcvt.s32.f32 %v1386
      %1389 = vmin.xlane.f32.xlu0 %v1388
      %v1390 = vpop.xlane.xlu0 %1389
      %vm1391 = vcmp.eq.f32.partialorder %v1388, %v1390
      %v1392 = vsel %vm1391, %v1387, inf
      %1393 = vmin.xlane.f32.xlu0 %v1392
      %v1394 = vpop.xlane.xlu0 %1393
      %v1395 = vcvt.f32.s32 %v1394
      %v1396 = vcvt.f32.s32 %v1390
      %v1397 = vshll.u32 %v1396, 16
      %v1398 = vadd.s32 %v1397, %v1395
      %v1399 = vand.u32 %v1107, 65535
      %v1400 = vshra.s32 %v1107, 16
      %v1401 = vcvt.s32.f32 %v1399
      %v1402 = vcvt.s32.f32 %v1400
      %1403 = vmin.xlane.f32.xlu0 %v1402
      %v1404 = vpop.xlane.xlu0 %1403
      %vm1405 = vcmp.eq.f32.partialorder %v1402, %v1404
      %v1406 = vsel %vm1405, %v1401, inf
      %1407 = vmin.xlane.f32.xlu0 %v1406
      %v1408 = vpop.xlane.xlu0 %1407
      %v1409 = vcvt.f32.s32 %v1408
      %v1410 = vcvt.f32.s32 %v1404
      %v1411 = vshll.u32 %v1410, 16
      %v1412 = vadd.s32 %v1411, %v1409
      %v1413 = vand.u32 %v1108, 65535
      %v1414 = vshra.s32 %v1108, 16
      %v1415 = vcvt.s32.f32 %v1413
      %v1416 = vcvt.s32.f32 %v1414
      %1417 = vmin.xlane.f32.xlu0 %v1416
      %v1418 = vpop.xlane.xlu0 %1417
      %vm1419 = vcmp.eq.f32.partialorder %v1416, %v1418
      %v1420 = vsel %vm1419, %v1415, inf
      %1421 = vmin.xlane.f32.xlu0 %v1420
      %v1422 = vpop.xlane.xlu0 %1421
      %v1423 = vcvt.f32.s32 %v1422
      %v1424 = vcvt.f32.s32 %v1418
      %v1425 = vshll.u32 %v1424, 16
      %v1426 = vadd.s32 %v1425, %v1423
      %v1427 = vand.u32 %v1109, 65535
      %v1428 = vshra.s32 %v1109, 16
      %v1429 = vcvt.s32.f32 %v1427
      %v1430 = vcvt.s32.f32 %v1428
      %1431 = vmin.xlane.f32.xlu0 %v1430
      %v1432 = vpop.xlane.xlu0 %1431
      %vm1433 = vcmp.eq.f32.partialorder %v1430, %v1432
      %v1434 = vsel %vm1433, %v1429, inf
      %1435 = vmin.xlane.f32.xlu0 %v1434
      %v1436 = vpop.xlane.xlu0 %1435
      %v1437 = vcvt.f32.s32 %v1436
      %v1438 = vcvt.f32.s32 %v1432
      %v1439 = vshll.u32 %v1438, 16
      %v1440 = vadd.s32 %v1439, %v1437
      %v1441 = vand.u32 %v1110, 65535
      %v1442 = vshra.s32 %v1110, 16
      %v1443 = vcvt.s32.f32 %v1441
      %v1444 = vcvt.s32.f32 %v1442
      %1445 = vmin.xlane.f32.xlu0 %v1444
      %v1446 = vpop.xlane.xlu0 %1445
      %vm1447 = vcmp.eq.f32.partialorder %v1444, %v1446
      %v1448 = vsel %vm1447, %v1443, inf
      %1449 = vmin.xlane.f32.xlu0 %v1448
      %v1450 = vpop.xlane.xlu0 %1449
      %v1451 = vcvt.f32.s32 %v1450
      %v1452 = vcvt.f32.s32 %v1446
      %v1453 = vshll.u32 %v1452, 16
      %v1454 = vadd.s32 %v1453, %v1451
      %v1455 = vand.u32 %v1111, 65535
      %v1456 = vshra.s32 %v1111, 16
      %v1457 = vcvt.s32.f32 %v1455
      %v1458 = vcvt.s32.f32 %v1456
      %1459 = vmin.xlane.f32.xlu0 %v1458
      %v1460 = vpop.xlane.xlu0 %1459
      %vm1461 = vcmp.eq.f32.partialorder %v1458, %v1460
      %v1462 = vsel %vm1461, %v1457, inf
      %1463 = vmin.xlane.f32.xlu0 %v1462
      %v1464 = vpop.xlane.xlu0 %1463
      %v1465 = vcvt.f32.s32 %v1464
      %v1466 = vcvt.f32.s32 %v1460
      %v1467 = vshll.u32 %v1466, 16
      %v1468 = vadd.s32 %v1467, %v1465
      %v1469 = vand.u32 %v1112, 65535
      %v1470 = vshra.s32 %v1112, 16
      %v1471 = vcvt.s32.f32 %v1469
      %v1472 = vcvt.s32.f32 %v1470
      %1473 = vmin.xlane.f32.xlu0 %v1472
      %v1474 = vpop.xlane.xlu0 %1473
      %vm1475 = vcmp.eq.f32.partialorder %v1472, %v1474
      %v1476 = vsel %vm1475, %v1471, inf
      %1477 = vmin.xlane.f32.xlu0 %v1476
      %v1478 = vpop.xlane.xlu0 %1477
      %v1479 = vcvt.f32.s32 %v1478
      %v1480 = vcvt.f32.s32 %v1474
      %v1481 = vshll.u32 %v1480, 16
      %v1482 = vadd.s32 %v1481, %v1479
      %v1483 = vand.u32 %v1113, 65535
      %v1484 = vshra.s32 %v1113, 16
      %v1485 = vcvt.s32.f32 %v1483
      %v1486 = vcvt.s32.f32 %v1484
      %1487 = vmin.xlane.f32.xlu0 %v1486
      %v1488 = vpop.xlane.xlu0 %1487
      %vm1489 = vcmp.eq.f32.partialorder %v1486, %v1488
      %v1490 = vsel %vm1489, %v1485, inf
      %1491 = vmin.xlane.f32.xlu0 %v1490
      %v1492 = vpop.xlane.xlu0 %1491
      %v1493 = vcvt.f32.s32 %v1492
      %v1494 = vcvt.f32.s32 %v1488
      %v1495 = vshll.u32 %v1494, 16
      %v1496 = vadd.s32 %v1495, %v1493
      %v1497 = vand.u32 %v1114, 65535
      %v1498 = vshra.s32 %v1114, 16
      %v1499 = vcvt.s32.f32 %v1497
      %v1500 = vcvt.s32.f32 %v1498
      %1501 = vmin.xlane.f32.xlu0 %v1500
      %v1502 = vpop.xlane.xlu0 %1501
      %vm1503 = vcmp.eq.f32.partialorder %v1500, %v1502
      %v1504 = vsel %vm1503, %v1499, inf
      %1505 = vmin.xlane.f32.xlu0 %v1504
      %v1506 = vpop.xlane.xlu0 %1505
      %v1507 = vcvt.f32.s32 %v1506
      %v1508 = vcvt.f32.s32 %v1502
      %v1509 = vshll.u32 %v1508, 16
      %v1510 = vadd.s32 %v1509, %v1507
      %v1511 = vand.u32 %v1115, 65535
      %v1512 = vshra.s32 %v1115, 16
      %v1513 = vcvt.s32.f32 %v1511
      %v1514 = vcvt.s32.f32 %v1512
      %1515 = vmin.xlane.f32.xlu0 %v1514
      %v1516 = vpop.xlane.xlu0 %1515
      %vm1517 = vcmp.eq.f32.partialorder %v1514, %v1516
      %v1518 = vsel %vm1517, %v1513, inf
      %1519 = vmin.xlane.f32.xlu0 %v1518
      %v1520 = vpop.xlane.xlu0 %1519
      %v1521 = vcvt.f32.s32 %v1520
      %v1522 = vcvt.f32.s32 %v1516
      %v1523 = vshll.u32 %v1522, 16
      %v1524 = vadd.s32 %v1523, %v1521
      %v1525 = vand.u32 %v1116, 65535
      %v1526 = vshra.s32 %v1116, 16
      %v1527 = vcvt.s32.f32 %v1525
      %v1528 = vcvt.s32.f32 %v1526
      %1529 = vmin.xlane.f32.xlu0 %v1528
      %v1530 = vpop.xlane.xlu0 %1529
      %vm1531 = vcmp.eq.f32.partialorder %v1528, %v1530
      %v1532 = vsel %vm1531, %v1527, inf
      %1533 = vmin.xlane.f32.xlu0 %v1532
      %v1534 = vpop.xlane.xlu0 %1533
      %v1535 = vcvt.f32.s32 %v1534
      %v1536 = vcvt.f32.s32 %v1530
      %v1537 = vshll.u32 %v1536, 16
      %v1538 = vadd.s32 %v1537, %v1535
      %v1539 = vand.u32 %v1117, 65535
      %v1540 = vshra.s32 %v1117, 16
      %v1541 = vcvt.s32.f32 %v1539
      %v1542 = vcvt.s32.f32 %v1540
      %1543 = vmin.xlane.f32.xlu0 %v1542
      %v1544 = vpop.xlane.xlu0 %1543
      %vm1545 = vcmp.eq.f32.partialorder %v1542, %v1544
      %v1546 = vsel %vm1545, %v1541, inf
      %1547 = vmin.xlane.f32.xlu0 %v1546
      %v1548 = vpop.xlane.xlu0 %1547
      %v1549 = vcvt.f32.s32 %v1548
      %v1550 = vcvt.f32.s32 %v1544
      %v1551 = vshll.u32 %v1550, 16
      %v1552 = vadd.s32 %v1551, %v1549
      %v1553 = vand.u32 %v1118, 65535
      %v1554 = vshra.s32 %v1118, 16
      %v1555 = vcvt.s32.f32 %v1553
      %v1556 = vcvt.s32.f32 %v1554
      %1557 = vmin.xlane.f32.xlu0 %v1556
      %v1558 = vpop.xlane.xlu0 %1557
      %vm1559 = vcmp.eq.f32.partialorder %v1556, %v1558
      %v1560 = vsel %vm1559, %v1555, inf
      %1561 = vmin.xlane.f32.xlu0 %v1560
      %v1562 = vpop.xlane.xlu0 %1561
      %v1563 = vcvt.f32.s32 %v1562
      %v1564 = vcvt.f32.s32 %v1558
      %v1565 = vshll.u32 %v1564, 16
      %v1566 = vadd.s32 %v1565, %v1563
      %v1567 = vand.u32 %v1119, 65535
      %v1568 = vshra.s32 %v1119, 16
      %v1569 = vcvt.s32.f32 %v1567
      %v1570 = vcvt.s32.f32 %v1568
      %1571 = vmin.xlane.f32.xlu0 %v1570
      %v1572 = vpop.xlane.xlu0 %1571
      %vm1573 = vcmp.eq.f32.partialorder %v1570, %v1572
      %v1574 = vsel %vm1573, %v1569, inf
      %1575 = vmin.xlane.f32.xlu0 %v1574
      %v1576 = vpop.xlane.xlu0 %1575
      %v1577 = vcvt.f32.s32 %v1576
      %v1578 = vcvt.f32.s32 %v1572
      %v1579 = vshll.u32 %v1578, 16
      %v1580 = vadd.s32 %v1579, %v1577
      %v1581 = vand.u32 %v1120, 65535
      %v1582 = vshra.s32 %v1120, 16
      %v1583 = vcvt.s32.f32 %v1581
      %v1584 = vcvt.s32.f32 %v1582
      %1585 = vmin.xlane.f32.xlu0 %v1584
      %v1586 = vpop.xlane.xlu0 %1585
      %vm1587 = vcmp.eq.f32.partialorder %v1584, %v1586
      %v1588 = vsel %vm1587, %v1583, inf
      %1589 = vmin.xlane.f32.xlu0 %v1588
      %v1590 = vpop.xlane.xlu0 %1589
      %v1591 = vcvt.f32.s32 %v1590
      %v1592 = vcvt.f32.s32 %v1586
      %v1593 = vshll.u32 %v1592, 16
      %v1594 = vadd.s32 %v1593, %v1591
      %v1595 = vand.u32 %v1121, 65535
      %v1596 = vshra.s32 %v1121, 16
      %v1597 = vcvt.s32.f32 %v1595
      %v1598 = vcvt.s32.f32 %v1596
      %1599 = vmin.xlane.f32.xlu0 %v1598
      %v1600 = vpop.xlane.xlu0 %1599
      %vm1601 = vcmp.eq.f32.partialorder %v1598, %v1600
      %v1602 = vsel %vm1601, %v1597, inf
      %1603 = vmin.xlane.f32.xlu0 %v1602
      %v1604 = vpop.xlane.xlu0 %1603
      %v1605 = vcvt.f32.s32 %v1604
      %v1606 = vcvt.f32.s32 %v1600
      %v1607 = vshll.u32 %v1606, 16
      %v1608 = vadd.s32 %v1607, %v1605
      %v1609 = vand.u32 %v1122, 65535
      %v1610 = vshra.s32 %v1122, 16
      %v1611 = vcvt.s32.f32 %v1609
      %v1612 = vcvt.s32.f32 %v1610
      %1613 = vmin.xlane.f32.xlu0 %v1612
      %v1614 = vpop.xlane.xlu0 %1613
      %vm1615 = vcmp.eq.f32.partialorder %v1612, %v1614
      %v1616 = vsel %vm1615, %v1611, inf
      %1617 = vmin.xlane.f32.xlu0 %v1616
      %v1618 = vpop.xlane.xlu0 %1617
      %v1619 = vcvt.f32.s32 %v1618
      %v1620 = vcvt.f32.s32 %v1614
      %v1621 = vshll.u32 %v1620, 16
      %v1622 = vadd.s32 %v1621, %v1619
      %v1623 = vand.u32 %v1123, 65535
      %v1624 = vshra.s32 %v1123, 16
      %v1625 = vcvt.s32.f32 %v1623
      %v1626 = vcvt.s32.f32 %v1624
      %1627 = vmin.xlane.f32.xlu0 %v1626
      %v1628 = vpop.xlane.xlu0 %1627
      %vm1629 = vcmp.eq.f32.partialorder %v1626, %v1628
      %v1630 = vsel %vm1629, %v1625, inf
      %1631 = vmin.xlane.f32.xlu0 %v1630
      %v1632 = vpop.xlane.xlu0 %1631
      %v1633 = vcvt.f32.s32 %v1632
      %v1634 = vcvt.f32.s32 %v1628
      %v1635 = vshll.u32 %v1634, 16
      %v1636 = vadd.s32 %v1635, %v1633
      %v1637 = vand.u32 %v1202, 127
      %v1638 = vand.u32 %v1216, 127
      %v1639 = vand.u32 %v1230, 127
      %v1640 = vand.u32 %v1244, 127
      %v1641 = vand.u32 %v1258, 127
      %v1642 = vand.u32 %v1272, 127
      %v1643 = vand.u32 %v1286, 127
      %v1644 = vand.u32 %v1300, 127
      %v1645 = vand.u32 %v1314, 127
      %v1646 = vand.u32 %v1328, 127
      %v1647 = vand.u32 %v1342, 127
      %v1648 = vand.u32 %v1356, 127
      %v1649 = vand.u32 %v1370, 127
      %v1650 = vand.u32 %v1384, 127
      %v1651 = vand.u32 %v1398, 127
      %v1652 = vand.u32 %v1412, 127
      %v1653 = vand.u32 %v1426, 127
      %v1654 = vand.u32 %v1440, 127
      %v1655 = vand.u32 %v1454, 127
      %v1656 = vand.u32 %v1468, 127
      %v1657 = vand.u32 %v1482, 127
      %v1658 = vand.u32 %v1496, 127
      %v1659 = vand.u32 %v1510, 127
      %v1660 = vand.u32 %v1524, 127
      %v1661 = vand.u32 %v1538, 127
      %v1662 = vand.u32 %v1552, 127
      %v1663 = vand.u32 %v1566, 127
      %v1664 = vand.u32 %v1580, 127
      %v1665 = vand.u32 %v1594, 127
      %v1666 = vand.u32 %v1608, 127
      %v1667 = vand.u32 %v1622, 127
      %v1668 = vand.u32 %v1636, 127
      %v1669 = vand.u32 %v1202, 4294967168
      %v1670 = vand.u32 %v1216, 4294967168
      %v1671 = vand.u32 %v1230, 4294967168
      %v1672 = vand.u32 %v1244, 4294967168
      %v1673 = vand.u32 %v1258, 4294967168
      %v1674 = vand.u32 %v1272, 4294967168
      %v1675 = vand.u32 %v1286, 4294967168
      %v1676 = vand.u32 %v1300, 4294967168
      %v1677 = vand.u32 %v1314, 4294967168
      %v1678 = vand.u32 %v1328, 4294967168
      %v1679 = vand.u32 %v1342, 4294967168
      %v1680 = vand.u32 %v1356, 4294967168
      %v1681 = vand.u32 %v1370, 4294967168
      %v1682 = vand.u32 %v1384, 4294967168
      %v1683 = vand.u32 %v1398, 4294967168
      %v1684 = vand.u32 %v1412, 4294967168
      %v1685 = vand.u32 %v1426, 4294967168
      %v1686 = vand.u32 %v1440, 4294967168
      %v1687 = vand.u32 %v1454, 4294967168
      %v1688 = vand.u32 %v1468, 4294967168
      %v1689 = vand.u32 %v1482, 4294967168
      %v1690 = vand.u32 %v1496, 4294967168
      %v1691 = vand.u32 %v1510, 4294967168
      %v1692 = vand.u32 %v1524, 4294967168
      %v1693 = vand.u32 %v1538, 4294967168
      %v1694 = vand.u32 %v1552, 4294967168
      %v1695 = vand.u32 %v1566, 4294967168
      %v1696 = vand.u32 %v1580, 4294967168
      %v1697 = vand.u32 %v1594, 4294967168
      %v1698 = vand.u32 %v1608, 4294967168
      %v1699 = vand.u32 %v1622, 4294967168
      %v1700 = vand.u32 %v1636, 4294967168
      %v1701 = vstv %s1124
      %v1702 = vadd.s32 %v1637, %v1701
      %v1703 = vadd.s32 %v1638, %v1701
      %v1704 = vadd.s32 %v1639, %v1701
      %v1705 = vadd.s32 %v1640, %v1701
      %v1706 = vadd.s32 %v1641, %v1701
      %v1707 = vadd.s32 %v1642, %v1701
      %v1708 = vadd.s32 %v1643, %v1701
      %v1709 = vadd.s32 %v1644, %v1701
      %v1710 = vadd.s32 %v1645, %v1701
      %v1711 = vadd.s32 %v1646, %v1701
      %v1712 = vadd.s32 %v1647, %v1701
      %v1713 = vadd.s32 %v1648, %v1701
      %v1714 = vadd.s32 %v1649, %v1701
      %v1715 = vadd.s32 %v1650, %v1701
      %v1716 = vadd.s32 %v1651, %v1701
      %v1717 = vadd.s32 %v1652, %v1701
      %v1718 = vadd.s32 %v1653, %v1701
      %v1719 = vadd.s32 %v1654, %v1701
      %v1720 = vadd.s32 %v1655, %v1701
      %v1721 = vadd.s32 %v1656, %v1701
      %v1722 = vadd.s32 %v1657, %v1701
      %v1723 = vadd.s32 %v1658, %v1701
      %v1724 = vadd.s32 %v1659, %v1701
      %v1725 = vadd.s32 %v1660, %v1701
      %v1726 = vadd.s32 %v1661, %v1701
      %v1727 = vadd.s32 %v1662, %v1701
      %v1728 = vadd.s32 %v1663, %v1701
      %v1729 = vadd.s32 %v1664, %v1701
      %v1730 = vadd.s32 %v1665, %v1701
      %v1731 = vadd.s32 %v1666, %v1701
      %v1732 = vadd.s32 %v1667, %v1701
      %v1733 = vadd.s32 %v1668, %v1701
      %vm1734 = vcmp.eq.s32.totalorder %v963, %v1637
      %vm1735 = vcmp.eq.s32.totalorder %v963, %v1638
      %vm1736 = vcmp.eq.s32.totalorder %v963, %v1639
      %vm1737 = vcmp.eq.s32.totalorder %v963, %v1640
      %vm1738 = vcmp.eq.s32.totalorder %v963, %v1641
      %vm1739 = vcmp.eq.s32.totalorder %v963, %v1642
      %vm1740 = vcmp.eq.s32.totalorder %v963, %v1643
      %vm1741 = vcmp.eq.s32.totalorder %v963, %v1644
      %vm1742 = vcmp.eq.s32.totalorder %v963, %v1645
      %vm1743 = vcmp.eq.s32.totalorder %v963, %v1646
      %vm1744 = vcmp.eq.s32.totalorder %v963, %v1647
      %vm1745 = vcmp.eq.s32.totalorder %v963, %v1648
      %vm1746 = vcmp.eq.s32.totalorder %v963, %v1649
      %vm1747 = vcmp.eq.s32.totalorder %v963, %v1650
      %vm1748 = vcmp.eq.s32.totalorder %v963, %v1651
      %vm1749 = vcmp.eq.s32.totalorder %v963, %v1652
      %vm1750 = vcmp.eq.s32.totalorder %v963, %v1653
      %vm1751 = vcmp.eq.s32.totalorder %v963, %v1654
      %vm1752 = vcmp.eq.s32.totalorder %v963, %v1655
      %vm1753 = vcmp.eq.s32.totalorder %v963, %v1656
      %vm1754 = vcmp.eq.s32.totalorder %v963, %v1657
      %vm1755 = vcmp.eq.s32.totalorder %v963, %v1658
      %vm1756 = vcmp.eq.s32.totalorder %v963, %v1659
      %vm1757 = vcmp.eq.s32.totalorder %v963, %v1660
      %vm1758 = vcmp.eq.s32.totalorder %v963, %v1661
      %vm1759 = vcmp.eq.s32.totalorder %v963, %v1662
      %vm1760 = vcmp.eq.s32.totalorder %v963, %v1663
      %vm1761 = vcmp.eq.s32.totalorder %v963, %v1664
      %vm1762 = vcmp.eq.s32.totalorder %v963, %v1665
      %vm1763 = vcmp.eq.s32.totalorder %v963, %v1666
      %vm1764 = vcmp.eq.s32.totalorder %v963, %v1667
      %vm1765 = vcmp.eq.s32.totalorder %v963, %v1668
      %v1766 = vsel %vm1734, 2147483647, %v1092
      %v1767 = vsel %vm1735, 2147483647, %v1093
      %v1768 = vsel %vm1736, 2147483647, %v1094
      %v1769 = vsel %vm1737, 2147483647, %v1095
      %v1770 = vsel %vm1738, 2147483647, %v1096
      %v1771 = vsel %vm1739, 2147483647, %v1097
      %v1772 = vsel %vm1740, 2147483647, %v1098
      %v1773 = vsel %vm1741, 2147483647, %v1099
      %v1774 = vsel %vm1742, 2147483647, %v1100
      %v1775 = vsel %vm1743, 2147483647, %v1101
      %v1776 = vsel %vm1744, 2147483647, %v1102
      %v1777 = vsel %vm1745, 2147483647, %v1103
      %v1778 = vsel %vm1746, 2147483647, %v1104
      %v1779 = vsel %vm1747, 2147483647, %v1105
      %v1780 = vsel %vm1748, 2147483647, %v1106
      %v1781 = vsel %vm1749, 2147483647, %v1107
      %v1782 = vsel %vm1750, 2147483647, %v1108
      %v1783 = vsel %vm1751, 2147483647, %v1109
      %v1784 = vsel %vm1752, 2147483647, %v1110
      %v1785 = vsel %vm1753, 2147483647, %v1111
      %v1786 = vsel %vm1754, 2147483647, %v1112
      %v1787 = vsel %vm1755, 2147483647, %v1113
      %v1788 = vsel %vm1756, 2147483647, %v1114
      %v1789 = vsel %vm1757, 2147483647, %v1115
      %v1790 = vsel %vm1758, 2147483647, %v1116
      %v1791 = vsel %vm1759, 2147483647, %v1117
      %v1792 = vsel %vm1760, 2147483647, %v1118
      %v1793 = vsel %vm1761, 2147483647, %v1119
      %v1794 = vsel %vm1762, 2147483647, %v1120
      %v1795 = vsel %vm1763, 2147483647, %v1121
      %v1796 = vsel %vm1764, 2147483647, %v1122
      %v1797 = vsel %vm1765, 2147483647, %v1123
      %vm1798 = vcmp.lt.s32.totalorder %v1669, %v1125
      %vm1799 = vcmp.lt.s32.totalorder %v1670, %v1126
      %vm1800 = vcmp.lt.s32.totalorder %v1671, %v1127
      %vm1801 = vcmp.lt.s32.totalorder %v1672, %v1128
      %vm1802 = vcmp.lt.s32.totalorder %v1673, %v1129
      %vm1803 = vcmp.lt.s32.totalorder %v1674, %v1130
      %vm1804 = vcmp.lt.s32.totalorder %v1675, %v1131
      %vm1805 = vcmp.lt.s32.totalorder %v1676, %v1132
      %vm1806 = vcmp.lt.s32.totalorder %v1677, %v1133
      %vm1807 = vcmp.lt.s32.totalorder %v1678, %v1134
      %vm1808 = vcmp.lt.s32.totalorder %v1679, %v1135
      %vm1809 = vcmp.lt.s32.totalorder %v1680, %v1136
      %vm1810 = vcmp.lt.s32.totalorder %v1681, %v1137
      %vm1811 = vcmp.lt.s32.totalorder %v1682, %v1138
      %vm1812 = vcmp.lt.s32.totalorder %v1683, %v1139
      %vm1813 = vcmp.lt.s32.totalorder %v1684, %v1140
      %vm1814 = vcmp.lt.s32.totalorder %v1685, %v1141
      %vm1815 = vcmp.lt.s32.totalorder %v1686, %v1142
      %vm1816 = vcmp.lt.s32.totalorder %v1687, %v1143
      %vm1817 = vcmp.lt.s32.totalorder %v1688, %v1144
      %vm1818 = vcmp.lt.s32.totalorder %v1689, %v1145
      %vm1819 = vcmp.lt.s32.totalorder %v1690, %v1146
      %vm1820 = vcmp.lt.s32.totalorder %v1691, %v1147
      %vm1821 = vcmp.lt.s32.totalorder %v1692, %v1148
      %vm1822 = vcmp.lt.s32.totalorder %v1693, %v1149
      %vm1823 = vcmp.lt.s32.totalorder %v1694, %v1150
      %vm1824 = vcmp.lt.s32.totalorder %v1695, %v1151
      %vm1825 = vcmp.lt.s32.totalorder %v1696, %v1152
      %vm1826 = vcmp.lt.s32.totalorder %v1697, %v1153
      %vm1827 = vcmp.lt.s32.totalorder %v1698, %v1154
      %vm1828 = vcmp.lt.s32.totalorder %v1699, %v1155
      %vm1829 = vcmp.lt.s32.totalorder %v1700, %v1156
      %vm1830 = vcmp.eq.s32.totalorder %v1669, %v1125
      %vm1831 = vcmp.eq.s32.totalorder %v1670, %v1126
      %vm1832 = vcmp.eq.s32.totalorder %v1671, %v1127
      %vm1833 = vcmp.eq.s32.totalorder %v1672, %v1128
      %vm1834 = vcmp.eq.s32.totalorder %v1673, %v1129
      %vm1835 = vcmp.eq.s32.totalorder %v1674, %v1130
      %vm1836 = vcmp.eq.s32.totalorder %v1675, %v1131
      %vm1837 = vcmp.eq.s32.totalorder %v1676, %v1132
      %vm1838 = vcmp.eq.s32.totalorder %v1677, %v1133
      %vm1839 = vcmp.eq.s32.totalorder %v1678, %v1134
      %vm1840 = vcmp.eq.s32.totalorder %v1679, %v1135
      %vm1841 = vcmp.eq.s32.totalorder %v1680, %v1136
      %vm1842 = vcmp.eq.s32.totalorder %v1681, %v1137
      %vm1843 = vcmp.eq.s32.totalorder %v1682, %v1138
      %vm1844 = vcmp.eq.s32.totalorder %v1683, %v1139
      %vm1845 = vcmp.eq.s32.totalorder %v1684, %v1140
      %vm1846 = vcmp.eq.s32.totalorder %v1685, %v1141
      %vm1847 = vcmp.eq.s32.totalorder %v1686, %v1142
      %vm1848 = vcmp.eq.s32.totalorder %v1687, %v1143
      %vm1849 = vcmp.eq.s32.totalorder %v1688, %v1144
      %vm1850 = vcmp.eq.s32.totalorder %v1689, %v1145
      %vm1851 = vcmp.eq.s32.totalorder %v1690, %v1146
      %vm1852 = vcmp.eq.s32.totalorder %v1691, %v1147
      %vm1853 = vcmp.eq.s32.totalorder %v1692, %v1148
      %vm1854 = vcmp.eq.s32.totalorder %v1693, %v1149
      %vm1855 = vcmp.eq.s32.totalorder %v1694, %v1150
      %vm1856 = vcmp.eq.s32.totalorder %v1695, %v1151
      %vm1857 = vcmp.eq.s32.totalorder %v1696, %v1152
      %vm1858 = vcmp.eq.s32.totalorder %v1697, %v1153
      %vm1859 = vcmp.eq.s32.totalorder %v1698, %v1154
      %vm1860 = vcmp.eq.s32.totalorder %v1699, %v1155
      %vm1861 = vcmp.eq.s32.totalorder %v1700, %v1156
      %vm1862 = vcmp.lt.s32.totalorder %v1702, %v1157
      %vm1863 = vcmp.lt.s32.totalorder %v1703, %v1158
      %vm1864 = vcmp.lt.s32.totalorder %v1704, %v1159
      %vm1865 = vcmp.lt.s32.totalorder %v1705, %v1160
      %vm1866 = vcmp.lt.s32.totalorder %v1706, %v1161
      %vm1867 = vcmp.lt.s32.totalorder %v1707, %v1162
      %vm1868 = vcmp.lt.s32.totalorder %v1708, %v1163
      %vm1869 = vcmp.lt.s32.totalorder %v1709, %v1164
      %vm1870 = vcmp.lt.s32.totalorder %v1710, %v1165
      %vm1871 = vcmp.lt.s32.totalorder %v1711, %v1166
      %vm1872 = vcmp.lt.s32.totalorder %v1712, %v1167
      %vm1873 = vcmp.lt.s32.totalorder %v1713, %v1168
      %vm1874 = vcmp.lt.s32.totalorder %v1714, %v1169
      %vm1875 = vcmp.lt.s32.totalorder %v1715, %v1170
      %vm1876 = vcmp.lt.s32.totalorder %v1716, %v1171
      %vm1877 = vcmp.lt.s32.totalorder %v1717, %v1172
      %vm1878 = vcmp.lt.s32.totalorder %v1718, %v1173
      %vm1879 = vcmp.lt.s32.totalorder %v1719, %v1174
      %vm1880 = vcmp.lt.s32.totalorder %v1720, %v1175
      %vm1881 = vcmp.lt.s32.totalorder %v1721, %v1176
      %vm1882 = vcmp.lt.s32.totalorder %v1722, %v1177
      %vm1883 = vcmp.lt.s32.totalorder %v1723, %v1178
      %vm1884 = vcmp.lt.s32.totalorder %v1724, %v1179
      %vm1885 = vcmp.lt.s32.totalorder %v1725, %v1180
      %vm1886 = vcmp.lt.s32.totalorder %v1726, %v1181
      %vm1887 = vcmp.lt.s32.totalorder %v1727, %v1182
      %vm1888 = vcmp.lt.s32.totalorder %v1728, %v1183
      %vm1889 = vcmp.lt.s32.totalorder %v1729, %v1184
      %vm1890 = vcmp.lt.s32.totalorder %v1730, %v1185
      %vm1891 = vcmp.lt.s32.totalorder %v1731, %v1186
      %vm1892 = vcmp.lt.s32.totalorder %v1732, %v1187
      %vm1893 = vcmp.lt.s32.totalorder %v1733, %v1188
      %vm1894 = vmand %vm1830, %vm1862
      %vm1895 = vmand %vm1831, %vm1863
      %vm1896 = vmand %vm1832, %vm1864
      %vm1897 = vmand %vm1833, %vm1865
      %vm1898 = vmand %vm1834, %vm1866
      %vm1899 = vmand %vm1835, %vm1867
      %vm1900 = vmand %vm1836, %vm1868
      %vm1901 = vmand %vm1837, %vm1869
      %vm1902 = vmand %vm1838, %vm1870
      %vm1903 = vmand %vm1839, %vm1871
      %vm1904 = vmand %vm1840, %vm1872
      %vm1905 = vmand %vm1841, %vm1873
      %vm1906 = vmand %vm1842, %vm1874
      %vm1907 = vmand %vm1843, %vm1875
      %vm1908 = vmand %vm1844, %vm1876
      %vm1909 = vmand %vm1845, %vm1877
      %vm1910 = vmand %vm1846, %vm1878
      %vm1911 = vmand %vm1847, %vm1879
      %vm1912 = vmand %vm1848, %vm1880
      %vm1913 = vmand %vm1849, %vm1881
      %vm1914 = vmand %vm1850, %vm1882
      %vm1915 = vmand %vm1851, %vm1883
      %vm1916 = vmand %vm1852, %vm1884
      %vm1917 = vmand %vm1853, %vm1885
      %vm1918 = vmand %vm1854, %vm1886
      %vm1919 = vmand %vm1855, %vm1887
      %vm1920 = vmand %vm1856, %vm1888
      %vm1921 = vmand %vm1857, %vm1889
      %vm1922 = vmand %vm1858, %vm1890
      %vm1923 = vmand %vm1859, %vm1891
      %vm1924 = vmand %vm1860, %vm1892
      %vm1925 = vmand %vm1861, %vm1893
      %vm1926 = vmor %vm1798, %vm1894
      %vm1927 = vmor %vm1799, %vm1895
      %vm1928 = vmor %vm1800, %vm1896
      %vm1929 = vmor %vm1801, %vm1897
      %vm1930 = vmor %vm1802, %vm1898
      %vm1931 = vmor %vm1803, %vm1899
      %vm1932 = vmor %vm1804, %vm1900
      %vm1933 = vmor %vm1805, %vm1901
      %vm1934 = vmor %vm1806, %vm1902
      %vm1935 = vmor %vm1807, %vm1903
      %vm1936 = vmor %vm1808, %vm1904
      %vm1937 = vmor %vm1809, %vm1905
      %vm1938 = vmor %vm1810, %vm1906
      %vm1939 = vmor %vm1811, %vm1907
      %vm1940 = vmor %vm1812, %vm1908
      %vm1941 = vmor %vm1813, %vm1909
      %vm1942 = vmor %vm1814, %vm1910
      %vm1943 = vmor %vm1815, %vm1911
      %vm1944 = vmor %vm1816, %vm1912
      %vm1945 = vmor %vm1817, %vm1913
      %vm1946 = vmor %vm1818, %vm1914
      %vm1947 = vmor %vm1819, %vm1915
      %vm1948 = vmor %vm1820, %vm1916
      %vm1949 = vmor %vm1821, %vm1917
      %vm1950 = vmor %vm1822, %vm1918
      %vm1951 = vmor %vm1823, %vm1919
      %vm1952 = vmor %vm1824, %vm1920
      %vm1953 = vmor %vm1825, %vm1921
      %vm1954 = vmor %vm1826, %vm1922
      %vm1955 = vmor %vm1827, %vm1923
      %vm1956 = vmor %vm1828, %vm1924
      %vm1957 = vmor %vm1829, %vm1925
      %v1958 = vsel %vm1926, %v1669, %v1125
      %v1959 = vsel %vm1927, %v1670, %v1126
      %v1960 = vsel %vm1928, %v1671, %v1127
      %v1961 = vsel %vm1929, %v1672, %v1128
      %v1962 = vsel %vm1930, %v1673, %v1129
      %v1963 = vsel %vm1931, %v1674, %v1130
      %v1964 = vsel %vm1932, %v1675, %v1131
      %v1965 = vsel %vm1933, %v1676, %v1132
      %v1966 = vsel %vm1934, %v1677, %v1133
      %v1967 = vsel %vm1935, %v1678, %v1134
      %v1968 = vsel %vm1936, %v1679, %v1135
      %v1969 = vsel %vm1937, %v1680, %v1136
      %v1970 = vsel %vm1938, %v1681, %v1137
      %v1971 = vsel %vm1939, %v1682, %v1138
      %v1972 = vsel %vm1940, %v1683, %v1139
      %v1973 = vsel %vm1941, %v1684, %v1140
      %v1974 = vsel %vm1942, %v1685, %v1141
      %v1975 = vsel %vm1943, %v1686, %v1142
      %v1976 = vsel %vm1944, %v1687, %v1143
      %v1977 = vsel %vm1945, %v1688, %v1144
      %v1978 = vsel %vm1946, %v1689, %v1145
      %v1979 = vsel %vm1947, %v1690, %v1146
      %v1980 = vsel %vm1948, %v1691, %v1147
      %v1981 = vsel %vm1949, %v1692, %v1148
      %v1982 = vsel %vm1950, %v1693, %v1149
      %v1983 = vsel %vm1951, %v1694, %v1150
      %v1984 = vsel %vm1952, %v1695, %v1151
      %v1985 = vsel %vm1953, %v1696, %v1152
      %v1986 = vsel %vm1954, %v1697, %v1153
      %v1987 = vsel %vm1955, %v1698, %v1154
      %v1988 = vsel %vm1956, %v1699, %v1155
      %v1989 = vsel %vm1957, %v1700, %v1156
      %v1990 = vsel %vm1926, %v1702, %v1157
      %v1991 = vsel %vm1927, %v1703, %v1158
      %v1992 = vsel %vm1928, %v1704, %v1159
      %v1993 = vsel %vm1929, %v1705, %v1160
      %v1994 = vsel %vm1930, %v1706, %v1161
      %v1995 = vsel %vm1931, %v1707, %v1162
      %v1996 = vsel %vm1932, %v1708, %v1163
      %v1997 = vsel %vm1933, %v1709, %v1164
      %v1998 = vsel %vm1934, %v1710, %v1165
      %v1999 = vsel %vm1935, %v1711, %v1166
      %v2000 = vsel %vm1936, %v1712, %v1167
      %v2001 = vsel %vm1937, %v1713, %v1168
      %v2002 = vsel %vm1938, %v1714, %v1169
      %v2003 = vsel %vm1939, %v1715, %v1170
      %v2004 = vsel %vm1940, %v1716, %v1171
      %v2005 = vsel %vm1941, %v1717, %v1172
      %v2006 = vsel %vm1942, %v1718, %v1173
      %v2007 = vsel %vm1943, %v1719, %v1174
      %v2008 = vsel %vm1944, %v1720, %v1175
      %v2009 = vsel %vm1945, %v1721, %v1176
      %v2010 = vsel %vm1946, %v1722, %v1177
      %v2011 = vsel %vm1947, %v1723, %v1178
      %v2012 = vsel %vm1948, %v1724, %v1179
      %v2013 = vsel %vm1949, %v1725, %v1180
      %v2014 = vsel %vm1950, %v1726, %v1181
      %v2015 = vsel %vm1951, %v1727, %v1182
      %v2016 = vsel %vm1952, %v1728, %v1183
      %v2017 = vsel %vm1953, %v1729, %v1184
      %v2018 = vsel %vm1954, %v1730, %v1185
      %v2019 = vsel %vm1955, %v1731, %v1186
      %v2020 = vsel %vm1956, %v1732, %v1187
      %v2021 = vsel %vm1957, %v1733, %v1188
      %v2022 = vsel %vm1926, %v1125, %v1669
      %v2023 = vsel %vm1927, %v1126, %v1670
      %v2024 = vsel %vm1928, %v1127, %v1671
      %v2025 = vsel %vm1929, %v1128, %v1672
      %v2026 = vsel %vm1930, %v1129, %v1673
      %v2027 = vsel %vm1931, %v1130, %v1674
      %v2028 = vsel %vm1932, %v1131, %v1675
      %v2029 = vsel %vm1933, %v1132, %v1676
      %v2030 = vsel %vm1934, %v1133, %v1677
      %v2031 = vsel %vm1935, %v1134, %v1678
      %v2032 = vsel %vm1936, %v1135, %v1679
      %v2033 = vsel %vm1937, %v1136, %v1680
      %v2034 = vsel %vm1938, %v1137, %v1681
      %v2035 = vsel %vm1939, %v1138, %v1682
      %v2036 = vsel %vm1940, %v1139, %v1683
      %v2037 = vsel %vm1941, %v1140, %v1684
      %v2038 = vsel %vm1942, %v1141, %v1685
      %v2039 = vsel %vm1943, %v1142, %v1686
      %v2040 = vsel %vm1944, %v1143, %v1687
      %v2041 = vsel %vm1945, %v1144, %v1688
      %v2042 = vsel %vm1946, %v1145, %v1689
      %v2043 = vsel %vm1947, %v1146, %v1690
      %v2044 = vsel %vm1948, %v1147, %v1691
      %v2045 = vsel %vm1949, %v1148, %v1692
      %v2046 = vsel %vm1950, %v1149, %v1693
      %v2047 = vsel %vm1951, %v1150, %v1694
      %v2048 = vsel %vm1952, %v1151, %v1695
      %v2049 = vsel %vm1953, %v1152, %v1696
      %v2050 = vsel %vm1954, %v1153, %v1697
      %v2051 = vsel %vm1955, %v1154, %v1698
      %v2052 = vsel %vm1956, %v1155, %v1699
      %v2053 = vsel %vm1957, %v1156, %v1700
      %v2054 = vsel %vm1926, %v1157, %v1702
      %v2055 = vsel %vm1927, %v1158, %v1703
      %v2056 = vsel %vm1928, %v1159, %v1704
      %v2057 = vsel %vm1929, %v1160, %v1705
      %v2058 = vsel %vm1930, %v1161, %v1706
      %v2059 = vsel %vm1931, %v1162, %v1707
      %v2060 = vsel %vm1932, %v1163, %v1708
      %v2061 = vsel %vm1933, %v1164, %v1709
      %v2062 = vsel %vm1934, %v1165, %v1710
      %v2063 = vsel %vm1935, %v1166, %v1711
      %v2064 = vsel %vm1936, %v1167, %v1712
      %v2065 = vsel %vm1937, %v1168, %v1713
      %v2066 = vsel %vm1938, %v1169, %v1714
      %v2067 = vsel %vm1939, %v1170, %v1715
      %v2068 = vsel %vm1940, %v1171, %v1716
      %v2069 = vsel %vm1941, %v1172, %v1717
      %v2070 = vsel %vm1942, %v1173, %v1718
      %v2071 = vsel %vm1943, %v1174, %v1719
      %v2072 = vsel %vm1944, %v1175, %v1720
      %v2073 = vsel %vm1945, %v1176, %v1721
      %v2074 = vsel %vm1946, %v1177, %v1722
      %v2075 = vsel %vm1947, %v1178, %v1723
      %v2076 = vsel %vm1948, %v1179, %v1724
      %v2077 = vsel %vm1949, %v1180, %v1725
      %v2078 = vsel %vm1950, %v1181, %v1726
      %v2079 = vsel %vm1951, %v1182, %v1727
      %v2080 = vsel %vm1952, %v1183, %v1728
      %v2081 = vsel %vm1953, %v1184, %v1729
      %v2082 = vsel %vm1954, %v1185, %v1730
      %v2083 = vsel %vm1955, %v1186, %v1731
      %v2084 = vsel %vm1956, %v1187, %v1732
      %v2085 = vsel %vm1957, %v1188, %v1733
      %2086 = vrot.lane.b32.xlu0 %v1125, 127
      %v2087 = vpop.permute.xlu0 %2086
      %2088 = vrot.lane.b32.xlu0 %v1126, 127
      %v2089 = vpop.permute.xlu0 %2088
      %2090 = vrot.lane.b32.xlu0 %v1127, 127
      %v2091 = vpop.permute.xlu0 %2090
      %2092 = vrot.lane.b32.xlu0 %v1128, 127
      %v2093 = vpop.permute.xlu0 %2092
      %2094 = vrot.lane.b32.xlu0 %v1129, 127
      %v2095 = vpop.permute.xlu0 %2094
      %2096 = vrot.lane.b32.xlu0 %v1130, 127
      %v2097 = vpop.permute.xlu0 %2096
      %2098 = vrot.lane.b32.xlu0 %v1131, 127
      %v2099 = vpop.permute.xlu0 %2098
      %2100 = vrot.lane.b32.xlu0 %v1132, 127
      %v2101 = vpop.permute.xlu0 %2100
      %2102 = vrot.lane.b32.xlu0 %v1133, 127
      %v2103 = vpop.permute.xlu0 %2102
      %2104 = vrot.lane.b32.xlu0 %v1134, 127
      %v2105 = vpop.permute.xlu0 %2104
      %2106 = vrot.lane.b32.xlu0 %v1135, 127
      %v2107 = vpop.permute.xlu0 %2106
      %2108 = vrot.lane.b32.xlu0 %v1136, 127
      %v2109 = vpop.permute.xlu0 %2108
      %2110 = vrot.lane.b32.xlu0 %v1137, 127
      %v2111 = vpop.permute.xlu0 %2110
      %2112 = vrot.lane.b32.xlu0 %v1138, 127
      %v2113 = vpop.permute.xlu0 %2112
      %2114 = vrot.lane.b32.xlu0 %v1139, 127
      %v2115 = vpop.permute.xlu0 %2114
      %2116 = vrot.lane.b32.xlu0 %v1140, 127
      %v2117 = vpop.permute.xlu0 %2116
      %2118 = vrot.lane.b32.xlu0 %v1141, 127
      %v2119 = vpop.permute.xlu0 %2118
      %2120 = vrot.lane.b32.xlu0 %v1142, 127
      %v2121 = vpop.permute.xlu0 %2120
      %2122 = vrot.lane.b32.xlu0 %v1143, 127
      %v2123 = vpop.permute.xlu0 %2122
      %2124 = vrot.lane.b32.xlu0 %v1144, 127
      %v2125 = vpop.permute.xlu0 %2124
      %2126 = vrot.lane.b32.xlu0 %v1145, 127
      %v2127 = vpop.permute.xlu0 %2126
      %2128 = vrot.lane.b32.xlu0 %v1146, 127
      %v2129 = vpop.permute.xlu0 %2128
      %2130 = vrot.lane.b32.xlu0 %v1147, 127
      %v2131 = vpop.permute.xlu0 %2130
      %2132 = vrot.lane.b32.xlu0 %v1148, 127
      %v2133 = vpop.permute.xlu0 %2132
      %2134 = vrot.lane.b32.xlu0 %v1149, 127
      %v2135 = vpop.permute.xlu0 %2134
      %2136 = vrot.lane.b32.xlu0 %v1150, 127
      %v2137 = vpop.permute.xlu0 %2136
      %2138 = vrot.lane.b32.xlu0 %v1151, 127
      %v2139 = vpop.permute.xlu0 %2138
      %2140 = vrot.lane.b32.xlu0 %v1152, 127
      %v2141 = vpop.permute.xlu0 %2140
      %2142 = vrot.lane.b32.xlu0 %v1153, 127
      %v2143 = vpop.permute.xlu0 %2142
      %2144 = vrot.lane.b32.xlu0 %v1154, 127
      %v2145 = vpop.permute.xlu0 %2144
      %2146 = vrot.lane.b32.xlu0 %v1155, 127
      %v2147 = vpop.permute.xlu0 %2146
      %2148 = vrot.lane.b32.xlu0 %v1156, 127
      %v2149 = vpop.permute.xlu0 %2148
      %vm2150 = vcmp.lt.s32.totalorder %v2022, %v2087
      %vm2151 = vcmp.lt.s32.totalorder %v2023, %v2089
      %vm2152 = vcmp.lt.s32.totalorder %v2024, %v2091
      %vm2153 = vcmp.lt.s32.totalorder %v2025, %v2093
      %vm2154 = vcmp.lt.s32.totalorder %v2026, %v2095
      %vm2155 = vcmp.lt.s32.totalorder %v2027, %v2097
      %vm2156 = vcmp.lt.s32.totalorder %v2028, %v2099
      %vm2157 = vcmp.lt.s32.totalorder %v2029, %v2101
      %vm2158 = vcmp.lt.s32.totalorder %v2030, %v2103
      %vm2159 = vcmp.lt.s32.totalorder %v2031, %v2105
      %vm2160 = vcmp.lt.s32.totalorder %v2032, %v2107
      %vm2161 = vcmp.lt.s32.totalorder %v2033, %v2109
      %vm2162 = vcmp.lt.s32.totalorder %v2034, %v2111
      %vm2163 = vcmp.lt.s32.totalorder %v2035, %v2113
      %vm2164 = vcmp.lt.s32.totalorder %v2036, %v2115
      %vm2165 = vcmp.lt.s32.totalorder %v2037, %v2117
      %vm2166 = vcmp.lt.s32.totalorder %v2038, %v2119
      %vm2167 = vcmp.lt.s32.totalorder %v2039, %v2121
      %vm2168 = vcmp.lt.s32.totalorder %v2040, %v2123
      %vm2169 = vcmp.lt.s32.totalorder %v2041, %v2125
      %vm2170 = vcmp.lt.s32.totalorder %v2042, %v2127
      %vm2171 = vcmp.lt.s32.totalorder %v2043, %v2129
      %vm2172 = vcmp.lt.s32.totalorder %v2044, %v2131
      %vm2173 = vcmp.lt.s32.totalorder %v2045, %v2133
      %vm2174 = vcmp.lt.s32.totalorder %v2046, %v2135
      %vm2175 = vcmp.lt.s32.totalorder %v2047, %v2137
      %vm2176 = vcmp.lt.s32.totalorder %v2048, %v2139
      %vm2177 = vcmp.lt.s32.totalorder %v2049, %v2141
      %vm2178 = vcmp.lt.s32.totalorder %v2050, %v2143
      %vm2179 = vcmp.lt.s32.totalorder %v2051, %v2145
      %vm2180 = vcmp.lt.s32.totalorder %v2052, %v2147
      %vm2181 = vcmp.lt.s32.totalorder %v2053, %v2149
      %vm2182 = vcmp.eq.s32.totalorder %v2022, %v2087
      %vm2183 = vcmp.eq.s32.totalorder %v2023, %v2089
      %vm2184 = vcmp.eq.s32.totalorder %v2024, %v2091
      %vm2185 = vcmp.eq.s32.totalorder %v2025, %v2093
      %vm2186 = vcmp.eq.s32.totalorder %v2026, %v2095
      %vm2187 = vcmp.eq.s32.totalorder %v2027, %v2097
      %vm2188 = vcmp.eq.s32.totalorder %v2028, %v2099
      %vm2189 = vcmp.eq.s32.totalorder %v2029, %v2101
      %vm2190 = vcmp.eq.s32.totalorder %v2030, %v2103
      %vm2191 = vcmp.eq.s32.totalorder %v2031, %v2105
      %vm2192 = vcmp.eq.s32.totalorder %v2032, %v2107
      %vm2193 = vcmp.eq.s32.totalorder %v2033, %v2109
      %vm2194 = vcmp.eq.s32.totalorder %v2034, %v2111
      %vm2195 = vcmp.eq.s32.totalorder %v2035, %v2113
      %vm2196 = vcmp.eq.s32.totalorder %v2036, %v2115
      %vm2197 = vcmp.eq.s32.totalorder %v2037, %v2117
      %vm2198 = vcmp.eq.s32.totalorder %v2038, %v2119
      %vm2199 = vcmp.eq.s32.totalorder %v2039, %v2121
      %vm2200 = vcmp.eq.s32.totalorder %v2040, %v2123
      %vm2201 = vcmp.eq.s32.totalorder %v2041, %v2125
      %vm2202 = vcmp.eq.s32.totalorder %v2042, %v2127
      %vm2203 = vcmp.eq.s32.totalorder %v2043, %v2129
      %vm2204 = vcmp.eq.s32.totalorder %v2044, %v2131
      %vm2205 = vcmp.eq.s32.totalorder %v2045, %v2133
      %vm2206 = vcmp.eq.s32.totalorder %v2046, %v2135
      %vm2207 = vcmp.eq.s32.totalorder %v2047, %v2137
      %vm2208 = vcmp.eq.s32.totalorder %v2048, %v2139
      %vm2209 = vcmp.eq.s32.totalorder %v2049, %v2141
      %vm2210 = vcmp.eq.s32.totalorder %v2050, %v2143
      %vm2211 = vcmp.eq.s32.totalorder %v2051, %v2145
      %vm2212 = vcmp.eq.s32.totalorder %v2052, %v2147
      %vm2213 = vcmp.eq.s32.totalorder %v2053, %v2149
      %2214 = vrot.lane.b32.xlu0 %v1157, 127
      %v2215 = vpop.permute.xlu0 %2214
      %2216 = vrot.lane.b32.xlu0 %v1158, 127
      %v2217 = vpop.permute.xlu0 %2216
      %2218 = vrot.lane.b32.xlu0 %v1159, 127
      %v2219 = vpop.permute.xlu0 %2218
      %2220 = vrot.lane.b32.xlu0 %v1160, 127
      %v2221 = vpop.permute.xlu0 %2220
      %2222 = vrot.lane.b32.xlu0 %v1161, 127
      %v2223 = vpop.permute.xlu0 %2222
      %2224 = vrot.lane.b32.xlu0 %v1162, 127
      %v2225 = vpop.permute.xlu0 %2224
      %2226 = vrot.lane.b32.xlu0 %v1163, 127
      %v2227 = vpop.permute.xlu0 %2226
      %2228 = vrot.lane.b32.xlu0 %v1164, 127
      %v2229 = vpop.permute.xlu0 %2228
      %2230 = vrot.lane.b32.xlu0 %v1165, 127
      %v2231 = vpop.permute.xlu0 %2230
      %2232 = vrot.lane.b32.xlu0 %v1166, 127
      %v2233 = vpop.permute.xlu0 %2232
      %2234 = vrot.lane.b32.xlu0 %v1167, 127
      %v2235 = vpop.permute.xlu0 %2234
      %2236 = vrot.lane.b32.xlu0 %v1168, 127
      %v2237 = vpop.permute.xlu0 %2236
      %2238 = vrot.lane.b32.xlu0 %v1169, 127
      %v2239 = vpop.permute.xlu0 %2238
      %2240 = vrot.lane.b32.xlu0 %v1170, 127
      %v2241 = vpop.permute.xlu0 %2240
      %2242 = vrot.lane.b32.xlu0 %v1171, 127
      %v2243 = vpop.permute.xlu0 %2242
      %2244 = vrot.lane.b32.xlu0 %v1172, 127
      %v2245 = vpop.permute.xlu0 %2244
      %2246 = vrot.lane.b32.xlu0 %v1173, 127
      %v2247 = vpop.permute.xlu0 %2246
      %2248 = vrot.lane.b32.xlu0 %v1174, 127
      %v2249 = vpop.permute.xlu0 %2248
      %2250 = vrot.lane.b32.xlu0 %v1175, 127
      %v2251 = vpop.permute.xlu0 %2250
      %2252 = vrot.lane.b32.xlu0 %v1176, 127
      %v2253 = vpop.permute.xlu0 %2252
      %2254 = vrot.lane.b32.xlu0 %v1177, 127
      %v2255 = vpop.permute.xlu0 %2254
      %2256 = vrot.lane.b32.xlu0 %v1178, 127
      %v2257 = vpop.permute.xlu0 %2256
      %2258 = vrot.lane.b32.xlu0 %v1179, 127
      %v2259 = vpop.permute.xlu0 %2258
      %2260 = vrot.lane.b32.xlu0 %v1180, 127
      %v2261 = vpop.permute.xlu0 %2260
      %2262 = vrot.lane.b32.xlu0 %v1181, 127
      %v2263 = vpop.permute.xlu0 %2262
      %2264 = vrot.lane.b32.xlu0 %v1182, 127
      %v2265 = vpop.permute.xlu0 %2264
      %2266 = vrot.lane.b32.xlu0 %v1183, 127
      %v2267 = vpop.permute.xlu0 %2266
      %2268 = vrot.lane.b32.xlu0 %v1184, 127
      %v2269 = vpop.permute.xlu0 %2268
      %2270 = vrot.lane.b32.xlu0 %v1185, 127
      %v2271 = vpop.permute.xlu0 %2270
      %2272 = vrot.lane.b32.xlu0 %v1186, 127
      %v2273 = vpop.permute.xlu0 %2272
      %2274 = vrot.lane.b32.xlu0 %v1187, 127
      %v2275 = vpop.permute.xlu0 %2274
      %2276 = vrot.lane.b32.xlu0 %v1188, 127
      %v2277 = vpop.permute.xlu0 %2276
      %vm2278 = vcmp.lt.s32.totalorder %v2054, %v2215
      %vm2279 = vcmp.lt.s32.totalorder %v2055, %v2217
      %vm2280 = vcmp.lt.s32.totalorder %v2056, %v2219
      %vm2281 = vcmp.lt.s32.totalorder %v2057, %v2221
      %vm2282 = vcmp.lt.s32.totalorder %v2058, %v2223
      %vm2283 = vcmp.lt.s32.totalorder %v2059, %v2225
      %vm2284 = vcmp.lt.s32.totalorder %v2060, %v2227
      %vm2285 = vcmp.lt.s32.totalorder %v2061, %v2229
      %vm2286 = vcmp.lt.s32.totalorder %v2062, %v2231
      %vm2287 = vcmp.lt.s32.totalorder %v2063, %v2233
      %vm2288 = vcmp.lt.s32.totalorder %v2064, %v2235
      %vm2289 = vcmp.lt.s32.totalorder %v2065, %v2237
      %vm2290 = vcmp.lt.s32.totalorder %v2066, %v2239
      %vm2291 = vcmp.lt.s32.totalorder %v2067, %v2241
      %vm2292 = vcmp.lt.s32.totalorder %v2068, %v2243
      %vm2293 = vcmp.lt.s32.totalorder %v2069, %v2245
      %vm2294 = vcmp.lt.s32.totalorder %v2070, %v2247
      %vm2295 = vcmp.lt.s32.totalorder %v2071, %v2249
      %vm2296 = vcmp.lt.s32.totalorder %v2072, %v2251
      %vm2297 = vcmp.lt.s32.totalorder %v2073, %v2253
      %vm2298 = vcmp.lt.s32.totalorder %v2074, %v2255
      %vm2299 = vcmp.lt.s32.totalorder %v2075, %v2257
      %vm2300 = vcmp.lt.s32.totalorder %v2076, %v2259
      %vm2301 = vcmp.lt.s32.totalorder %v2077, %v2261
      %vm2302 = vcmp.lt.s32.totalorder %v2078, %v2263
      %vm2303 = vcmp.lt.s32.totalorder %v2079, %v2265
      %vm2304 = vcmp.lt.s32.totalorder %v2080, %v2267
      %vm2305 = vcmp.lt.s32.totalorder %v2081, %v2269
      %vm2306 = vcmp.lt.s32.totalorder %v2082, %v2271
      %vm2307 = vcmp.lt.s32.totalorder %v2083, %v2273
      %vm2308 = vcmp.lt.s32.totalorder %v2084, %v2275
      %vm2309 = vcmp.lt.s32.totalorder %v2085, %v2277
      %vm2310 = vmand %vm2182, %vm2278
      %vm2311 = vmand %vm2183, %vm2279
      %vm2312 = vmand %vm2184, %vm2280
      %vm2313 = vmand %vm2185, %vm2281
      %vm2314 = vmand %vm2186, %vm2282
      %vm2315 = vmand %vm2187, %vm2283
      %vm2316 = vmand %vm2188, %vm2284
      %vm2317 = vmand %vm2189, %vm2285
      %vm2318 = vmand %vm2190, %vm2286
      %vm2319 = vmand %vm2191, %vm2287
      %vm2320 = vmand %vm2192, %vm2288
      %vm2321 = vmand %vm2193, %vm2289
      %vm2322 = vmand %vm2194, %vm2290
      %vm2323 = vmand %vm2195, %vm2291
      %vm2324 = vmand %vm2196, %vm2292
      %vm2325 = vmand %vm2197, %vm2293
      %vm2326 = vmand %vm2198, %vm2294
      %vm2327 = vmand %vm2199, %vm2295
      %vm2328 = vmand %vm2200, %vm2296
      %vm2329 = vmand %vm2201, %vm2297
      %vm2330 = vmand %vm2202, %vm2298
      %vm2331 = vmand %vm2203, %vm2299
      %vm2332 = vmand %vm2204, %vm2300
      %vm2333 = vmand %vm2205, %vm2301
      %vm2334 = vmand %vm2206, %vm2302
      %vm2335 = vmand %vm2207, %vm2303
      %vm2336 = vmand %vm2208, %vm2304
      %vm2337 = vmand %vm2209, %vm2305
      %vm2338 = vmand %vm2210, %vm2306
      %vm2339 = vmand %vm2211, %vm2307
      %vm2340 = vmand %vm2212, %vm2308
      %vm2341 = vmand %vm2213, %vm2309
      %vm2342 = vmor %vm2150, %vm2310
      %vm2343 = vmor %vm2151, %vm2311
      %vm2344 = vmor %vm2152, %vm2312
      %vm2345 = vmor %vm2153, %vm2313
      %vm2346 = vmor %vm2154, %vm2314
      %vm2347 = vmor %vm2155, %vm2315
      %vm2348 = vmor %vm2156, %vm2316
      %vm2349 = vmor %vm2157, %vm2317
      %vm2350 = vmor %vm2158, %vm2318
      %vm2351 = vmor %vm2159, %vm2319
      %vm2352 = vmor %vm2160, %vm2320
      %vm2353 = vmor %vm2161, %vm2321
      %vm2354 = vmor %vm2162, %vm2322
      %vm2355 = vmor %vm2163, %vm2323
      %vm2356 = vmor %vm2164, %vm2324
      %vm2357 = vmor %vm2165, %vm2325
      %vm2358 = vmor %vm2166, %vm2326
      %vm2359 = vmor %vm2167, %vm2327
      %vm2360 = vmor %vm2168, %vm2328
      %vm2361 = vmor %vm2169, %vm2329
      %vm2362 = vmor %vm2170, %vm2330
      %vm2363 = vmor %vm2171, %vm2331
      %vm2364 = vmor %vm2172, %vm2332
      %vm2365 = vmor %vm2173, %vm2333
      %vm2366 = vmor %vm2174, %vm2334
      %vm2367 = vmor %vm2175, %vm2335
      %vm2368 = vmor %vm2176, %vm2336
      %vm2369 = vmor %vm2177, %vm2337
      %vm2370 = vmor %vm2178, %vm2338
      %vm2371 = vmor %vm2179, %vm2339
      %vm2372 = vmor %vm2180, %vm2340
      %vm2373 = vmor %vm2181, %vm2341
      %v2374 = vsel %vm2342, %v2022, %v2087
      %v2375 = vsel %vm2343, %v2023, %v2089
      %v2376 = vsel %vm2344, %v2024, %v2091
      %v2377 = vsel %vm2345, %v2025, %v2093
      %v2378 = vsel %vm2346, %v2026, %v2095
      %v2379 = vsel %vm2347, %v2027, %v2097
      %v2380 = vsel %vm2348, %v2028, %v2099
      %v2381 = vsel %vm2349, %v2029, %v2101
      %v2382 = vsel %vm2350, %v2030, %v2103
      %v2383 = vsel %vm2351, %v2031, %v2105
      %v2384 = vsel %vm2352, %v2032, %v2107
      %v2385 = vsel %vm2353, %v2033, %v2109
      %v2386 = vsel %vm2354, %v2034, %v2111
      %v2387 = vsel %vm2355, %v2035, %v2113
      %v2388 = vsel %vm2356, %v2036, %v2115
      %v2389 = vsel %vm2357, %v2037, %v2117
      %v2390 = vsel %vm2358, %v2038, %v2119
      %v2391 = vsel %vm2359, %v2039, %v2121
      %v2392 = vsel %vm2360, %v2040, %v2123
      %v2393 = vsel %vm2361, %v2041, %v2125
      %v2394 = vsel %vm2362, %v2042, %v2127
      %v2395 = vsel %vm2363, %v2043, %v2129
      %v2396 = vsel %vm2364, %v2044, %v2131
      %v2397 = vsel %vm2365, %v2045, %v2133
      %v2398 = vsel %vm2366, %v2046, %v2135
      %v2399 = vsel %vm2367, %v2047, %v2137
      %v2400 = vsel %vm2368, %v2048, %v2139
      %v2401 = vsel %vm2369, %v2049, %v2141
      %v2402 = vsel %vm2370, %v2050, %v2143
      %v2403 = vsel %vm2371, %v2051, %v2145
      %v2404 = vsel %vm2372, %v2052, %v2147
      %v2405 = vsel %vm2373, %v2053, %v2149
      %v2406 = vsel %vm2342, %v2054, %v2215
      %v2407 = vsel %vm2343, %v2055, %v2217
      %v2408 = vsel %vm2344, %v2056, %v2219
      %v2409 = vsel %vm2345, %v2057, %v2221
      %v2410 = vsel %vm2346, %v2058, %v2223
      %v2411 = vsel %vm2347, %v2059, %v2225
      %v2412 = vsel %vm2348, %v2060, %v2227
      %v2413 = vsel %vm2349, %v2061, %v2229
      %v2414 = vsel %vm2350, %v2062, %v2231
      %v2415 = vsel %vm2351, %v2063, %v2233
      %v2416 = vsel %vm2352, %v2064, %v2235
      %v2417 = vsel %vm2353, %v2065, %v2237
      %v2418 = vsel %vm2354, %v2066, %v2239
      %v2419 = vsel %vm2355, %v2067, %v2241
      %v2420 = vsel %vm2356, %v2068, %v2243
      %v2421 = vsel %vm2357, %v2069, %v2245
      %v2422 = vsel %vm2358, %v2070, %v2247
      %v2423 = vsel %vm2359, %v2071, %v2249
      %v2424 = vsel %vm2360, %v2072, %v2251
      %v2425 = vsel %vm2361, %v2073, %v2253
      %v2426 = vsel %vm2362, %v2074, %v2255
      %v2427 = vsel %vm2363, %v2075, %v2257
      %v2428 = vsel %vm2364, %v2076, %v2259
      %v2429 = vsel %vm2365, %v2077, %v2261
      %v2430 = vsel %vm2366, %v2078, %v2263
      %v2431 = vsel %vm2367, %v2079, %v2265
      %v2432 = vsel %vm2368, %v2080, %v2267
      %v2433 = vsel %vm2369, %v2081, %v2269
      %v2434 = vsel %vm2370, %v2082, %v2271
      %v2435 = vsel %vm2371, %v2083, %v2273
      %v2436 = vsel %vm2372, %v2084, %v2275
      %v2437 = vsel %vm2373, %v2085, %v2277
      %v2438 = vsel %vm2342, %v2087, %v2022
      %v2439 = vsel %vm2343, %v2089, %v2023
      %v2440 = vsel %vm2344, %v2091, %v2024
      %v2441 = vsel %vm2345, %v2093, %v2025
      %v2442 = vsel %vm2346, %v2095, %v2026
      %v2443 = vsel %vm2347, %v2097, %v2027
      %v2444 = vsel %vm2348, %v2099, %v2028
      %v2445 = vsel %vm2349, %v2101, %v2029
      %v2446 = vsel %vm2350, %v2103, %v2030
      %v2447 = vsel %vm2351, %v2105, %v2031
      %v2448 = vsel %vm2352, %v2107, %v2032
      %v2449 = vsel %vm2353, %v2109, %v2033
      %v2450 = vsel %vm2354, %v2111, %v2034
      %v2451 = vsel %vm2355, %v2113, %v2035
      %v2452 = vsel %vm2356, %v2115, %v2036
      %v2453 = vsel %vm2357, %v2117, %v2037
      %v2454 = vsel %vm2358, %v2119, %v2038
      %v2455 = vsel %vm2359, %v2121, %v2039
      %v2456 = vsel %vm2360, %v2123, %v2040
      %v2457 = vsel %vm2361, %v2125, %v2041
      %v2458 = vsel %vm2362, %v2127, %v2042
      %v2459 = vsel %vm2363, %v2129, %v2043
      %v2460 = vsel %vm2364, %v2131, %v2044
      %v2461 = vsel %vm2365, %v2133, %v2045
      %v2462 = vsel %vm2366, %v2135, %v2046
      %v2463 = vsel %vm2367, %v2137, %v2047
      %v2464 = vsel %vm2368, %v2139, %v2048
      %v2465 = vsel %vm2369, %v2141, %v2049
      %v2466 = vsel %vm2370, %v2143, %v2050
      %v2467 = vsel %vm2371, %v2145, %v2051
      %v2468 = vsel %vm2372, %v2147, %v2052
      %v2469 = vsel %vm2373, %v2149, %v2053
      %v2470 = vsel %vm2342, %v2215, %v2054
      %v2471 = vsel %vm2343, %v2217, %v2055
      %v2472 = vsel %vm2344, %v2219, %v2056
      %v2473 = vsel %vm2345, %v2221, %v2057
      %v2474 = vsel %vm2346, %v2223, %v2058
      %v2475 = vsel %vm2347, %v2225, %v2059
      %v2476 = vsel %vm2348, %v2227, %v2060
      %v2477 = vsel %vm2349, %v2229, %v2061
      %v2478 = vsel %vm2350, %v2231, %v2062
      %v2479 = vsel %vm2351, %v2233, %v2063
      %v2480 = vsel %vm2352, %v2235, %v2064
      %v2481 = vsel %vm2353, %v2237, %v2065
      %v2482 = vsel %vm2354, %v2239, %v2066
      %v2483 = vsel %vm2355, %v2241, %v2067
      %v2484 = vsel %vm2356, %v2243, %v2068
      %v2485 = vsel %vm2357, %v2245, %v2069
      %v2486 = vsel %vm2358, %v2247, %v2070
      %v2487 = vsel %vm2359, %v2249, %v2071
      %v2488 = vsel %vm2360, %v2251, %v2072
      %v2489 = vsel %vm2361, %v2253, %v2073
      %v2490 = vsel %vm2362, %v2255, %v2074
      %v2491 = vsel %vm2363, %v2257, %v2075
      %v2492 = vsel %vm2364, %v2259, %v2076
      %v2493 = vsel %vm2365, %v2261, %v2077
      %v2494 = vsel %vm2366, %v2263, %v2078
      %v2495 = vsel %vm2367, %v2265, %v2079
      %v2496 = vsel %vm2368, %v2267, %v2080
      %v2497 = vsel %vm2369, %v2269, %v2081
      %v2498 = vsel %vm2370, %v2271, %v2082
      %v2499 = vsel %vm2371, %v2273, %v2083
      %v2500 = vsel %vm2372, %v2275, %v2084
      %v2501 = vsel %vm2373, %v2277, %v2085
      %2502 = vrot.lane.b32.xlu0 %v1125, 126
      %v2503 = vpop.permute.xlu0 %2502
      %2504 = vrot.lane.b32.xlu0 %v1126, 126
      %v2505 = vpop.permute.xlu0 %2504
      %2506 = vrot.lane.b32.xlu0 %v1127, 126
      %v2507 = vpop.permute.xlu0 %2506
      %2508 = vrot.lane.b32.xlu0 %v1128, 126
      %v2509 = vpop.permute.xlu0 %2508
      %2510 = vrot.lane.b32.xlu0 %v1129, 126
      %v2511 = vpop.permute.xlu0 %2510
      %2512 = vrot.lane.b32.xlu0 %v1130, 126
      %v2513 = vpop.permute.xlu0 %2512
      %2514 = vrot.lane.b32.xlu0 %v1131, 126
      %v2515 = vpop.permute.xlu0 %2514
      %2516 = vrot.lane.b32.xlu0 %v1132, 126
      %v2517 = vpop.permute.xlu0 %2516
      %2518 = vrot.lane.b32.xlu0 %v1133, 126
      %v2519 = vpop.permute.xlu0 %2518
      %2520 = vrot.lane.b32.xlu0 %v1134, 126
      %v2521 = vpop.permute.xlu0 %2520
      %2522 = vrot.lane.b32.xlu0 %v1135, 126
      %v2523 = vpop.permute.xlu0 %2522
      %2524 = vrot.lane.b32.xlu0 %v1136, 126
      %v2525 = vpop.permute.xlu0 %2524
      %2526 = vrot.lane.b32.xlu0 %v1137, 126
      %v2527 = vpop.permute.xlu0 %2526
      %2528 = vrot.lane.b32.xlu0 %v1138, 126
      %v2529 = vpop.permute.xlu0 %2528
      %2530 = vrot.lane.b32.xlu0 %v1139, 126
      %v2531 = vpop.permute.xlu0 %2530
      %2532 = vrot.lane.b32.xlu0 %v1140, 126
      %v2533 = vpop.permute.xlu0 %2532
      %2534 = vrot.lane.b32.xlu0 %v1141, 126
      %v2535 = vpop.permute.xlu0 %2534
      %2536 = vrot.lane.b32.xlu0 %v1142, 126
      %v2537 = vpop.permute.xlu0 %2536
      %2538 = vrot.lane.b32.xlu0 %v1143, 126
      %v2539 = vpop.permute.xlu0 %2538
      %2540 = vrot.lane.b32.xlu0 %v1144, 126
      %v2541 = vpop.permute.xlu0 %2540
      %2542 = vrot.lane.b32.xlu0 %v1145, 126
      %v2543 = vpop.permute.xlu0 %2542
      %2544 = vrot.lane.b32.xlu0 %v1146, 126
      %v2545 = vpop.permute.xlu0 %2544
      %2546 = vrot.lane.b32.xlu0 %v1147, 126
      %v2547 = vpop.permute.xlu0 %2546
      %2548 = vrot.lane.b32.xlu0 %v1148, 126
      %v2549 = vpop.permute.xlu0 %2548
      %2550 = vrot.lane.b32.xlu0 %v1149, 126
      %v2551 = vpop.permute.xlu0 %2550
      %2552 = vrot.lane.b32.xlu0 %v1150, 126
      %v2553 = vpop.permute.xlu0 %2552
      %2554 = vrot.lane.b32.xlu0 %v1151, 126
      %v2555 = vpop.permute.xlu0 %2554
      %2556 = vrot.lane.b32.xlu0 %v1152, 126
      %v2557 = vpop.permute.xlu0 %2556
      %2558 = vrot.lane.b32.xlu0 %v1153, 126
      %v2559 = vpop.permute.xlu0 %2558
      %2560 = vrot.lane.b32.xlu0 %v1154, 126
      %v2561 = vpop.permute.xlu0 %2560
      %2562 = vrot.lane.b32.xlu0 %v1155, 126
      %v2563 = vpop.permute.xlu0 %2562
      %2564 = vrot.lane.b32.xlu0 %v1156, 126
      %v2565 = vpop.permute.xlu0 %2564
      %vm2566 = vcmp.lt.s32.totalorder %v2438, %v2503
      %vm2567 = vcmp.lt.s32.totalorder %v2439, %v2505
      %vm2568 = vcmp.lt.s32.totalorder %v2440, %v2507
      %vm2569 = vcmp.lt.s32.totalorder %v2441, %v2509
      %vm2570 = vcmp.lt.s32.totalorder %v2442, %v2511
      %vm2571 = vcmp.lt.s32.totalorder %v2443, %v2513
      %vm2572 = vcmp.lt.s32.totalorder %v2444, %v2515
      %vm2573 = vcmp.lt.s32.totalorder %v2445, %v2517
      %vm2574 = vcmp.lt.s32.totalorder %v2446, %v2519
      %vm2575 = vcmp.lt.s32.totalorder %v2447, %v2521
      %vm2576 = vcmp.lt.s32.totalorder %v2448, %v2523
      %vm2577 = vcmp.lt.s32.totalorder %v2449, %v2525
      %vm2578 = vcmp.lt.s32.totalorder %v2450, %v2527
      %vm2579 = vcmp.lt.s32.totalorder %v2451, %v2529
      %vm2580 = vcmp.lt.s32.totalorder %v2452, %v2531
      %vm2581 = vcmp.lt.s32.totalorder %v2453, %v2533
      %vm2582 = vcmp.lt.s32.totalorder %v2454, %v2535
      %vm2583 = vcmp.lt.s32.totalorder %v2455, %v2537
      %vm2584 = vcmp.lt.s32.totalorder %v2456, %v2539
      %vm2585 = vcmp.lt.s32.totalorder %v2457, %v2541
      %vm2586 = vcmp.lt.s32.totalorder %v2458, %v2543
      %vm2587 = vcmp.lt.s32.totalorder %v2459, %v2545
      %vm2588 = vcmp.lt.s32.totalorder %v2460, %v2547
      %vm2589 = vcmp.lt.s32.totalorder %v2461, %v2549
      %vm2590 = vcmp.lt.s32.totalorder %v2462, %v2551
      %vm2591 = vcmp.lt.s32.totalorder %v2463, %v2553
      %vm2592 = vcmp.lt.s32.totalorder %v2464, %v2555
      %vm2593 = vcmp.lt.s32.totalorder %v2465, %v2557
      %vm2594 = vcmp.lt.s32.totalorder %v2466, %v2559
      %vm2595 = vcmp.lt.s32.totalorder %v2467, %v2561
      %vm2596 = vcmp.lt.s32.totalorder %v2468, %v2563
      %vm2597 = vcmp.lt.s32.totalorder %v2469, %v2565
      %vm2598 = vcmp.eq.s32.totalorder %v2438, %v2503
      %vm2599 = vcmp.eq.s32.totalorder %v2439, %v2505
      %vm2600 = vcmp.eq.s32.totalorder %v2440, %v2507
      %vm2601 = vcmp.eq.s32.totalorder %v2441, %v2509
      %vm2602 = vcmp.eq.s32.totalorder %v2442, %v2511
      %vm2603 = vcmp.eq.s32.totalorder %v2443, %v2513
      %vm2604 = vcmp.eq.s32.totalorder %v2444, %v2515
      %vm2605 = vcmp.eq.s32.totalorder %v2445, %v2517
      %vm2606 = vcmp.eq.s32.totalorder %v2446, %v2519
      %vm2607 = vcmp.eq.s32.totalorder %v2447, %v2521
      %vm2608 = vcmp.eq.s32.totalorder %v2448, %v2523
      %vm2609 = vcmp.eq.s32.totalorder %v2449, %v2525
      %vm2610 = vcmp.eq.s32.totalorder %v2450, %v2527
      %vm2611 = vcmp.eq.s32.totalorder %v2451, %v2529
      %vm2612 = vcmp.eq.s32.totalorder %v2452, %v2531
      %vm2613 = vcmp.eq.s32.totalorder %v2453, %v2533
      %vm2614 = vcmp.eq.s32.totalorder %v2454, %v2535
      %vm2615 = vcmp.eq.s32.totalorder %v2455, %v2537
      %vm2616 = vcmp.eq.s32.totalorder %v2456, %v2539
      %vm2617 = vcmp.eq.s32.totalorder %v2457, %v2541
      %vm2618 = vcmp.eq.s32.totalorder %v2458, %v2543
      %vm2619 = vcmp.eq.s32.totalorder %v2459, %v2545
      %vm2620 = vcmp.eq.s32.totalorder %v2460, %v2547
      %vm2621 = vcmp.eq.s32.totalorder %v2461, %v2549
      %vm2622 = vcmp.eq.s32.totalorder %v2462, %v2551
      %vm2623 = vcmp.eq.s32.totalorder %v2463, %v2553
      %vm2624 = vcmp.eq.s32.totalorder %v2464, %v2555
      %vm2625 = vcmp.eq.s32.totalorder %v2465, %v2557
      %vm2626 = vcmp.eq.s32.totalorder %v2466, %v2559
      %vm2627 = vcmp.eq.s32.totalorder %v2467, %v2561
      %vm2628 = vcmp.eq.s32.totalorder %v2468, %v2563
      %vm2629 = vcmp.eq.s32.totalorder %v2469, %v2565
      %2630 = vrot.lane.b32.xlu0 %v1157, 126
      %v2631 = vpop.permute.xlu0 %2630
      %2632 = vrot.lane.b32.xlu0 %v1158, 126
      %v2633 = vpop.permute.xlu0 %2632
      %2634 = vrot.lane.b32.xlu0 %v1159, 126
      %v2635 = vpop.permute.xlu0 %2634
      %2636 = vrot.lane.b32.xlu0 %v1160, 126
      %v2637 = vpop.permute.xlu0 %2636
      %2638 = vrot.lane.b32.xlu0 %v1161, 126
      %v2639 = vpop.permute.xlu0 %2638
      %2640 = vrot.lane.b32.xlu0 %v1162, 126
      %v2641 = vpop.permute.xlu0 %2640
      %2642 = vrot.lane.b32.xlu0 %v1163, 126
      %v2643 = vpop.permute.xlu0 %2642
      %2644 = vrot.lane.b32.xlu0 %v1164, 126
      %v2645 = vpop.permute.xlu0 %2644
      %2646 = vrot.lane.b32.xlu0 %v1165, 126
      %v2647 = vpop.permute.xlu0 %2646
      %2648 = vrot.lane.b32.xlu0 %v1166, 126
      %v2649 = vpop.permute.xlu0 %2648
      %2650 = vrot.lane.b32.xlu0 %v1167, 126
      %v2651 = vpop.permute.xlu0 %2650
      %2652 = vrot.lane.b32.xlu0 %v1168, 126
      %v2653 = vpop.permute.xlu0 %2652
      %2654 = vrot.lane.b32.xlu0 %v1169, 126
      %v2655 = vpop.permute.xlu0 %2654
      %2656 = vrot.lane.b32.xlu0 %v1170, 126
      %v2657 = vpop.permute.xlu0 %2656
      %2658 = vrot.lane.b32.xlu0 %v1171, 126
      %v2659 = vpop.permute.xlu0 %2658
      %2660 = vrot.lane.b32.xlu0 %v1172, 126
      %v2661 = vpop.permute.xlu0 %2660
      %2662 = vrot.lane.b32.xlu0 %v1173, 126
      %v2663 = vpop.permute.xlu0 %2662
      %2664 = vrot.lane.b32.xlu0 %v1174, 126
      %v2665 = vpop.permute.xlu0 %2664
      %2666 = vrot.lane.b32.xlu0 %v1175, 126
      %v2667 = vpop.permute.xlu0 %2666
      %2668 = vrot.lane.b32.xlu0 %v1176, 126
      %v2669 = vpop.permute.xlu0 %2668
      %2670 = vrot.lane.b32.xlu0 %v1177, 126
      %v2671 = vpop.permute.xlu0 %2670
      %2672 = vrot.lane.b32.xlu0 %v1178, 126
      %v2673 = vpop.permute.xlu0 %2672
      %2674 = vrot.lane.b32.xlu0 %v1179, 126
      %v2675 = vpop.permute.xlu0 %2674
      %2676 = vrot.lane.b32.xlu0 %v1180, 126
      %v2677 = vpop.permute.xlu0 %2676
      %2678 = vrot.lane.b32.xlu0 %v1181, 126
      %v2679 = vpop.permute.xlu0 %2678
      %2680 = vrot.lane.b32.xlu0 %v1182, 126
      %v2681 = vpop.permute.xlu0 %2680
      %2682 = vrot.lane.b32.xlu0 %v1183, 126
      %v2683 = vpop.permute.xlu0 %2682
      %2684 = vrot.lane.b32.xlu0 %v1184, 126
      %v2685 = vpop.permute.xlu0 %2684
      %2686 = vrot.lane.b32.xlu0 %v1185, 126
      %v2687 = vpop.permute.xlu0 %2686
      %2688 = vrot.lane.b32.xlu0 %v1186, 126
      %v2689 = vpop.permute.xlu0 %2688
      %2690 = vrot.lane.b32.xlu0 %v1187, 126
      %v2691 = vpop.permute.xlu0 %2690
      %2692 = vrot.lane.b32.xlu0 %v1188, 126
      %v2693 = vpop.permute.xlu0 %2692
      %vm2694 = vcmp.lt.s32.totalorder %v2470, %v2631
      %vm2695 = vcmp.lt.s32.totalorder %v2471, %v2633
      %vm2696 = vcmp.lt.s32.totalorder %v2472, %v2635
      %vm2697 = vcmp.lt.s32.totalorder %v2473, %v2637
      %vm2698 = vcmp.lt.s32.totalorder %v2474, %v2639
      %vm2699 = vcmp.lt.s32.totalorder %v2475, %v2641
      %vm2700 = vcmp.lt.s32.totalorder %v2476, %v2643
      %vm2701 = vcmp.lt.s32.totalorder %v2477, %v2645
      %vm2702 = vcmp.lt.s32.totalorder %v2478, %v2647
      %vm2703 = vcmp.lt.s32.totalorder %v2479, %v2649
      %vm2704 = vcmp.lt.s32.totalorder %v2480, %v2651
      %vm2705 = vcmp.lt.s32.totalorder %v2481, %v2653
      %vm2706 = vcmp.lt.s32.totalorder %v2482, %v2655
      %vm2707 = vcmp.lt.s32.totalorder %v2483, %v2657
      %vm2708 = vcmp.lt.s32.totalorder %v2484, %v2659
      %vm2709 = vcmp.lt.s32.totalorder %v2485, %v2661
      %vm2710 = vcmp.lt.s32.totalorder %v2486, %v2663
      %vm2711 = vcmp.lt.s32.totalorder %v2487, %v2665
      %vm2712 = vcmp.lt.s32.totalorder %v2488, %v2667
      %vm2713 = vcmp.lt.s32.totalorder %v2489, %v2669
      %vm2714 = vcmp.lt.s32.totalorder %v2490, %v2671
      %vm2715 = vcmp.lt.s32.totalorder %v2491, %v2673
      %vm2716 = vcmp.lt.s32.totalorder %v2492, %v2675
      %vm2717 = vcmp.lt.s32.totalorder %v2493, %v2677
      %vm2718 = vcmp.lt.s32.totalorder %v2494, %v2679
      %vm2719 = vcmp.lt.s32.totalorder %v2495, %v2681
      %vm2720 = vcmp.lt.s32.totalorder %v2496, %v2683
      %vm2721 = vcmp.lt.s32.totalorder %v2497, %v2685
      %vm2722 = vcmp.lt.s32.totalorder %v2498, %v2687
      %vm2723 = vcmp.lt.s32.totalorder %v2499, %v2689
      %vm2724 = vcmp.lt.s32.totalorder %v2500, %v2691
      %vm2725 = vcmp.lt.s32.totalorder %v2501, %v2693
      %vm2726 = vmand %vm2598, %vm2694
      %vm2727 = vmand %vm2599, %vm2695
      %vm2728 = vmand %vm2600, %vm2696
      %vm2729 = vmand %vm2601, %vm2697
      %vm2730 = vmand %vm2602, %vm2698
      %vm2731 = vmand %vm2603, %vm2699
      %vm2732 = vmand %vm2604, %vm2700
      %vm2733 = vmand %vm2605, %vm2701
      %vm2734 = vmand %vm2606, %vm2702
      %vm2735 = vmand %vm2607, %vm2703
      %vm2736 = vmand %vm2608, %vm2704
      %vm2737 = vmand %vm2609, %vm2705
      %vm2738 = vmand %vm2610, %vm2706
      %vm2739 = vmand %vm2611, %vm2707
      %vm2740 = vmand %vm2612, %vm2708
      %vm2741 = vmand %vm2613, %vm2709
      %vm2742 = vmand %vm2614, %vm2710
      %vm2743 = vmand %vm2615, %vm2711
      %vm2744 = vmand %vm2616, %vm2712
      %vm2745 = vmand %vm2617, %vm2713
      %vm2746 = vmand %vm2618, %vm2714
      %vm2747 = vmand %vm2619, %vm2715
      %vm2748 = vmand %vm2620, %vm2716
      %vm2749 = vmand %vm2621, %vm2717
      %vm2750 = vmand %vm2622, %vm2718
      %vm2751 = vmand %vm2623, %vm2719
      %vm2752 = vmand %vm2624, %vm2720
      %vm2753 = vmand %vm2625, %vm2721
      %vm2754 = vmand %vm2626, %vm2722
      %vm2755 = vmand %vm2627, %vm2723
      %vm2756 = vmand %vm2628, %vm2724
      %vm2757 = vmand %vm2629, %vm2725
      %vm2758 = vmor %vm2566, %vm2726
      %vm2759 = vmor %vm2567, %vm2727
      %vm2760 = vmor %vm2568, %vm2728
      %vm2761 = vmor %vm2569, %vm2729
      %vm2762 = vmor %vm2570, %vm2730
      %vm2763 = vmor %vm2571, %vm2731
      %vm2764 = vmor %vm2572, %vm2732
      %vm2765 = vmor %vm2573, %vm2733
      %vm2766 = vmor %vm2574, %vm2734
      %vm2767 = vmor %vm2575, %vm2735
      %vm2768 = vmor %vm2576, %vm2736
      %vm2769 = vmor %vm2577, %vm2737
      %vm2770 = vmor %vm2578, %vm2738
      %vm2771 = vmor %vm2579, %vm2739
      %vm2772 = vmor %vm2580, %vm2740
      %vm2773 = vmor %vm2581, %vm2741
      %vm2774 = vmor %vm2582, %vm2742
      %vm2775 = vmor %vm2583, %vm2743
      %vm2776 = vmor %vm2584, %vm2744
      %vm2777 = vmor %vm2585, %vm2745
      %vm2778 = vmor %vm2586, %vm2746
      %vm2779 = vmor %vm2587, %vm2747
      %vm2780 = vmor %vm2588, %vm2748
      %vm2781 = vmor %vm2589, %vm2749
      %vm2782 = vmor %vm2590, %vm2750
      %vm2783 = vmor %vm2591, %vm2751
      %vm2784 = vmor %vm2592, %vm2752
      %vm2785 = vmor %vm2593, %vm2753
      %vm2786 = vmor %vm2594, %vm2754
      %vm2787 = vmor %vm2595, %vm2755
      %vm2788 = vmor %vm2596, %vm2756
      %vm2789 = vmor %vm2597, %vm2757
      %v2790 = vsel %vm2758, %v2438, %v2503
      %v2791 = vsel %vm2759, %v2439, %v2505
      %v2792 = vsel %vm2760, %v2440, %v2507
      %v2793 = vsel %vm2761, %v2441, %v2509
      %v2794 = vsel %vm2762, %v2442, %v2511
      %v2795 = vsel %vm2763, %v2443, %v2513
      %v2796 = vsel %vm2764, %v2444, %v2515
      %v2797 = vsel %vm2765, %v2445, %v2517
      %v2798 = vsel %vm2766, %v2446, %v2519
      %v2799 = vsel %vm2767, %v2447, %v2521
      %v2800 = vsel %vm2768, %v2448, %v2523
      %v2801 = vsel %vm2769, %v2449, %v2525
      %v2802 = vsel %vm2770, %v2450, %v2527
      %v2803 = vsel %vm2771, %v2451, %v2529
      %v2804 = vsel %vm2772, %v2452, %v2531
      %v2805 = vsel %vm2773, %v2453, %v2533
      %v2806 = vsel %vm2774, %v2454, %v2535
      %v2807 = vsel %vm2775, %v2455, %v2537
      %v2808 = vsel %vm2776, %v2456, %v2539
      %v2809 = vsel %vm2777, %v2457, %v2541
      %v2810 = vsel %vm2778, %v2458, %v2543
      %v2811 = vsel %vm2779, %v2459, %v2545
      %v2812 = vsel %vm2780, %v2460, %v2547
      %v2813 = vsel %vm2781, %v2461, %v2549
      %v2814 = vsel %vm2782, %v2462, %v2551
      %v2815 = vsel %vm2783, %v2463, %v2553
      %v2816 = vsel %vm2784, %v2464, %v2555
      %v2817 = vsel %vm2785, %v2465, %v2557
      %v2818 = vsel %vm2786, %v2466, %v2559
      %v2819 = vsel %vm2787, %v2467, %v2561
      %v2820 = vsel %vm2788, %v2468, %v2563
      %v2821 = vsel %vm2789, %v2469, %v2565
      %v2822 = vsel %vm2758, %v2470, %v2631
      %v2823 = vsel %vm2759, %v2471, %v2633
      %v2824 = vsel %vm2760, %v2472, %v2635
      %v2825 = vsel %vm2761, %v2473, %v2637
      %v2826 = vsel %vm2762, %v2474, %v2639
      %v2827 = vsel %vm2763, %v2475, %v2641
      %v2828 = vsel %vm2764, %v2476, %v2643
      %v2829 = vsel %vm2765, %v2477, %v2645
      %v2830 = vsel %vm2766, %v2478, %v2647
      %v2831 = vsel %vm2767, %v2479, %v2649
      %v2832 = vsel %vm2768, %v2480, %v2651
      %v2833 = vsel %vm2769, %v2481, %v2653
      %v2834 = vsel %vm2770, %v2482, %v2655
      %v2835 = vsel %vm2771, %v2483, %v2657
      %v2836 = vsel %vm2772, %v2484, %v2659
      %v2837 = vsel %vm2773, %v2485, %v2661
      %v2838 = vsel %vm2774, %v2486, %v2663
      %v2839 = vsel %vm2775, %v2487, %v2665
      %v2840 = vsel %vm2776, %v2488, %v2667
      %v2841 = vsel %vm2777, %v2489, %v2669
      %v2842 = vsel %vm2778, %v2490, %v2671
      %v2843 = vsel %vm2779, %v2491, %v2673
      %v2844 = vsel %vm2780, %v2492, %v2675
      %v2845 = vsel %vm2781, %v2493, %v2677
      %v2846 = vsel %vm2782, %v2494, %v2679
      %v2847 = vsel %vm2783, %v2495, %v2681
      %v2848 = vsel %vm2784, %v2496, %v2683
      %v2849 = vsel %vm2785, %v2497, %v2685
      %v2850 = vsel %vm2786, %v2498, %v2687
      %v2851 = vsel %vm2787, %v2499, %v2689
      %v2852 = vsel %vm2788, %v2500, %v2691
      %v2853 = vsel %vm2789, %v2501, %v2693
      %v2854 = vsel %vm2758, %v2503, %v2438
      %v2855 = vsel %vm2759, %v2505, %v2439
      %v2856 = vsel %vm2760, %v2507, %v2440
      %v2857 = vsel %vm2761, %v2509, %v2441
      %v2858 = vsel %vm2762, %v2511, %v2442
      %v2859 = vsel %vm2763, %v2513, %v2443
      %v2860 = vsel %vm2764, %v2515, %v2444
      %v2861 = vsel %vm2765, %v2517, %v2445
      %v2862 = vsel %vm2766, %v2519, %v2446
      %v2863 = vsel %vm2767, %v2521, %v2447
      %v2864 = vsel %vm2768, %v2523, %v2448
      %v2865 = vsel %vm2769, %v2525, %v2449
      %v2866 = vsel %vm2770, %v2527, %v2450
      %v2867 = vsel %vm2771, %v2529, %v2451
      %v2868 = vsel %vm2772, %v2531, %v2452
      %v2869 = vsel %vm2773, %v2533, %v2453
      %v2870 = vsel %vm2774, %v2535, %v2454
      %v2871 = vsel %vm2775, %v2537, %v2455
      %v2872 = vsel %vm2776, %v2539, %v2456
      %v2873 = vsel %vm2777, %v2541, %v2457
      %v2874 = vsel %vm2778, %v2543, %v2458
      %v2875 = vsel %vm2779, %v2545, %v2459
      %v2876 = vsel %vm2780, %v2547, %v2460
      %v2877 = vsel %vm2781, %v2549, %v2461
      %v2878 = vsel %vm2782, %v2551, %v2462
      %v2879 = vsel %vm2783, %v2553, %v2463
      %v2880 = vsel %vm2784, %v2555, %v2464
      %v2881 = vsel %vm2785, %v2557, %v2465
      %v2882 = vsel %vm2786, %v2559, %v2466
      %v2883 = vsel %vm2787, %v2561, %v2467
      %v2884 = vsel %vm2788, %v2563, %v2468
      %v2885 = vsel %vm2789, %v2565, %v2469
      %v2886 = vsel %vm2758, %v2631, %v2470
      %v2887 = vsel %vm2759, %v2633, %v2471
      %v2888 = vsel %vm2760, %v2635, %v2472
      %v2889 = vsel %vm2761, %v2637, %v2473
      %v2890 = vsel %vm2762, %v2639, %v2474
      %v2891 = vsel %vm2763, %v2641, %v2475
      %v2892 = vsel %vm2764, %v2643, %v2476
      %v2893 = vsel %vm2765, %v2645, %v2477
      %v2894 = vsel %vm2766, %v2647, %v2478
      %v2895 = vsel %vm2767, %v2649, %v2479
      %v2896 = vsel %vm2768, %v2651, %v2480
      %v2897 = vsel %vm2769, %v2653, %v2481
      %v2898 = vsel %vm2770, %v2655, %v2482
      %v2899 = vsel %vm2771, %v2657, %v2483
      %v2900 = vsel %vm2772, %v2659, %v2484
      %v2901 = vsel %vm2773, %v2661, %v2485
      %v2902 = vsel %vm2774, %v2663, %v2486
      %v2903 = vsel %vm2775, %v2665, %v2487
      %v2904 = vsel %vm2776, %v2667, %v2488
      %v2905 = vsel %vm2777, %v2669, %v2489
      %v2906 = vsel %vm2778, %v2671, %v2490
      %v2907 = vsel %vm2779, %v2673, %v2491
      %v2908 = vsel %vm2780, %v2675, %v2492
      %v2909 = vsel %vm2781, %v2677, %v2493
      %v2910 = vsel %vm2782, %v2679, %v2494
      %v2911 = vsel %vm2783, %v2681, %v2495
      %v2912 = vsel %vm2784, %v2683, %v2496
      %v2913 = vsel %vm2785, %v2685, %v2497
      %v2914 = vsel %vm2786, %v2687, %v2498
      %v2915 = vsel %vm2787, %v2689, %v2499
      %v2916 = vsel %vm2788, %v2691, %v2500
      %v2917 = vsel %vm2789, %v2693, %v2501
      %2918 = vrot.lane.b32.xlu0 %v1125, 125
      %v2919 = vpop.permute.xlu0 %2918
      %2920 = vrot.lane.b32.xlu0 %v1126, 125
      %v2921 = vpop.permute.xlu0 %2920
      %2922 = vrot.lane.b32.xlu0 %v1127, 125
      %v2923 = vpop.permute.xlu0 %2922
      %2924 = vrot.lane.b32.xlu0 %v1128, 125
      %v2925 = vpop.permute.xlu0 %2924
      %2926 = vrot.lane.b32.xlu0 %v1129, 125
      %v2927 = vpop.permute.xlu0 %2926
      %2928 = vrot.lane.b32.xlu0 %v1130, 125
      %v2929 = vpop.permute.xlu0 %2928
      %2930 = vrot.lane.b32.xlu0 %v1131, 125
      %v2931 = vpop.permute.xlu0 %2930
      %2932 = vrot.lane.b32.xlu0 %v1132, 125
      %v2933 = vpop.permute.xlu0 %2932
      %2934 = vrot.lane.b32.xlu0 %v1133, 125
      %v2935 = vpop.permute.xlu0 %2934
      %2936 = vrot.lane.b32.xlu0 %v1134, 125
      %v2937 = vpop.permute.xlu0 %2936
      %2938 = vrot.lane.b32.xlu0 %v1135, 125
      %v2939 = vpop.permute.xlu0 %2938
      %2940 = vrot.lane.b32.xlu0 %v1136, 125
      %v2941 = vpop.permute.xlu0 %2940
      %2942 = vrot.lane.b32.xlu0 %v1137, 125
      %v2943 = vpop.permute.xlu0 %2942
      %2944 = vrot.lane.b32.xlu0 %v1138, 125
      %v2945 = vpop.permute.xlu0 %2944
      %2946 = vrot.lane.b32.xlu0 %v1139, 125
      %v2947 = vpop.permute.xlu0 %2946
      %2948 = vrot.lane.b32.xlu0 %v1140, 125
      %v2949 = vpop.permute.xlu0 %2948
      %2950 = vrot.lane.b32.xlu0 %v1141, 125
      %v2951 = vpop.permute.xlu0 %2950
      %2952 = vrot.lane.b32.xlu0 %v1142, 125
      %v2953 = vpop.permute.xlu0 %2952
      %2954 = vrot.lane.b32.xlu0 %v1143, 125
      %v2955 = vpop.permute.xlu0 %2954
      %2956 = vrot.lane.b32.xlu0 %v1144, 125
      %v2957 = vpop.permute.xlu0 %2956
      %2958 = vrot.lane.b32.xlu0 %v1145, 125
      %v2959 = vpop.permute.xlu0 %2958
      %2960 = vrot.lane.b32.xlu0 %v1146, 125
      %v2961 = vpop.permute.xlu0 %2960
      %2962 = vrot.lane.b32.xlu0 %v1147, 125
      %v2963 = vpop.permute.xlu0 %2962
      %2964 = vrot.lane.b32.xlu0 %v1148, 125
      %v2965 = vpop.permute.xlu0 %2964
      %2966 = vrot.lane.b32.xlu0 %v1149, 125
      %v2967 = vpop.permute.xlu0 %2966
      %2968 = vrot.lane.b32.xlu0 %v1150, 125
      %v2969 = vpop.permute.xlu0 %2968
      %2970 = vrot.lane.b32.xlu0 %v1151, 125
      %v2971 = vpop.permute.xlu0 %2970
      %2972 = vrot.lane.b32.xlu0 %v1152, 125
      %v2973 = vpop.permute.xlu0 %2972
      %2974 = vrot.lane.b32.xlu0 %v1153, 125
      %v2975 = vpop.permute.xlu0 %2974
      %2976 = vrot.lane.b32.xlu0 %v1154, 125
      %v2977 = vpop.permute.xlu0 %2976
      %2978 = vrot.lane.b32.xlu0 %v1155, 125
      %v2979 = vpop.permute.xlu0 %2978
      %2980 = vrot.lane.b32.xlu0 %v1156, 125
      %v2981 = vpop.permute.xlu0 %2980
      %vm2982 = vcmp.lt.s32.totalorder %v2854, %v2919
      %vm2983 = vcmp.lt.s32.totalorder %v2855, %v2921
      %vm2984 = vcmp.lt.s32.totalorder %v2856, %v2923
      %vm2985 = vcmp.lt.s32.totalorder %v2857, %v2925
      %vm2986 = vcmp.lt.s32.totalorder %v2858, %v2927
      %vm2987 = vcmp.lt.s32.totalorder %v2859, %v2929
      %vm2988 = vcmp.lt.s32.totalorder %v2860, %v2931
      %vm2989 = vcmp.lt.s32.totalorder %v2861, %v2933
      %vm2990 = vcmp.lt.s32.totalorder %v2862, %v2935
      %vm2991 = vcmp.lt.s32.totalorder %v2863, %v2937
      %vm2992 = vcmp.lt.s32.totalorder %v2864, %v2939
      %vm2993 = vcmp.lt.s32.totalorder %v2865, %v2941
      %vm2994 = vcmp.lt.s32.totalorder %v2866, %v2943
      %vm2995 = vcmp.lt.s32.totalorder %v2867, %v2945
      %vm2996 = vcmp.lt.s32.totalorder %v2868, %v2947
      %vm2997 = vcmp.lt.s32.totalorder %v2869, %v2949
      %vm2998 = vcmp.lt.s32.totalorder %v2870, %v2951
      %vm2999 = vcmp.lt.s32.totalorder %v2871, %v2953
      %vm3000 = vcmp.lt.s32.totalorder %v2872, %v2955
      %vm3001 = vcmp.lt.s32.totalorder %v2873, %v2957
      %vm3002 = vcmp.lt.s32.totalorder %v2874, %v2959
      %vm3003 = vcmp.lt.s32.totalorder %v2875, %v2961
      %vm3004 = vcmp.lt.s32.totalorder %v2876, %v2963
      %vm3005 = vcmp.lt.s32.totalorder %v2877, %v2965
      %vm3006 = vcmp.lt.s32.totalorder %v2878, %v2967
      %vm3007 = vcmp.lt.s32.totalorder %v2879, %v2969
      %vm3008 = vcmp.lt.s32.totalorder %v2880, %v2971
      %vm3009 = vcmp.lt.s32.totalorder %v2881, %v2973
      %vm3010 = vcmp.lt.s32.totalorder %v2882, %v2975
      %vm3011 = vcmp.lt.s32.totalorder %v2883, %v2977
      %vm3012 = vcmp.lt.s32.totalorder %v2884, %v2979
      %vm3013 = vcmp.lt.s32.totalorder %v2885, %v2981
      %vm3014 = vcmp.eq.s32.totalorder %v2854, %v2919
      %vm3015 = vcmp.eq.s32.totalorder %v2855, %v2921
      %vm3016 = vcmp.eq.s32.totalorder %v2856, %v2923
      %vm3017 = vcmp.eq.s32.totalorder %v2857, %v2925
      %vm3018 = vcmp.eq.s32.totalorder %v2858, %v2927
      %vm3019 = vcmp.eq.s32.totalorder %v2859, %v2929
      %vm3020 = vcmp.eq.s32.totalorder %v2860, %v2931
      %vm3021 = vcmp.eq.s32.totalorder %v2861, %v2933
      %vm3022 = vcmp.eq.s32.totalorder %v2862, %v2935
      %vm3023 = vcmp.eq.s32.totalorder %v2863, %v2937
      %vm3024 = vcmp.eq.s32.totalorder %v2864, %v2939
      %vm3025 = vcmp.eq.s32.totalorder %v2865, %v2941
      %vm3026 = vcmp.eq.s32.totalorder %v2866, %v2943
      %vm3027 = vcmp.eq.s32.totalorder %v2867, %v2945
      %vm3028 = vcmp.eq.s32.totalorder %v2868, %v2947
      %vm3029 = vcmp.eq.s32.totalorder %v2869, %v2949
      %vm3030 = vcmp.eq.s32.totalorder %v2870, %v2951
      %vm3031 = vcmp.eq.s32.totalorder %v2871, %v2953
      %vm3032 = vcmp.eq.s32.totalorder %v2872, %v2955
      %vm3033 = vcmp.eq.s32.totalorder %v2873, %v2957
      %vm3034 = vcmp.eq.s32.totalorder %v2874, %v2959
      %vm3035 = vcmp.eq.s32.totalorder %v2875, %v2961
      %vm3036 = vcmp.eq.s32.totalorder %v2876, %v2963
      %vm3037 = vcmp.eq.s32.totalorder %v2877, %v2965
      %vm3038 = vcmp.eq.s32.totalorder %v2878, %v2967
      %vm3039 = vcmp.eq.s32.totalorder %v2879, %v2969
      %vm3040 = vcmp.eq.s32.totalorder %v2880, %v2971
      %vm3041 = vcmp.eq.s32.totalorder %v2881, %v2973
      %vm3042 = vcmp.eq.s32.totalorder %v2882, %v2975
      %vm3043 = vcmp.eq.s32.totalorder %v2883, %v2977
      %vm3044 = vcmp.eq.s32.totalorder %v2884, %v2979
      %vm3045 = vcmp.eq.s32.totalorder %v2885, %v2981
      %3046 = vrot.lane.b32.xlu0 %v1157, 125
      %v3047 = vpop.permute.xlu0 %3046
      %3048 = vrot.lane.b32.xlu0 %v1158, 125
      %v3049 = vpop.permute.xlu0 %3048
      %3050 = vrot.lane.b32.xlu0 %v1159, 125
      %v3051 = vpop.permute.xlu0 %3050
      %3052 = vrot.lane.b32.xlu0 %v1160, 125
      %v3053 = vpop.permute.xlu0 %3052
      %3054 = vrot.lane.b32.xlu0 %v1161, 125
      %v3055 = vpop.permute.xlu0 %3054
      %3056 = vrot.lane.b32.xlu0 %v1162, 125
      %v3057 = vpop.permute.xlu0 %3056
      %3058 = vrot.lane.b32.xlu0 %v1163, 125
      %v3059 = vpop.permute.xlu0 %3058
      %3060 = vrot.lane.b32.xlu0 %v1164, 125
      %v3061 = vpop.permute.xlu0 %3060
      %3062 = vrot.lane.b32.xlu0 %v1165, 125
      %v3063 = vpop.permute.xlu0 %3062
      %3064 = vrot.lane.b32.xlu0 %v1166, 125
      %v3065 = vpop.permute.xlu0 %3064
      %3066 = vrot.lane.b32.xlu0 %v1167, 125
      %v3067 = vpop.permute.xlu0 %3066
      %3068 = vrot.lane.b32.xlu0 %v1168, 125
      %v3069 = vpop.permute.xlu0 %3068
      %3070 = vrot.lane.b32.xlu0 %v1169, 125
      %v3071 = vpop.permute.xlu0 %3070
      %3072 = vrot.lane.b32.xlu0 %v1170, 125
      %v3073 = vpop.permute.xlu0 %3072
      %3074 = vrot.lane.b32.xlu0 %v1171, 125
      %v3075 = vpop.permute.xlu0 %3074
      %3076 = vrot.lane.b32.xlu0 %v1172, 125
      %v3077 = vpop.permute.xlu0 %3076
      %3078 = vrot.lane.b32.xlu0 %v1173, 125
      %v3079 = vpop.permute.xlu0 %3078
      %3080 = vrot.lane.b32.xlu0 %v1174, 125
      %v3081 = vpop.permute.xlu0 %3080
      %3082 = vrot.lane.b32.xlu0 %v1175, 125
      %v3083 = vpop.permute.xlu0 %3082
      %3084 = vrot.lane.b32.xlu0 %v1176, 125
      %v3085 = vpop.permute.xlu0 %3084
      %3086 = vrot.lane.b32.xlu0 %v1177, 125
      %v3087 = vpop.permute.xlu0 %3086
      %3088 = vrot.lane.b32.xlu0 %v1178, 125
      %v3089 = vpop.permute.xlu0 %3088
      %3090 = vrot.lane.b32.xlu0 %v1179, 125
      %v3091 = vpop.permute.xlu0 %3090
      %3092 = vrot.lane.b32.xlu0 %v1180, 125
      %v3093 = vpop.permute.xlu0 %3092
      %3094 = vrot.lane.b32.xlu0 %v1181, 125
      %v3095 = vpop.permute.xlu0 %3094
      %3096 = vrot.lane.b32.xlu0 %v1182, 125
      %v3097 = vpop.permute.xlu0 %3096
      %3098 = vrot.lane.b32.xlu0 %v1183, 125
      %v3099 = vpop.permute.xlu0 %3098
      %3100 = vrot.lane.b32.xlu0 %v1184, 125
      %v3101 = vpop.permute.xlu0 %3100
      %3102 = vrot.lane.b32.xlu0 %v1185, 125
      %v3103 = vpop.permute.xlu0 %3102
      %3104 = vrot.lane.b32.xlu0 %v1186, 125
      %v3105 = vpop.permute.xlu0 %3104
      %3106 = vrot.lane.b32.xlu0 %v1187, 125
      %v3107 = vpop.permute.xlu0 %3106
      %3108 = vrot.lane.b32.xlu0 %v1188, 125
      %v3109 = vpop.permute.xlu0 %3108
      %vm3110 = vcmp.lt.s32.totalorder %v2886, %v3047
      %vm3111 = vcmp.lt.s32.totalorder %v2887, %v3049
      %vm3112 = vcmp.lt.s32.totalorder %v2888, %v3051
      %vm3113 = vcmp.lt.s32.totalorder %v2889, %v3053
      %vm3114 = vcmp.lt.s32.totalorder %v2890, %v3055
      %vm3115 = vcmp.lt.s32.totalorder %v2891, %v3057
      %vm3116 = vcmp.lt.s32.totalorder %v2892, %v3059
      %vm3117 = vcmp.lt.s32.totalorder %v2893, %v3061
      %vm3118 = vcmp.lt.s32.totalorder %v2894, %v3063
      %vm3119 = vcmp.lt.s32.totalorder %v2895, %v3065
      %vm3120 = vcmp.lt.s32.totalorder %v2896, %v3067
      %vm3121 = vcmp.lt.s32.totalorder %v2897, %v3069
      %vm3122 = vcmp.lt.s32.totalorder %v2898, %v3071
      %vm3123 = vcmp.lt.s32.totalorder %v2899, %v3073
      %vm3124 = vcmp.lt.s32.totalorder %v2900, %v3075
      %vm3125 = vcmp.lt.s32.totalorder %v2901, %v3077
      %vm3126 = vcmp.lt.s32.totalorder %v2902, %v3079
      %vm3127 = vcmp.lt.s32.totalorder %v2903, %v3081
      %vm3128 = vcmp.lt.s32.totalorder %v2904, %v3083
      %vm3129 = vcmp.lt.s32.totalorder %v2905, %v3085
      %vm3130 = vcmp.lt.s32.totalorder %v2906, %v3087
      %vm3131 = vcmp.lt.s32.totalorder %v2907, %v3089
      %vm3132 = vcmp.lt.s32.totalorder %v2908, %v3091
      %vm3133 = vcmp.lt.s32.totalorder %v2909, %v3093
      %vm3134 = vcmp.lt.s32.totalorder %v2910, %v3095
      %vm3135 = vcmp.lt.s32.totalorder %v2911, %v3097
      %vm3136 = vcmp.lt.s32.totalorder %v2912, %v3099
      %vm3137 = vcmp.lt.s32.totalorder %v2913, %v3101
      %vm3138 = vcmp.lt.s32.totalorder %v2914, %v3103
      %vm3139 = vcmp.lt.s32.totalorder %v2915, %v3105
      %vm3140 = vcmp.lt.s32.totalorder %v2916, %v3107
      %vm3141 = vcmp.lt.s32.totalorder %v2917, %v3109
      %vm3142 = vmand %vm3014, %vm3110
      %vm3143 = vmand %vm3015, %vm3111
      %vm3144 = vmand %vm3016, %vm3112
      %vm3145 = vmand %vm3017, %vm3113
      %vm3146 = vmand %vm3018, %vm3114
      %vm3147 = vmand %vm3019, %vm3115
      %vm3148 = vmand %vm3020, %vm3116
      %vm3149 = vmand %vm3021, %vm3117
      %vm3150 = vmand %vm3022, %vm3118
      %vm3151 = vmand %vm3023, %vm3119
      %vm3152 = vmand %vm3024, %vm3120
      %vm3153 = vmand %vm3025, %vm3121
      %vm3154 = vmand %vm3026, %vm3122
      %vm3155 = vmand %vm3027, %vm3123
      %vm3156 = vmand %vm3028, %vm3124
      %vm3157 = vmand %vm3029, %vm3125
      %vm3158 = vmand %vm3030, %vm3126
      %vm3159 = vmand %vm3031, %vm3127
      %vm3160 = vmand %vm3032, %vm3128
      %vm3161 = vmand %vm3033, %vm3129
      %vm3162 = vmand %vm3034, %vm3130
      %vm3163 = vmand %vm3035, %vm3131
      %vm3164 = vmand %vm3036, %vm3132
      %vm3165 = vmand %vm3037, %vm3133
      %vm3166 = vmand %vm3038, %vm3134
      %vm3167 = vmand %vm3039, %vm3135
      %vm3168 = vmand %vm3040, %vm3136
      %vm3169 = vmand %vm3041, %vm3137
      %vm3170 = vmand %vm3042, %vm3138
      %vm3171 = vmand %vm3043, %vm3139
      %vm3172 = vmand %vm3044, %vm3140
      %vm3173 = vmand %vm3045, %vm3141
      %vm3174 = vmor %vm2982, %vm3142
      %vm3175 = vmor %vm2983, %vm3143
      %vm3176 = vmor %vm2984, %vm3144
      %vm3177 = vmor %vm2985, %vm3145
      %vm3178 = vmor %vm2986, %vm3146
      %vm3179 = vmor %vm2987, %vm3147
      %vm3180 = vmor %vm2988, %vm3148
      %vm3181 = vmor %vm2989, %vm3149
      %vm3182 = vmor %vm2990, %vm3150
      %vm3183 = vmor %vm2991, %vm3151
      %vm3184 = vmor %vm2992, %vm3152
      %vm3185 = vmor %vm2993, %vm3153
      %vm3186 = vmor %vm2994, %vm3154
      %vm3187 = vmor %vm2995, %vm3155
      %vm3188 = vmor %vm2996, %vm3156
      %vm3189 = vmor %vm2997, %vm3157
      %vm3190 = vmor %vm2998, %vm3158
      %vm3191 = vmor %vm2999, %vm3159
      %vm3192 = vmor %vm3000, %vm3160
      %vm3193 = vmor %vm3001, %vm3161
      %vm3194 = vmor %vm3002, %vm3162
      %vm3195 = vmor %vm3003, %vm3163
      %vm3196 = vmor %vm3004, %vm3164
      %vm3197 = vmor %vm3005, %vm3165
      %vm3198 = vmor %vm3006, %vm3166
      %vm3199 = vmor %vm3007, %vm3167
      %vm3200 = vmor %vm3008, %vm3168
      %vm3201 = vmor %vm3009, %vm3169
      %vm3202 = vmor %vm3010, %vm3170
      %vm3203 = vmor %vm3011, %vm3171
      %vm3204 = vmor %vm3012, %vm3172
      %vm3205 = vmor %vm3013, %vm3173
      %v3206 = vsel %vm3174, %v2854, %v2919
      %v3207 = vsel %vm3175, %v2855, %v2921
      %v3208 = vsel %vm3176, %v2856, %v2923
      %v3209 = vsel %vm3177, %v2857, %v2925
      %v3210 = vsel %vm3178, %v2858, %v2927
      %v3211 = vsel %vm3179, %v2859, %v2929
      %v3212 = vsel %vm3180, %v2860, %v2931
      %v3213 = vsel %vm3181, %v2861, %v2933
      %v3214 = vsel %vm3182, %v2862, %v2935
      %v3215 = vsel %vm3183, %v2863, %v2937
      %v3216 = vsel %vm3184, %v2864, %v2939
      %v3217 = vsel %vm3185, %v2865, %v2941
      %v3218 = vsel %vm3186, %v2866, %v2943
      %v3219 = vsel %vm3187, %v2867, %v2945
      %v3220 = vsel %vm3188, %v2868, %v2947
      %v3221 = vsel %vm3189, %v2869, %v2949
      %v3222 = vsel %vm3190, %v2870, %v2951
      %v3223 = vsel %vm3191, %v2871, %v2953
      %v3224 = vsel %vm3192, %v2872, %v2955
      %v3225 = vsel %vm3193, %v2873, %v2957
      %v3226 = vsel %vm3194, %v2874, %v2959
      %v3227 = vsel %vm3195, %v2875, %v2961
      %v3228 = vsel %vm3196, %v2876, %v2963
      %v3229 = vsel %vm3197, %v2877, %v2965
      %v3230 = vsel %vm3198, %v2878, %v2967
      %v3231 = vsel %vm3199, %v2879, %v2969
      %v3232 = vsel %vm3200, %v2880, %v2971
      %v3233 = vsel %vm3201, %v2881, %v2973
      %v3234 = vsel %vm3202, %v2882, %v2975
      %v3235 = vsel %vm3203, %v2883, %v2977
      %v3236 = vsel %vm3204, %v2884, %v2979
      %v3237 = vsel %vm3205, %v2885, %v2981
      %v3238 = vsel %vm3174, %v2886, %v3047
      %v3239 = vsel %vm3175, %v2887, %v3049
      %v3240 = vsel %vm3176, %v2888, %v3051
      %v3241 = vsel %vm3177, %v2889, %v3053
      %v3242 = vsel %vm3178, %v2890, %v3055
      %v3243 = vsel %vm3179, %v2891, %v3057
      %v3244 = vsel %vm3180, %v2892, %v3059
      %v3245 = vsel %vm3181, %v2893, %v3061
      %v3246 = vsel %vm3182, %v2894, %v3063
      %v3247 = vsel %vm3183, %v2895, %v3065
      %v3248 = vsel %vm3184, %v2896, %v3067
      %v3249 = vsel %vm3185, %v2897, %v3069
      %v3250 = vsel %vm3186, %v2898, %v3071
      %v3251 = vsel %vm3187, %v2899, %v3073
      %v3252 = vsel %vm3188, %v2900, %v3075
      %v3253 = vsel %vm3189, %v2901, %v3077
      %v3254 = vsel %vm3190, %v2902, %v3079
      %v3255 = vsel %vm3191, %v2903, %v3081
      %v3256 = vsel %vm3192, %v2904, %v3083
      %v3257 = vsel %vm3193, %v2905, %v3085
      %v3258 = vsel %vm3194, %v2906, %v3087
      %v3259 = vsel %vm3195, %v2907, %v3089
      %v3260 = vsel %vm3196, %v2908, %v3091
      %v3261 = vsel %vm3197, %v2909, %v3093
      %v3262 = vsel %vm3198, %v2910, %v3095
      %v3263 = vsel %vm3199, %v2911, %v3097
      %v3264 = vsel %vm3200, %v2912, %v3099
      %v3265 = vsel %vm3201, %v2913, %v3101
      %v3266 = vsel %vm3202, %v2914, %v3103
      %v3267 = vsel %vm3203, %v2915, %v3105
      %v3268 = vsel %vm3204, %v2916, %v3107
      %v3269 = vsel %vm3205, %v2917, %v3109
      %v3270 = vand.u32 %v1766, 65535
      %v3271 = vshra.s32 %v1766, 16
      %v3272 = vcvt.s32.f32 %v3270
      %v3273 = vcvt.s32.f32 %v3271
      %3274 = vmin.xlane.f32.xlu0 %v3273
      %v3275 = vpop.xlane.xlu0 %3274
      %vm3276 = vcmp.eq.f32.partialorder %v3273, %v3275
      %v3277 = vsel %vm3276, %v3272, inf
      %3278 = vmin.xlane.f32.xlu0 %v3277
      %v3279 = vpop.xlane.xlu0 %3278
      %v3280 = vcvt.f32.s32 %v3279
      %v3281 = vcvt.f32.s32 %v3275
      %v3282 = vshll.u32 %v3281, 16
      %v3283 = vadd.s32 %v3282, %v3280
      %v3284 = vand.u32 %v1767, 65535
      %v3285 = vshra.s32 %v1767, 16
      %v3286 = vcvt.s32.f32 %v3284
      %v3287 = vcvt.s32.f32 %v3285
      %3288 = vmin.xlane.f32.xlu0 %v3287
      %v3289 = vpop.xlane.xlu0 %3288
      %vm3290 = vcmp.eq.f32.partialorder %v3287, %v3289
      %v3291 = vsel %vm3290, %v3286, inf
      %3292 = vmin.xlane.f32.xlu0 %v3291
      %v3293 = vpop.xlane.xlu0 %3292
      %v3294 = vcvt.f32.s32 %v3293
      %v3295 = vcvt.f32.s32 %v3289
      %v3296 = vshll.u32 %v3295, 16
      %v3297 = vadd.s32 %v3296, %v3294
      %v3298 = vand.u32 %v1768, 65535
      %v3299 = vshra.s32 %v1768, 16
      %v3300 = vcvt.s32.f32 %v3298
      %v3301 = vcvt.s32.f32 %v3299
      %3302 = vmin.xlane.f32.xlu0 %v3301
      %v3303 = vpop.xlane.xlu0 %3302
      %vm3304 = vcmp.eq.f32.partialorder %v3301, %v3303
      %v3305 = vsel %vm3304, %v3300, inf
      %3306 = vmin.xlane.f32.xlu0 %v3305
      %v3307 = vpop.xlane.xlu0 %3306
      %v3308 = vcvt.f32.s32 %v3307
      %v3309 = vcvt.f32.s32 %v3303
      %v3310 = vshll.u32 %v3309, 16
      %v3311 = vadd.s32 %v3310, %v3308
      %v3312 = vand.u32 %v1769, 65535
      %v3313 = vshra.s32 %v1769, 16
      %v3314 = vcvt.s32.f32 %v3312
      %v3315 = vcvt.s32.f32 %v3313
      %3316 = vmin.xlane.f32.xlu0 %v3315
      %v3317 = vpop.xlane.xlu0 %3316
      %vm3318 = vcmp.eq.f32.partialorder %v3315, %v3317
      %v3319 = vsel %vm3318, %v3314, inf
      %3320 = vmin.xlane.f32.xlu0 %v3319
      %v3321 = vpop.xlane.xlu0 %3320
      %v3322 = vcvt.f32.s32 %v3321
      %v3323 = vcvt.f32.s32 %v3317
      %v3324 = vshll.u32 %v3323, 16
      %v3325 = vadd.s32 %v3324, %v3322
      %v3326 = vand.u32 %v1770, 65535
      %v3327 = vshra.s32 %v1770, 16
      %v3328 = vcvt.s32.f32 %v3326
      %v3329 = vcvt.s32.f32 %v3327
      %3330 = vmin.xlane.f32.xlu0 %v3329
      %v3331 = vpop.xlane.xlu0 %3330
      %vm3332 = vcmp.eq.f32.partialorder %v3329, %v3331
      %v3333 = vsel %vm3332, %v3328, inf
      %3334 = vmin.xlane.f32.xlu0 %v3333
      %v3335 = vpop.xlane.xlu0 %3334
      %v3336 = vcvt.f32.s32 %v3335
      %v3337 = vcvt.f32.s32 %v3331
      %v3338 = vshll.u32 %v3337, 16
      %v3339 = vadd.s32 %v3338, %v3336
      %v3340 = vand.u32 %v1771, 65535
      %v3341 = vshra.s32 %v1771, 16
      %v3342 = vcvt.s32.f32 %v3340
      %v3343 = vcvt.s32.f32 %v3341
      %3344 = vmin.xlane.f32.xlu0 %v3343
      %v3345 = vpop.xlane.xlu0 %3344
      %vm3346 = vcmp.eq.f32.partialorder %v3343, %v3345
      %v3347 = vsel %vm3346, %v3342, inf
      %3348 = vmin.xlane.f32.xlu0 %v3347
      %v3349 = vpop.xlane.xlu0 %3348
      %v3350 = vcvt.f32.s32 %v3349
      %v3351 = vcvt.f32.s32 %v3345
      %v3352 = vshll.u32 %v3351, 16
      %v3353 = vadd.s32 %v3352, %v3350
      %v3354 = vand.u32 %v1772, 65535
      %v3355 = vshra.s32 %v1772, 16
      %v3356 = vcvt.s32.f32 %v3354
      %v3357 = vcvt.s32.f32 %v3355
      %3358 = vmin.xlane.f32.xlu0 %v3357
      %v3359 = vpop.xlane.xlu0 %3358
      %vm3360 = vcmp.eq.f32.partialorder %v3357, %v3359
      %v3361 = vsel %vm3360, %v3356, inf
      %3362 = vmin.xlane.f32.xlu0 %v3361
      %v3363 = vpop.xlane.xlu0 %3362
      %v3364 = vcvt.f32.s32 %v3363
      %v3365 = vcvt.f32.s32 %v3359
      %v3366 = vshll.u32 %v3365, 16
      %v3367 = vadd.s32 %v3366, %v3364
      %v3368 = vand.u32 %v1773, 65535
      %v3369 = vshra.s32 %v1773, 16
      %v3370 = vcvt.s32.f32 %v3368
      %v3371 = vcvt.s32.f32 %v3369
      %3372 = vmin.xlane.f32.xlu0 %v3371
      %v3373 = vpop.xlane.xlu0 %3372
      %vm3374 = vcmp.eq.f32.partialorder %v3371, %v3373
      %v3375 = vsel %vm3374, %v3370, inf
      %3376 = vmin.xlane.f32.xlu0 %v3375
      %v3377 = vpop.xlane.xlu0 %3376
      %v3378 = vcvt.f32.s32 %v3377
      %v3379 = vcvt.f32.s32 %v3373
      %v3380 = vshll.u32 %v3379, 16
      %v3381 = vadd.s32 %v3380, %v3378
      %v3382 = vand.u32 %v1774, 65535
      %v3383 = vshra.s32 %v1774, 16
      %v3384 = vcvt.s32.f32 %v3382
      %v3385 = vcvt.s32.f32 %v3383
      %3386 = vmin.xlane.f32.xlu0 %v3385
      %v3387 = vpop.xlane.xlu0 %3386
      %vm3388 = vcmp.eq.f32.partialorder %v3385, %v3387
      %v3389 = vsel %vm3388, %v3384, inf
      %3390 = vmin.xlane.f32.xlu0 %v3389
      %v3391 = vpop.xlane.xlu0 %3390
      %v3392 = vcvt.f32.s32 %v3391
      %v3393 = vcvt.f32.s32 %v3387
      %v3394 = vshll.u32 %v3393, 16
      %v3395 = vadd.s32 %v3394, %v3392
      %v3396 = vand.u32 %v1775, 65535
      %v3397 = vshra.s32 %v1775, 16
      %v3398 = vcvt.s32.f32 %v3396
      %v3399 = vcvt.s32.f32 %v3397
      %3400 = vmin.xlane.f32.xlu0 %v3399
      %v3401 = vpop.xlane.xlu0 %3400
      %vm3402 = vcmp.eq.f32.partialorder %v3399, %v3401
      %v3403 = vsel %vm3402, %v3398, inf
      %3404 = vmin.xlane.f32.xlu0 %v3403
      %v3405 = vpop.xlane.xlu0 %3404
      %v3406 = vcvt.f32.s32 %v3405
      %v3407 = vcvt.f32.s32 %v3401
      %v3408 = vshll.u32 %v3407, 16
      %v3409 = vadd.s32 %v3408, %v3406
      %v3410 = vand.u32 %v1776, 65535
      %v3411 = vshra.s32 %v1776, 16
      %v3412 = vcvt.s32.f32 %v3410
      %v3413 = vcvt.s32.f32 %v3411
      %3414 = vmin.xlane.f32.xlu0 %v3413
      %v3415 = vpop.xlane.xlu0 %3414
      %vm3416 = vcmp.eq.f32.partialorder %v3413, %v3415
      %v3417 = vsel %vm3416, %v3412, inf
      %3418 = vmin.xlane.f32.xlu0 %v3417
      %v3419 = vpop.xlane.xlu0 %3418
      %v3420 = vcvt.f32.s32 %v3419
      %v3421 = vcvt.f32.s32 %v3415
      %v3422 = vshll.u32 %v3421, 16
      %v3423 = vadd.s32 %v3422, %v3420
      %v3424 = vand.u32 %v1777, 65535
      %v3425 = vshra.s32 %v1777, 16
      %v3426 = vcvt.s32.f32 %v3424
      %v3427 = vcvt.s32.f32 %v3425
      %3428 = vmin.xlane.f32.xlu0 %v3427
      %v3429 = vpop.xlane.xlu0 %3428
      %vm3430 = vcmp.eq.f32.partialorder %v3427, %v3429
      %v3431 = vsel %vm3430, %v3426, inf
      %3432 = vmin.xlane.f32.xlu0 %v3431
      %v3433 = vpop.xlane.xlu0 %3432
      %v3434 = vcvt.f32.s32 %v3433
      %v3435 = vcvt.f32.s32 %v3429
      %v3436 = vshll.u32 %v3435, 16
      %v3437 = vadd.s32 %v3436, %v3434
      %v3438 = vand.u32 %v1778, 65535
      %v3439 = vshra.s32 %v1778, 16
      %v3440 = vcvt.s32.f32 %v3438
      %v3441 = vcvt.s32.f32 %v3439
      %3442 = vmin.xlane.f32.xlu0 %v3441
      %v3443 = vpop.xlane.xlu0 %3442
      %vm3444 = vcmp.eq.f32.partialorder %v3441, %v3443
      %v3445 = vsel %vm3444, %v3440, inf
      %3446 = vmin.xlane.f32.xlu0 %v3445
      %v3447 = vpop.xlane.xlu0 %3446
      %v3448 = vcvt.f32.s32 %v3447
      %v3449 = vcvt.f32.s32 %v3443
      %v3450 = vshll.u32 %v3449, 16
      %v3451 = vadd.s32 %v3450, %v3448
      %v3452 = vand.u32 %v1779, 65535
      %v3453 = vshra.s32 %v1779, 16
      %v3454 = vcvt.s32.f32 %v3452
      %v3455 = vcvt.s32.f32 %v3453
      %3456 = vmin.xlane.f32.xlu0 %v3455
      %v3457 = vpop.xlane.xlu0 %3456
      %vm3458 = vcmp.eq.f32.partialorder %v3455, %v3457
      %v3459 = vsel %vm3458, %v3454, inf
      %3460 = vmin.xlane.f32.xlu0 %v3459
      %v3461 = vpop.xlane.xlu0 %3460
      %v3462 = vcvt.f32.s32 %v3461
      %v3463 = vcvt.f32.s32 %v3457
      %v3464 = vshll.u32 %v3463, 16
      %v3465 = vadd.s32 %v3464, %v3462
      %v3466 = vand.u32 %v1780, 65535
      %v3467 = vshra.s32 %v1780, 16
      %v3468 = vcvt.s32.f32 %v3466
      %v3469 = vcvt.s32.f32 %v3467
      %3470 = vmin.xlane.f32.xlu0 %v3469
      %v3471 = vpop.xlane.xlu0 %3470
      %vm3472 = vcmp.eq.f32.partialorder %v3469, %v3471
      %v3473 = vsel %vm3472, %v3468, inf
      %3474 = vmin.xlane.f32.xlu0 %v3473
      %v3475 = vpop.xlane.xlu0 %3474
      %v3476 = vcvt.f32.s32 %v3475
      %v3477 = vcvt.f32.s32 %v3471
      %v3478 = vshll.u32 %v3477, 16
      %v3479 = vadd.s32 %v3478, %v3476
      %v3480 = vand.u32 %v1781, 65535
      %v3481 = vshra.s32 %v1781, 16
      %v3482 = vcvt.s32.f32 %v3480
      %v3483 = vcvt.s32.f32 %v3481
      %3484 = vmin.xlane.f32.xlu0 %v3483
      %v3485 = vpop.xlane.xlu0 %3484
      %vm3486 = vcmp.eq.f32.partialorder %v3483, %v3485
      %v3487 = vsel %vm3486, %v3482, inf
      %3488 = vmin.xlane.f32.xlu0 %v3487
      %v3489 = vpop.xlane.xlu0 %3488
      %v3490 = vcvt.f32.s32 %v3489
      %v3491 = vcvt.f32.s32 %v3485
      %v3492 = vshll.u32 %v3491, 16
      %v3493 = vadd.s32 %v3492, %v3490
      %v3494 = vand.u32 %v1782, 65535
      %v3495 = vshra.s32 %v1782, 16
      %v3496 = vcvt.s32.f32 %v3494
      %v3497 = vcvt.s32.f32 %v3495
      %3498 = vmin.xlane.f32.xlu0 %v3497
      %v3499 = vpop.xlane.xlu0 %3498
      %vm3500 = vcmp.eq.f32.partialorder %v3497, %v3499
      %v3501 = vsel %vm3500, %v3496, inf
      %3502 = vmin.xlane.f32.xlu0 %v3501
      %v3503 = vpop.xlane.xlu0 %3502
      %v3504 = vcvt.f32.s32 %v3503
      %v3505 = vcvt.f32.s32 %v3499
      %v3506 = vshll.u32 %v3505, 16
      %v3507 = vadd.s32 %v3506, %v3504
      %v3508 = vand.u32 %v1783, 65535
      %v3509 = vshra.s32 %v1783, 16
      %v3510 = vcvt.s32.f32 %v3508
      %v3511 = vcvt.s32.f32 %v3509
      %3512 = vmin.xlane.f32.xlu0 %v3511
      %v3513 = vpop.xlane.xlu0 %3512
      %vm3514 = vcmp.eq.f32.partialorder %v3511, %v3513
      %v3515 = vsel %vm3514, %v3510, inf
      %3516 = vmin.xlane.f32.xlu0 %v3515
      %v3517 = vpop.xlane.xlu0 %3516
      %v3518 = vcvt.f32.s32 %v3517
      %v3519 = vcvt.f32.s32 %v3513
      %v3520 = vshll.u32 %v3519, 16
      %v3521 = vadd.s32 %v3520, %v3518
      %v3522 = vand.u32 %v1784, 65535
      %v3523 = vshra.s32 %v1784, 16
      %v3524 = vcvt.s32.f32 %v3522
      %v3525 = vcvt.s32.f32 %v3523
      %3526 = vmin.xlane.f32.xlu0 %v3525
      %v3527 = vpop.xlane.xlu0 %3526
      %vm3528 = vcmp.eq.f32.partialorder %v3525, %v3527
      %v3529 = vsel %vm3528, %v3524, inf
      %3530 = vmin.xlane.f32.xlu0 %v3529
      %v3531 = vpop.xlane.xlu0 %3530
      %v3532 = vcvt.f32.s32 %v3531
      %v3533 = vcvt.f32.s32 %v3527
      %v3534 = vshll.u32 %v3533, 16
      %v3535 = vadd.s32 %v3534, %v3532
      %v3536 = vand.u32 %v1785, 65535
      %v3537 = vshra.s32 %v1785, 16
      %v3538 = vcvt.s32.f32 %v3536
      %v3539 = vcvt.s32.f32 %v3537
      %3540 = vmin.xlane.f32.xlu0 %v3539
      %v3541 = vpop.xlane.xlu0 %3540
      %vm3542 = vcmp.eq.f32.partialorder %v3539, %v3541
      %v3543 = vsel %vm3542, %v3538, inf
      %3544 = vmin.xlane.f32.xlu0 %v3543
      %v3545 = vpop.xlane.xlu0 %3544
      %v3546 = vcvt.f32.s32 %v3545
      %v3547 = vcvt.f32.s32 %v3541
      %v3548 = vshll.u32 %v3547, 16
      %v3549 = vadd.s32 %v3548, %v3546
      %v3550 = vand.u32 %v1786, 65535
      %v3551 = vshra.s32 %v1786, 16
      %v3552 = vcvt.s32.f32 %v3550
      %v3553 = vcvt.s32.f32 %v3551
      %3554 = vmin.xlane.f32.xlu0 %v3553
      %v3555 = vpop.xlane.xlu0 %3554
      %vm3556 = vcmp.eq.f32.partialorder %v3553, %v3555
      %v3557 = vsel %vm3556, %v3552, inf
      %3558 = vmin.xlane.f32.xlu0 %v3557
      %v3559 = vpop.xlane.xlu0 %3558
      %v3560 = vcvt.f32.s32 %v3559
      %v3561 = vcvt.f32.s32 %v3555
      %v3562 = vshll.u32 %v3561, 16
      %v3563 = vadd.s32 %v3562, %v3560
      %v3564 = vand.u32 %v1787, 65535
      %v3565 = vshra.s32 %v1787, 16
      %v3566 = vcvt.s32.f32 %v3564
      %v3567 = vcvt.s32.f32 %v3565
      %3568 = vmin.xlane.f32.xlu0 %v3567
      %v3569 = vpop.xlane.xlu0 %3568
      %vm3570 = vcmp.eq.f32.partialorder %v3567, %v3569
      %v3571 = vsel %vm3570, %v3566, inf
      %3572 = vmin.xlane.f32.xlu0 %v3571
      %v3573 = vpop.xlane.xlu0 %3572
      %v3574 = vcvt.f32.s32 %v3573
      %v3575 = vcvt.f32.s32 %v3569
      %v3576 = vshll.u32 %v3575, 16
      %v3577 = vadd.s32 %v3576, %v3574
      %v3578 = vand.u32 %v1788, 65535
      %v3579 = vshra.s32 %v1788, 16
      %v3580 = vcvt.s32.f32 %v3578
      %v3581 = vcvt.s32.f32 %v3579
      %3582 = vmin.xlane.f32.xlu0 %v3581
      %v3583 = vpop.xlane.xlu0 %3582
      %vm3584 = vcmp.eq.f32.partialorder %v3581, %v3583
      %v3585 = vsel %vm3584, %v3580, inf
      %3586 = vmin.xlane.f32.xlu0 %v3585
      %v3587 = vpop.xlane.xlu0 %3586
      %v3588 = vcvt.f32.s32 %v3587
      %v3589 = vcvt.f32.s32 %v3583
      %v3590 = vshll.u32 %v3589, 16
      %v3591 = vadd.s32 %v3590, %v3588
      %v3592 = vand.u32 %v1789, 65535
      %v3593 = vshra.s32 %v1789, 16
      %v3594 = vcvt.s32.f32 %v3592
      %v3595 = vcvt.s32.f32 %v3593
      %3596 = vmin.xlane.f32.xlu0 %v3595
      %v3597 = vpop.xlane.xlu0 %3596
      %vm3598 = vcmp.eq.f32.partialorder %v3595, %v3597
      %v3599 = vsel %vm3598, %v3594, inf
      %3600 = vmin.xlane.f32.xlu0 %v3599
      %v3601 = vpop.xlane.xlu0 %3600
      %v3602 = vcvt.f32.s32 %v3601
      %v3603 = vcvt.f32.s32 %v3597
      %v3604 = vshll.u32 %v3603, 16
      %v3605 = vadd.s32 %v3604, %v3602
      %v3606 = vand.u32 %v1790, 65535
      %v3607 = vshra.s32 %v1790, 16
      %v3608 = vcvt.s32.f32 %v3606
      %v3609 = vcvt.s32.f32 %v3607
      %3610 = vmin.xlane.f32.xlu0 %v3609
      %v3611 = vpop.xlane.xlu0 %3610
      %vm3612 = vcmp.eq.f32.partialorder %v3609, %v3611
      %v3613 = vsel %vm3612, %v3608, inf
      %3614 = vmin.xlane.f32.xlu0 %v3613
      %v3615 = vpop.xlane.xlu0 %3614
      %v3616 = vcvt.f32.s32 %v3615
      %v3617 = vcvt.f32.s32 %v3611
      %v3618 = vshll.u32 %v3617, 16
      %v3619 = vadd.s32 %v3618, %v3616
      %v3620 = vand.u32 %v1791, 65535
      %v3621 = vshra.s32 %v1791, 16
      %v3622 = vcvt.s32.f32 %v3620
      %v3623 = vcvt.s32.f32 %v3621
      %3624 = vmin.xlane.f32.xlu0 %v3623
      %v3625 = vpop.xlane.xlu0 %3624
      %vm3626 = vcmp.eq.f32.partialorder %v3623, %v3625
      %v3627 = vsel %vm3626, %v3622, inf
      %3628 = vmin.xlane.f32.xlu0 %v3627
      %v3629 = vpop.xlane.xlu0 %3628
      %v3630 = vcvt.f32.s32 %v3629
      %v3631 = vcvt.f32.s32 %v3625
      %v3632 = vshll.u32 %v3631, 16
      %v3633 = vadd.s32 %v3632, %v3630
      %v3634 = vand.u32 %v1792, 65535
      %v3635 = vshra.s32 %v1792, 16
      %v3636 = vcvt.s32.f32 %v3634
      %v3637 = vcvt.s32.f32 %v3635
      %3638 = vmin.xlane.f32.xlu0 %v3637
      %v3639 = vpop.xlane.xlu0 %3638
      %vm3640 = vcmp.eq.f32.partialorder %v3637, %v3639
      %v3641 = vsel %vm3640, %v3636, inf
      %3642 = vmin.xlane.f32.xlu0 %v3641
      %v3643 = vpop.xlane.xlu0 %3642
      %v3644 = vcvt.f32.s32 %v3643
      %v3645 = vcvt.f32.s32 %v3639
      %v3646 = vshll.u32 %v3645, 16
      %v3647 = vadd.s32 %v3646, %v3644
      %v3648 = vand.u32 %v1793, 65535
      %v3649 = vshra.s32 %v1793, 16
      %v3650 = vcvt.s32.f32 %v3648
      %v3651 = vcvt.s32.f32 %v3649
      %3652 = vmin.xlane.f32.xlu0 %v3651
      %v3653 = vpop.xlane.xlu0 %3652
      %vm3654 = vcmp.eq.f32.partialorder %v3651, %v3653
      %v3655 = vsel %vm3654, %v3650, inf
      %3656 = vmin.xlane.f32.xlu0 %v3655
      %v3657 = vpop.xlane.xlu0 %3656
      %v3658 = vcvt.f32.s32 %v3657
      %v3659 = vcvt.f32.s32 %v3653
      %v3660 = vshll.u32 %v3659, 16
      %v3661 = vadd.s32 %v3660, %v3658
      %v3662 = vand.u32 %v1794, 65535
      %v3663 = vshra.s32 %v1794, 16
      %v3664 = vcvt.s32.f32 %v3662
      %v3665 = vcvt.s32.f32 %v3663
      %3666 = vmin.xlane.f32.xlu0 %v3665
      %v3667 = vpop.xlane.xlu0 %3666
      %vm3668 = vcmp.eq.f32.partialorder %v3665, %v3667
      %v3669 = vsel %vm3668, %v3664, inf
      %3670 = vmin.xlane.f32.xlu0 %v3669
      %v3671 = vpop.xlane.xlu0 %3670
      %v3672 = vcvt.f32.s32 %v3671
      %v3673 = vcvt.f32.s32 %v3667
      %v3674 = vshll.u32 %v3673, 16
      %v3675 = vadd.s32 %v3674, %v3672
      %v3676 = vand.u32 %v1795, 65535
      %v3677 = vshra.s32 %v1795, 16
      %v3678 = vcvt.s32.f32 %v3676
      %v3679 = vcvt.s32.f32 %v3677
      %3680 = vmin.xlane.f32.xlu0 %v3679
      %v3681 = vpop.xlane.xlu0 %3680
      %vm3682 = vcmp.eq.f32.partialorder %v3679, %v3681
      %v3683 = vsel %vm3682, %v3678, inf
      %3684 = vmin.xlane.f32.xlu0 %v3683
      %v3685 = vpop.xlane.xlu0 %3684
      %v3686 = vcvt.f32.s32 %v3685
      %v3687 = vcvt.f32.s32 %v3681
      %v3688 = vshll.u32 %v3687, 16
      %v3689 = vadd.s32 %v3688, %v3686
      %v3690 = vand.u32 %v1796, 65535
      %v3691 = vshra.s32 %v1796, 16
      %v3692 = vcvt.s32.f32 %v3690
      %v3693 = vcvt.s32.f32 %v3691
      %3694 = vmin.xlane.f32.xlu0 %v3693
      %v3695 = vpop.xlane.xlu0 %3694
      %vm3696 = vcmp.eq.f32.partialorder %v3693, %v3695
      %v3697 = vsel %vm3696, %v3692, inf
      %3698 = vmin.xlane.f32.xlu0 %v3697
      %v3699 = vpop.xlane.xlu0 %3698
      %v3700 = vcvt.f32.s32 %v3699
      %v3701 = vcvt.f32.s32 %v3695
      %v3702 = vshll.u32 %v3701, 16
      %v3703 = vadd.s32 %v3702, %v3700
      %v3704 = vand.u32 %v1797, 65535
      %v3705 = vshra.s32 %v1797, 16
      %v3706 = vcvt.s32.f32 %v3704
      %v3707 = vcvt.s32.f32 %v3705
      %3708 = vmin.xlane.f32.xlu0 %v3707
      %v3709 = vpop.xlane.xlu0 %3708
      %vm3710 = vcmp.eq.f32.partialorder %v3707, %v3709
      %v3711 = vsel %vm3710, %v3706, inf
      %3712 = vmin.xlane.f32.xlu0 %v3711
      %v3713 = vpop.xlane.xlu0 %3712
      %v3714 = vcvt.f32.s32 %v3713
      %v3715 = vcvt.f32.s32 %v3709
      %v3716 = vshll.u32 %v3715, 16
      %v3717 = vadd.s32 %v3716, %v3714
      %v3718 = vand.u32 %v3283, 127
      %v3719 = vand.u32 %v3297, 127
      %v3720 = vand.u32 %v3311, 127
      %v3721 = vand.u32 %v3325, 127
      %v3722 = vand.u32 %v3339, 127
      %v3723 = vand.u32 %v3353, 127
      %v3724 = vand.u32 %v3367, 127
      %v3725 = vand.u32 %v3381, 127
      %v3726 = vand.u32 %v3395, 127
      %v3727 = vand.u32 %v3409, 127
      %v3728 = vand.u32 %v3423, 127
      %v3729 = vand.u32 %v3437, 127
      %v3730 = vand.u32 %v3451, 127
      %v3731 = vand.u32 %v3465, 127
      %v3732 = vand.u32 %v3479, 127
      %v3733 = vand.u32 %v3493, 127
      %v3734 = vand.u32 %v3507, 127
      %v3735 = vand.u32 %v3521, 127
      %v3736 = vand.u32 %v3535, 127
      %v3737 = vand.u32 %v3549, 127
      %v3738 = vand.u32 %v3563, 127
      %v3739 = vand.u32 %v3577, 127
      %v3740 = vand.u32 %v3591, 127
      %v3741 = vand.u32 %v3605, 127
      %v3742 = vand.u32 %v3619, 127
      %v3743 = vand.u32 %v3633, 127
      %v3744 = vand.u32 %v3647, 127
      %v3745 = vand.u32 %v3661, 127
      %v3746 = vand.u32 %v3675, 127
      %v3747 = vand.u32 %v3689, 127
      %v3748 = vand.u32 %v3703, 127
      %v3749 = vand.u32 %v3717, 127
      %v3750 = vand.u32 %v3283, 4294967168
      %v3751 = vand.u32 %v3297, 4294967168
      %v3752 = vand.u32 %v3311, 4294967168
      %v3753 = vand.u32 %v3325, 4294967168
      %v3754 = vand.u32 %v3339, 4294967168
      %v3755 = vand.u32 %v3353, 4294967168
      %v3756 = vand.u32 %v3367, 4294967168
      %v3757 = vand.u32 %v3381, 4294967168
      %v3758 = vand.u32 %v3395, 4294967168
      %v3759 = vand.u32 %v3409, 4294967168
      %v3760 = vand.u32 %v3423, 4294967168
      %v3761 = vand.u32 %v3437, 4294967168
      %v3762 = vand.u32 %v3451, 4294967168
      %v3763 = vand.u32 %v3465, 4294967168
      %v3764 = vand.u32 %v3479, 4294967168
      %v3765 = vand.u32 %v3493, 4294967168
      %v3766 = vand.u32 %v3507, 4294967168
      %v3767 = vand.u32 %v3521, 4294967168
      %v3768 = vand.u32 %v3535, 4294967168
      %v3769 = vand.u32 %v3549, 4294967168
      %v3770 = vand.u32 %v3563, 4294967168
      %v3771 = vand.u32 %v3577, 4294967168
      %v3772 = vand.u32 %v3591, 4294967168
      %v3773 = vand.u32 %v3605, 4294967168
      %v3774 = vand.u32 %v3619, 4294967168
      %v3775 = vand.u32 %v3633, 4294967168
      %v3776 = vand.u32 %v3647, 4294967168
      %v3777 = vand.u32 %v3661, 4294967168
      %v3778 = vand.u32 %v3675, 4294967168
      %v3779 = vand.u32 %v3689, 4294967168
      %v3780 = vand.u32 %v3703, 4294967168
      %v3781 = vand.u32 %v3717, 4294967168
      %v3782 = vadd.s32 %v3718, %v1701
      %v3783 = vadd.s32 %v3719, %v1701
      %v3784 = vadd.s32 %v3720, %v1701
      %v3785 = vadd.s32 %v3721, %v1701
      %v3786 = vadd.s32 %v3722, %v1701
      %v3787 = vadd.s32 %v3723, %v1701
      %v3788 = vadd.s32 %v3724, %v1701
      %v3789 = vadd.s32 %v3725, %v1701
      %v3790 = vadd.s32 %v3726, %v1701
      %v3791 = vadd.s32 %v3727, %v1701
      %v3792 = vadd.s32 %v3728, %v1701
      %v3793 = vadd.s32 %v3729, %v1701
      %v3794 = vadd.s32 %v3730, %v1701
      %v3795 = vadd.s32 %v3731, %v1701
      %v3796 = vadd.s32 %v3732, %v1701
      %v3797 = vadd.s32 %v3733, %v1701
      %v3798 = vadd.s32 %v3734, %v1701
      %v3799 = vadd.s32 %v3735, %v1701
      %v3800 = vadd.s32 %v3736, %v1701
      %v3801 = vadd.s32 %v3737, %v1701
      %v3802 = vadd.s32 %v3738, %v1701
      %v3803 = vadd.s32 %v3739, %v1701
      %v3804 = vadd.s32 %v3740, %v1701
      %v3805 = vadd.s32 %v3741, %v1701
      %v3806 = vadd.s32 %v3742, %v1701
      %v3807 = vadd.s32 %v3743, %v1701
      %v3808 = vadd.s32 %v3744, %v1701
      %v3809 = vadd.s32 %v3745, %v1701
      %v3810 = vadd.s32 %v3746, %v1701
      %v3811 = vadd.s32 %v3747, %v1701
      %v3812 = vadd.s32 %v3748, %v1701
      %v3813 = vadd.s32 %v3749, %v1701
      %vm3814 = vcmp.eq.s32.totalorder %v963, %v3718
      %vm3815 = vcmp.eq.s32.totalorder %v963, %v3719
      %vm3816 = vcmp.eq.s32.totalorder %v963, %v3720
      %vm3817 = vcmp.eq.s32.totalorder %v963, %v3721
      %vm3818 = vcmp.eq.s32.totalorder %v963, %v3722
      %vm3819 = vcmp.eq.s32.totalorder %v963, %v3723
      %vm3820 = vcmp.eq.s32.totalorder %v963, %v3724
      %vm3821 = vcmp.eq.s32.totalorder %v963, %v3725
      %vm3822 = vcmp.eq.s32.totalorder %v963, %v3726
      %vm3823 = vcmp.eq.s32.totalorder %v963, %v3727
      %vm3824 = vcmp.eq.s32.totalorder %v963, %v3728
      %vm3825 = vcmp.eq.s32.totalorder %v963, %v3729
      %vm3826 = vcmp.eq.s32.totalorder %v963, %v3730
      %vm3827 = vcmp.eq.s32.totalorder %v963, %v3731
      %vm3828 = vcmp.eq.s32.totalorder %v963, %v3732
      %vm3829 = vcmp.eq.s32.totalorder %v963, %v3733
      %vm3830 = vcmp.eq.s32.totalorder %v963, %v3734
      %vm3831 = vcmp.eq.s32.totalorder %v963, %v3735
      %vm3832 = vcmp.eq.s32.totalorder %v963, %v3736
      %vm3833 = vcmp.eq.s32.totalorder %v963, %v3737
      %vm3834 = vcmp.eq.s32.totalorder %v963, %v3738
      %vm3835 = vcmp.eq.s32.totalorder %v963, %v3739
      %vm3836 = vcmp.eq.s32.totalorder %v963, %v3740
      %vm3837 = vcmp.eq.s32.totalorder %v963, %v3741
      %vm3838 = vcmp.eq.s32.totalorder %v963, %v3742
      %vm3839 = vcmp.eq.s32.totalorder %v963, %v3743
      %vm3840 = vcmp.eq.s32.totalorder %v963, %v3744
      %vm3841 = vcmp.eq.s32.totalorder %v963, %v3745
      %vm3842 = vcmp.eq.s32.totalorder %v963, %v3746
      %vm3843 = vcmp.eq.s32.totalorder %v963, %v3747
      %vm3844 = vcmp.eq.s32.totalorder %v963, %v3748
      %vm3845 = vcmp.eq.s32.totalorder %v963, %v3749
      %v3846 = vsel %vm3814, 2147483647, %v1766
      %v3847 = vsel %vm3815, 2147483647, %v1767
      %v3848 = vsel %vm3816, 2147483647, %v1768
      %v3849 = vsel %vm3817, 2147483647, %v1769
      %v3850 = vsel %vm3818, 2147483647, %v1770
      %v3851 = vsel %vm3819, 2147483647, %v1771
      %v3852 = vsel %vm3820, 2147483647, %v1772
      %v3853 = vsel %vm3821, 2147483647, %v1773
      %v3854 = vsel %vm3822, 2147483647, %v1774
      %v3855 = vsel %vm3823, 2147483647, %v1775
      %v3856 = vsel %vm3824, 2147483647, %v1776
      %v3857 = vsel %vm3825, 2147483647, %v1777
      %v3858 = vsel %vm3826, 2147483647, %v1778
      %v3859 = vsel %vm3827, 2147483647, %v1779
      %v3860 = vsel %vm3828, 2147483647, %v1780
      %v3861 = vsel %vm3829, 2147483647, %v1781
      %v3862 = vsel %vm3830, 2147483647, %v1782
      %v3863 = vsel %vm3831, 2147483647, %v1783
      %v3864 = vsel %vm3832, 2147483647, %v1784
      %v3865 = vsel %vm3833, 2147483647, %v1785
      %v3866 = vsel %vm3834, 2147483647, %v1786
      %v3867 = vsel %vm3835, 2147483647, %v1787
      %v3868 = vsel %vm3836, 2147483647, %v1788
      %v3869 = vsel %vm3837, 2147483647, %v1789
      %v3870 = vsel %vm3838, 2147483647, %v1790
      %v3871 = vsel %vm3839, 2147483647, %v1791
      %v3872 = vsel %vm3840, 2147483647, %v1792
      %v3873 = vsel %vm3841, 2147483647, %v1793
      %v3874 = vsel %vm3842, 2147483647, %v1794
      %v3875 = vsel %vm3843, 2147483647, %v1795
      %v3876 = vsel %vm3844, 2147483647, %v1796
      %v3877 = vsel %vm3845, 2147483647, %v1797
      %vm3878 = vcmp.lt.s32.totalorder %v3750, %v1958
      %vm3879 = vcmp.lt.s32.totalorder %v3751, %v1959
      %vm3880 = vcmp.lt.s32.totalorder %v3752, %v1960
      %vm3881 = vcmp.lt.s32.totalorder %v3753, %v1961
      %vm3882 = vcmp.lt.s32.totalorder %v3754, %v1962
      %vm3883 = vcmp.lt.s32.totalorder %v3755, %v1963
      %vm3884 = vcmp.lt.s32.totalorder %v3756, %v1964
      %vm3885 = vcmp.lt.s32.totalorder %v3757, %v1965
      %vm3886 = vcmp.lt.s32.totalorder %v3758, %v1966
      %vm3887 = vcmp.lt.s32.totalorder %v3759, %v1967
      %vm3888 = vcmp.lt.s32.totalorder %v3760, %v1968
      %vm3889 = vcmp.lt.s32.totalorder %v3761, %v1969
      %vm3890 = vcmp.lt.s32.totalorder %v3762, %v1970
      %vm3891 = vcmp.lt.s32.totalorder %v3763, %v1971
      %vm3892 = vcmp.lt.s32.totalorder %v3764, %v1972
      %vm3893 = vcmp.lt.s32.totalorder %v3765, %v1973
      %vm3894 = vcmp.lt.s32.totalorder %v3766, %v1974
      %vm3895 = vcmp.lt.s32.totalorder %v3767, %v1975
      %vm3896 = vcmp.lt.s32.totalorder %v3768, %v1976
      %vm3897 = vcmp.lt.s32.totalorder %v3769, %v1977
      %vm3898 = vcmp.lt.s32.totalorder %v3770, %v1978
      %vm3899 = vcmp.lt.s32.totalorder %v3771, %v1979
      %vm3900 = vcmp.lt.s32.totalorder %v3772, %v1980
      %vm3901 = vcmp.lt.s32.totalorder %v3773, %v1981
      %vm3902 = vcmp.lt.s32.totalorder %v3774, %v1982
      %vm3903 = vcmp.lt.s32.totalorder %v3775, %v1983
      %vm3904 = vcmp.lt.s32.totalorder %v3776, %v1984
      %vm3905 = vcmp.lt.s32.totalorder %v3777, %v1985
      %vm3906 = vcmp.lt.s32.totalorder %v3778, %v1986
      %vm3907 = vcmp.lt.s32.totalorder %v3779, %v1987
      %vm3908 = vcmp.lt.s32.totalorder %v3780, %v1988
      %vm3909 = vcmp.lt.s32.totalorder %v3781, %v1989
      %vm3910 = vcmp.eq.s32.totalorder %v3750, %v1958
      %vm3911 = vcmp.eq.s32.totalorder %v3751, %v1959
      %vm3912 = vcmp.eq.s32.totalorder %v3752, %v1960
      %vm3913 = vcmp.eq.s32.totalorder %v3753, %v1961
      %vm3914 = vcmp.eq.s32.totalorder %v3754, %v1962
      %vm3915 = vcmp.eq.s32.totalorder %v3755, %v1963
      %vm3916 = vcmp.eq.s32.totalorder %v3756, %v1964
      %vm3917 = vcmp.eq.s32.totalorder %v3757, %v1965
      %vm3918 = vcmp.eq.s32.totalorder %v3758, %v1966
      %vm3919 = vcmp.eq.s32.totalorder %v3759, %v1967
      %vm3920 = vcmp.eq.s32.totalorder %v3760, %v1968
      %vm3921 = vcmp.eq.s32.totalorder %v3761, %v1969
      %vm3922 = vcmp.eq.s32.totalorder %v3762, %v1970
      %vm3923 = vcmp.eq.s32.totalorder %v3763, %v1971
      %vm3924 = vcmp.eq.s32.totalorder %v3764, %v1972
      %vm3925 = vcmp.eq.s32.totalorder %v3765, %v1973
      %vm3926 = vcmp.eq.s32.totalorder %v3766, %v1974
      %vm3927 = vcmp.eq.s32.totalorder %v3767, %v1975
      %vm3928 = vcmp.eq.s32.totalorder %v3768, %v1976
      %vm3929 = vcmp.eq.s32.totalorder %v3769, %v1977
      %vm3930 = vcmp.eq.s32.totalorder %v3770, %v1978
      %vm3931 = vcmp.eq.s32.totalorder %v3771, %v1979
      %vm3932 = vcmp.eq.s32.totalorder %v3772, %v1980
      %vm3933 = vcmp.eq.s32.totalorder %v3773, %v1981
      %vm3934 = vcmp.eq.s32.totalorder %v3774, %v1982
      %vm3935 = vcmp.eq.s32.totalorder %v3775, %v1983
      %vm3936 = vcmp.eq.s32.totalorder %v3776, %v1984
      %vm3937 = vcmp.eq.s32.totalorder %v3777, %v1985
      %vm3938 = vcmp.eq.s32.totalorder %v3778, %v1986
      %vm3939 = vcmp.eq.s32.totalorder %v3779, %v1987
      %vm3940 = vcmp.eq.s32.totalorder %v3780, %v1988
      %vm3941 = vcmp.eq.s32.totalorder %v3781, %v1989
      %vm3942 = vcmp.lt.s32.totalorder %v3782, %v1990
      %vm3943 = vcmp.lt.s32.totalorder %v3783, %v1991
      %vm3944 = vcmp.lt.s32.totalorder %v3784, %v1992
      %vm3945 = vcmp.lt.s32.totalorder %v3785, %v1993
      %vm3946 = vcmp.lt.s32.totalorder %v3786, %v1994
      %vm3947 = vcmp.lt.s32.totalorder %v3787, %v1995
      %vm3948 = vcmp.lt.s32.totalorder %v3788, %v1996
      %vm3949 = vcmp.lt.s32.totalorder %v3789, %v1997
      %vm3950 = vcmp.lt.s32.totalorder %v3790, %v1998
      %vm3951 = vcmp.lt.s32.totalorder %v3791, %v1999
      %vm3952 = vcmp.lt.s32.totalorder %v3792, %v2000
      %vm3953 = vcmp.lt.s32.totalorder %v3793, %v2001
      %vm3954 = vcmp.lt.s32.totalorder %v3794, %v2002
      %vm3955 = vcmp.lt.s32.totalorder %v3795, %v2003
      %vm3956 = vcmp.lt.s32.totalorder %v3796, %v2004
      %vm3957 = vcmp.lt.s32.totalorder %v3797, %v2005
      %vm3958 = vcmp.lt.s32.totalorder %v3798, %v2006
      %vm3959 = vcmp.lt.s32.totalorder %v3799, %v2007
      %vm3960 = vcmp.lt.s32.totalorder %v3800, %v2008
      %vm3961 = vcmp.lt.s32.totalorder %v3801, %v2009
      %vm3962 = vcmp.lt.s32.totalorder %v3802, %v2010
      %vm3963 = vcmp.lt.s32.totalorder %v3803, %v2011
      %vm3964 = vcmp.lt.s32.totalorder %v3804, %v2012
      %vm3965 = vcmp.lt.s32.totalorder %v3805, %v2013
      %vm3966 = vcmp.lt.s32.totalorder %v3806, %v2014
      %vm3967 = vcmp.lt.s32.totalorder %v3807, %v2015
      %vm3968 = vcmp.lt.s32.totalorder %v3808, %v2016
      %vm3969 = vcmp.lt.s32.totalorder %v3809, %v2017
      %vm3970 = vcmp.lt.s32.totalorder %v3810, %v2018
      %vm3971 = vcmp.lt.s32.totalorder %v3811, %v2019
      %vm3972 = vcmp.lt.s32.totalorder %v3812, %v2020
      %vm3973 = vcmp.lt.s32.totalorder %v3813, %v2021
      %vm3974 = vmand %vm3910, %vm3942
      %vm3975 = vmand %vm3911, %vm3943
      %vm3976 = vmand %vm3912, %vm3944
      %vm3977 = vmand %vm3913, %vm3945
      %vm3978 = vmand %vm3914, %vm3946
      %vm3979 = vmand %vm3915, %vm3947
      %vm3980 = vmand %vm3916, %vm3948
      %vm3981 = vmand %vm3917, %vm3949
      %vm3982 = vmand %vm3918, %vm3950
      %vm3983 = vmand %vm3919, %vm3951
      %vm3984 = vmand %vm3920, %vm3952
      %vm3985 = vmand %vm3921, %vm3953
      %vm3986 = vmand %vm3922, %vm3954
      %vm3987 = vmand %vm3923, %vm3955
      %vm3988 = vmand %vm3924, %vm3956
      %vm3989 = vmand %vm3925, %vm3957
      %vm3990 = vmand %vm3926, %vm3958
      %vm3991 = vmand %vm3927, %vm3959
      %vm3992 = vmand %vm3928, %vm3960
      %vm3993 = vmand %vm3929, %vm3961
      %vm3994 = vmand %vm3930, %vm3962
      %vm3995 = vmand %vm3931, %vm3963
      %vm3996 = vmand %vm3932, %vm3964
      %vm3997 = vmand %vm3933, %vm3965
      %vm3998 = vmand %vm3934, %vm3966
      %vm3999 = vmand %vm3935, %vm3967
      %vm4000 = vmand %vm3936, %vm3968
      %vm4001 = vmand %vm3937, %vm3969
      %vm4002 = vmand %vm3938, %vm3970
      %vm4003 = vmand %vm3939, %vm3971
      %vm4004 = vmand %vm3940, %vm3972
      %vm4005 = vmand %vm3941, %vm3973
      %vm4006 = vmor %vm3878, %vm3974
      %vm4007 = vmor %vm3879, %vm3975
      %vm4008 = vmor %vm3880, %vm3976
      %vm4009 = vmor %vm3881, %vm3977
      %vm4010 = vmor %vm3882, %vm3978
      %vm4011 = vmor %vm3883, %vm3979
      %vm4012 = vmor %vm3884, %vm3980
      %vm4013 = vmor %vm3885, %vm3981
      %vm4014 = vmor %vm3886, %vm3982
      %vm4015 = vmor %vm3887, %vm3983
      %vm4016 = vmor %vm3888, %vm3984
      %vm4017 = vmor %vm3889, %vm3985
      %vm4018 = vmor %vm3890, %vm3986
      %vm4019 = vmor %vm3891, %vm3987
      %vm4020 = vmor %vm3892, %vm3988
      %vm4021 = vmor %vm3893, %vm3989
      %vm4022 = vmor %vm3894, %vm3990
      %vm4023 = vmor %vm3895, %vm3991
      %vm4024 = vmor %vm3896, %vm3992
      %vm4025 = vmor %vm3897, %vm3993
      %vm4026 = vmor %vm3898, %vm3994
      %vm4027 = vmor %vm3899, %vm3995
      %vm4028 = vmor %vm3900, %vm3996
      %vm4029 = vmor %vm3901, %vm3997
      %vm4030 = vmor %vm3902, %vm3998
      %vm4031 = vmor %vm3903, %vm3999
      %vm4032 = vmor %vm3904, %vm4000
      %vm4033 = vmor %vm3905, %vm4001
      %vm4034 = vmor %vm3906, %vm4002
      %vm4035 = vmor %vm3907, %vm4003
      %vm4036 = vmor %vm3908, %vm4004
      %vm4037 = vmor %vm3909, %vm4005
      %v4038 = vsel %vm4006, %v3750, %v1958
      %v4039 = vsel %vm4007, %v3751, %v1959
      %v4040 = vsel %vm4008, %v3752, %v1960
      %v4041 = vsel %vm4009, %v3753, %v1961
      %v4042 = vsel %vm4010, %v3754, %v1962
      %v4043 = vsel %vm4011, %v3755, %v1963
      %v4044 = vsel %vm4012, %v3756, %v1964
      %v4045 = vsel %vm4013, %v3757, %v1965
      %v4046 = vsel %vm4014, %v3758, %v1966
      %v4047 = vsel %vm4015, %v3759, %v1967
      %v4048 = vsel %vm4016, %v3760, %v1968
      %v4049 = vsel %vm4017, %v3761, %v1969
      %v4050 = vsel %vm4018, %v3762, %v1970
      %v4051 = vsel %vm4019, %v3763, %v1971
      %v4052 = vsel %vm4020, %v3764, %v1972
      %v4053 = vsel %vm4021, %v3765, %v1973
      %v4054 = vsel %vm4022, %v3766, %v1974
      %v4055 = vsel %vm4023, %v3767, %v1975
      %v4056 = vsel %vm4024, %v3768, %v1976
      %v4057 = vsel %vm4025, %v3769, %v1977
      %v4058 = vsel %vm4026, %v3770, %v1978
      %v4059 = vsel %vm4027, %v3771, %v1979
      %v4060 = vsel %vm4028, %v3772, %v1980
      %v4061 = vsel %vm4029, %v3773, %v1981
      %v4062 = vsel %vm4030, %v3774, %v1982
      %v4063 = vsel %vm4031, %v3775, %v1983
      %v4064 = vsel %vm4032, %v3776, %v1984
      %v4065 = vsel %vm4033, %v3777, %v1985
      %v4066 = vsel %vm4034, %v3778, %v1986
      %v4067 = vsel %vm4035, %v3779, %v1987
      %v4068 = vsel %vm4036, %v3780, %v1988
      %v4069 = vsel %vm4037, %v3781, %v1989
      %v4070 = vsel %vm4006, %v3782, %v1990
      %v4071 = vsel %vm4007, %v3783, %v1991
      %v4072 = vsel %vm4008, %v3784, %v1992
      %v4073 = vsel %vm4009, %v3785, %v1993
      %v4074 = vsel %vm4010, %v3786, %v1994
      %v4075 = vsel %vm4011, %v3787, %v1995
      %v4076 = vsel %vm4012, %v3788, %v1996
      %v4077 = vsel %vm4013, %v3789, %v1997
      %v4078 = vsel %vm4014, %v3790, %v1998
      %v4079 = vsel %vm4015, %v3791, %v1999
      %v4080 = vsel %vm4016, %v3792, %v2000
      %v4081 = vsel %vm4017, %v3793, %v2001
      %v4082 = vsel %vm4018, %v3794, %v2002
      %v4083 = vsel %vm4019, %v3795, %v2003
      %v4084 = vsel %vm4020, %v3796, %v2004
      %v4085 = vsel %vm4021, %v3797, %v2005
      %v4086 = vsel %vm4022, %v3798, %v2006
      %v4087 = vsel %vm4023, %v3799, %v2007
      %v4088 = vsel %vm4024, %v3800, %v2008
      %v4089 = vsel %vm4025, %v3801, %v2009
      %v4090 = vsel %vm4026, %v3802, %v2010
      %v4091 = vsel %vm4027, %v3803, %v2011
      %v4092 = vsel %vm4028, %v3804, %v2012
      %v4093 = vsel %vm4029, %v3805, %v2013
      %v4094 = vsel %vm4030, %v3806, %v2014
      %v4095 = vsel %vm4031, %v3807, %v2015
      %v4096 = vsel %vm4032, %v3808, %v2016
      %v4097 = vsel %vm4033, %v3809, %v2017
      %v4098 = vsel %vm4034, %v3810, %v2018
      %v4099 = vsel %vm4035, %v3811, %v2019
      %v4100 = vsel %vm4036, %v3812, %v2020
      %v4101 = vsel %vm4037, %v3813, %v2021
      %v4102 = vsel %vm4006, %v1958, %v3750
      %v4103 = vsel %vm4007, %v1959, %v3751
      %v4104 = vsel %vm4008, %v1960, %v3752
      %v4105 = vsel %vm4009, %v1961, %v3753
      %v4106 = vsel %vm4010, %v1962, %v3754
      %v4107 = vsel %vm4011, %v1963, %v3755
      %v4108 = vsel %vm4012, %v1964, %v3756
      %v4109 = vsel %vm4013, %v1965, %v3757
      %v4110 = vsel %vm4014, %v1966, %v3758
      %v4111 = vsel %vm4015, %v1967, %v3759
      %v4112 = vsel %vm4016, %v1968, %v3760
      %v4113 = vsel %vm4017, %v1969, %v3761
      %v4114 = vsel %vm4018, %v1970, %v3762
      %v4115 = vsel %vm4019, %v1971, %v3763
      %v4116 = vsel %vm4020, %v1972, %v3764
      %v4117 = vsel %vm4021, %v1973, %v3765
      %v4118 = vsel %vm4022, %v1974, %v3766
      %v4119 = vsel %vm4023, %v1975, %v3767
      %v4120 = vsel %vm4024, %v1976, %v3768
      %v4121 = vsel %vm4025, %v1977, %v3769
      %v4122 = vsel %vm4026, %v1978, %v3770
      %v4123 = vsel %vm4027, %v1979, %v3771
      %v4124 = vsel %vm4028, %v1980, %v3772
      %v4125 = vsel %vm4029, %v1981, %v3773
      %v4126 = vsel %vm4030, %v1982, %v3774
      %v4127 = vsel %vm4031, %v1983, %v3775
      %v4128 = vsel %vm4032, %v1984, %v3776
      %v4129 = vsel %vm4033, %v1985, %v3777
      %v4130 = vsel %vm4034, %v1986, %v3778
      %v4131 = vsel %vm4035, %v1987, %v3779
      %v4132 = vsel %vm4036, %v1988, %v3780
      %v4133 = vsel %vm4037, %v1989, %v3781
      %v4134 = vsel %vm4006, %v1990, %v3782
      %v4135 = vsel %vm4007, %v1991, %v3783
      %v4136 = vsel %vm4008, %v1992, %v3784
      %v4137 = vsel %vm4009, %v1993, %v3785
      %v4138 = vsel %vm4010, %v1994, %v3786
      %v4139 = vsel %vm4011, %v1995, %v3787
      %v4140 = vsel %vm4012, %v1996, %v3788
      %v4141 = vsel %vm4013, %v1997, %v3789
      %v4142 = vsel %vm4014, %v1998, %v3790
      %v4143 = vsel %vm4015, %v1999, %v3791
      %v4144 = vsel %vm4016, %v2000, %v3792
      %v4145 = vsel %vm4017, %v2001, %v3793
      %v4146 = vsel %vm4018, %v2002, %v3794
      %v4147 = vsel %vm4019, %v2003, %v3795
      %v4148 = vsel %vm4020, %v2004, %v3796
      %v4149 = vsel %vm4021, %v2005, %v3797
      %v4150 = vsel %vm4022, %v2006, %v3798
      %v4151 = vsel %vm4023, %v2007, %v3799
      %v4152 = vsel %vm4024, %v2008, %v3800
      %v4153 = vsel %vm4025, %v2009, %v3801
      %v4154 = vsel %vm4026, %v2010, %v3802
      %v4155 = vsel %vm4027, %v2011, %v3803
      %v4156 = vsel %vm4028, %v2012, %v3804
      %v4157 = vsel %vm4029, %v2013, %v3805
      %v4158 = vsel %vm4030, %v2014, %v3806
      %v4159 = vsel %vm4031, %v2015, %v3807
      %v4160 = vsel %vm4032, %v2016, %v3808
      %v4161 = vsel %vm4033, %v2017, %v3809
      %v4162 = vsel %vm4034, %v2018, %v3810
      %v4163 = vsel %vm4035, %v2019, %v3811
      %v4164 = vsel %vm4036, %v2020, %v3812
      %v4165 = vsel %vm4037, %v2021, %v3813
      %vm4166 = vcmp.lt.s32.totalorder %v4102, %v2374
      %vm4167 = vcmp.lt.s32.totalorder %v4103, %v2375
      %vm4168 = vcmp.lt.s32.totalorder %v4104, %v2376
      %vm4169 = vcmp.lt.s32.totalorder %v4105, %v2377
      %vm4170 = vcmp.lt.s32.totalorder %v4106, %v2378
      %vm4171 = vcmp.lt.s32.totalorder %v4107, %v2379
      %vm4172 = vcmp.lt.s32.totalorder %v4108, %v2380
      %vm4173 = vcmp.lt.s32.totalorder %v4109, %v2381
      %vm4174 = vcmp.lt.s32.totalorder %v4110, %v2382
      %vm4175 = vcmp.lt.s32.totalorder %v4111, %v2383
      %vm4176 = vcmp.lt.s32.totalorder %v4112, %v2384
      %vm4177 = vcmp.lt.s32.totalorder %v4113, %v2385
      %vm4178 = vcmp.lt.s32.totalorder %v4114, %v2386
      %vm4179 = vcmp.lt.s32.totalorder %v4115, %v2387
      %vm4180 = vcmp.lt.s32.totalorder %v4116, %v2388
      %vm4181 = vcmp.lt.s32.totalorder %v4117, %v2389
      %vm4182 = vcmp.lt.s32.totalorder %v4118, %v2390
      %vm4183 = vcmp.lt.s32.totalorder %v4119, %v2391
      %vm4184 = vcmp.lt.s32.totalorder %v4120, %v2392
      %vm4185 = vcmp.lt.s32.totalorder %v4121, %v2393
      %vm4186 = vcmp.lt.s32.totalorder %v4122, %v2394
      %vm4187 = vcmp.lt.s32.totalorder %v4123, %v2395
      %vm4188 = vcmp.lt.s32.totalorder %v4124, %v2396
      %vm4189 = vcmp.lt.s32.totalorder %v4125, %v2397
      %vm4190 = vcmp.lt.s32.totalorder %v4126, %v2398
      %vm4191 = vcmp.lt.s32.totalorder %v4127, %v2399
      %vm4192 = vcmp.lt.s32.totalorder %v4128, %v2400
      %vm4193 = vcmp.lt.s32.totalorder %v4129, %v2401
      %vm4194 = vcmp.lt.s32.totalorder %v4130, %v2402
      %vm4195 = vcmp.lt.s32.totalorder %v4131, %v2403
      %vm4196 = vcmp.lt.s32.totalorder %v4132, %v2404
      %vm4197 = vcmp.lt.s32.totalorder %v4133, %v2405
      %vm4198 = vcmp.eq.s32.totalorder %v4102, %v2374
      %vm4199 = vcmp.eq.s32.totalorder %v4103, %v2375
      %vm4200 = vcmp.eq.s32.totalorder %v4104, %v2376
      %vm4201 = vcmp.eq.s32.totalorder %v4105, %v2377
      %vm4202 = vcmp.eq.s32.totalorder %v4106, %v2378
      %vm4203 = vcmp.eq.s32.totalorder %v4107, %v2379
      %vm4204 = vcmp.eq.s32.totalorder %v4108, %v2380
      %vm4205 = vcmp.eq.s32.totalorder %v4109, %v2381
      %vm4206 = vcmp.eq.s32.totalorder %v4110, %v2382
      %vm4207 = vcmp.eq.s32.totalorder %v4111, %v2383
      %vm4208 = vcmp.eq.s32.totalorder %v4112, %v2384
      %vm4209 = vcmp.eq.s32.totalorder %v4113, %v2385
      %vm4210 = vcmp.eq.s32.totalorder %v4114, %v2386
      %vm4211 = vcmp.eq.s32.totalorder %v4115, %v2387
      %vm4212 = vcmp.eq.s32.totalorder %v4116, %v2388
      %vm4213 = vcmp.eq.s32.totalorder %v4117, %v2389
      %vm4214 = vcmp.eq.s32.totalorder %v4118, %v2390
      %vm4215 = vcmp.eq.s32.totalorder %v4119, %v2391
      %vm4216 = vcmp.eq.s32.totalorder %v4120, %v2392
      %vm4217 = vcmp.eq.s32.totalorder %v4121, %v2393
      %vm4218 = vcmp.eq.s32.totalorder %v4122, %v2394
      %vm4219 = vcmp.eq.s32.totalorder %v4123, %v2395
      %vm4220 = vcmp.eq.s32.totalorder %v4124, %v2396
      %vm4221 = vcmp.eq.s32.totalorder %v4125, %v2397
      %vm4222 = vcmp.eq.s32.totalorder %v4126, %v2398
      %vm4223 = vcmp.eq.s32.totalorder %v4127, %v2399
      %vm4224 = vcmp.eq.s32.totalorder %v4128, %v2400
      %vm4225 = vcmp.eq.s32.totalorder %v4129, %v2401
      %vm4226 = vcmp.eq.s32.totalorder %v4130, %v2402
      %vm4227 = vcmp.eq.s32.totalorder %v4131, %v2403
      %vm4228 = vcmp.eq.s32.totalorder %v4132, %v2404
      %vm4229 = vcmp.eq.s32.totalorder %v4133, %v2405
      %vm4230 = vcmp.lt.s32.totalorder %v4134, %v2406
      %vm4231 = vcmp.lt.s32.totalorder %v4135, %v2407
      %vm4232 = vcmp.lt.s32.totalorder %v4136, %v2408
      %vm4233 = vcmp.lt.s32.totalorder %v4137, %v2409
      %vm4234 = vcmp.lt.s32.totalorder %v4138, %v2410
      %vm4235 = vcmp.lt.s32.totalorder %v4139, %v2411
      %vm4236 = vcmp.lt.s32.totalorder %v4140, %v2412
      %vm4237 = vcmp.lt.s32.totalorder %v4141, %v2413
      %vm4238 = vcmp.lt.s32.totalorder %v4142, %v2414
      %vm4239 = vcmp.lt.s32.totalorder %v4143, %v2415
      %vm4240 = vcmp.lt.s32.totalorder %v4144, %v2416
      %vm4241 = vcmp.lt.s32.totalorder %v4145, %v2417
      %vm4242 = vcmp.lt.s32.totalorder %v4146, %v2418
      %vm4243 = vcmp.lt.s32.totalorder %v4147, %v2419
      %vm4244 = vcmp.lt.s32.totalorder %v4148, %v2420
      %vm4245 = vcmp.lt.s32.totalorder %v4149, %v2421
      %vm4246 = vcmp.lt.s32.totalorder %v4150, %v2422
      %vm4247 = vcmp.lt.s32.totalorder %v4151, %v2423
      %vm4248 = vcmp.lt.s32.totalorder %v4152, %v2424
      %vm4249 = vcmp.lt.s32.totalorder %v4153, %v2425
      %vm4250 = vcmp.lt.s32.totalorder %v4154, %v2426
      %vm4251 = vcmp.lt.s32.totalorder %v4155, %v2427
      %vm4252 = vcmp.lt.s32.totalorder %v4156, %v2428
      %vm4253 = vcmp.lt.s32.totalorder %v4157, %v2429
      %vm4254 = vcmp.lt.s32.totalorder %v4158, %v2430
      %vm4255 = vcmp.lt.s32.totalorder %v4159, %v2431
      %vm4256 = vcmp.lt.s32.totalorder %v4160, %v2432
      %vm4257 = vcmp.lt.s32.totalorder %v4161, %v2433
      %vm4258 = vcmp.lt.s32.totalorder %v4162, %v2434
      %vm4259 = vcmp.lt.s32.totalorder %v4163, %v2435
      %vm4260 = vcmp.lt.s32.totalorder %v4164, %v2436
      %vm4261 = vcmp.lt.s32.totalorder %v4165, %v2437
      %vm4262 = vmand %vm4198, %vm4230
      %vm4263 = vmand %vm4199, %vm4231
      %vm4264 = vmand %vm4200, %vm4232
      %vm4265 = vmand %vm4201, %vm4233
      %vm4266 = vmand %vm4202, %vm4234
      %vm4267 = vmand %vm4203, %vm4235
      %vm4268 = vmand %vm4204, %vm4236
      %vm4269 = vmand %vm4205, %vm4237
      %vm4270 = vmand %vm4206, %vm4238
      %vm4271 = vmand %vm4207, %vm4239
      %vm4272 = vmand %vm4208, %vm4240
      %vm4273 = vmand %vm4209, %vm4241
      %vm4274 = vmand %vm4210, %vm4242
      %vm4275 = vmand %vm4211, %vm4243
      %vm4276 = vmand %vm4212, %vm4244
      %vm4277 = vmand %vm4213, %vm4245
      %vm4278 = vmand %vm4214, %vm4246
      %vm4279 = vmand %vm4215, %vm4247
      %vm4280 = vmand %vm4216, %vm4248
      %vm4281 = vmand %vm4217, %vm4249
      %vm4282 = vmand %vm4218, %vm4250
      %vm4283 = vmand %vm4219, %vm4251
      %vm4284 = vmand %vm4220, %vm4252
      %vm4285 = vmand %vm4221, %vm4253
      %vm4286 = vmand %vm4222, %vm4254
      %vm4287 = vmand %vm4223, %vm4255
      %vm4288 = vmand %vm4224, %vm4256
      %vm4289 = vmand %vm4225, %vm4257
      %vm4290 = vmand %vm4226, %vm4258
      %vm4291 = vmand %vm4227, %vm4259
      %vm4292 = vmand %vm4228, %vm4260
      %vm4293 = vmand %vm4229, %vm4261
      %vm4294 = vmor %vm4166, %vm4262
      %vm4295 = vmor %vm4167, %vm4263
      %vm4296 = vmor %vm4168, %vm4264
      %vm4297 = vmor %vm4169, %vm4265
      %vm4298 = vmor %vm4170, %vm4266
      %vm4299 = vmor %vm4171, %vm4267
      %vm4300 = vmor %vm4172, %vm4268
      %vm4301 = vmor %vm4173, %vm4269
      %vm4302 = vmor %vm4174, %vm4270
      %vm4303 = vmor %vm4175, %vm4271
      %vm4304 = vmor %vm4176, %vm4272
      %vm4305 = vmor %vm4177, %vm4273
      %vm4306 = vmor %vm4178, %vm4274
      %vm4307 = vmor %vm4179, %vm4275
      %vm4308 = vmor %vm4180, %vm4276
      %vm4309 = vmor %vm4181, %vm4277
      %vm4310 = vmor %vm4182, %vm4278
      %vm4311 = vmor %vm4183, %vm4279
      %vm4312 = vmor %vm4184, %vm4280
      %vm4313 = vmor %vm4185, %vm4281
      %vm4314 = vmor %vm4186, %vm4282
      %vm4315 = vmor %vm4187, %vm4283
      %vm4316 = vmor %vm4188, %vm4284
      %vm4317 = vmor %vm4189, %vm4285
      %vm4318 = vmor %vm4190, %vm4286
      %vm4319 = vmor %vm4191, %vm4287
      %vm4320 = vmor %vm4192, %vm4288
      %vm4321 = vmor %vm4193, %vm4289
      %vm4322 = vmor %vm4194, %vm4290
      %vm4323 = vmor %vm4195, %vm4291
      %vm4324 = vmor %vm4196, %vm4292
      %vm4325 = vmor %vm4197, %vm4293
      %v4326 = vsel %vm4294, %v4102, %v2374
      %v4327 = vsel %vm4295, %v4103, %v2375
      %v4328 = vsel %vm4296, %v4104, %v2376
      %v4329 = vsel %vm4297, %v4105, %v2377
      %v4330 = vsel %vm4298, %v4106, %v2378
      %v4331 = vsel %vm4299, %v4107, %v2379
      %v4332 = vsel %vm4300, %v4108, %v2380
      %v4333 = vsel %vm4301, %v4109, %v2381
      %v4334 = vsel %vm4302, %v4110, %v2382
      %v4335 = vsel %vm4303, %v4111, %v2383
      %v4336 = vsel %vm4304, %v4112, %v2384
      %v4337 = vsel %vm4305, %v4113, %v2385
      %v4338 = vsel %vm4306, %v4114, %v2386
      %v4339 = vsel %vm4307, %v4115, %v2387
      %v4340 = vsel %vm4308, %v4116, %v2388
      %v4341 = vsel %vm4309, %v4117, %v2389
      %v4342 = vsel %vm4310, %v4118, %v2390
      %v4343 = vsel %vm4311, %v4119, %v2391
      %v4344 = vsel %vm4312, %v4120, %v2392
      %v4345 = vsel %vm4313, %v4121, %v2393
      %v4346 = vsel %vm4314, %v4122, %v2394
      %v4347 = vsel %vm4315, %v4123, %v2395
      %v4348 = vsel %vm4316, %v4124, %v2396
      %v4349 = vsel %vm4317, %v4125, %v2397
      %v4350 = vsel %vm4318, %v4126, %v2398
      %v4351 = vsel %vm4319, %v4127, %v2399
      %v4352 = vsel %vm4320, %v4128, %v2400
      %v4353 = vsel %vm4321, %v4129, %v2401
      %v4354 = vsel %vm4322, %v4130, %v2402
      %v4355 = vsel %vm4323, %v4131, %v2403
      %v4356 = vsel %vm4324, %v4132, %v2404
      %v4357 = vsel %vm4325, %v4133, %v2405
      %v4358 = vsel %vm4294, %v4134, %v2406
      %v4359 = vsel %vm4295, %v4135, %v2407
      %v4360 = vsel %vm4296, %v4136, %v2408
      %v4361 = vsel %vm4297, %v4137, %v2409
      %v4362 = vsel %vm4298, %v4138, %v2410
      %v4363 = vsel %vm4299, %v4139, %v2411
      %v4364 = vsel %vm4300, %v4140, %v2412
      %v4365 = vsel %vm4301, %v4141, %v2413
      %v4366 = vsel %vm4302, %v4142, %v2414
      %v4367 = vsel %vm4303, %v4143, %v2415
      %v4368 = vsel %vm4304, %v4144, %v2416
      %v4369 = vsel %vm4305, %v4145, %v2417
      %v4370 = vsel %vm4306, %v4146, %v2418
      %v4371 = vsel %vm4307, %v4147, %v2419
      %v4372 = vsel %vm4308, %v4148, %v2420
      %v4373 = vsel %vm4309, %v4149, %v2421
      %v4374 = vsel %vm4310, %v4150, %v2422
      %v4375 = vsel %vm4311, %v4151, %v2423
      %v4376 = vsel %vm4312, %v4152, %v2424
      %v4377 = vsel %vm4313, %v4153, %v2425
      %v4378 = vsel %vm4314, %v4154, %v2426
      %v4379 = vsel %vm4315, %v4155, %v2427
      %v4380 = vsel %vm4316, %v4156, %v2428
      %v4381 = vsel %vm4317, %v4157, %v2429
      %v4382 = vsel %vm4318, %v4158, %v2430
      %v4383 = vsel %vm4319, %v4159, %v2431
      %v4384 = vsel %vm4320, %v4160, %v2432
      %v4385 = vsel %vm4321, %v4161, %v2433
      %v4386 = vsel %vm4322, %v4162, %v2434
      %v4387 = vsel %vm4323, %v4163, %v2435
      %v4388 = vsel %vm4324, %v4164, %v2436
      %v4389 = vsel %vm4325, %v4165, %v2437
      %v4390 = vsel %vm4294, %v2374, %v4102
      %v4391 = vsel %vm4295, %v2375, %v4103
      %v4392 = vsel %vm4296, %v2376, %v4104
      %v4393 = vsel %vm4297, %v2377, %v4105
      %v4394 = vsel %vm4298, %v2378, %v4106
      %v4395 = vsel %vm4299, %v2379, %v4107
      %v4396 = vsel %vm4300, %v2380, %v4108
      %v4397 = vsel %vm4301, %v2381, %v4109
      %v4398 = vsel %vm4302, %v2382, %v4110
      %v4399 = vsel %vm4303, %v2383, %v4111
      %v4400 = vsel %vm4304, %v2384, %v4112
      %v4401 = vsel %vm4305, %v2385, %v4113
      %v4402 = vsel %vm4306, %v2386, %v4114
      %v4403 = vsel %vm4307, %v2387, %v4115
      %v4404 = vsel %vm4308, %v2388, %v4116
      %v4405 = vsel %vm4309, %v2389, %v4117
      %v4406 = vsel %vm4310, %v2390, %v4118
      %v4407 = vsel %vm4311, %v2391, %v4119
      %v4408 = vsel %vm4312, %v2392, %v4120
      %v4409 = vsel %vm4313, %v2393, %v4121
      %v4410 = vsel %vm4314, %v2394, %v4122
      %v4411 = vsel %vm4315, %v2395, %v4123
      %v4412 = vsel %vm4316, %v2396, %v4124
      %v4413 = vsel %vm4317, %v2397, %v4125
      %v4414 = vsel %vm4318, %v2398, %v4126
      %v4415 = vsel %vm4319, %v2399, %v4127
      %v4416 = vsel %vm4320, %v2400, %v4128
      %v4417 = vsel %vm4321, %v2401, %v4129
      %v4418 = vsel %vm4322, %v2402, %v4130
      %v4419 = vsel %vm4323, %v2403, %v4131
      %v4420 = vsel %vm4324, %v2404, %v4132
      %v4421 = vsel %vm4325, %v2405, %v4133
      %v4422 = vsel %vm4294, %v2406, %v4134
      %v4423 = vsel %vm4295, %v2407, %v4135
      %v4424 = vsel %vm4296, %v2408, %v4136
      %v4425 = vsel %vm4297, %v2409, %v4137
      %v4426 = vsel %vm4298, %v2410, %v4138
      %v4427 = vsel %vm4299, %v2411, %v4139
      %v4428 = vsel %vm4300, %v2412, %v4140
      %v4429 = vsel %vm4301, %v2413, %v4141
      %v4430 = vsel %vm4302, %v2414, %v4142
      %v4431 = vsel %vm4303, %v2415, %v4143
      %v4432 = vsel %vm4304, %v2416, %v4144
      %v4433 = vsel %vm4305, %v2417, %v4145
      %v4434 = vsel %vm4306, %v2418, %v4146
      %v4435 = vsel %vm4307, %v2419, %v4147
      %v4436 = vsel %vm4308, %v2420, %v4148
      %v4437 = vsel %vm4309, %v2421, %v4149
      %v4438 = vsel %vm4310, %v2422, %v4150
      %v4439 = vsel %vm4311, %v2423, %v4151
      %v4440 = vsel %vm4312, %v2424, %v4152
      %v4441 = vsel %vm4313, %v2425, %v4153
      %v4442 = vsel %vm4314, %v2426, %v4154
      %v4443 = vsel %vm4315, %v2427, %v4155
      %v4444 = vsel %vm4316, %v2428, %v4156
      %v4445 = vsel %vm4317, %v2429, %v4157
      %v4446 = vsel %vm4318, %v2430, %v4158
      %v4447 = vsel %vm4319, %v2431, %v4159
      %v4448 = vsel %vm4320, %v2432, %v4160
      %v4449 = vsel %vm4321, %v2433, %v4161
      %v4450 = vsel %vm4322, %v2434, %v4162
      %v4451 = vsel %vm4323, %v2435, %v4163
      %v4452 = vsel %vm4324, %v2436, %v4164
      %v4453 = vsel %vm4325, %v2437, %v4165
      %vm4454 = vcmp.lt.s32.totalorder %v4390, %v2790
      %vm4455 = vcmp.lt.s32.totalorder %v4391, %v2791
      %vm4456 = vcmp.lt.s32.totalorder %v4392, %v2792
      %vm4457 = vcmp.lt.s32.totalorder %v4393, %v2793
      %vm4458 = vcmp.lt.s32.totalorder %v4394, %v2794
      %vm4459 = vcmp.lt.s32.totalorder %v4395, %v2795
      %vm4460 = vcmp.lt.s32.totalorder %v4396, %v2796
      %vm4461 = vcmp.lt.s32.totalorder %v4397, %v2797
      %vm4462 = vcmp.lt.s32.totalorder %v4398, %v2798
      %vm4463 = vcmp.lt.s32.totalorder %v4399, %v2799
      %vm4464 = vcmp.lt.s32.totalorder %v4400, %v2800
      %vm4465 = vcmp.lt.s32.totalorder %v4401, %v2801
      %vm4466 = vcmp.lt.s32.totalorder %v4402, %v2802
      %vm4467 = vcmp.lt.s32.totalorder %v4403, %v2803
      %vm4468 = vcmp.lt.s32.totalorder %v4404, %v2804
      %vm4469 = vcmp.lt.s32.totalorder %v4405, %v2805
      %vm4470 = vcmp.lt.s32.totalorder %v4406, %v2806
      %vm4471 = vcmp.lt.s32.totalorder %v4407, %v2807
      %vm4472 = vcmp.lt.s32.totalorder %v4408, %v2808
      %vm4473 = vcmp.lt.s32.totalorder %v4409, %v2809
      %vm4474 = vcmp.lt.s32.totalorder %v4410, %v2810
      %vm4475 = vcmp.lt.s32.totalorder %v4411, %v2811
      %vm4476 = vcmp.lt.s32.totalorder %v4412, %v2812
      %vm4477 = vcmp.lt.s32.totalorder %v4413, %v2813
      %vm4478 = vcmp.lt.s32.totalorder %v4414, %v2814
      %vm4479 = vcmp.lt.s32.totalorder %v4415, %v2815
      %vm4480 = vcmp.lt.s32.totalorder %v4416, %v2816
      %vm4481 = vcmp.lt.s32.totalorder %v4417, %v2817
      %vm4482 = vcmp.lt.s32.totalorder %v4418, %v2818
      %vm4483 = vcmp.lt.s32.totalorder %v4419, %v2819
      %vm4484 = vcmp.lt.s32.totalorder %v4420, %v2820
      %vm4485 = vcmp.lt.s32.totalorder %v4421, %v2821
      %vm4486 = vcmp.eq.s32.totalorder %v4390, %v2790
      %vm4487 = vcmp.eq.s32.totalorder %v4391, %v2791
      %vm4488 = vcmp.eq.s32.totalorder %v4392, %v2792
      %vm4489 = vcmp.eq.s32.totalorder %v4393, %v2793
      %vm4490 = vcmp.eq.s32.totalorder %v4394, %v2794
      %vm4491 = vcmp.eq.s32.totalorder %v4395, %v2795
      %vm4492 = vcmp.eq.s32.totalorder %v4396, %v2796
      %vm4493 = vcmp.eq.s32.totalorder %v4397, %v2797
      %vm4494 = vcmp.eq.s32.totalorder %v4398, %v2798
      %vm4495 = vcmp.eq.s32.totalorder %v4399, %v2799
      %vm4496 = vcmp.eq.s32.totalorder %v4400, %v2800
      %vm4497 = vcmp.eq.s32.totalorder %v4401, %v2801
      %vm4498 = vcmp.eq.s32.totalorder %v4402, %v2802
      %vm4499 = vcmp.eq.s32.totalorder %v4403, %v2803
      %vm4500 = vcmp.eq.s32.totalorder %v4404, %v2804
      %vm4501 = vcmp.eq.s32.totalorder %v4405, %v2805
      %vm4502 = vcmp.eq.s32.totalorder %v4406, %v2806
      %vm4503 = vcmp.eq.s32.totalorder %v4407, %v2807
      %vm4504 = vcmp.eq.s32.totalorder %v4408, %v2808
      %vm4505 = vcmp.eq.s32.totalorder %v4409, %v2809
      %vm4506 = vcmp.eq.s32.totalorder %v4410, %v2810
      %vm4507 = vcmp.eq.s32.totalorder %v4411, %v2811
      %vm4508 = vcmp.eq.s32.totalorder %v4412, %v2812
      %vm4509 = vcmp.eq.s32.totalorder %v4413, %v2813
      %vm4510 = vcmp.eq.s32.totalorder %v4414, %v2814
      %vm4511 = vcmp.eq.s32.totalorder %v4415, %v2815
      %vm4512 = vcmp.eq.s32.totalorder %v4416, %v2816
      %vm4513 = vcmp.eq.s32.totalorder %v4417, %v2817
      %vm4514 = vcmp.eq.s32.totalorder %v4418, %v2818
      %vm4515 = vcmp.eq.s32.totalorder %v4419, %v2819
      %vm4516 = vcmp.eq.s32.totalorder %v4420, %v2820
      %vm4517 = vcmp.eq.s32.totalorder %v4421, %v2821
      %vm4518 = vcmp.lt.s32.totalorder %v4422, %v2822
      %vm4519 = vcmp.lt.s32.totalorder %v4423, %v2823
      %vm4520 = vcmp.lt.s32.totalorder %v4424, %v2824
      %vm4521 = vcmp.lt.s32.totalorder %v4425, %v2825
      %vm4522 = vcmp.lt.s32.totalorder %v4426, %v2826
      %vm4523 = vcmp.lt.s32.totalorder %v4427, %v2827
      %vm4524 = vcmp.lt.s32.totalorder %v4428, %v2828
      %vm4525 = vcmp.lt.s32.totalorder %v4429, %v2829
      %vm4526 = vcmp.lt.s32.totalorder %v4430, %v2830
      %vm4527 = vcmp.lt.s32.totalorder %v4431, %v2831
      %vm4528 = vcmp.lt.s32.totalorder %v4432, %v2832
      %vm4529 = vcmp.lt.s32.totalorder %v4433, %v2833
      %vm4530 = vcmp.lt.s32.totalorder %v4434, %v2834
      %vm4531 = vcmp.lt.s32.totalorder %v4435, %v2835
      %vm4532 = vcmp.lt.s32.totalorder %v4436, %v2836
      %vm4533 = vcmp.lt.s32.totalorder %v4437, %v2837
      %vm4534 = vcmp.lt.s32.totalorder %v4438, %v2838
      %vm4535 = vcmp.lt.s32.totalorder %v4439, %v2839
      %vm4536 = vcmp.lt.s32.totalorder %v4440, %v2840
      %vm4537 = vcmp.lt.s32.totalorder %v4441, %v2841
      %vm4538 = vcmp.lt.s32.totalorder %v4442, %v2842
      %vm4539 = vcmp.lt.s32.totalorder %v4443, %v2843
      %vm4540 = vcmp.lt.s32.totalorder %v4444, %v2844
      %vm4541 = vcmp.lt.s32.totalorder %v4445, %v2845
      %vm4542 = vcmp.lt.s32.totalorder %v4446, %v2846
      %vm4543 = vcmp.lt.s32.totalorder %v4447, %v2847
      %vm4544 = vcmp.lt.s32.totalorder %v4448, %v2848
      %vm4545 = vcmp.lt.s32.totalorder %v4449, %v2849
      %vm4546 = vcmp.lt.s32.totalorder %v4450, %v2850
      %vm4547 = vcmp.lt.s32.totalorder %v4451, %v2851
      %vm4548 = vcmp.lt.s32.totalorder %v4452, %v2852
      %vm4549 = vcmp.lt.s32.totalorder %v4453, %v2853
      %vm4550 = vmand %vm4486, %vm4518
      %vm4551 = vmand %vm4487, %vm4519
      %vm4552 = vmand %vm4488, %vm4520
      %vm4553 = vmand %vm4489, %vm4521
      %vm4554 = vmand %vm4490, %vm4522
      %vm4555 = vmand %vm4491, %vm4523
      %vm4556 = vmand %vm4492, %vm4524
      %vm4557 = vmand %vm4493, %vm4525
      %vm4558 = vmand %vm4494, %vm4526
      %vm4559 = vmand %vm4495, %vm4527
      %vm4560 = vmand %vm4496, %vm4528
      %vm4561 = vmand %vm4497, %vm4529
      %vm4562 = vmand %vm4498, %vm4530
      %vm4563 = vmand %vm4499, %vm4531
      %vm4564 = vmand %vm4500, %vm4532
      %vm4565 = vmand %vm4501, %vm4533
      %vm4566 = vmand %vm4502, %vm4534
      %vm4567 = vmand %vm4503, %vm4535
      %vm4568 = vmand %vm4504, %vm4536
      %vm4569 = vmand %vm4505, %vm4537
      %vm4570 = vmand %vm4506, %vm4538
      %vm4571 = vmand %vm4507, %vm4539
      %vm4572 = vmand %vm4508, %vm4540
      %vm4573 = vmand %vm4509, %vm4541
      %vm4574 = vmand %vm4510, %vm4542
      %vm4575 = vmand %vm4511, %vm4543
      %vm4576 = vmand %vm4512, %vm4544
      %vm4577 = vmand %vm4513, %vm4545
      %vm4578 = vmand %vm4514, %vm4546
      %vm4579 = vmand %vm4515, %vm4547
      %vm4580 = vmand %vm4516, %vm4548
      %vm4581 = vmand %vm4517, %vm4549
      %vm4582 = vmor %vm4454, %vm4550
      %vm4583 = vmor %vm4455, %vm4551
      %vm4584 = vmor %vm4456, %vm4552
      %vm4585 = vmor %vm4457, %vm4553
      %vm4586 = vmor %vm4458, %vm4554
      %vm4587 = vmor %vm4459, %vm4555
      %vm4588 = vmor %vm4460, %vm4556
      %vm4589 = vmor %vm4461, %vm4557
      %vm4590 = vmor %vm4462, %vm4558
      %vm4591 = vmor %vm4463, %vm4559
      %vm4592 = vmor %vm4464, %vm4560
      %vm4593 = vmor %vm4465, %vm4561
      %vm4594 = vmor %vm4466, %vm4562
      %vm4595 = vmor %vm4467, %vm4563
      %vm4596 = vmor %vm4468, %vm4564
      %vm4597 = vmor %vm4469, %vm4565
      %vm4598 = vmor %vm4470, %vm4566
      %vm4599 = vmor %vm4471, %vm4567
      %vm4600 = vmor %vm4472, %vm4568
      %vm4601 = vmor %vm4473, %vm4569
      %vm4602 = vmor %vm4474, %vm4570
      %vm4603 = vmor %vm4475, %vm4571
      %vm4604 = vmor %vm4476, %vm4572
      %vm4605 = vmor %vm4477, %vm4573
      %vm4606 = vmor %vm4478, %vm4574
      %vm4607 = vmor %vm4479, %vm4575
      %vm4608 = vmor %vm4480, %vm4576
      %vm4609 = vmor %vm4481, %vm4577
      %vm4610 = vmor %vm4482, %vm4578
      %vm4611 = vmor %vm4483, %vm4579
      %vm4612 = vmor %vm4484, %vm4580
      %vm4613 = vmor %vm4485, %vm4581
      %v4614 = vsel %vm4582, %v4390, %v2790
      %v4615 = vsel %vm4583, %v4391, %v2791
      %v4616 = vsel %vm4584, %v4392, %v2792
      %v4617 = vsel %vm4585, %v4393, %v2793
      %v4618 = vsel %vm4586, %v4394, %v2794
      %v4619 = vsel %vm4587, %v4395, %v2795
      %v4620 = vsel %vm4588, %v4396, %v2796
      %v4621 = vsel %vm4589, %v4397, %v2797
      %v4622 = vsel %vm4590, %v4398, %v2798
      %v4623 = vsel %vm4591, %v4399, %v2799
      %v4624 = vsel %vm4592, %v4400, %v2800
      %v4625 = vsel %vm4593, %v4401, %v2801
      %v4626 = vsel %vm4594, %v4402, %v2802
      %v4627 = vsel %vm4595, %v4403, %v2803
      %v4628 = vsel %vm4596, %v4404, %v2804
      %v4629 = vsel %vm4597, %v4405, %v2805
      %v4630 = vsel %vm4598, %v4406, %v2806
      %v4631 = vsel %vm4599, %v4407, %v2807
      %v4632 = vsel %vm4600, %v4408, %v2808
      %v4633 = vsel %vm4601, %v4409, %v2809
      %v4634 = vsel %vm4602, %v4410, %v2810
      %v4635 = vsel %vm4603, %v4411, %v2811
      %v4636 = vsel %vm4604, %v4412, %v2812
      %v4637 = vsel %vm4605, %v4413, %v2813
      %v4638 = vsel %vm4606, %v4414, %v2814
      %v4639 = vsel %vm4607, %v4415, %v2815
      %v4640 = vsel %vm4608, %v4416, %v2816
      %v4641 = vsel %vm4609, %v4417, %v2817
      %v4642 = vsel %vm4610, %v4418, %v2818
      %v4643 = vsel %vm4611, %v4419, %v2819
      %v4644 = vsel %vm4612, %v4420, %v2820
      %v4645 = vsel %vm4613, %v4421, %v2821
      %v4646 = vsel %vm4582, %v4422, %v2822
      %v4647 = vsel %vm4583, %v4423, %v2823
      %v4648 = vsel %vm4584, %v4424, %v2824
      %v4649 = vsel %vm4585, %v4425, %v2825
      %v4650 = vsel %vm4586, %v4426, %v2826
      %v4651 = vsel %vm4587, %v4427, %v2827
      %v4652 = vsel %vm4588, %v4428, %v2828
      %v4653 = vsel %vm4589, %v4429, %v2829
      %v4654 = vsel %vm4590, %v4430, %v2830
      %v4655 = vsel %vm4591, %v4431, %v2831
      %v4656 = vsel %vm4592, %v4432, %v2832
      %v4657 = vsel %vm4593, %v4433, %v2833
      %v4658 = vsel %vm4594, %v4434, %v2834
      %v4659 = vsel %vm4595, %v4435, %v2835
      %v4660 = vsel %vm4596, %v4436, %v2836
      %v4661 = vsel %vm4597, %v4437, %v2837
      %v4662 = vsel %vm4598, %v4438, %v2838
      %v4663 = vsel %vm4599, %v4439, %v2839
      %v4664 = vsel %vm4600, %v4440, %v2840
      %v4665 = vsel %vm4601, %v4441, %v2841
      %v4666 = vsel %vm4602, %v4442, %v2842
      %v4667 = vsel %vm4603, %v4443, %v2843
      %v4668 = vsel %vm4604, %v4444, %v2844
      %v4669 = vsel %vm4605, %v4445, %v2845
      %v4670 = vsel %vm4606, %v4446, %v2846
      %v4671 = vsel %vm4607, %v4447, %v2847
      %v4672 = vsel %vm4608, %v4448, %v2848
      %v4673 = vsel %vm4609, %v4449, %v2849
      %v4674 = vsel %vm4610, %v4450, %v2850
      %v4675 = vsel %vm4611, %v4451, %v2851
      %v4676 = vsel %vm4612, %v4452, %v2852
      %v4677 = vsel %vm4613, %v4453, %v2853
      %v4678 = vsel %vm4582, %v2790, %v4390
      %v4679 = vsel %vm4583, %v2791, %v4391
      %v4680 = vsel %vm4584, %v2792, %v4392
      %v4681 = vsel %vm4585, %v2793, %v4393
      %v4682 = vsel %vm4586, %v2794, %v4394
      %v4683 = vsel %vm4587, %v2795, %v4395
      %v4684 = vsel %vm4588, %v2796, %v4396
      %v4685 = vsel %vm4589, %v2797, %v4397
      %v4686 = vsel %vm4590, %v2798, %v4398
      %v4687 = vsel %vm4591, %v2799, %v4399
      %v4688 = vsel %vm4592, %v2800, %v4400
      %v4689 = vsel %vm4593, %v2801, %v4401
      %v4690 = vsel %vm4594, %v2802, %v4402
      %v4691 = vsel %vm4595, %v2803, %v4403
      %v4692 = vsel %vm4596, %v2804, %v4404
      %v4693 = vsel %vm4597, %v2805, %v4405
      %v4694 = vsel %vm4598, %v2806, %v4406
      %v4695 = vsel %vm4599, %v2807, %v4407
      %v4696 = vsel %vm4600, %v2808, %v4408
      %v4697 = vsel %vm4601, %v2809, %v4409
      %v4698 = vsel %vm4602, %v2810, %v4410
      %v4699 = vsel %vm4603, %v2811, %v4411
      %v4700 = vsel %vm4604, %v2812, %v4412
      %v4701 = vsel %vm4605, %v2813, %v4413
      %v4702 = vsel %vm4606, %v2814, %v4414
      %v4703 = vsel %vm4607, %v2815, %v4415
      %v4704 = vsel %vm4608, %v2816, %v4416
      %v4705 = vsel %vm4609, %v2817, %v4417
      %v4706 = vsel %vm4610, %v2818, %v4418
      %v4707 = vsel %vm4611, %v2819, %v4419
      %v4708 = vsel %vm4612, %v2820, %v4420
      %v4709 = vsel %vm4613, %v2821, %v4421
      %v4710 = vsel %vm4582, %v2822, %v4422
      %v4711 = vsel %vm4583, %v2823, %v4423
      %v4712 = vsel %vm4584, %v2824, %v4424
      %v4713 = vsel %vm4585, %v2825, %v4425
      %v4714 = vsel %vm4586, %v2826, %v4426
      %v4715 = vsel %vm4587, %v2827, %v4427
      %v4716 = vsel %vm4588, %v2828, %v4428
      %v4717 = vsel %vm4589, %v2829, %v4429
      %v4718 = vsel %vm4590, %v2830, %v4430
      %v4719 = vsel %vm4591, %v2831, %v4431
      %v4720 = vsel %vm4592, %v2832, %v4432
      %v4721 = vsel %vm4593, %v2833, %v4433
      %v4722 = vsel %vm4594, %v2834, %v4434
      %v4723 = vsel %vm4595, %v2835, %v4435
      %v4724 = vsel %vm4596, %v2836, %v4436
      %v4725 = vsel %vm4597, %v2837, %v4437
      %v4726 = vsel %vm4598, %v2838, %v4438
      %v4727 = vsel %vm4599, %v2839, %v4439
      %v4728 = vsel %vm4600, %v2840, %v4440
      %v4729 = vsel %vm4601, %v2841, %v4441
      %v4730 = vsel %vm4602, %v2842, %v4442
      %v4731 = vsel %vm4603, %v2843, %v4443
      %v4732 = vsel %vm4604, %v2844, %v4444
      %v4733 = vsel %vm4605, %v2845, %v4445
      %v4734 = vsel %vm4606, %v2846, %v4446
      %v4735 = vsel %vm4607, %v2847, %v4447
      %v4736 = vsel %vm4608, %v2848, %v4448
      %v4737 = vsel %vm4609, %v2849, %v4449
      %v4738 = vsel %vm4610, %v2850, %v4450
      %v4739 = vsel %vm4611, %v2851, %v4451
      %v4740 = vsel %vm4612, %v2852, %v4452
      %v4741 = vsel %vm4613, %v2853, %v4453
      %vm4742 = vcmp.lt.s32.totalorder %v4678, %v3206
      %vm4743 = vcmp.lt.s32.totalorder %v4679, %v3207
      %vm4744 = vcmp.lt.s32.totalorder %v4680, %v3208
      %vm4745 = vcmp.lt.s32.totalorder %v4681, %v3209
      %vm4746 = vcmp.lt.s32.totalorder %v4682, %v3210
      %vm4747 = vcmp.lt.s32.totalorder %v4683, %v3211
      %vm4748 = vcmp.lt.s32.totalorder %v4684, %v3212
      %vm4749 = vcmp.lt.s32.totalorder %v4685, %v3213
      %vm4750 = vcmp.lt.s32.totalorder %v4686, %v3214
      %vm4751 = vcmp.lt.s32.totalorder %v4687, %v3215
      %vm4752 = vcmp.lt.s32.totalorder %v4688, %v3216
      %vm4753 = vcmp.lt.s32.totalorder %v4689, %v3217
      %vm4754 = vcmp.lt.s32.totalorder %v4690, %v3218
      %vm4755 = vcmp.lt.s32.totalorder %v4691, %v3219
      %vm4756 = vcmp.lt.s32.totalorder %v4692, %v3220
      %vm4757 = vcmp.lt.s32.totalorder %v4693, %v3221
      %vm4758 = vcmp.lt.s32.totalorder %v4694, %v3222
      %vm4759 = vcmp.lt.s32.totalorder %v4695, %v3223
      %vm4760 = vcmp.lt.s32.totalorder %v4696, %v3224
      %vm4761 = vcmp.lt.s32.totalorder %v4697, %v3225
      %vm4762 = vcmp.lt.s32.totalorder %v4698, %v3226
      %vm4763 = vcmp.lt.s32.totalorder %v4699, %v3227
      %vm4764 = vcmp.lt.s32.totalorder %v4700, %v3228
      %vm4765 = vcmp.lt.s32.totalorder %v4701, %v3229
      %vm4766 = vcmp.lt.s32.totalorder %v4702, %v3230
      %vm4767 = vcmp.lt.s32.totalorder %v4703, %v3231
      %vm4768 = vcmp.lt.s32.totalorder %v4704, %v3232
      %vm4769 = vcmp.lt.s32.totalorder %v4705, %v3233
      %vm4770 = vcmp.lt.s32.totalorder %v4706, %v3234
      %vm4771 = vcmp.lt.s32.totalorder %v4707, %v3235
      %vm4772 = vcmp.lt.s32.totalorder %v4708, %v3236
      %vm4773 = vcmp.lt.s32.totalorder %v4709, %v3237
      %vm4774 = vcmp.eq.s32.totalorder %v4678, %v3206
      %vm4775 = vcmp.eq.s32.totalorder %v4679, %v3207
      %vm4776 = vcmp.eq.s32.totalorder %v4680, %v3208
      %vm4777 = vcmp.eq.s32.totalorder %v4681, %v3209
      %vm4778 = vcmp.eq.s32.totalorder %v4682, %v3210
      %vm4779 = vcmp.eq.s32.totalorder %v4683, %v3211
      %vm4780 = vcmp.eq.s32.totalorder %v4684, %v3212
      %vm4781 = vcmp.eq.s32.totalorder %v4685, %v3213
      %vm4782 = vcmp.eq.s32.totalorder %v4686, %v3214
      %vm4783 = vcmp.eq.s32.totalorder %v4687, %v3215
      %vm4784 = vcmp.eq.s32.totalorder %v4688, %v3216
      %vm4785 = vcmp.eq.s32.totalorder %v4689, %v3217
      %vm4786 = vcmp.eq.s32.totalorder %v4690, %v3218
      %vm4787 = vcmp.eq.s32.totalorder %v4691, %v3219
      %vm4788 = vcmp.eq.s32.totalorder %v4692, %v3220
      %vm4789 = vcmp.eq.s32.totalorder %v4693, %v3221
      %vm4790 = vcmp.eq.s32.totalorder %v4694, %v3222
      %vm4791 = vcmp.eq.s32.totalorder %v4695, %v3223
      %vm4792 = vcmp.eq.s32.totalorder %v4696, %v3224
      %vm4793 = vcmp.eq.s32.totalorder %v4697, %v3225
      %vm4794 = vcmp.eq.s32.totalorder %v4698, %v3226
      %vm4795 = vcmp.eq.s32.totalorder %v4699, %v3227
      %vm4796 = vcmp.eq.s32.totalorder %v4700, %v3228
      %vm4797 = vcmp.eq.s32.totalorder %v4701, %v3229
      %vm4798 = vcmp.eq.s32.totalorder %v4702, %v3230
      %vm4799 = vcmp.eq.s32.totalorder %v4703, %v3231
      %vm4800 = vcmp.eq.s32.totalorder %v4704, %v3232
      %vm4801 = vcmp.eq.s32.totalorder %v4705, %v3233
      %vm4802 = vcmp.eq.s32.totalorder %v4706, %v3234
      %vm4803 = vcmp.eq.s32.totalorder %v4707, %v3235
      %vm4804 = vcmp.eq.s32.totalorder %v4708, %v3236
      %vm4805 = vcmp.eq.s32.totalorder %v4709, %v3237
      %vm4806 = vcmp.lt.s32.totalorder %v4710, %v3238
      %vm4807 = vcmp.lt.s32.totalorder %v4711, %v3239
      %vm4808 = vcmp.lt.s32.totalorder %v4712, %v3240
      %vm4809 = vcmp.lt.s32.totalorder %v4713, %v3241
      %vm4810 = vcmp.lt.s32.totalorder %v4714, %v3242
      %vm4811 = vcmp.lt.s32.totalorder %v4715, %v3243
      %vm4812 = vcmp.lt.s32.totalorder %v4716, %v3244
      %vm4813 = vcmp.lt.s32.totalorder %v4717, %v3245
      %vm4814 = vcmp.lt.s32.totalorder %v4718, %v3246
      %vm4815 = vcmp.lt.s32.totalorder %v4719, %v3247
      %vm4816 = vcmp.lt.s32.totalorder %v4720, %v3248
      %vm4817 = vcmp.lt.s32.totalorder %v4721, %v3249
      %vm4818 = vcmp.lt.s32.totalorder %v4722, %v3250
      %vm4819 = vcmp.lt.s32.totalorder %v4723, %v3251
      %vm4820 = vcmp.lt.s32.totalorder %v4724, %v3252
      %vm4821 = vcmp.lt.s32.totalorder %v4725, %v3253
      %vm4822 = vcmp.lt.s32.totalorder %v4726, %v3254
      %vm4823 = vcmp.lt.s32.totalorder %v4727, %v3255
      %vm4824 = vcmp.lt.s32.totalorder %v4728, %v3256
      %vm4825 = vcmp.lt.s32.totalorder %v4729, %v3257
      %vm4826 = vcmp.lt.s32.totalorder %v4730, %v3258
      %vm4827 = vcmp.lt.s32.totalorder %v4731, %v3259
      %vm4828 = vcmp.lt.s32.totalorder %v4732, %v3260
      %vm4829 = vcmp.lt.s32.totalorder %v4733, %v3261
      %vm4830 = vcmp.lt.s32.totalorder %v4734, %v3262
      %vm4831 = vcmp.lt.s32.totalorder %v4735, %v3263
      %vm4832 = vcmp.lt.s32.totalorder %v4736, %v3264
      %vm4833 = vcmp.lt.s32.totalorder %v4737, %v3265
      %vm4834 = vcmp.lt.s32.totalorder %v4738, %v3266
      %vm4835 = vcmp.lt.s32.totalorder %v4739, %v3267
      %vm4836 = vcmp.lt.s32.totalorder %v4740, %v3268
      %vm4837 = vcmp.lt.s32.totalorder %v4741, %v3269
      %vm4838 = vmand %vm4774, %vm4806
      %vm4839 = vmand %vm4775, %vm4807
      %vm4840 = vmand %vm4776, %vm4808
      %vm4841 = vmand %vm4777, %vm4809
      %vm4842 = vmand %vm4778, %vm4810
      %vm4843 = vmand %vm4779, %vm4811
      %vm4844 = vmand %vm4780, %vm4812
      %vm4845 = vmand %vm4781, %vm4813
      %vm4846 = vmand %vm4782, %vm4814
      %vm4847 = vmand %vm4783, %vm4815
      %vm4848 = vmand %vm4784, %vm4816
      %vm4849 = vmand %vm4785, %vm4817
      %vm4850 = vmand %vm4786, %vm4818
      %vm4851 = vmand %vm4787, %vm4819
      %vm4852 = vmand %vm4788, %vm4820
      %vm4853 = vmand %vm4789, %vm4821
      %vm4854 = vmand %vm4790, %vm4822
      %vm4855 = vmand %vm4791, %vm4823
      %vm4856 = vmand %vm4792, %vm4824
      %vm4857 = vmand %vm4793, %vm4825
      %vm4858 = vmand %vm4794, %vm4826
      %vm4859 = vmand %vm4795, %vm4827
      %vm4860 = vmand %vm4796, %vm4828
      %vm4861 = vmand %vm4797, %vm4829
      %vm4862 = vmand %vm4798, %vm4830
      %vm4863 = vmand %vm4799, %vm4831
      %vm4864 = vmand %vm4800, %vm4832
      %vm4865 = vmand %vm4801, %vm4833
      %vm4866 = vmand %vm4802, %vm4834
      %vm4867 = vmand %vm4803, %vm4835
      %vm4868 = vmand %vm4804, %vm4836
      %vm4869 = vmand %vm4805, %vm4837
      %vm4870 = vmor %vm4742, %vm4838
      %vm4871 = vmor %vm4743, %vm4839
      %vm4872 = vmor %vm4744, %vm4840
      %vm4873 = vmor %vm4745, %vm4841
      %vm4874 = vmor %vm4746, %vm4842
      %vm4875 = vmor %vm4747, %vm4843
      %vm4876 = vmor %vm4748, %vm4844
      %vm4877 = vmor %vm4749, %vm4845
      %vm4878 = vmor %vm4750, %vm4846
      %vm4879 = vmor %vm4751, %vm4847
      %vm4880 = vmor %vm4752, %vm4848
      %vm4881 = vmor %vm4753, %vm4849
      %vm4882 = vmor %vm4754, %vm4850
      %vm4883 = vmor %vm4755, %vm4851
      %vm4884 = vmor %vm4756, %vm4852
      %vm4885 = vmor %vm4757, %vm4853
      %vm4886 = vmor %vm4758, %vm4854
      %vm4887 = vmor %vm4759, %vm4855
      %vm4888 = vmor %vm4760, %vm4856
      %vm4889 = vmor %vm4761, %vm4857
      %vm4890 = vmor %vm4762, %vm4858
      %vm4891 = vmor %vm4763, %vm4859
      %vm4892 = vmor %vm4764, %vm4860
      %vm4893 = vmor %vm4765, %vm4861
      %vm4894 = vmor %vm4766, %vm4862
      %vm4895 = vmor %vm4767, %vm4863
      %vm4896 = vmor %vm4768, %vm4864
      %vm4897 = vmor %vm4769, %vm4865
      %vm4898 = vmor %vm4770, %vm4866
      %vm4899 = vmor %vm4771, %vm4867
      %vm4900 = vmor %vm4772, %vm4868
      %vm4901 = vmor %vm4773, %vm4869
      %v4902 = vsel %vm4870, %v4678, %v3206
      %v4903 = vsel %vm4871, %v4679, %v3207
      %v4904 = vsel %vm4872, %v4680, %v3208
      %v4905 = vsel %vm4873, %v4681, %v3209
      %v4906 = vsel %vm4874, %v4682, %v3210
      %v4907 = vsel %vm4875, %v4683, %v3211
      %v4908 = vsel %vm4876, %v4684, %v3212
      %v4909 = vsel %vm4877, %v4685, %v3213
      %v4910 = vsel %vm4878, %v4686, %v3214
      %v4911 = vsel %vm4879, %v4687, %v3215
      %v4912 = vsel %vm4880, %v4688, %v3216
      %v4913 = vsel %vm4881, %v4689, %v3217
      %v4914 = vsel %vm4882, %v4690, %v3218
      %v4915 = vsel %vm4883, %v4691, %v3219
      %v4916 = vsel %vm4884, %v4692, %v3220
      %v4917 = vsel %vm4885, %v4693, %v3221
      %v4918 = vsel %vm4886, %v4694, %v3222
      %v4919 = vsel %vm4887, %v4695, %v3223
      %v4920 = vsel %vm4888, %v4696, %v3224
      %v4921 = vsel %vm4889, %v4697, %v3225
      %v4922 = vsel %vm4890, %v4698, %v3226
      %v4923 = vsel %vm4891, %v4699, %v3227
      %v4924 = vsel %vm4892, %v4700, %v3228
      %v4925 = vsel %vm4893, %v4701, %v3229
      %v4926 = vsel %vm4894, %v4702, %v3230
      %v4927 = vsel %vm4895, %v4703, %v3231
      %v4928 = vsel %vm4896, %v4704, %v3232
      %v4929 = vsel %vm4897, %v4705, %v3233
      %v4930 = vsel %vm4898, %v4706, %v3234
      %v4931 = vsel %vm4899, %v4707, %v3235
      %v4932 = vsel %vm4900, %v4708, %v3236
      %v4933 = vsel %vm4901, %v4709, %v3237
      %v4934 = vsel %vm4870, %v4710, %v3238
      %v4935 = vsel %vm4871, %v4711, %v3239
      %v4936 = vsel %vm4872, %v4712, %v3240
      %v4937 = vsel %vm4873, %v4713, %v3241
      %v4938 = vsel %vm4874, %v4714, %v3242
      %v4939 = vsel %vm4875, %v4715, %v3243
      %v4940 = vsel %vm4876, %v4716, %v3244
      %v4941 = vsel %vm4877, %v4717, %v3245
      %v4942 = vsel %vm4878, %v4718, %v3246
      %v4943 = vsel %vm4879, %v4719, %v3247
      %v4944 = vsel %vm4880, %v4720, %v3248
      %v4945 = vsel %vm4881, %v4721, %v3249
      %v4946 = vsel %vm4882, %v4722, %v3250
      %v4947 = vsel %vm4883, %v4723, %v3251
      %v4948 = vsel %vm4884, %v4724, %v3252
      %v4949 = vsel %vm4885, %v4725, %v3253
      %v4950 = vsel %vm4886, %v4726, %v3254
      %v4951 = vsel %vm4887, %v4727, %v3255
      %v4952 = vsel %vm4888, %v4728, %v3256
      %v4953 = vsel %vm4889, %v4729, %v3257
      %v4954 = vsel %vm4890, %v4730, %v3258
      %v4955 = vsel %vm4891, %v4731, %v3259
      %v4956 = vsel %vm4892, %v4732, %v3260
      %v4957 = vsel %vm4893, %v4733, %v3261
      %v4958 = vsel %vm4894, %v4734, %v3262
      %v4959 = vsel %vm4895, %v4735, %v3263
      %v4960 = vsel %vm4896, %v4736, %v3264
      %v4961 = vsel %vm4897, %v4737, %v3265
      %v4962 = vsel %vm4898, %v4738, %v3266
      %v4963 = vsel %vm4899, %v4739, %v3267
      %v4964 = vsel %vm4900, %v4740, %v3268
      %v4965 = vsel %vm4901, %v4741, %v3269
      %v4966 = vand.u32 %v3846, 65535
      %v4967 = vshra.s32 %v3846, 16
      %v4968 = vcvt.s32.f32 %v4966
      %v4969 = vcvt.s32.f32 %v4967
      %4970 = vmin.xlane.f32.xlu0 %v4969
      %v4971 = vpop.xlane.xlu0 %4970
      %vm4972 = vcmp.eq.f32.partialorder %v4969, %v4971
      %v4973 = vsel %vm4972, %v4968, inf
      %4974 = vmin.xlane.f32.xlu0 %v4973
      %v4975 = vpop.xlane.xlu0 %4974
      %v4976 = vcvt.f32.s32 %v4975
      %v4977 = vcvt.f32.s32 %v4971
      %v4978 = vshll.u32 %v4977, 16
      %v4979 = vadd.s32 %v4978, %v4976
      %v4980 = vand.u32 %v3847, 65535
      %v4981 = vshra.s32 %v3847, 16
      %v4982 = vcvt.s32.f32 %v4980
      %v4983 = vcvt.s32.f32 %v4981
      %4984 = vmin.xlane.f32.xlu0 %v4983
      %v4985 = vpop.xlane.xlu0 %4984
      %vm4986 = vcmp.eq.f32.partialorder %v4983, %v4985
      %v4987 = vsel %vm4986, %v4982, inf
      %4988 = vmin.xlane.f32.xlu0 %v4987
      %v4989 = vpop.xlane.xlu0 %4988
      %v4990 = vcvt.f32.s32 %v4989
      %v4991 = vcvt.f32.s32 %v4985
      %v4992 = vshll.u32 %v4991, 16
      %v4993 = vadd.s32 %v4992, %v4990
      %v4994 = vand.u32 %v3848, 65535
      %v4995 = vshra.s32 %v3848, 16
      %v4996 = vcvt.s32.f32 %v4994
      %v4997 = vcvt.s32.f32 %v4995
      %4998 = vmin.xlane.f32.xlu0 %v4997
      %v4999 = vpop.xlane.xlu0 %4998
      %vm5000 = vcmp.eq.f32.partialorder %v4997, %v4999
      %v5001 = vsel %vm5000, %v4996, inf
      %5002 = vmin.xlane.f32.xlu0 %v5001
      %v5003 = vpop.xlane.xlu0 %5002
      %v5004 = vcvt.f32.s32 %v5003
      %v5005 = vcvt.f32.s32 %v4999
      %v5006 = vshll.u32 %v5005, 16
      %v5007 = vadd.s32 %v5006, %v5004
      %v5008 = vand.u32 %v3849, 65535
      %v5009 = vshra.s32 %v3849, 16
      %v5010 = vcvt.s32.f32 %v5008
      %v5011 = vcvt.s32.f32 %v5009
      %5012 = vmin.xlane.f32.xlu0 %v5011
      %v5013 = vpop.xlane.xlu0 %5012
      %vm5014 = vcmp.eq.f32.partialorder %v5011, %v5013
      %v5015 = vsel %vm5014, %v5010, inf
      %5016 = vmin.xlane.f32.xlu0 %v5015
      %v5017 = vpop.xlane.xlu0 %5016
      %v5018 = vcvt.f32.s32 %v5017
      %v5019 = vcvt.f32.s32 %v5013
      %v5020 = vshll.u32 %v5019, 16
      %v5021 = vadd.s32 %v5020, %v5018
      %v5022 = vand.u32 %v3850, 65535
      %v5023 = vshra.s32 %v3850, 16
      %v5024 = vcvt.s32.f32 %v5022
      %v5025 = vcvt.s32.f32 %v5023
      %5026 = vmin.xlane.f32.xlu0 %v5025
      %v5027 = vpop.xlane.xlu0 %5026
      %vm5028 = vcmp.eq.f32.partialorder %v5025, %v5027
      %v5029 = vsel %vm5028, %v5024, inf
      %5030 = vmin.xlane.f32.xlu0 %v5029
      %v5031 = vpop.xlane.xlu0 %5030
      %v5032 = vcvt.f32.s32 %v5031
      %v5033 = vcvt.f32.s32 %v5027
      %v5034 = vshll.u32 %v5033, 16
      %v5035 = vadd.s32 %v5034, %v5032
      %v5036 = vand.u32 %v3851, 65535
      %v5037 = vshra.s32 %v3851, 16
      %v5038 = vcvt.s32.f32 %v5036
      %v5039 = vcvt.s32.f32 %v5037
      %5040 = vmin.xlane.f32.xlu0 %v5039
      %v5041 = vpop.xlane.xlu0 %5040
      %vm5042 = vcmp.eq.f32.partialorder %v5039, %v5041
      %v5043 = vsel %vm5042, %v5038, inf
      %5044 = vmin.xlane.f32.xlu0 %v5043
      %v5045 = vpop.xlane.xlu0 %5044
      %v5046 = vcvt.f32.s32 %v5045
      %v5047 = vcvt.f32.s32 %v5041
      %v5048 = vshll.u32 %v5047, 16
      %v5049 = vadd.s32 %v5048, %v5046
      %v5050 = vand.u32 %v3852, 65535
      %v5051 = vshra.s32 %v3852, 16
      %v5052 = vcvt.s32.f32 %v5050
      %v5053 = vcvt.s32.f32 %v5051
      %5054 = vmin.xlane.f32.xlu0 %v5053
      %v5055 = vpop.xlane.xlu0 %5054
      %vm5056 = vcmp.eq.f32.partialorder %v5053, %v5055
      %v5057 = vsel %vm5056, %v5052, inf
      %5058 = vmin.xlane.f32.xlu0 %v5057
      %v5059 = vpop.xlane.xlu0 %5058
      %v5060 = vcvt.f32.s32 %v5059
      %v5061 = vcvt.f32.s32 %v5055
      %v5062 = vshll.u32 %v5061, 16
      %v5063 = vadd.s32 %v5062, %v5060
      %v5064 = vand.u32 %v3853, 65535
      %v5065 = vshra.s32 %v3853, 16
      %v5066 = vcvt.s32.f32 %v5064
      %v5067 = vcvt.s32.f32 %v5065
      %5068 = vmin.xlane.f32.xlu0 %v5067
      %v5069 = vpop.xlane.xlu0 %5068
      %vm5070 = vcmp.eq.f32.partialorder %v5067, %v5069
      %v5071 = vsel %vm5070, %v5066, inf
      %5072 = vmin.xlane.f32.xlu0 %v5071
      %v5073 = vpop.xlane.xlu0 %5072
      %v5074 = vcvt.f32.s32 %v5073
      %v5075 = vcvt.f32.s32 %v5069
      %v5076 = vshll.u32 %v5075, 16
      %v5077 = vadd.s32 %v5076, %v5074
      %v5078 = vand.u32 %v3854, 65535
      %v5079 = vshra.s32 %v3854, 16
      %v5080 = vcvt.s32.f32 %v5078
      %v5081 = vcvt.s32.f32 %v5079
      %5082 = vmin.xlane.f32.xlu0 %v5081
      %v5083 = vpop.xlane.xlu0 %5082
      %vm5084 = vcmp.eq.f32.partialorder %v5081, %v5083
      %v5085 = vsel %vm5084, %v5080, inf
      %5086 = vmin.xlane.f32.xlu0 %v5085
      %v5087 = vpop.xlane.xlu0 %5086
      %v5088 = vcvt.f32.s32 %v5087
      %v5089 = vcvt.f32.s32 %v5083
      %v5090 = vshll.u32 %v5089, 16
      %v5091 = vadd.s32 %v5090, %v5088
      %v5092 = vand.u32 %v3855, 65535
      %v5093 = vshra.s32 %v3855, 16
      %v5094 = vcvt.s32.f32 %v5092
      %v5095 = vcvt.s32.f32 %v5093
      %5096 = vmin.xlane.f32.xlu0 %v5095
      %v5097 = vpop.xlane.xlu0 %5096
      %vm5098 = vcmp.eq.f32.partialorder %v5095, %v5097
      %v5099 = vsel %vm5098, %v5094, inf
      %5100 = vmin.xlane.f32.xlu0 %v5099
      %v5101 = vpop.xlane.xlu0 %5100
      %v5102 = vcvt.f32.s32 %v5101
      %v5103 = vcvt.f32.s32 %v5097
      %v5104 = vshll.u32 %v5103, 16
      %v5105 = vadd.s32 %v5104, %v5102
      %v5106 = vand.u32 %v3856, 65535
      %v5107 = vshra.s32 %v3856, 16
      %v5108 = vcvt.s32.f32 %v5106
      %v5109 = vcvt.s32.f32 %v5107
      %5110 = vmin.xlane.f32.xlu0 %v5109
      %v5111 = vpop.xlane.xlu0 %5110
      %vm5112 = vcmp.eq.f32.partialorder %v5109, %v5111
      %v5113 = vsel %vm5112, %v5108, inf
      %5114 = vmin.xlane.f32.xlu0 %v5113
      %v5115 = vpop.xlane.xlu0 %5114
      %v5116 = vcvt.f32.s32 %v5115
      %v5117 = vcvt.f32.s32 %v5111
      %v5118 = vshll.u32 %v5117, 16
      %v5119 = vadd.s32 %v5118, %v5116
      %v5120 = vand.u32 %v3857, 65535
      %v5121 = vshra.s32 %v3857, 16
      %v5122 = vcvt.s32.f32 %v5120
      %v5123 = vcvt.s32.f32 %v5121
      %5124 = vmin.xlane.f32.xlu0 %v5123
      %v5125 = vpop.xlane.xlu0 %5124
      %vm5126 = vcmp.eq.f32.partialorder %v5123, %v5125
      %v5127 = vsel %vm5126, %v5122, inf
      %5128 = vmin.xlane.f32.xlu0 %v5127
      %v5129 = vpop.xlane.xlu0 %5128
      %v5130 = vcvt.f32.s32 %v5129
      %v5131 = vcvt.f32.s32 %v5125
      %v5132 = vshll.u32 %v5131, 16
      %v5133 = vadd.s32 %v5132, %v5130
      %v5134 = vand.u32 %v3858, 65535
      %v5135 = vshra.s32 %v3858, 16
      %v5136 = vcvt.s32.f32 %v5134
      %v5137 = vcvt.s32.f32 %v5135
      %5138 = vmin.xlane.f32.xlu0 %v5137
      %v5139 = vpop.xlane.xlu0 %5138
      %vm5140 = vcmp.eq.f32.partialorder %v5137, %v5139
      %v5141 = vsel %vm5140, %v5136, inf
      %5142 = vmin.xlane.f32.xlu0 %v5141
      %v5143 = vpop.xlane.xlu0 %5142
      %v5144 = vcvt.f32.s32 %v5143
      %v5145 = vcvt.f32.s32 %v5139
      %v5146 = vshll.u32 %v5145, 16
      %v5147 = vadd.s32 %v5146, %v5144
      %v5148 = vand.u32 %v3859, 65535
      %v5149 = vshra.s32 %v3859, 16
      %v5150 = vcvt.s32.f32 %v5148
      %v5151 = vcvt.s32.f32 %v5149
      %5152 = vmin.xlane.f32.xlu0 %v5151
      %v5153 = vpop.xlane.xlu0 %5152
      %vm5154 = vcmp.eq.f32.partialorder %v5151, %v5153
      %v5155 = vsel %vm5154, %v5150, inf
      %5156 = vmin.xlane.f32.xlu0 %v5155
      %v5157 = vpop.xlane.xlu0 %5156
      %v5158 = vcvt.f32.s32 %v5157
      %v5159 = vcvt.f32.s32 %v5153
      %v5160 = vshll.u32 %v5159, 16
      %v5161 = vadd.s32 %v5160, %v5158
      %v5162 = vand.u32 %v3860, 65535
      %v5163 = vshra.s32 %v3860, 16
      %v5164 = vcvt.s32.f32 %v5162
      %v5165 = vcvt.s32.f32 %v5163
      %5166 = vmin.xlane.f32.xlu0 %v5165
      %v5167 = vpop.xlane.xlu0 %5166
      %vm5168 = vcmp.eq.f32.partialorder %v5165, %v5167
      %v5169 = vsel %vm5168, %v5164, inf
      %5170 = vmin.xlane.f32.xlu0 %v5169
      %v5171 = vpop.xlane.xlu0 %5170
      %v5172 = vcvt.f32.s32 %v5171
      %v5173 = vcvt.f32.s32 %v5167
      %v5174 = vshll.u32 %v5173, 16
      %v5175 = vadd.s32 %v5174, %v5172
      %v5176 = vand.u32 %v3861, 65535
      %v5177 = vshra.s32 %v3861, 16
      %v5178 = vcvt.s32.f32 %v5176
      %v5179 = vcvt.s32.f32 %v5177
      %5180 = vmin.xlane.f32.xlu0 %v5179
      %v5181 = vpop.xlane.xlu0 %5180
      %vm5182 = vcmp.eq.f32.partialorder %v5179, %v5181
      %v5183 = vsel %vm5182, %v5178, inf
      %5184 = vmin.xlane.f32.xlu0 %v5183
      %v5185 = vpop.xlane.xlu0 %5184
      %v5186 = vcvt.f32.s32 %v5185
      %v5187 = vcvt.f32.s32 %v5181
      %v5188 = vshll.u32 %v5187, 16
      %v5189 = vadd.s32 %v5188, %v5186
      %v5190 = vand.u32 %v3862, 65535
      %v5191 = vshra.s32 %v3862, 16
      %v5192 = vcvt.s32.f32 %v5190
      %v5193 = vcvt.s32.f32 %v5191
      %5194 = vmin.xlane.f32.xlu0 %v5193
      %v5195 = vpop.xlane.xlu0 %5194
      %vm5196 = vcmp.eq.f32.partialorder %v5193, %v5195
      %v5197 = vsel %vm5196, %v5192, inf
      %5198 = vmin.xlane.f32.xlu0 %v5197
      %v5199 = vpop.xlane.xlu0 %5198
      %v5200 = vcvt.f32.s32 %v5199
      %v5201 = vcvt.f32.s32 %v5195
      %v5202 = vshll.u32 %v5201, 16
      %v5203 = vadd.s32 %v5202, %v5200
      %v5204 = vand.u32 %v3863, 65535
      %v5205 = vshra.s32 %v3863, 16
      %v5206 = vcvt.s32.f32 %v5204
      %v5207 = vcvt.s32.f32 %v5205
      %5208 = vmin.xlane.f32.xlu0 %v5207
      %v5209 = vpop.xlane.xlu0 %5208
      %vm5210 = vcmp.eq.f32.partialorder %v5207, %v5209
      %v5211 = vsel %vm5210, %v5206, inf
      %5212 = vmin.xlane.f32.xlu0 %v5211
      %v5213 = vpop.xlane.xlu0 %5212
      %v5214 = vcvt.f32.s32 %v5213
      %v5215 = vcvt.f32.s32 %v5209
      %v5216 = vshll.u32 %v5215, 16
      %v5217 = vadd.s32 %v5216, %v5214
      %v5218 = vand.u32 %v3864, 65535
      %v5219 = vshra.s32 %v3864, 16
      %v5220 = vcvt.s32.f32 %v5218
      %v5221 = vcvt.s32.f32 %v5219
      %5222 = vmin.xlane.f32.xlu0 %v5221
      %v5223 = vpop.xlane.xlu0 %5222
      %vm5224 = vcmp.eq.f32.partialorder %v5221, %v5223
      %v5225 = vsel %vm5224, %v5220, inf
      %5226 = vmin.xlane.f32.xlu0 %v5225
      %v5227 = vpop.xlane.xlu0 %5226
      %v5228 = vcvt.f32.s32 %v5227
      %v5229 = vcvt.f32.s32 %v5223
      %v5230 = vshll.u32 %v5229, 16
      %v5231 = vadd.s32 %v5230, %v5228
      %v5232 = vand.u32 %v3865, 65535
      %v5233 = vshra.s32 %v3865, 16
      %v5234 = vcvt.s32.f32 %v5232
      %v5235 = vcvt.s32.f32 %v5233
      %5236 = vmin.xlane.f32.xlu0 %v5235
      %v5237 = vpop.xlane.xlu0 %5236
      %vm5238 = vcmp.eq.f32.partialorder %v5235, %v5237
      %v5239 = vsel %vm5238, %v5234, inf
      %5240 = vmin.xlane.f32.xlu0 %v5239
      %v5241 = vpop.xlane.xlu0 %5240
      %v5242 = vcvt.f32.s32 %v5241
      %v5243 = vcvt.f32.s32 %v5237
      %v5244 = vshll.u32 %v5243, 16
      %v5245 = vadd.s32 %v5244, %v5242
      %v5246 = vand.u32 %v3866, 65535
      %v5247 = vshra.s32 %v3866, 16
      %v5248 = vcvt.s32.f32 %v5246
      %v5249 = vcvt.s32.f32 %v5247
      %5250 = vmin.xlane.f32.xlu0 %v5249
      %v5251 = vpop.xlane.xlu0 %5250
      %vm5252 = vcmp.eq.f32.partialorder %v5249, %v5251
      %v5253 = vsel %vm5252, %v5248, inf
      %5254 = vmin.xlane.f32.xlu0 %v5253
      %v5255 = vpop.xlane.xlu0 %5254
      %v5256 = vcvt.f32.s32 %v5255
      %v5257 = vcvt.f32.s32 %v5251
      %v5258 = vshll.u32 %v5257, 16
      %v5259 = vadd.s32 %v5258, %v5256
      %v5260 = vand.u32 %v3867, 65535
      %v5261 = vshra.s32 %v3867, 16
      %v5262 = vcvt.s32.f32 %v5260
      %v5263 = vcvt.s32.f32 %v5261
      %5264 = vmin.xlane.f32.xlu0 %v5263
      %v5265 = vpop.xlane.xlu0 %5264
      %vm5266 = vcmp.eq.f32.partialorder %v5263, %v5265
      %v5267 = vsel %vm5266, %v5262, inf
      %5268 = vmin.xlane.f32.xlu0 %v5267
      %v5269 = vpop.xlane.xlu0 %5268
      %v5270 = vcvt.f32.s32 %v5269
      %v5271 = vcvt.f32.s32 %v5265
      %v5272 = vshll.u32 %v5271, 16
      %v5273 = vadd.s32 %v5272, %v5270
      %v5274 = vand.u32 %v3868, 65535
      %v5275 = vshra.s32 %v3868, 16
      %v5276 = vcvt.s32.f32 %v5274
      %v5277 = vcvt.s32.f32 %v5275
      %5278 = vmin.xlane.f32.xlu0 %v5277
      %v5279 = vpop.xlane.xlu0 %5278
      %vm5280 = vcmp.eq.f32.partialorder %v5277, %v5279
      %v5281 = vsel %vm5280, %v5276, inf
      %5282 = vmin.xlane.f32.xlu0 %v5281
      %v5283 = vpop.xlane.xlu0 %5282
      %v5284 = vcvt.f32.s32 %v5283
      %v5285 = vcvt.f32.s32 %v5279
      %v5286 = vshll.u32 %v5285, 16
      %v5287 = vadd.s32 %v5286, %v5284
      %v5288 = vand.u32 %v3869, 65535
      %v5289 = vshra.s32 %v3869, 16
      %v5290 = vcvt.s32.f32 %v5288
      %v5291 = vcvt.s32.f32 %v5289
      %5292 = vmin.xlane.f32.xlu0 %v5291
      %v5293 = vpop.xlane.xlu0 %5292
      %vm5294 = vcmp.eq.f32.partialorder %v5291, %v5293
      %v5295 = vsel %vm5294, %v5290, inf
      %5296 = vmin.xlane.f32.xlu0 %v5295
      %v5297 = vpop.xlane.xlu0 %5296
      %v5298 = vcvt.f32.s32 %v5297
      %v5299 = vcvt.f32.s32 %v5293
      %v5300 = vshll.u32 %v5299, 16
      %v5301 = vadd.s32 %v5300, %v5298
      %v5302 = vand.u32 %v3870, 65535
      %v5303 = vshra.s32 %v3870, 16
      %v5304 = vcvt.s32.f32 %v5302
      %v5305 = vcvt.s32.f32 %v5303
      %5306 = vmin.xlane.f32.xlu0 %v5305
      %v5307 = vpop.xlane.xlu0 %5306
      %vm5308 = vcmp.eq.f32.partialorder %v5305, %v5307
      %v5309 = vsel %vm5308, %v5304, inf
      %5310 = vmin.xlane.f32.xlu0 %v5309
      %v5311 = vpop.xlane.xlu0 %5310
      %v5312 = vcvt.f32.s32 %v5311
      %v5313 = vcvt.f32.s32 %v5307
      %v5314 = vshll.u32 %v5313, 16
      %v5315 = vadd.s32 %v5314, %v5312
      %v5316 = vand.u32 %v3871, 65535
      %v5317 = vshra.s32 %v3871, 16
      %v5318 = vcvt.s32.f32 %v5316
      %v5319 = vcvt.s32.f32 %v5317
      %5320 = vmin.xlane.f32.xlu0 %v5319
      %v5321 = vpop.xlane.xlu0 %5320
      %vm5322 = vcmp.eq.f32.partialorder %v5319, %v5321
      %v5323 = vsel %vm5322, %v5318, inf
      %5324 = vmin.xlane.f32.xlu0 %v5323
      %v5325 = vpop.xlane.xlu0 %5324
      %v5326 = vcvt.f32.s32 %v5325
      %v5327 = vcvt.f32.s32 %v5321
      %v5328 = vshll.u32 %v5327, 16
      %v5329 = vadd.s32 %v5328, %v5326
      %v5330 = vand.u32 %v3872, 65535
      %v5331 = vshra.s32 %v3872, 16
      %v5332 = vcvt.s32.f32 %v5330
      %v5333 = vcvt.s32.f32 %v5331
      %5334 = vmin.xlane.f32.xlu0 %v5333
      %v5335 = vpop.xlane.xlu0 %5334
      %vm5336 = vcmp.eq.f32.partialorder %v5333, %v5335
      %v5337 = vsel %vm5336, %v5332, inf
      %5338 = vmin.xlane.f32.xlu0 %v5337
      %v5339 = vpop.xlane.xlu0 %5338
      %v5340 = vcvt.f32.s32 %v5339
      %v5341 = vcvt.f32.s32 %v5335
      %v5342 = vshll.u32 %v5341, 16
      %v5343 = vadd.s32 %v5342, %v5340
      %v5344 = vand.u32 %v3873, 65535
      %v5345 = vshra.s32 %v3873, 16
      %v5346 = vcvt.s32.f32 %v5344
      %v5347 = vcvt.s32.f32 %v5345
      %5348 = vmin.xlane.f32.xlu0 %v5347
      %v5349 = vpop.xlane.xlu0 %5348
      %vm5350 = vcmp.eq.f32.partialorder %v5347, %v5349
      %v5351 = vsel %vm5350, %v5346, inf
      %5352 = vmin.xlane.f32.xlu0 %v5351
      %v5353 = vpop.xlane.xlu0 %5352
      %v5354 = vcvt.f32.s32 %v5353
      %v5355 = vcvt.f32.s32 %v5349
      %v5356 = vshll.u32 %v5355, 16
      %v5357 = vadd.s32 %v5356, %v5354
      %v5358 = vand.u32 %v3874, 65535
      %v5359 = vshra.s32 %v3874, 16
      %v5360 = vcvt.s32.f32 %v5358
      %v5361 = vcvt.s32.f32 %v5359
      %5362 = vmin.xlane.f32.xlu0 %v5361
      %v5363 = vpop.xlane.xlu0 %5362
      %vm5364 = vcmp.eq.f32.partialorder %v5361, %v5363
      %v5365 = vsel %vm5364, %v5360, inf
      %5366 = vmin.xlane.f32.xlu0 %v5365
      %v5367 = vpop.xlane.xlu0 %5366
      %v5368 = vcvt.f32.s32 %v5367
      %v5369 = vcvt.f32.s32 %v5363
      %v5370 = vshll.u32 %v5369, 16
      %v5371 = vadd.s32 %v5370, %v5368
      %v5372 = vand.u32 %v3875, 65535
      %v5373 = vshra.s32 %v3875, 16
      %v5374 = vcvt.s32.f32 %v5372
      %v5375 = vcvt.s32.f32 %v5373
      %5376 = vmin.xlane.f32.xlu0 %v5375
      %v5377 = vpop.xlane.xlu0 %5376
      %vm5378 = vcmp.eq.f32.partialorder %v5375, %v5377
      %v5379 = vsel %vm5378, %v5374, inf
      %5380 = vmin.xlane.f32.xlu0 %v5379
      %v5381 = vpop.xlane.xlu0 %5380
      %v5382 = vcvt.f32.s32 %v5381
      %v5383 = vcvt.f32.s32 %v5377
      %v5384 = vshll.u32 %v5383, 16
      %v5385 = vadd.s32 %v5384, %v5382
      %v5386 = vand.u32 %v3876, 65535
      %v5387 = vshra.s32 %v3876, 16
      %v5388 = vcvt.s32.f32 %v5386
      %v5389 = vcvt.s32.f32 %v5387
      %5390 = vmin.xlane.f32.xlu0 %v5389
      %v5391 = vpop.xlane.xlu0 %5390
      %vm5392 = vcmp.eq.f32.partialorder %v5389, %v5391
      %v5393 = vsel %vm5392, %v5388, inf
      %5394 = vmin.xlane.f32.xlu0 %v5393
      %v5395 = vpop.xlane.xlu0 %5394
      %v5396 = vcvt.f32.s32 %v5395
      %v5397 = vcvt.f32.s32 %v5391
      %v5398 = vshll.u32 %v5397, 16
      %v5399 = vadd.s32 %v5398, %v5396
      %v5400 = vand.u32 %v3877, 65535
      %v5401 = vshra.s32 %v3877, 16
      %v5402 = vcvt.s32.f32 %v5400
      %v5403 = vcvt.s32.f32 %v5401
      %5404 = vmin.xlane.f32.xlu0 %v5403
      %v5405 = vpop.xlane.xlu0 %5404
      %vm5406 = vcmp.eq.f32.partialorder %v5403, %v5405
      %v5407 = vsel %vm5406, %v5402, inf
      %5408 = vmin.xlane.f32.xlu0 %v5407
      %v5409 = vpop.xlane.xlu0 %5408
      %v5410 = vcvt.f32.s32 %v5409
      %v5411 = vcvt.f32.s32 %v5405
      %v5412 = vshll.u32 %v5411, 16
      %v5413 = vadd.s32 %v5412, %v5410
      %v5414 = vand.u32 %v4979, 127
      %v5415 = vand.u32 %v4993, 127
      %v5416 = vand.u32 %v5007, 127
      %v5417 = vand.u32 %v5021, 127
      %v5418 = vand.u32 %v5035, 127
      %v5419 = vand.u32 %v5049, 127
      %v5420 = vand.u32 %v5063, 127
      %v5421 = vand.u32 %v5077, 127
      %v5422 = vand.u32 %v5091, 127
      %v5423 = vand.u32 %v5105, 127
      %v5424 = vand.u32 %v5119, 127
      %v5425 = vand.u32 %v5133, 127
      %v5426 = vand.u32 %v5147, 127
      %v5427 = vand.u32 %v5161, 127
      %v5428 = vand.u32 %v5175, 127
      %v5429 = vand.u32 %v5189, 127
      %v5430 = vand.u32 %v5203, 127
      %v5431 = vand.u32 %v5217, 127
      %v5432 = vand.u32 %v5231, 127
      %v5433 = vand.u32 %v5245, 127
      %v5434 = vand.u32 %v5259, 127
      %v5435 = vand.u32 %v5273, 127
      %v5436 = vand.u32 %v5287, 127
      %v5437 = vand.u32 %v5301, 127
      %v5438 = vand.u32 %v5315, 127
      %v5439 = vand.u32 %v5329, 127
      %v5440 = vand.u32 %v5343, 127
      %v5441 = vand.u32 %v5357, 127
      %v5442 = vand.u32 %v5371, 127
      %v5443 = vand.u32 %v5385, 127
      %v5444 = vand.u32 %v5399, 127
      %v5445 = vand.u32 %v5413, 127
      %v5446 = vand.u32 %v4979, 4294967168
      %v5447 = vand.u32 %v4993, 4294967168
      %v5448 = vand.u32 %v5007, 4294967168
      %v5449 = vand.u32 %v5021, 4294967168
      %v5450 = vand.u32 %v5035, 4294967168
      %v5451 = vand.u32 %v5049, 4294967168
      %v5452 = vand.u32 %v5063, 4294967168
      %v5453 = vand.u32 %v5077, 4294967168
      %v5454 = vand.u32 %v5091, 4294967168
      %v5455 = vand.u32 %v5105, 4294967168
      %v5456 = vand.u32 %v5119, 4294967168
      %v5457 = vand.u32 %v5133, 4294967168
      %v5458 = vand.u32 %v5147, 4294967168
      %v5459 = vand.u32 %v5161, 4294967168
      %v5460 = vand.u32 %v5175, 4294967168
      %v5461 = vand.u32 %v5189, 4294967168
      %v5462 = vand.u32 %v5203, 4294967168
      %v5463 = vand.u32 %v5217, 4294967168
      %v5464 = vand.u32 %v5231, 4294967168
      %v5465 = vand.u32 %v5245, 4294967168
      %v5466 = vand.u32 %v5259, 4294967168
      %v5467 = vand.u32 %v5273, 4294967168
      %v5468 = vand.u32 %v5287, 4294967168
      %v5469 = vand.u32 %v5301, 4294967168
      %v5470 = vand.u32 %v5315, 4294967168
      %v5471 = vand.u32 %v5329, 4294967168
      %v5472 = vand.u32 %v5343, 4294967168
      %v5473 = vand.u32 %v5357, 4294967168
      %v5474 = vand.u32 %v5371, 4294967168
      %v5475 = vand.u32 %v5385, 4294967168
      %v5476 = vand.u32 %v5399, 4294967168
      %v5477 = vand.u32 %v5413, 4294967168
      %v5478 = vadd.s32 %v5414, %v1701
      %v5479 = vadd.s32 %v5415, %v1701
      %v5480 = vadd.s32 %v5416, %v1701
      %v5481 = vadd.s32 %v5417, %v1701
      %v5482 = vadd.s32 %v5418, %v1701
      %v5483 = vadd.s32 %v5419, %v1701
      %v5484 = vadd.s32 %v5420, %v1701
      %v5485 = vadd.s32 %v5421, %v1701
      %v5486 = vadd.s32 %v5422, %v1701
      %v5487 = vadd.s32 %v5423, %v1701
      %v5488 = vadd.s32 %v5424, %v1701
      %v5489 = vadd.s32 %v5425, %v1701
      %v5490 = vadd.s32 %v5426, %v1701
      %v5491 = vadd.s32 %v5427, %v1701
      %v5492 = vadd.s32 %v5428, %v1701
      %v5493 = vadd.s32 %v5429, %v1701
      %v5494 = vadd.s32 %v5430, %v1701
      %v5495 = vadd.s32 %v5431, %v1701
      %v5496 = vadd.s32 %v5432, %v1701
      %v5497 = vadd.s32 %v5433, %v1701
      %v5498 = vadd.s32 %v5434, %v1701
      %v5499 = vadd.s32 %v5435, %v1701
      %v5500 = vadd.s32 %v5436, %v1701
      %v5501 = vadd.s32 %v5437, %v1701
      %v5502 = vadd.s32 %v5438, %v1701
      %v5503 = vadd.s32 %v5439, %v1701
      %v5504 = vadd.s32 %v5440, %v1701
      %v5505 = vadd.s32 %v5441, %v1701
      %v5506 = vadd.s32 %v5442, %v1701
      %v5507 = vadd.s32 %v5443, %v1701
      %v5508 = vadd.s32 %v5444, %v1701
      %v5509 = vadd.s32 %v5445, %v1701
      %vm5510 = vcmp.eq.s32.totalorder %v963, %v5414
      %vm5511 = vcmp.eq.s32.totalorder %v963, %v5415
      %vm5512 = vcmp.eq.s32.totalorder %v963, %v5416
      %vm5513 = vcmp.eq.s32.totalorder %v963, %v5417
      %vm5514 = vcmp.eq.s32.totalorder %v963, %v5418
      %vm5515 = vcmp.eq.s32.totalorder %v963, %v5419
      %vm5516 = vcmp.eq.s32.totalorder %v963, %v5420
      %vm5517 = vcmp.eq.s32.totalorder %v963, %v5421
      %vm5518 = vcmp.eq.s32.totalorder %v963, %v5422
      %vm5519 = vcmp.eq.s32.totalorder %v963, %v5423
      %vm5520 = vcmp.eq.s32.totalorder %v963, %v5424
      %vm5521 = vcmp.eq.s32.totalorder %v963, %v5425
      %vm5522 = vcmp.eq.s32.totalorder %v963, %v5426
      %vm5523 = vcmp.eq.s32.totalorder %v963, %v5427
      %vm5524 = vcmp.eq.s32.totalorder %v963, %v5428
      %vm5525 = vcmp.eq.s32.totalorder %v963, %v5429
      %vm5526 = vcmp.eq.s32.totalorder %v963, %v5430
      %vm5527 = vcmp.eq.s32.totalorder %v963, %v5431
      %vm5528 = vcmp.eq.s32.totalorder %v963, %v5432
      %vm5529 = vcmp.eq.s32.totalorder %v963, %v5433
      %vm5530 = vcmp.eq.s32.totalorder %v963, %v5434
      %vm5531 = vcmp.eq.s32.totalorder %v963, %v5435
      %vm5532 = vcmp.eq.s32.totalorder %v963, %v5436
      %vm5533 = vcmp.eq.s32.totalorder %v963, %v5437
      %vm5534 = vcmp.eq.s32.totalorder %v963, %v5438
      %vm5535 = vcmp.eq.s32.totalorder %v963, %v5439
      %vm5536 = vcmp.eq.s32.totalorder %v963, %v5440
      %vm5537 = vcmp.eq.s32.totalorder %v963, %v5441
      %vm5538 = vcmp.eq.s32.totalorder %v963, %v5442
      %vm5539 = vcmp.eq.s32.totalorder %v963, %v5443
      %vm5540 = vcmp.eq.s32.totalorder %v963, %v5444
      %vm5541 = vcmp.eq.s32.totalorder %v963, %v5445
      %v5542 = vsel %vm5510, 2147483647, %v3846
      %v5543 = vsel %vm5511, 2147483647, %v3847
      %v5544 = vsel %vm5512, 2147483647, %v3848
      %v5545 = vsel %vm5513, 2147483647, %v3849
      %v5546 = vsel %vm5514, 2147483647, %v3850
      %v5547 = vsel %vm5515, 2147483647, %v3851
      %v5548 = vsel %vm5516, 2147483647, %v3852
      %v5549 = vsel %vm5517, 2147483647, %v3853
      %v5550 = vsel %vm5518, 2147483647, %v3854
      %v5551 = vsel %vm5519, 2147483647, %v3855
      %v5552 = vsel %vm5520, 2147483647, %v3856
      %v5553 = vsel %vm5521, 2147483647, %v3857
      %v5554 = vsel %vm5522, 2147483647, %v3858
      %v5555 = vsel %vm5523, 2147483647, %v3859
      %v5556 = vsel %vm5524, 2147483647, %v3860
      %v5557 = vsel %vm5525, 2147483647, %v3861
      %v5558 = vsel %vm5526, 2147483647, %v3862
      %v5559 = vsel %vm5527, 2147483647, %v3863
      %v5560 = vsel %vm5528, 2147483647, %v3864
      %v5561 = vsel %vm5529, 2147483647, %v3865
      %v5562 = vsel %vm5530, 2147483647, %v3866
      %v5563 = vsel %vm5531, 2147483647, %v3867
      %v5564 = vsel %vm5532, 2147483647, %v3868
      %v5565 = vsel %vm5533, 2147483647, %v3869
      %v5566 = vsel %vm5534, 2147483647, %v3870
      %v5567 = vsel %vm5535, 2147483647, %v3871
      %v5568 = vsel %vm5536, 2147483647, %v3872
      %v5569 = vsel %vm5537, 2147483647, %v3873
      %v5570 = vsel %vm5538, 2147483647, %v3874
      %v5571 = vsel %vm5539, 2147483647, %v3875
      %v5572 = vsel %vm5540, 2147483647, %v3876
      %v5573 = vsel %vm5541, 2147483647, %v3877
      %vm5574 = vcmp.lt.s32.totalorder %v5446, %v4038
      %vm5575 = vcmp.lt.s32.totalorder %v5447, %v4039
      %vm5576 = vcmp.lt.s32.totalorder %v5448, %v4040
      %vm5577 = vcmp.lt.s32.totalorder %v5449, %v4041
      %vm5578 = vcmp.lt.s32.totalorder %v5450, %v4042
      %vm5579 = vcmp.lt.s32.totalorder %v5451, %v4043
      %vm5580 = vcmp.lt.s32.totalorder %v5452, %v4044
      %vm5581 = vcmp.lt.s32.totalorder %v5453, %v4045
      %vm5582 = vcmp.lt.s32.totalorder %v5454, %v4046
      %vm5583 = vcmp.lt.s32.totalorder %v5455, %v4047
      %vm5584 = vcmp.lt.s32.totalorder %v5456, %v4048
      %vm5585 = vcmp.lt.s32.totalorder %v5457, %v4049
      %vm5586 = vcmp.lt.s32.totalorder %v5458, %v4050
      %vm5587 = vcmp.lt.s32.totalorder %v5459, %v4051
      %vm5588 = vcmp.lt.s32.totalorder %v5460, %v4052
      %vm5589 = vcmp.lt.s32.totalorder %v5461, %v4053
      %vm5590 = vcmp.lt.s32.totalorder %v5462, %v4054
      %vm5591 = vcmp.lt.s32.totalorder %v5463, %v4055
      %vm5592 = vcmp.lt.s32.totalorder %v5464, %v4056
      %vm5593 = vcmp.lt.s32.totalorder %v5465, %v4057
      %vm5594 = vcmp.lt.s32.totalorder %v5466, %v4058
      %vm5595 = vcmp.lt.s32.totalorder %v5467, %v4059
      %vm5596 = vcmp.lt.s32.totalorder %v5468, %v4060
      %vm5597 = vcmp.lt.s32.totalorder %v5469, %v4061
      %vm5598 = vcmp.lt.s32.totalorder %v5470, %v4062
      %vm5599 = vcmp.lt.s32.totalorder %v5471, %v4063
      %vm5600 = vcmp.lt.s32.totalorder %v5472, %v4064
      %vm5601 = vcmp.lt.s32.totalorder %v5473, %v4065
      %vm5602 = vcmp.lt.s32.totalorder %v5474, %v4066
      %vm5603 = vcmp.lt.s32.totalorder %v5475, %v4067
      %vm5604 = vcmp.lt.s32.totalorder %v5476, %v4068
      %vm5605 = vcmp.lt.s32.totalorder %v5477, %v4069
      %vm5606 = vcmp.eq.s32.totalorder %v5446, %v4038
      %vm5607 = vcmp.eq.s32.totalorder %v5447, %v4039
      %vm5608 = vcmp.eq.s32.totalorder %v5448, %v4040
      %vm5609 = vcmp.eq.s32.totalorder %v5449, %v4041
      %vm5610 = vcmp.eq.s32.totalorder %v5450, %v4042
      %vm5611 = vcmp.eq.s32.totalorder %v5451, %v4043
      %vm5612 = vcmp.eq.s32.totalorder %v5452, %v4044
      %vm5613 = vcmp.eq.s32.totalorder %v5453, %v4045
      %vm5614 = vcmp.eq.s32.totalorder %v5454, %v4046
      %vm5615 = vcmp.eq.s32.totalorder %v5455, %v4047
      %vm5616 = vcmp.eq.s32.totalorder %v5456, %v4048
      %vm5617 = vcmp.eq.s32.totalorder %v5457, %v4049
      %vm5618 = vcmp.eq.s32.totalorder %v5458, %v4050
      %vm5619 = vcmp.eq.s32.totalorder %v5459, %v4051
      %vm5620 = vcmp.eq.s32.totalorder %v5460, %v4052
      %vm5621 = vcmp.eq.s32.totalorder %v5461, %v4053
      %vm5622 = vcmp.eq.s32.totalorder %v5462, %v4054
      %vm5623 = vcmp.eq.s32.totalorder %v5463, %v4055
      %vm5624 = vcmp.eq.s32.totalorder %v5464, %v4056
      %vm5625 = vcmp.eq.s32.totalorder %v5465, %v4057
      %vm5626 = vcmp.eq.s32.totalorder %v5466, %v4058
      %vm5627 = vcmp.eq.s32.totalorder %v5467, %v4059
      %vm5628 = vcmp.eq.s32.totalorder %v5468, %v4060
      %vm5629 = vcmp.eq.s32.totalorder %v5469, %v4061
      %vm5630 = vcmp.eq.s32.totalorder %v5470, %v4062
      %vm5631 = vcmp.eq.s32.totalorder %v5471, %v4063
      %vm5632 = vcmp.eq.s32.totalorder %v5472, %v4064
      %vm5633 = vcmp.eq.s32.totalorder %v5473, %v4065
      %vm5634 = vcmp.eq.s32.totalorder %v5474, %v4066
      %vm5635 = vcmp.eq.s32.totalorder %v5475, %v4067
      %vm5636 = vcmp.eq.s32.totalorder %v5476, %v4068
      %vm5637 = vcmp.eq.s32.totalorder %v5477, %v4069
      %vm5638 = vcmp.lt.s32.totalorder %v5478, %v4070
      %vm5639 = vcmp.lt.s32.totalorder %v5479, %v4071
      %vm5640 = vcmp.lt.s32.totalorder %v5480, %v4072
      %vm5641 = vcmp.lt.s32.totalorder %v5481, %v4073
      %vm5642 = vcmp.lt.s32.totalorder %v5482, %v4074
      %vm5643 = vcmp.lt.s32.totalorder %v5483, %v4075
      %vm5644 = vcmp.lt.s32.totalorder %v5484, %v4076
      %vm5645 = vcmp.lt.s32.totalorder %v5485, %v4077
      %vm5646 = vcmp.lt.s32.totalorder %v5486, %v4078
      %vm5647 = vcmp.lt.s32.totalorder %v5487, %v4079
      %vm5648 = vcmp.lt.s32.totalorder %v5488, %v4080
      %vm5649 = vcmp.lt.s32.totalorder %v5489, %v4081
      %vm5650 = vcmp.lt.s32.totalorder %v5490, %v4082
      %vm5651 = vcmp.lt.s32.totalorder %v5491, %v4083
      %vm5652 = vcmp.lt.s32.totalorder %v5492, %v4084
      %vm5653 = vcmp.lt.s32.totalorder %v5493, %v4085
      %vm5654 = vcmp.lt.s32.totalorder %v5494, %v4086
      %vm5655 = vcmp.lt.s32.totalorder %v5495, %v4087
      %vm5656 = vcmp.lt.s32.totalorder %v5496, %v4088
      %vm5657 = vcmp.lt.s32.totalorder %v5497, %v4089
      %vm5658 = vcmp.lt.s32.totalorder %v5498, %v4090
      %vm5659 = vcmp.lt.s32.totalorder %v5499, %v4091
      %vm5660 = vcmp.lt.s32.totalorder %v5500, %v4092
      %vm5661 = vcmp.lt.s32.totalorder %v5501, %v4093
      %vm5662 = vcmp.lt.s32.totalorder %v5502, %v4094
      %vm5663 = vcmp.lt.s32.totalorder %v5503, %v4095
      %vm5664 = vcmp.lt.s32.totalorder %v5504, %v4096
      %vm5665 = vcmp.lt.s32.totalorder %v5505, %v4097
      %vm5666 = vcmp.lt.s32.totalorder %v5506, %v4098
      %vm5667 = vcmp.lt.s32.totalorder %v5507, %v4099
      %vm5668 = vcmp.lt.s32.totalorder %v5508, %v4100
      %vm5669 = vcmp.lt.s32.totalorder %v5509, %v4101
      %vm5670 = vmand %vm5606, %vm5638
      %vm5671 = vmand %vm5607, %vm5639
      %vm5672 = vmand %vm5608, %vm5640
      %vm5673 = vmand %vm5609, %vm5641
      %vm5674 = vmand %vm5610, %vm5642
      %vm5675 = vmand %vm5611, %vm5643
      %vm5676 = vmand %vm5612, %vm5644
      %vm5677 = vmand %vm5613, %vm5645
      %vm5678 = vmand %vm5614, %vm5646
      %vm5679 = vmand %vm5615, %vm5647
      %vm5680 = vmand %vm5616, %vm5648
      %vm5681 = vmand %vm5617, %vm5649
      %vm5682 = vmand %vm5618, %vm5650
      %vm5683 = vmand %vm5619, %vm5651
      %vm5684 = vmand %vm5620, %vm5652
      %vm5685 = vmand %vm5621, %vm5653
      %vm5686 = vmand %vm5622, %vm5654
      %vm5687 = vmand %vm5623, %vm5655
      %vm5688 = vmand %vm5624, %vm5656
      %vm5689 = vmand %vm5625, %vm5657
      %vm5690 = vmand %vm5626, %vm5658
      %vm5691 = vmand %vm5627, %vm5659
      %vm5692 = vmand %vm5628, %vm5660
      %vm5693 = vmand %vm5629, %vm5661
      %vm5694 = vmand %vm5630, %vm5662
      %vm5695 = vmand %vm5631, %vm5663
      %vm5696 = vmand %vm5632, %vm5664
      %vm5697 = vmand %vm5633, %vm5665
      %vm5698 = vmand %vm5634, %vm5666
      %vm5699 = vmand %vm5635, %vm5667
      %vm5700 = vmand %vm5636, %vm5668
      %vm5701 = vmand %vm5637, %vm5669
      %vm5702 = vmor %vm5574, %vm5670
      %vm5703 = vmor %vm5575, %vm5671
      %vm5704 = vmor %vm5576, %vm5672
      %vm5705 = vmor %vm5577, %vm5673
      %vm5706 = vmor %vm5578, %vm5674
      %vm5707 = vmor %vm5579, %vm5675
      %vm5708 = vmor %vm5580, %vm5676
      %vm5709 = vmor %vm5581, %vm5677
      %vm5710 = vmor %vm5582, %vm5678
      %vm5711 = vmor %vm5583, %vm5679
      %vm5712 = vmor %vm5584, %vm5680
      %vm5713 = vmor %vm5585, %vm5681
      %vm5714 = vmor %vm5586, %vm5682
      %vm5715 = vmor %vm5587, %vm5683
      %vm5716 = vmor %vm5588, %vm5684
      %vm5717 = vmor %vm5589, %vm5685
      %vm5718 = vmor %vm5590, %vm5686
      %vm5719 = vmor %vm5591, %vm5687
      %vm5720 = vmor %vm5592, %vm5688
      %vm5721 = vmor %vm5593, %vm5689
      %vm5722 = vmor %vm5594, %vm5690
      %vm5723 = vmor %vm5595, %vm5691
      %vm5724 = vmor %vm5596, %vm5692
      %vm5725 = vmor %vm5597, %vm5693
      %vm5726 = vmor %vm5598, %vm5694
      %vm5727 = vmor %vm5599, %vm5695
      %vm5728 = vmor %vm5600, %vm5696
      %vm5729 = vmor %vm5601, %vm5697
      %vm5730 = vmor %vm5602, %vm5698
      %vm5731 = vmor %vm5603, %vm5699
      %vm5732 = vmor %vm5604, %vm5700
      %vm5733 = vmor %vm5605, %vm5701
      %v5734 = vsel %vm5702, %v5446, %v4038
      %v5735 = vsel %vm5703, %v5447, %v4039
      %v5736 = vsel %vm5704, %v5448, %v4040
      %v5737 = vsel %vm5705, %v5449, %v4041
      %v5738 = vsel %vm5706, %v5450, %v4042
      %v5739 = vsel %vm5707, %v5451, %v4043
      %v5740 = vsel %vm5708, %v5452, %v4044
      %v5741 = vsel %vm5709, %v5453, %v4045
      %v5742 = vsel %vm5710, %v5454, %v4046
      %v5743 = vsel %vm5711, %v5455, %v4047
      %v5744 = vsel %vm5712, %v5456, %v4048
      %v5745 = vsel %vm5713, %v5457, %v4049
      %v5746 = vsel %vm5714, %v5458, %v4050
      %v5747 = vsel %vm5715, %v5459, %v4051
      %v5748 = vsel %vm5716, %v5460, %v4052
      %v5749 = vsel %vm5717, %v5461, %v4053
      %v5750 = vsel %vm5718, %v5462, %v4054
      %v5751 = vsel %vm5719, %v5463, %v4055
      %v5752 = vsel %vm5720, %v5464, %v4056
      %v5753 = vsel %vm5721, %v5465, %v4057
      %v5754 = vsel %vm5722, %v5466, %v4058
      %v5755 = vsel %vm5723, %v5467, %v4059
      %v5756 = vsel %vm5724, %v5468, %v4060
      %v5757 = vsel %vm5725, %v5469, %v4061
      %v5758 = vsel %vm5726, %v5470, %v4062
      %v5759 = vsel %vm5727, %v5471, %v4063
      %v5760 = vsel %vm5728, %v5472, %v4064
      %v5761 = vsel %vm5729, %v5473, %v4065
      %v5762 = vsel %vm5730, %v5474, %v4066
      %v5763 = vsel %vm5731, %v5475, %v4067
      %v5764 = vsel %vm5732, %v5476, %v4068
      %v5765 = vsel %vm5733, %v5477, %v4069
      %v5766 = vsel %vm5702, %v5478, %v4070
      %v5767 = vsel %vm5703, %v5479, %v4071
      %v5768 = vsel %vm5704, %v5480, %v4072
      %v5769 = vsel %vm5705, %v5481, %v4073
      %v5770 = vsel %vm5706, %v5482, %v4074
      %v5771 = vsel %vm5707, %v5483, %v4075
      %v5772 = vsel %vm5708, %v5484, %v4076
      %v5773 = vsel %vm5709, %v5485, %v4077
      %v5774 = vsel %vm5710, %v5486, %v4078
      %v5775 = vsel %vm5711, %v5487, %v4079
      %v5776 = vsel %vm5712, %v5488, %v4080
      %v5777 = vsel %vm5713, %v5489, %v4081
      %v5778 = vsel %vm5714, %v5490, %v4082
      %v5779 = vsel %vm5715, %v5491, %v4083
      %v5780 = vsel %vm5716, %v5492, %v4084
      %v5781 = vsel %vm5717, %v5493, %v4085
      %v5782 = vsel %vm5718, %v5494, %v4086
      %v5783 = vsel %vm5719, %v5495, %v4087
      %v5784 = vsel %vm5720, %v5496, %v4088
      %v5785 = vsel %vm5721, %v5497, %v4089
      %v5786 = vsel %vm5722, %v5498, %v4090
      %v5787 = vsel %vm5723, %v5499, %v4091
      %v5788 = vsel %vm5724, %v5500, %v4092
      %v5789 = vsel %vm5725, %v5501, %v4093
      %v5790 = vsel %vm5726, %v5502, %v4094
      %v5791 = vsel %vm5727, %v5503, %v4095
      %v5792 = vsel %vm5728, %v5504, %v4096
      %v5793 = vsel %vm5729, %v5505, %v4097
      %v5794 = vsel %vm5730, %v5506, %v4098
      %v5795 = vsel %vm5731, %v5507, %v4099
      %v5796 = vsel %vm5732, %v5508, %v4100
      %v5797 = vsel %vm5733, %v5509, %v4101
      %v5798 = vsel %vm5702, %v4038, %v5446
      %v5799 = vsel %vm5703, %v4039, %v5447
      %v5800 = vsel %vm5704, %v4040, %v5448
      %v5801 = vsel %vm5705, %v4041, %v5449
      %v5802 = vsel %vm5706, %v4042, %v5450
      %v5803 = vsel %vm5707, %v4043, %v5451
      %v5804 = vsel %vm5708, %v4044, %v5452
      %v5805 = vsel %vm5709, %v4045, %v5453
      %v5806 = vsel %vm5710, %v4046, %v5454
      %v5807 = vsel %vm5711, %v4047, %v5455
      %v5808 = vsel %vm5712, %v4048, %v5456
      %v5809 = vsel %vm5713, %v4049, %v5457
      %v5810 = vsel %vm5714, %v4050, %v5458
      %v5811 = vsel %vm5715, %v4051, %v5459
      %v5812 = vsel %vm5716, %v4052, %v5460
      %v5813 = vsel %vm5717, %v4053, %v5461
      %v5814 = vsel %vm5718, %v4054, %v5462
      %v5815 = vsel %vm5719, %v4055, %v5463
      %v5816 = vsel %vm5720, %v4056, %v5464
      %v5817 = vsel %vm5721, %v4057, %v5465
      %v5818 = vsel %vm5722, %v4058, %v5466
      %v5819 = vsel %vm5723, %v4059, %v5467
      %v5820 = vsel %vm5724, %v4060, %v5468
      %v5821 = vsel %vm5725, %v4061, %v5469
      %v5822 = vsel %vm5726, %v4062, %v5470
      %v5823 = vsel %vm5727, %v4063, %v5471
      %v5824 = vsel %vm5728, %v4064, %v5472
      %v5825 = vsel %vm5729, %v4065, %v5473
      %v5826 = vsel %vm5730, %v4066, %v5474
      %v5827 = vsel %vm5731, %v4067, %v5475
      %v5828 = vsel %vm5732, %v4068, %v5476
      %v5829 = vsel %vm5733, %v4069, %v5477
      %v5830 = vsel %vm5702, %v4070, %v5478
      %v5831 = vsel %vm5703, %v4071, %v5479
      %v5832 = vsel %vm5704, %v4072, %v5480
      %v5833 = vsel %vm5705, %v4073, %v5481
      %v5834 = vsel %vm5706, %v4074, %v5482
      %v5835 = vsel %vm5707, %v4075, %v5483
      %v5836 = vsel %vm5708, %v4076, %v5484
      %v5837 = vsel %vm5709, %v4077, %v5485
      %v5838 = vsel %vm5710, %v4078, %v5486
      %v5839 = vsel %vm5711, %v4079, %v5487
      %v5840 = vsel %vm5712, %v4080, %v5488
      %v5841 = vsel %vm5713, %v4081, %v5489
      %v5842 = vsel %vm5714, %v4082, %v5490
      %v5843 = vsel %vm5715, %v4083, %v5491
      %v5844 = vsel %vm5716, %v4084, %v5492
      %v5845 = vsel %vm5717, %v4085, %v5493
      %v5846 = vsel %vm5718, %v4086, %v5494
      %v5847 = vsel %vm5719, %v4087, %v5495
      %v5848 = vsel %vm5720, %v4088, %v5496
      %v5849 = vsel %vm5721, %v4089, %v5497
      %v5850 = vsel %vm5722, %v4090, %v5498
      %v5851 = vsel %vm5723, %v4091, %v5499
      %v5852 = vsel %vm5724, %v4092, %v5500
      %v5853 = vsel %vm5725, %v4093, %v5501
      %v5854 = vsel %vm5726, %v4094, %v5502
      %v5855 = vsel %vm5727, %v4095, %v5503
      %v5856 = vsel %vm5728, %v4096, %v5504
      %v5857 = vsel %vm5729, %v4097, %v5505
      %v5858 = vsel %vm5730, %v4098, %v5506
      %v5859 = vsel %vm5731, %v4099, %v5507
      %v5860 = vsel %vm5732, %v4100, %v5508
      %v5861 = vsel %vm5733, %v4101, %v5509
      %vm5862 = vcmp.lt.s32.totalorder %v5798, %v4326
      %vm5863 = vcmp.lt.s32.totalorder %v5799, %v4327
      %vm5864 = vcmp.lt.s32.totalorder %v5800, %v4328
      %vm5865 = vcmp.lt.s32.totalorder %v5801, %v4329
      %vm5866 = vcmp.lt.s32.totalorder %v5802, %v4330
      %vm5867 = vcmp.lt.s32.totalorder %v5803, %v4331
      %vm5868 = vcmp.lt.s32.totalorder %v5804, %v4332
      %vm5869 = vcmp.lt.s32.totalorder %v5805, %v4333
      %vm5870 = vcmp.lt.s32.totalorder %v5806, %v4334
      %vm5871 = vcmp.lt.s32.totalorder %v5807, %v4335
      %vm5872 = vcmp.lt.s32.totalorder %v5808, %v4336
      %vm5873 = vcmp.lt.s32.totalorder %v5809, %v4337
      %vm5874 = vcmp.lt.s32.totalorder %v5810, %v4338
      %vm5875 = vcmp.lt.s32.totalorder %v5811, %v4339
      %vm5876 = vcmp.lt.s32.totalorder %v5812, %v4340
      %vm5877 = vcmp.lt.s32.totalorder %v5813, %v4341
      %vm5878 = vcmp.lt.s32.totalorder %v5814, %v4342
      %vm5879 = vcmp.lt.s32.totalorder %v5815, %v4343
      %vm5880 = vcmp.lt.s32.totalorder %v5816, %v4344
      %vm5881 = vcmp.lt.s32.totalorder %v5817, %v4345
      %vm5882 = vcmp.lt.s32.totalorder %v5818, %v4346
      %vm5883 = vcmp.lt.s32.totalorder %v5819, %v4347
      %vm5884 = vcmp.lt.s32.totalorder %v5820, %v4348
      %vm5885 = vcmp.lt.s32.totalorder %v5821, %v4349
      %vm5886 = vcmp.lt.s32.totalorder %v5822, %v4350
      %vm5887 = vcmp.lt.s32.totalorder %v5823, %v4351
      %vm5888 = vcmp.lt.s32.totalorder %v5824, %v4352
      %vm5889 = vcmp.lt.s32.totalorder %v5825, %v4353
      %vm5890 = vcmp.lt.s32.totalorder %v5826, %v4354
      %vm5891 = vcmp.lt.s32.totalorder %v5827, %v4355
      %vm5892 = vcmp.lt.s32.totalorder %v5828, %v4356
      %vm5893 = vcmp.lt.s32.totalorder %v5829, %v4357
      %vm5894 = vcmp.eq.s32.totalorder %v5798, %v4326
      %vm5895 = vcmp.eq.s32.totalorder %v5799, %v4327
      %vm5896 = vcmp.eq.s32.totalorder %v5800, %v4328
      %vm5897 = vcmp.eq.s32.totalorder %v5801, %v4329
      %vm5898 = vcmp.eq.s32.totalorder %v5802, %v4330
      %vm5899 = vcmp.eq.s32.totalorder %v5803, %v4331
      %vm5900 = vcmp.eq.s32.totalorder %v5804, %v4332
      %vm5901 = vcmp.eq.s32.totalorder %v5805, %v4333
      %vm5902 = vcmp.eq.s32.totalorder %v5806, %v4334
      %vm5903 = vcmp.eq.s32.totalorder %v5807, %v4335
      %vm5904 = vcmp.eq.s32.totalorder %v5808, %v4336
      %vm5905 = vcmp.eq.s32.totalorder %v5809, %v4337
      %vm5906 = vcmp.eq.s32.totalorder %v5810, %v4338
      %vm5907 = vcmp.eq.s32.totalorder %v5811, %v4339
      %vm5908 = vcmp.eq.s32.totalorder %v5812, %v4340
      %vm5909 = vcmp.eq.s32.totalorder %v5813, %v4341
      %vm5910 = vcmp.eq.s32.totalorder %v5814, %v4342
      %vm5911 = vcmp.eq.s32.totalorder %v5815, %v4343
      %vm5912 = vcmp.eq.s32.totalorder %v5816, %v4344
      %vm5913 = vcmp.eq.s32.totalorder %v5817, %v4345
      %vm5914 = vcmp.eq.s32.totalorder %v5818, %v4346
      %vm5915 = vcmp.eq.s32.totalorder %v5819, %v4347
      %vm5916 = vcmp.eq.s32.totalorder %v5820, %v4348
      %vm5917 = vcmp.eq.s32.totalorder %v5821, %v4349
      %vm5918 = vcmp.eq.s32.totalorder %v5822, %v4350
      %vm5919 = vcmp.eq.s32.totalorder %v5823, %v4351
      %vm5920 = vcmp.eq.s32.totalorder %v5824, %v4352
      %vm5921 = vcmp.eq.s32.totalorder %v5825, %v4353
      %vm5922 = vcmp.eq.s32.totalorder %v5826, %v4354
      %vm5923 = vcmp.eq.s32.totalorder %v5827, %v4355
      %vm5924 = vcmp.eq.s32.totalorder %v5828, %v4356
      %vm5925 = vcmp.eq.s32.totalorder %v5829, %v4357
      %vm5926 = vcmp.lt.s32.totalorder %v5830, %v4358
      %vm5927 = vcmp.lt.s32.totalorder %v5831, %v4359
      %vm5928 = vcmp.lt.s32.totalorder %v5832, %v4360
      %vm5929 = vcmp.lt.s32.totalorder %v5833, %v4361
      %vm5930 = vcmp.lt.s32.totalorder %v5834, %v4362
      %vm5931 = vcmp.lt.s32.totalorder %v5835, %v4363
      %vm5932 = vcmp.lt.s32.totalorder %v5836, %v4364
      %vm5933 = vcmp.lt.s32.totalorder %v5837, %v4365
      %vm5934 = vcmp.lt.s32.totalorder %v5838, %v4366
      %vm5935 = vcmp.lt.s32.totalorder %v5839, %v4367
      %vm5936 = vcmp.lt.s32.totalorder %v5840, %v4368
      %vm5937 = vcmp.lt.s32.totalorder %v5841, %v4369
      %vm5938 = vcmp.lt.s32.totalorder %v5842, %v4370
      %vm5939 = vcmp.lt.s32.totalorder %v5843, %v4371
      %vm5940 = vcmp.lt.s32.totalorder %v5844, %v4372
      %vm5941 = vcmp.lt.s32.totalorder %v5845, %v4373
      %vm5942 = vcmp.lt.s32.totalorder %v5846, %v4374
      %vm5943 = vcmp.lt.s32.totalorder %v5847, %v4375
      %vm5944 = vcmp.lt.s32.totalorder %v5848, %v4376
      %vm5945 = vcmp.lt.s32.totalorder %v5849, %v4377
      %vm5946 = vcmp.lt.s32.totalorder %v5850, %v4378
      %vm5947 = vcmp.lt.s32.totalorder %v5851, %v4379
      %vm5948 = vcmp.lt.s32.totalorder %v5852, %v4380
      %vm5949 = vcmp.lt.s32.totalorder %v5853, %v4381
      %vm5950 = vcmp.lt.s32.totalorder %v5854, %v4382
      %vm5951 = vcmp.lt.s32.totalorder %v5855, %v4383
      %vm5952 = vcmp.lt.s32.totalorder %v5856, %v4384
      %vm5953 = vcmp.lt.s32.totalorder %v5857, %v4385
      %vm5954 = vcmp.lt.s32.totalorder %v5858, %v4386
      %vm5955 = vcmp.lt.s32.totalorder %v5859, %v4387
      %vm5956 = vcmp.lt.s32.totalorder %v5860, %v4388
      %vm5957 = vcmp.lt.s32.totalorder %v5861, %v4389
      %vm5958 = vmand %vm5894, %vm5926
      %vm5959 = vmand %vm5895, %vm5927
      %vm5960 = vmand %vm5896, %vm5928
      %vm5961 = vmand %vm5897, %vm5929
      %vm5962 = vmand %vm5898, %vm5930
      %vm5963 = vmand %vm5899, %vm5931
      %vm5964 = vmand %vm5900, %vm5932
      %vm5965 = vmand %vm5901, %vm5933
      %vm5966 = vmand %vm5902, %vm5934
      %vm5967 = vmand %vm5903, %vm5935
      %vm5968 = vmand %vm5904, %vm5936
      %vm5969 = vmand %vm5905, %vm5937
      %vm5970 = vmand %vm5906, %vm5938
      %vm5971 = vmand %vm5907, %vm5939
      %vm5972 = vmand %vm5908, %vm5940
      %vm5973 = vmand %vm5909, %vm5941
      %vm5974 = vmand %vm5910, %vm5942
      %vm5975 = vmand %vm5911, %vm5943
      %vm5976 = vmand %vm5912, %vm5944
      %vm5977 = vmand %vm5913, %vm5945
      %vm5978 = vmand %vm5914, %vm5946
      %vm5979 = vmand %vm5915, %vm5947
      %vm5980 = vmand %vm5916, %vm5948
      %vm5981 = vmand %vm5917, %vm5949
      %vm5982 = vmand %vm5918, %vm5950
      %vm5983 = vmand %vm5919, %vm5951
      %vm5984 = vmand %vm5920, %vm5952
      %vm5985 = vmand %vm5921, %vm5953
      %vm5986 = vmand %vm5922, %vm5954
      %vm5987 = vmand %vm5923, %vm5955
      %vm5988 = vmand %vm5924, %vm5956
      %vm5989 = vmand %vm5925, %vm5957
      %vm5990 = vmor %vm5862, %vm5958
      %vm5991 = vmor %vm5863, %vm5959
      %vm5992 = vmor %vm5864, %vm5960
      %vm5993 = vmor %vm5865, %vm5961
      %vm5994 = vmor %vm5866, %vm5962
      %vm5995 = vmor %vm5867, %vm5963
      %vm5996 = vmor %vm5868, %vm5964
      %vm5997 = vmor %vm5869, %vm5965
      %vm5998 = vmor %vm5870, %vm5966
      %vm5999 = vmor %vm5871, %vm5967
      %vm6000 = vmor %vm5872, %vm5968
      %vm6001 = vmor %vm5873, %vm5969
      %vm6002 = vmor %vm5874, %vm5970
      %vm6003 = vmor %vm5875, %vm5971
      %vm6004 = vmor %vm5876, %vm5972
      %vm6005 = vmor %vm5877, %vm5973
      %vm6006 = vmor %vm5878, %vm5974
      %vm6007 = vmor %vm5879, %vm5975
      %vm6008 = vmor %vm5880, %vm5976
      %vm6009 = vmor %vm5881, %vm5977
      %vm6010 = vmor %vm5882, %vm5978
      %vm6011 = vmor %vm5883, %vm5979
      %vm6012 = vmor %vm5884, %vm5980
      %vm6013 = vmor %vm5885, %vm5981
      %vm6014 = vmor %vm5886, %vm5982
      %vm6015 = vmor %vm5887, %vm5983
      %vm6016 = vmor %vm5888, %vm5984
      %vm6017 = vmor %vm5889, %vm5985
      %vm6018 = vmor %vm5890, %vm5986
      %vm6019 = vmor %vm5891, %vm5987
      %vm6020 = vmor %vm5892, %vm5988
      %vm6021 = vmor %vm5893, %vm5989
      %v6022 = vsel %vm5990, %v5798, %v4326
      %v6023 = vsel %vm5991, %v5799, %v4327
      %v6024 = vsel %vm5992, %v5800, %v4328
      %v6025 = vsel %vm5993, %v5801, %v4329
      %v6026 = vsel %vm5994, %v5802, %v4330
      %v6027 = vsel %vm5995, %v5803, %v4331
      %v6028 = vsel %vm5996, %v5804, %v4332
      %v6029 = vsel %vm5997, %v5805, %v4333
      %v6030 = vsel %vm5998, %v5806, %v4334
      %v6031 = vsel %vm5999, %v5807, %v4335
      %v6032 = vsel %vm6000, %v5808, %v4336
      %v6033 = vsel %vm6001, %v5809, %v4337
      %v6034 = vsel %vm6002, %v5810, %v4338
      %v6035 = vsel %vm6003, %v5811, %v4339
      %v6036 = vsel %vm6004, %v5812, %v4340
      %v6037 = vsel %vm6005, %v5813, %v4341
      %v6038 = vsel %vm6006, %v5814, %v4342
      %v6039 = vsel %vm6007, %v5815, %v4343
      %v6040 = vsel %vm6008, %v5816, %v4344
      %v6041 = vsel %vm6009, %v5817, %v4345
      %v6042 = vsel %vm6010, %v5818, %v4346
      %v6043 = vsel %vm6011, %v5819, %v4347
      %v6044 = vsel %vm6012, %v5820, %v4348
      %v6045 = vsel %vm6013, %v5821, %v4349
      %v6046 = vsel %vm6014, %v5822, %v4350
      %v6047 = vsel %vm6015, %v5823, %v4351
      %v6048 = vsel %vm6016, %v5824, %v4352
      %v6049 = vsel %vm6017, %v5825, %v4353
      %v6050 = vsel %vm6018, %v5826, %v4354
      %v6051 = vsel %vm6019, %v5827, %v4355
      %v6052 = vsel %vm6020, %v5828, %v4356
      %v6053 = vsel %vm6021, %v5829, %v4357
      %v6054 = vsel %vm5990, %v5830, %v4358
      %v6055 = vsel %vm5991, %v5831, %v4359
      %v6056 = vsel %vm5992, %v5832, %v4360
      %v6057 = vsel %vm5993, %v5833, %v4361
      %v6058 = vsel %vm5994, %v5834, %v4362
      %v6059 = vsel %vm5995, %v5835, %v4363
      %v6060 = vsel %vm5996, %v5836, %v4364
      %v6061 = vsel %vm5997, %v5837, %v4365
      %v6062 = vsel %vm5998, %v5838, %v4366
      %v6063 = vsel %vm5999, %v5839, %v4367
      %v6064 = vsel %vm6000, %v5840, %v4368
      %v6065 = vsel %vm6001, %v5841, %v4369
      %v6066 = vsel %vm6002, %v5842, %v4370
      %v6067 = vsel %vm6003, %v5843, %v4371
      %v6068 = vsel %vm6004, %v5844, %v4372
      %v6069 = vsel %vm6005, %v5845, %v4373
      %v6070 = vsel %vm6006, %v5846, %v4374
      %v6071 = vsel %vm6007, %v5847, %v4375
      %v6072 = vsel %vm6008, %v5848, %v4376
      %v6073 = vsel %vm6009, %v5849, %v4377
      %v6074 = vsel %vm6010, %v5850, %v4378
      %v6075 = vsel %vm6011, %v5851, %v4379
      %v6076 = vsel %vm6012, %v5852, %v4380
      %v6077 = vsel %vm6013, %v5853, %v4381
      %v6078 = vsel %vm6014, %v5854, %v4382
      %v6079 = vsel %vm6015, %v5855, %v4383
      %v6080 = vsel %vm6016, %v5856, %v4384
      %v6081 = vsel %vm6017, %v5857, %v4385
      %v6082 = vsel %vm6018, %v5858, %v4386
      %v6083 = vsel %vm6019, %v5859, %v4387
      %v6084 = vsel %vm6020, %v5860, %v4388
      %v6085 = vsel %vm6021, %v5861, %v4389
      %v6086 = vsel %vm5990, %v4326, %v5798
      %v6087 = vsel %vm5991, %v4327, %v5799
      %v6088 = vsel %vm5992, %v4328, %v5800
      %v6089 = vsel %vm5993, %v4329, %v5801
      %v6090 = vsel %vm5994, %v4330, %v5802
      %v6091 = vsel %vm5995, %v4331, %v5803
      %v6092 = vsel %vm5996, %v4332, %v5804
      %v6093 = vsel %vm5997, %v4333, %v5805
      %v6094 = vsel %vm5998, %v4334, %v5806
      %v6095 = vsel %vm5999, %v4335, %v5807
      %v6096 = vsel %vm6000, %v4336, %v5808
      %v6097 = vsel %vm6001, %v4337, %v5809
      %v6098 = vsel %vm6002, %v4338, %v5810
      %v6099 = vsel %vm6003, %v4339, %v5811
      %v6100 = vsel %vm6004, %v4340, %v5812
      %v6101 = vsel %vm6005, %v4341, %v5813
      %v6102 = vsel %vm6006, %v4342, %v5814
      %v6103 = vsel %vm6007, %v4343, %v5815
      %v6104 = vsel %vm6008, %v4344, %v5816
      %v6105 = vsel %vm6009, %v4345, %v5817
      %v6106 = vsel %vm6010, %v4346, %v5818
      %v6107 = vsel %vm6011, %v4347, %v5819
      %v6108 = vsel %vm6012, %v4348, %v5820
      %v6109 = vsel %vm6013, %v4349, %v5821
      %v6110 = vsel %vm6014, %v4350, %v5822
      %v6111 = vsel %vm6015, %v4351, %v5823
      %v6112 = vsel %vm6016, %v4352, %v5824
      %v6113 = vsel %vm6017, %v4353, %v5825
      %v6114 = vsel %vm6018, %v4354, %v5826
      %v6115 = vsel %vm6019, %v4355, %v5827
      %v6116 = vsel %vm6020, %v4356, %v5828
      %v6117 = vsel %vm6021, %v4357, %v5829
      %v6118 = vsel %vm5990, %v4358, %v5830
      %v6119 = vsel %vm5991, %v4359, %v5831
      %v6120 = vsel %vm5992, %v4360, %v5832
      %v6121 = vsel %vm5993, %v4361, %v5833
      %v6122 = vsel %vm5994, %v4362, %v5834
      %v6123 = vsel %vm5995, %v4363, %v5835
      %v6124 = vsel %vm5996, %v4364, %v5836
      %v6125 = vsel %vm5997, %v4365, %v5837
      %v6126 = vsel %vm5998, %v4366, %v5838
      %v6127 = vsel %vm5999, %v4367, %v5839
      %v6128 = vsel %vm6000, %v4368, %v5840
      %v6129 = vsel %vm6001, %v4369, %v5841
      %v6130 = vsel %vm6002, %v4370, %v5842
      %v6131 = vsel %vm6003, %v4371, %v5843
      %v6132 = vsel %vm6004, %v4372, %v5844
      %v6133 = vsel %vm6005, %v4373, %v5845
      %v6134 = vsel %vm6006, %v4374, %v5846
      %v6135 = vsel %vm6007, %v4375, %v5847
      %v6136 = vsel %vm6008, %v4376, %v5848
      %v6137 = vsel %vm6009, %v4377, %v5849
      %v6138 = vsel %vm6010, %v4378, %v5850
      %v6139 = vsel %vm6011, %v4379, %v5851
      %v6140 = vsel %vm6012, %v4380, %v5852
      %v6141 = vsel %vm6013, %v4381, %v5853
      %v6142 = vsel %vm6014, %v4382, %v5854
      %v6143 = vsel %vm6015, %v4383, %v5855
      %v6144 = vsel %vm6016, %v4384, %v5856
      %v6145 = vsel %vm6017, %v4385, %v5857
      %v6146 = vsel %vm6018, %v4386, %v5858
      %v6147 = vsel %vm6019, %v4387, %v5859
      %v6148 = vsel %vm6020, %v4388, %v5860
      %v6149 = vsel %vm6021, %v4389, %v5861
      %vm6150 = vcmp.lt.s32.totalorder %v6086, %v4614
      %vm6151 = vcmp.lt.s32.totalorder %v6087, %v4615
      %vm6152 = vcmp.lt.s32.totalorder %v6088, %v4616
      %vm6153 = vcmp.lt.s32.totalorder %v6089, %v4617
      %vm6154 = vcmp.lt.s32.totalorder %v6090, %v4618
      %vm6155 = vcmp.lt.s32.totalorder %v6091, %v4619
      %vm6156 = vcmp.lt.s32.totalorder %v6092, %v4620
      %vm6157 = vcmp.lt.s32.totalorder %v6093, %v4621
      %vm6158 = vcmp.lt.s32.totalorder %v6094, %v4622
      %vm6159 = vcmp.lt.s32.totalorder %v6095, %v4623
      %vm6160 = vcmp.lt.s32.totalorder %v6096, %v4624
      %vm6161 = vcmp.lt.s32.totalorder %v6097, %v4625
      %vm6162 = vcmp.lt.s32.totalorder %v6098, %v4626
      %vm6163 = vcmp.lt.s32.totalorder %v6099, %v4627
      %vm6164 = vcmp.lt.s32.totalorder %v6100, %v4628
      %vm6165 = vcmp.lt.s32.totalorder %v6101, %v4629
      %vm6166 = vcmp.lt.s32.totalorder %v6102, %v4630
      %vm6167 = vcmp.lt.s32.totalorder %v6103, %v4631
      %vm6168 = vcmp.lt.s32.totalorder %v6104, %v4632
      %vm6169 = vcmp.lt.s32.totalorder %v6105, %v4633
      %vm6170 = vcmp.lt.s32.totalorder %v6106, %v4634
      %vm6171 = vcmp.lt.s32.totalorder %v6107, %v4635
      %vm6172 = vcmp.lt.s32.totalorder %v6108, %v4636
      %vm6173 = vcmp.lt.s32.totalorder %v6109, %v4637
      %vm6174 = vcmp.lt.s32.totalorder %v6110, %v4638
      %vm6175 = vcmp.lt.s32.totalorder %v6111, %v4639
      %vm6176 = vcmp.lt.s32.totalorder %v6112, %v4640
      %vm6177 = vcmp.lt.s32.totalorder %v6113, %v4641
      %vm6178 = vcmp.lt.s32.totalorder %v6114, %v4642
      %vm6179 = vcmp.lt.s32.totalorder %v6115, %v4643
      %vm6180 = vcmp.lt.s32.totalorder %v6116, %v4644
      %vm6181 = vcmp.lt.s32.totalorder %v6117, %v4645
      %vm6182 = vcmp.eq.s32.totalorder %v6086, %v4614
      %vm6183 = vcmp.eq.s32.totalorder %v6087, %v4615
      %vm6184 = vcmp.eq.s32.totalorder %v6088, %v4616
      %vm6185 = vcmp.eq.s32.totalorder %v6089, %v4617
      %vm6186 = vcmp.eq.s32.totalorder %v6090, %v4618
      %vm6187 = vcmp.eq.s32.totalorder %v6091, %v4619
      %vm6188 = vcmp.eq.s32.totalorder %v6092, %v4620
      %vm6189 = vcmp.eq.s32.totalorder %v6093, %v4621
      %vm6190 = vcmp.eq.s32.totalorder %v6094, %v4622
      %vm6191 = vcmp.eq.s32.totalorder %v6095, %v4623
      %vm6192 = vcmp.eq.s32.totalorder %v6096, %v4624
      %vm6193 = vcmp.eq.s32.totalorder %v6097, %v4625
      %vm6194 = vcmp.eq.s32.totalorder %v6098, %v4626
      %vm6195 = vcmp.eq.s32.totalorder %v6099, %v4627
      %vm6196 = vcmp.eq.s32.totalorder %v6100, %v4628
      %vm6197 = vcmp.eq.s32.totalorder %v6101, %v4629
      %vm6198 = vcmp.eq.s32.totalorder %v6102, %v4630
      %vm6199 = vcmp.eq.s32.totalorder %v6103, %v4631
      %vm6200 = vcmp.eq.s32.totalorder %v6104, %v4632
      %vm6201 = vcmp.eq.s32.totalorder %v6105, %v4633
      %vm6202 = vcmp.eq.s32.totalorder %v6106, %v4634
      %vm6203 = vcmp.eq.s32.totalorder %v6107, %v4635
      %vm6204 = vcmp.eq.s32.totalorder %v6108, %v4636
      %vm6205 = vcmp.eq.s32.totalorder %v6109, %v4637
      %vm6206 = vcmp.eq.s32.totalorder %v6110, %v4638
      %vm6207 = vcmp.eq.s32.totalorder %v6111, %v4639
      %vm6208 = vcmp.eq.s32.totalorder %v6112, %v4640
      %vm6209 = vcmp.eq.s32.totalorder %v6113, %v4641
      %vm6210 = vcmp.eq.s32.totalorder %v6114, %v4642
      %vm6211 = vcmp.eq.s32.totalorder %v6115, %v4643
      %vm6212 = vcmp.eq.s32.totalorder %v6116, %v4644
      %vm6213 = vcmp.eq.s32.totalorder %v6117, %v4645
      %vm6214 = vcmp.lt.s32.totalorder %v6118, %v4646
      %vm6215 = vcmp.lt.s32.totalorder %v6119, %v4647
      %vm6216 = vcmp.lt.s32.totalorder %v6120, %v4648
      %vm6217 = vcmp.lt.s32.totalorder %v6121, %v4649
      %vm6218 = vcmp.lt.s32.totalorder %v6122, %v4650
      %vm6219 = vcmp.lt.s32.totalorder %v6123, %v4651
      %vm6220 = vcmp.lt.s32.totalorder %v6124, %v4652
      %vm6221 = vcmp.lt.s32.totalorder %v6125, %v4653
      %vm6222 = vcmp.lt.s32.totalorder %v6126, %v4654
      %vm6223 = vcmp.lt.s32.totalorder %v6127, %v4655
      %vm6224 = vcmp.lt.s32.totalorder %v6128, %v4656
      %vm6225 = vcmp.lt.s32.totalorder %v6129, %v4657
      %vm6226 = vcmp.lt.s32.totalorder %v6130, %v4658
      %vm6227 = vcmp.lt.s32.totalorder %v6131, %v4659
      %vm6228 = vcmp.lt.s32.totalorder %v6132, %v4660
      %vm6229 = vcmp.lt.s32.totalorder %v6133, %v4661
      %vm6230 = vcmp.lt.s32.totalorder %v6134, %v4662
      %vm6231 = vcmp.lt.s32.totalorder %v6135, %v4663
      %vm6232 = vcmp.lt.s32.totalorder %v6136, %v4664
      %vm6233 = vcmp.lt.s32.totalorder %v6137, %v4665
      %vm6234 = vcmp.lt.s32.totalorder %v6138, %v4666
      %vm6235 = vcmp.lt.s32.totalorder %v6139, %v4667
      %vm6236 = vcmp.lt.s32.totalorder %v6140, %v4668
      %vm6237 = vcmp.lt.s32.totalorder %v6141, %v4669
      %vm6238 = vcmp.lt.s32.totalorder %v6142, %v4670
      %vm6239 = vcmp.lt.s32.totalorder %v6143, %v4671
      %vm6240 = vcmp.lt.s32.totalorder %v6144, %v4672
      %vm6241 = vcmp.lt.s32.totalorder %v6145, %v4673
      %vm6242 = vcmp.lt.s32.totalorder %v6146, %v4674
      %vm6243 = vcmp.lt.s32.totalorder %v6147, %v4675
      %vm6244 = vcmp.lt.s32.totalorder %v6148, %v4676
      %vm6245 = vcmp.lt.s32.totalorder %v6149, %v4677
      %vm6246 = vmand %vm6182, %vm6214
      %vm6247 = vmand %vm6183, %vm6215
      %vm6248 = vmand %vm6184, %vm6216
      %vm6249 = vmand %vm6185, %vm6217
      %vm6250 = vmand %vm6186, %vm6218
      %vm6251 = vmand %vm6187, %vm6219
      %vm6252 = vmand %vm6188, %vm6220
      %vm6253 = vmand %vm6189, %vm6221
      %vm6254 = vmand %vm6190, %vm6222
      %vm6255 = vmand %vm6191, %vm6223
      %vm6256 = vmand %vm6192, %vm6224
      %vm6257 = vmand %vm6193, %vm6225
      %vm6258 = vmand %vm6194, %vm6226
      %vm6259 = vmand %vm6195, %vm6227
      %vm6260 = vmand %vm6196, %vm6228
      %vm6261 = vmand %vm6197, %vm6229
      %vm6262 = vmand %vm6198, %vm6230
      %vm6263 = vmand %vm6199, %vm6231
      %vm6264 = vmand %vm6200, %vm6232
      %vm6265 = vmand %vm6201, %vm6233
      %vm6266 = vmand %vm6202, %vm6234
      %vm6267 = vmand %vm6203, %vm6235
      %vm6268 = vmand %vm6204, %vm6236
      %vm6269 = vmand %vm6205, %vm6237
      %vm6270 = vmand %vm6206, %vm6238
      %vm6271 = vmand %vm6207, %vm6239
      %vm6272 = vmand %vm6208, %vm6240
      %vm6273 = vmand %vm6209, %vm6241
      %vm6274 = vmand %vm6210, %vm6242
      %vm6275 = vmand %vm6211, %vm6243
      %vm6276 = vmand %vm6212, %vm6244
      %vm6277 = vmand %vm6213, %vm6245
      %vm6278 = vmor %vm6150, %vm6246
      %vm6279 = vmor %vm6151, %vm6247
      %vm6280 = vmor %vm6152, %vm6248
      %vm6281 = vmor %vm6153, %vm6249
      %vm6282 = vmor %vm6154, %vm6250
      %vm6283 = vmor %vm6155, %vm6251
      %vm6284 = vmor %vm6156, %vm6252
      %vm6285 = vmor %vm6157, %vm6253
      %vm6286 = vmor %vm6158, %vm6254
      %vm6287 = vmor %vm6159, %vm6255
      %vm6288 = vmor %vm6160, %vm6256
      %vm6289 = vmor %vm6161, %vm6257
      %vm6290 = vmor %vm6162, %vm6258
      %vm6291 = vmor %vm6163, %vm6259
      %vm6292 = vmor %vm6164, %vm6260
      %vm6293 = vmor %vm6165, %vm6261
      %vm6294 = vmor %vm6166, %vm6262
      %vm6295 = vmor %vm6167, %vm6263
      %vm6296 = vmor %vm6168, %vm6264
      %vm6297 = vmor %vm6169, %vm6265
      %vm6298 = vmor %vm6170, %vm6266
      %vm6299 = vmor %vm6171, %vm6267
      %vm6300 = vmor %vm6172, %vm6268
      %vm6301 = vmor %vm6173, %vm6269
      %vm6302 = vmor %vm6174, %vm6270
      %vm6303 = vmor %vm6175, %vm6271
      %vm6304 = vmor %vm6176, %vm6272
      %vm6305 = vmor %vm6177, %vm6273
      %vm6306 = vmor %vm6178, %vm6274
      %vm6307 = vmor %vm6179, %vm6275
      %vm6308 = vmor %vm6180, %vm6276
      %vm6309 = vmor %vm6181, %vm6277
      %v6310 = vsel %vm6278, %v6086, %v4614
      %v6311 = vsel %vm6279, %v6087, %v4615
      %v6312 = vsel %vm6280, %v6088, %v4616
      %v6313 = vsel %vm6281, %v6089, %v4617
      %v6314 = vsel %vm6282, %v6090, %v4618
      %v6315 = vsel %vm6283, %v6091, %v4619
      %v6316 = vsel %vm6284, %v6092, %v4620
      %v6317 = vsel %vm6285, %v6093, %v4621
      %v6318 = vsel %vm6286, %v6094, %v4622
      %v6319 = vsel %vm6287, %v6095, %v4623
      %v6320 = vsel %vm6288, %v6096, %v4624
      %v6321 = vsel %vm6289, %v6097, %v4625
      %v6322 = vsel %vm6290, %v6098, %v4626
      %v6323 = vsel %vm6291, %v6099, %v4627
      %v6324 = vsel %vm6292, %v6100, %v4628
      %v6325 = vsel %vm6293, %v6101, %v4629
      %v6326 = vsel %vm6294, %v6102, %v4630
      %v6327 = vsel %vm6295, %v6103, %v4631
      %v6328 = vsel %vm6296, %v6104, %v4632
      %v6329 = vsel %vm6297, %v6105, %v4633
      %v6330 = vsel %vm6298, %v6106, %v4634
      %v6331 = vsel %vm6299, %v6107, %v4635
      %v6332 = vsel %vm6300, %v6108, %v4636
      %v6333 = vsel %vm6301, %v6109, %v4637
      %v6334 = vsel %vm6302, %v6110, %v4638
      %v6335 = vsel %vm6303, %v6111, %v4639
      %v6336 = vsel %vm6304, %v6112, %v4640
      %v6337 = vsel %vm6305, %v6113, %v4641
      %v6338 = vsel %vm6306, %v6114, %v4642
      %v6339 = vsel %vm6307, %v6115, %v4643
      %v6340 = vsel %vm6308, %v6116, %v4644
      %v6341 = vsel %vm6309, %v6117, %v4645
      %v6342 = vsel %vm6278, %v6118, %v4646
      %v6343 = vsel %vm6279, %v6119, %v4647
      %v6344 = vsel %vm6280, %v6120, %v4648
      %v6345 = vsel %vm6281, %v6121, %v4649
      %v6346 = vsel %vm6282, %v6122, %v4650
      %v6347 = vsel %vm6283, %v6123, %v4651
      %v6348 = vsel %vm6284, %v6124, %v4652
      %v6349 = vsel %vm6285, %v6125, %v4653
      %v6350 = vsel %vm6286, %v6126, %v4654
      %v6351 = vsel %vm6287, %v6127, %v4655
      %v6352 = vsel %vm6288, %v6128, %v4656
      %v6353 = vsel %vm6289, %v6129, %v4657
      %v6354 = vsel %vm6290, %v6130, %v4658
      %v6355 = vsel %vm6291, %v6131, %v4659
      %v6356 = vsel %vm6292, %v6132, %v4660
      %v6357 = vsel %vm6293, %v6133, %v4661
      %v6358 = vsel %vm6294, %v6134, %v4662
      %v6359 = vsel %vm6295, %v6135, %v4663
      %v6360 = vsel %vm6296, %v6136, %v4664
      %v6361 = vsel %vm6297, %v6137, %v4665
      %v6362 = vsel %vm6298, %v6138, %v4666
      %v6363 = vsel %vm6299, %v6139, %v4667
      %v6364 = vsel %vm6300, %v6140, %v4668
      %v6365 = vsel %vm6301, %v6141, %v4669
      %v6366 = vsel %vm6302, %v6142, %v4670
      %v6367 = vsel %vm6303, %v6143, %v4671
      %v6368 = vsel %vm6304, %v6144, %v4672
      %v6369 = vsel %vm6305, %v6145, %v4673
      %v6370 = vsel %vm6306, %v6146, %v4674
      %v6371 = vsel %vm6307, %v6147, %v4675
      %v6372 = vsel %vm6308, %v6148, %v4676
      %v6373 = vsel %vm6309, %v6149, %v4677
      %v6374 = vsel %vm6278, %v4614, %v6086
      %v6375 = vsel %vm6279, %v4615, %v6087
      %v6376 = vsel %vm6280, %v4616, %v6088
      %v6377 = vsel %vm6281, %v4617, %v6089
      %v6378 = vsel %vm6282, %v4618, %v6090
      %v6379 = vsel %vm6283, %v4619, %v6091
      %v6380 = vsel %vm6284, %v4620, %v6092
      %v6381 = vsel %vm6285, %v4621, %v6093
      %v6382 = vsel %vm6286, %v4622, %v6094
      %v6383 = vsel %vm6287, %v4623, %v6095
      %v6384 = vsel %vm6288, %v4624, %v6096
      %v6385 = vsel %vm6289, %v4625, %v6097
      %v6386 = vsel %vm6290, %v4626, %v6098
      %v6387 = vsel %vm6291, %v4627, %v6099
      %v6388 = vsel %vm6292, %v4628, %v6100
      %v6389 = vsel %vm6293, %v4629, %v6101
      %v6390 = vsel %vm6294, %v4630, %v6102
      %v6391 = vsel %vm6295, %v4631, %v6103
      %v6392 = vsel %vm6296, %v4632, %v6104
      %v6393 = vsel %vm6297, %v4633, %v6105
      %v6394 = vsel %vm6298, %v4634, %v6106
      %v6395 = vsel %vm6299, %v4635, %v6107
      %v6396 = vsel %vm6300, %v4636, %v6108
      %v6397 = vsel %vm6301, %v4637, %v6109
      %v6398 = vsel %vm6302, %v4638, %v6110
      %v6399 = vsel %vm6303, %v4639, %v6111
      %v6400 = vsel %vm6304, %v4640, %v6112
      %v6401 = vsel %vm6305, %v4641, %v6113
      %v6402 = vsel %vm6306, %v4642, %v6114
      %v6403 = vsel %vm6307, %v4643, %v6115
      %v6404 = vsel %vm6308, %v4644, %v6116
      %v6405 = vsel %vm6309, %v4645, %v6117
      %v6406 = vsel %vm6278, %v4646, %v6118
      %v6407 = vsel %vm6279, %v4647, %v6119
      %v6408 = vsel %vm6280, %v4648, %v6120
      %v6409 = vsel %vm6281, %v4649, %v6121
      %v6410 = vsel %vm6282, %v4650, %v6122
      %v6411 = vsel %vm6283, %v4651, %v6123
      %v6412 = vsel %vm6284, %v4652, %v6124
      %v6413 = vsel %vm6285, %v4653, %v6125
      %v6414 = vsel %vm6286, %v4654, %v6126
      %v6415 = vsel %vm6287, %v4655, %v6127
      %v6416 = vsel %vm6288, %v4656, %v6128
      %v6417 = vsel %vm6289, %v4657, %v6129
      %v6418 = vsel %vm6290, %v4658, %v6130
      %v6419 = vsel %vm6291, %v4659, %v6131
      %v6420 = vsel %vm6292, %v4660, %v6132
      %v6421 = vsel %vm6293, %v4661, %v6133
      %v6422 = vsel %vm6294, %v4662, %v6134
      %v6423 = vsel %vm6295, %v4663, %v6135
      %v6424 = vsel %vm6296, %v4664, %v6136
      %v6425 = vsel %vm6297, %v4665, %v6137
      %v6426 = vsel %vm6298, %v4666, %v6138
      %v6427 = vsel %vm6299, %v4667, %v6139
      %v6428 = vsel %vm6300, %v4668, %v6140
      %v6429 = vsel %vm6301, %v4669, %v6141
      %v6430 = vsel %vm6302, %v4670, %v6142
      %v6431 = vsel %vm6303, %v4671, %v6143
      %v6432 = vsel %vm6304, %v4672, %v6144
      %v6433 = vsel %vm6305, %v4673, %v6145
      %v6434 = vsel %vm6306, %v4674, %v6146
      %v6435 = vsel %vm6307, %v4675, %v6147
      %v6436 = vsel %vm6308, %v4676, %v6148
      %v6437 = vsel %vm6309, %v4677, %v6149
      %vm6438 = vcmp.lt.s32.totalorder %v6374, %v4902
      %vm6439 = vcmp.lt.s32.totalorder %v6375, %v4903
      %vm6440 = vcmp.lt.s32.totalorder %v6376, %v4904
      %vm6441 = vcmp.lt.s32.totalorder %v6377, %v4905
      %vm6442 = vcmp.lt.s32.totalorder %v6378, %v4906
      %vm6443 = vcmp.lt.s32.totalorder %v6379, %v4907
      %vm6444 = vcmp.lt.s32.totalorder %v6380, %v4908
      %vm6445 = vcmp.lt.s32.totalorder %v6381, %v4909
      %vm6446 = vcmp.lt.s32.totalorder %v6382, %v4910
      %vm6447 = vcmp.lt.s32.totalorder %v6383, %v4911
      %vm6448 = vcmp.lt.s32.totalorder %v6384, %v4912
      %vm6449 = vcmp.lt.s32.totalorder %v6385, %v4913
      %vm6450 = vcmp.lt.s32.totalorder %v6386, %v4914
      %vm6451 = vcmp.lt.s32.totalorder %v6387, %v4915
      %vm6452 = vcmp.lt.s32.totalorder %v6388, %v4916
      %vm6453 = vcmp.lt.s32.totalorder %v6389, %v4917
      %vm6454 = vcmp.lt.s32.totalorder %v6390, %v4918
      %vm6455 = vcmp.lt.s32.totalorder %v6391, %v4919
      %vm6456 = vcmp.lt.s32.totalorder %v6392, %v4920
      %vm6457 = vcmp.lt.s32.totalorder %v6393, %v4921
      %vm6458 = vcmp.lt.s32.totalorder %v6394, %v4922
      %vm6459 = vcmp.lt.s32.totalorder %v6395, %v4923
      %vm6460 = vcmp.lt.s32.totalorder %v6396, %v4924
      %vm6461 = vcmp.lt.s32.totalorder %v6397, %v4925
      %vm6462 = vcmp.lt.s32.totalorder %v6398, %v4926
      %vm6463 = vcmp.lt.s32.totalorder %v6399, %v4927
      %vm6464 = vcmp.lt.s32.totalorder %v6400, %v4928
      %vm6465 = vcmp.lt.s32.totalorder %v6401, %v4929
      %vm6466 = vcmp.lt.s32.totalorder %v6402, %v4930
      %vm6467 = vcmp.lt.s32.totalorder %v6403, %v4931
      %vm6468 = vcmp.lt.s32.totalorder %v6404, %v4932
      %vm6469 = vcmp.lt.s32.totalorder %v6405, %v4933
      %vm6470 = vcmp.eq.s32.totalorder %v6374, %v4902
      %vm6471 = vcmp.eq.s32.totalorder %v6375, %v4903
      %vm6472 = vcmp.eq.s32.totalorder %v6376, %v4904
      %vm6473 = vcmp.eq.s32.totalorder %v6377, %v4905
      %vm6474 = vcmp.eq.s32.totalorder %v6378, %v4906
      %vm6475 = vcmp.eq.s32.totalorder %v6379, %v4907
      %vm6476 = vcmp.eq.s32.totalorder %v6380, %v4908
      %vm6477 = vcmp.eq.s32.totalorder %v6381, %v4909
      %vm6478 = vcmp.eq.s32.totalorder %v6382, %v4910
      %vm6479 = vcmp.eq.s32.totalorder %v6383, %v4911
      %vm6480 = vcmp.eq.s32.totalorder %v6384, %v4912
      %vm6481 = vcmp.eq.s32.totalorder %v6385, %v4913
      %vm6482 = vcmp.eq.s32.totalorder %v6386, %v4914
      %vm6483 = vcmp.eq.s32.totalorder %v6387, %v4915
      %vm6484 = vcmp.eq.s32.totalorder %v6388, %v4916
      %vm6485 = vcmp.eq.s32.totalorder %v6389, %v4917
      %vm6486 = vcmp.eq.s32.totalorder %v6390, %v4918
      %vm6487 = vcmp.eq.s32.totalorder %v6391, %v4919
      %vm6488 = vcmp.eq.s32.totalorder %v6392, %v4920
      %vm6489 = vcmp.eq.s32.totalorder %v6393, %v4921
      %vm6490 = vcmp.eq.s32.totalorder %v6394, %v4922
      %vm6491 = vcmp.eq.s32.totalorder %v6395, %v4923
      %vm6492 = vcmp.eq.s32.totalorder %v6396, %v4924
      %vm6493 = vcmp.eq.s32.totalorder %v6397, %v4925
      %vm6494 = vcmp.eq.s32.totalorder %v6398, %v4926
      %vm6495 = vcmp.eq.s32.totalorder %v6399, %v4927
      %vm6496 = vcmp.eq.s32.totalorder %v6400, %v4928
      %vm6497 = vcmp.eq.s32.totalorder %v6401, %v4929
      %vm6498 = vcmp.eq.s32.totalorder %v6402, %v4930
      %vm6499 = vcmp.eq.s32.totalorder %v6403, %v4931
      %vm6500 = vcmp.eq.s32.totalorder %v6404, %v4932
      %vm6501 = vcmp.eq.s32.totalorder %v6405, %v4933
      %vm6502 = vcmp.lt.s32.totalorder %v6406, %v4934
      %vm6503 = vcmp.lt.s32.totalorder %v6407, %v4935
      %vm6504 = vcmp.lt.s32.totalorder %v6408, %v4936
      %vm6505 = vcmp.lt.s32.totalorder %v6409, %v4937
      %vm6506 = vcmp.lt.s32.totalorder %v6410, %v4938
      %vm6507 = vcmp.lt.s32.totalorder %v6411, %v4939
      %vm6508 = vcmp.lt.s32.totalorder %v6412, %v4940
      %vm6509 = vcmp.lt.s32.totalorder %v6413, %v4941
      %vm6510 = vcmp.lt.s32.totalorder %v6414, %v4942
      %vm6511 = vcmp.lt.s32.totalorder %v6415, %v4943
      %vm6512 = vcmp.lt.s32.totalorder %v6416, %v4944
      %vm6513 = vcmp.lt.s32.totalorder %v6417, %v4945
      %vm6514 = vcmp.lt.s32.totalorder %v6418, %v4946
      %vm6515 = vcmp.lt.s32.totalorder %v6419, %v4947
      %vm6516 = vcmp.lt.s32.totalorder %v6420, %v4948
      %vm6517 = vcmp.lt.s32.totalorder %v6421, %v4949
      %vm6518 = vcmp.lt.s32.totalorder %v6422, %v4950
      %vm6519 = vcmp.lt.s32.totalorder %v6423, %v4951
      %vm6520 = vcmp.lt.s32.totalorder %v6424, %v4952
      %vm6521 = vcmp.lt.s32.totalorder %v6425, %v4953
      %vm6522 = vcmp.lt.s32.totalorder %v6426, %v4954
      %vm6523 = vcmp.lt.s32.totalorder %v6427, %v4955
      %vm6524 = vcmp.lt.s32.totalorder %v6428, %v4956
      %vm6525 = vcmp.lt.s32.totalorder %v6429, %v4957
      %vm6526 = vcmp.lt.s32.totalorder %v6430, %v4958
      %vm6527 = vcmp.lt.s32.totalorder %v6431, %v4959
      %vm6528 = vcmp.lt.s32.totalorder %v6432, %v4960
      %vm6529 = vcmp.lt.s32.totalorder %v6433, %v4961
      %vm6530 = vcmp.lt.s32.totalorder %v6434, %v4962
      %vm6531 = vcmp.lt.s32.totalorder %v6435, %v4963
      %vm6532 = vcmp.lt.s32.totalorder %v6436, %v4964
      %vm6533 = vcmp.lt.s32.totalorder %v6437, %v4965
      %vm6534 = vmand %vm6470, %vm6502
      %vm6535 = vmand %vm6471, %vm6503
      %vm6536 = vmand %vm6472, %vm6504
      %vm6537 = vmand %vm6473, %vm6505
      %vm6538 = vmand %vm6474, %vm6506
      %vm6539 = vmand %vm6475, %vm6507
      %vm6540 = vmand %vm6476, %vm6508
      %vm6541 = vmand %vm6477, %vm6509
      %vm6542 = vmand %vm6478, %vm6510
      %vm6543 = vmand %vm6479, %vm6511
      %vm6544 = vmand %vm6480, %vm6512
      %vm6545 = vmand %vm6481, %vm6513
      %vm6546 = vmand %vm6482, %vm6514
      %vm6547 = vmand %vm6483, %vm6515
      %vm6548 = vmand %vm6484, %vm6516
      %vm6549 = vmand %vm6485, %vm6517
      %vm6550 = vmand %vm6486, %vm6518
      %vm6551 = vmand %vm6487, %vm6519
      %vm6552 = vmand %vm6488, %vm6520
      %vm6553 = vmand %vm6489, %vm6521
      %vm6554 = vmand %vm6490, %vm6522
      %vm6555 = vmand %vm6491, %vm6523
      %vm6556 = vmand %vm6492, %vm6524
      %vm6557 = vmand %vm6493, %vm6525
      %vm6558 = vmand %vm6494, %vm6526
      %vm6559 = vmand %vm6495, %vm6527
      %vm6560 = vmand %vm6496, %vm6528
      %vm6561 = vmand %vm6497, %vm6529
      %vm6562 = vmand %vm6498, %vm6530
      %vm6563 = vmand %vm6499, %vm6531
      %vm6564 = vmand %vm6500, %vm6532
      %vm6565 = vmand %vm6501, %vm6533
      %vm6566 = vmor %vm6438, %vm6534
      %vm6567 = vmor %vm6439, %vm6535
      %vm6568 = vmor %vm6440, %vm6536
      %vm6569 = vmor %vm6441, %vm6537
      %vm6570 = vmor %vm6442, %vm6538
      %vm6571 = vmor %vm6443, %vm6539
      %vm6572 = vmor %vm6444, %vm6540
      %vm6573 = vmor %vm6445, %vm6541
      %vm6574 = vmor %vm6446, %vm6542
      %vm6575 = vmor %vm6447, %vm6543
      %vm6576 = vmor %vm6448, %vm6544
      %vm6577 = vmor %vm6449, %vm6545
      %vm6578 = vmor %vm6450, %vm6546
      %vm6579 = vmor %vm6451, %vm6547
      %vm6580 = vmor %vm6452, %vm6548
      %vm6581 = vmor %vm6453, %vm6549
      %vm6582 = vmor %vm6454, %vm6550
      %vm6583 = vmor %vm6455, %vm6551
      %vm6584 = vmor %vm6456, %vm6552
      %vm6585 = vmor %vm6457, %vm6553
      %vm6586 = vmor %vm6458, %vm6554
      %vm6587 = vmor %vm6459, %vm6555
      %vm6588 = vmor %vm6460, %vm6556
      %vm6589 = vmor %vm6461, %vm6557
      %vm6590 = vmor %vm6462, %vm6558
      %vm6591 = vmor %vm6463, %vm6559
      %vm6592 = vmor %vm6464, %vm6560
      %vm6593 = vmor %vm6465, %vm6561
      %vm6594 = vmor %vm6466, %vm6562
      %vm6595 = vmor %vm6467, %vm6563
      %vm6596 = vmor %vm6468, %vm6564
      %vm6597 = vmor %vm6469, %vm6565
      %v6598 = vsel %vm6566, %v6374, %v4902
      %v6599 = vsel %vm6567, %v6375, %v4903
      %v6600 = vsel %vm6568, %v6376, %v4904
      %v6601 = vsel %vm6569, %v6377, %v4905
      %v6602 = vsel %vm6570, %v6378, %v4906
      %v6603 = vsel %vm6571, %v6379, %v4907
      %v6604 = vsel %vm6572, %v6380, %v4908
      %v6605 = vsel %vm6573, %v6381, %v4909
      %v6606 = vsel %vm6574, %v6382, %v4910
      %v6607 = vsel %vm6575, %v6383, %v4911
      %v6608 = vsel %vm6576, %v6384, %v4912
      %v6609 = vsel %vm6577, %v6385, %v4913
      %v6610 = vsel %vm6578, %v6386, %v4914
      %v6611 = vsel %vm6579, %v6387, %v4915
      %v6612 = vsel %vm6580, %v6388, %v4916
      %v6613 = vsel %vm6581, %v6389, %v4917
      %v6614 = vsel %vm6582, %v6390, %v4918
      %v6615 = vsel %vm6583, %v6391, %v4919
      %v6616 = vsel %vm6584, %v6392, %v4920
      %v6617 = vsel %vm6585, %v6393, %v4921
      %v6618 = vsel %vm6586, %v6394, %v4922
      %v6619 = vsel %vm6587, %v6395, %v4923
      %v6620 = vsel %vm6588, %v6396, %v4924
      %v6621 = vsel %vm6589, %v6397, %v4925
      %v6622 = vsel %vm6590, %v6398, %v4926
      %v6623 = vsel %vm6591, %v6399, %v4927
      %v6624 = vsel %vm6592, %v6400, %v4928
      %v6625 = vsel %vm6593, %v6401, %v4929
      %v6626 = vsel %vm6594, %v6402, %v4930
      %v6627 = vsel %vm6595, %v6403, %v4931
      %v6628 = vsel %vm6596, %v6404, %v4932
      %v6629 = vsel %vm6597, %v6405, %v4933
      %v6630 = vsel %vm6566, %v6406, %v4934
      %v6631 = vsel %vm6567, %v6407, %v4935
      %v6632 = vsel %vm6568, %v6408, %v4936
      %v6633 = vsel %vm6569, %v6409, %v4937
      %v6634 = vsel %vm6570, %v6410, %v4938
      %v6635 = vsel %vm6571, %v6411, %v4939
      %v6636 = vsel %vm6572, %v6412, %v4940
      %v6637 = vsel %vm6573, %v6413, %v4941
      %v6638 = vsel %vm6574, %v6414, %v4942
      %v6639 = vsel %vm6575, %v6415, %v4943
      %v6640 = vsel %vm6576, %v6416, %v4944
      %v6641 = vsel %vm6577, %v6417, %v4945
      %v6642 = vsel %vm6578, %v6418, %v4946
      %v6643 = vsel %vm6579, %v6419, %v4947
      %v6644 = vsel %vm6580, %v6420, %v4948
      %v6645 = vsel %vm6581, %v6421, %v4949
      %v6646 = vsel %vm6582, %v6422, %v4950
      %v6647 = vsel %vm6583, %v6423, %v4951
      %v6648 = vsel %vm6584, %v6424, %v4952
      %v6649 = vsel %vm6585, %v6425, %v4953
      %v6650 = vsel %vm6586, %v6426, %v4954
      %v6651 = vsel %vm6587, %v6427, %v4955
      %v6652 = vsel %vm6588, %v6428, %v4956
      %v6653 = vsel %vm6589, %v6429, %v4957
      %v6654 = vsel %vm6590, %v6430, %v4958
      %v6655 = vsel %vm6591, %v6431, %v4959
      %v6656 = vsel %vm6592, %v6432, %v4960
      %v6657 = vsel %vm6593, %v6433, %v4961
      %v6658 = vsel %vm6594, %v6434, %v4962
      %v6659 = vsel %vm6595, %v6435, %v4963
      %v6660 = vsel %vm6596, %v6436, %v4964
      %v6661 = vsel %vm6597, %v6437, %v4965
      %v6662 = vand.u32 %v5542, 65535
      %v6663 = vshra.s32 %v5542, 16
      %v6664 = vcvt.s32.f32 %v6662
      %v6665 = vcvt.s32.f32 %v6663
      %6666 = vmin.xlane.f32.xlu0 %v6665
      %v6667 = vpop.xlane.xlu0 %6666
      %vm6668 = vcmp.eq.f32.partialorder %v6665, %v6667
      %v6669 = vsel %vm6668, %v6664, inf
      %6670 = vmin.xlane.f32.xlu0 %v6669
      %v6671 = vpop.xlane.xlu0 %6670
      %v6672 = vcvt.f32.s32 %v6671
      %v6673 = vcvt.f32.s32 %v6667
      %v6674 = vshll.u32 %v6673, 16
      %v6675 = vadd.s32 %v6674, %v6672
      %v6676 = vand.u32 %v5543, 65535
      %v6677 = vshra.s32 %v5543, 16
      %v6678 = vcvt.s32.f32 %v6676
      %v6679 = vcvt.s32.f32 %v6677
      %6680 = vmin.xlane.f32.xlu0 %v6679
      %v6681 = vpop.xlane.xlu0 %6680
      %vm6682 = vcmp.eq.f32.partialorder %v6679, %v6681
      %v6683 = vsel %vm6682, %v6678, inf
      %6684 = vmin.xlane.f32.xlu0 %v6683
      %v6685 = vpop.xlane.xlu0 %6684
      %v6686 = vcvt.f32.s32 %v6685
      %v6687 = vcvt.f32.s32 %v6681
      %v6688 = vshll.u32 %v6687, 16
      %v6689 = vadd.s32 %v6688, %v6686
      %v6690 = vand.u32 %v5544, 65535
      %v6691 = vshra.s32 %v5544, 16
      %v6692 = vcvt.s32.f32 %v6690
      %v6693 = vcvt.s32.f32 %v6691
      %6694 = vmin.xlane.f32.xlu0 %v6693
      %v6695 = vpop.xlane.xlu0 %6694
      %vm6696 = vcmp.eq.f32.partialorder %v6693, %v6695
      %v6697 = vsel %vm6696, %v6692, inf
      %6698 = vmin.xlane.f32.xlu0 %v6697
      %v6699 = vpop.xlane.xlu0 %6698
      %v6700 = vcvt.f32.s32 %v6699
      %v6701 = vcvt.f32.s32 %v6695
      %v6702 = vshll.u32 %v6701, 16
      %v6703 = vadd.s32 %v6702, %v6700
      %v6704 = vand.u32 %v5545, 65535
      %v6705 = vshra.s32 %v5545, 16
      %v6706 = vcvt.s32.f32 %v6704
      %v6707 = vcvt.s32.f32 %v6705
      %6708 = vmin.xlane.f32.xlu0 %v6707
      %v6709 = vpop.xlane.xlu0 %6708
      %vm6710 = vcmp.eq.f32.partialorder %v6707, %v6709
      %v6711 = vsel %vm6710, %v6706, inf
      %6712 = vmin.xlane.f32.xlu0 %v6711
      %v6713 = vpop.xlane.xlu0 %6712
      %v6714 = vcvt.f32.s32 %v6713
      %v6715 = vcvt.f32.s32 %v6709
      %v6716 = vshll.u32 %v6715, 16
      %v6717 = vadd.s32 %v6716, %v6714
      %v6718 = vand.u32 %v5546, 65535
      %v6719 = vshra.s32 %v5546, 16
      %v6720 = vcvt.s32.f32 %v6718
      %v6721 = vcvt.s32.f32 %v6719
      %6722 = vmin.xlane.f32.xlu0 %v6721
      %v6723 = vpop.xlane.xlu0 %6722
      %vm6724 = vcmp.eq.f32.partialorder %v6721, %v6723
      %v6725 = vsel %vm6724, %v6720, inf
      %6726 = vmin.xlane.f32.xlu0 %v6725
      %v6727 = vpop.xlane.xlu0 %6726
      %v6728 = vcvt.f32.s32 %v6727
      %v6729 = vcvt.f32.s32 %v6723
      %v6730 = vshll.u32 %v6729, 16
      %v6731 = vadd.s32 %v6730, %v6728
      %v6732 = vand.u32 %v5547, 65535
      %v6733 = vshra.s32 %v5547, 16
      %v6734 = vcvt.s32.f32 %v6732
      %v6735 = vcvt.s32.f32 %v6733
      %6736 = vmin.xlane.f32.xlu0 %v6735
      %v6737 = vpop.xlane.xlu0 %6736
      %vm6738 = vcmp.eq.f32.partialorder %v6735, %v6737
      %v6739 = vsel %vm6738, %v6734, inf
      %6740 = vmin.xlane.f32.xlu0 %v6739
      %v6741 = vpop.xlane.xlu0 %6740
      %v6742 = vcvt.f32.s32 %v6741
      %v6743 = vcvt.f32.s32 %v6737
      %v6744 = vshll.u32 %v6743, 16
      %v6745 = vadd.s32 %v6744, %v6742
      %v6746 = vand.u32 %v5548, 65535
      %v6747 = vshra.s32 %v5548, 16
      %v6748 = vcvt.s32.f32 %v6746
      %v6749 = vcvt.s32.f32 %v6747
      %6750 = vmin.xlane.f32.xlu0 %v6749
      %v6751 = vpop.xlane.xlu0 %6750
      %vm6752 = vcmp.eq.f32.partialorder %v6749, %v6751
      %v6753 = vsel %vm6752, %v6748, inf
      %6754 = vmin.xlane.f32.xlu0 %v6753
      %v6755 = vpop.xlane.xlu0 %6754
      %v6756 = vcvt.f32.s32 %v6755
      %v6757 = vcvt.f32.s32 %v6751
      %v6758 = vshll.u32 %v6757, 16
      %v6759 = vadd.s32 %v6758, %v6756
      %v6760 = vand.u32 %v5549, 65535
      %v6761 = vshra.s32 %v5549, 16
      %v6762 = vcvt.s32.f32 %v6760
      %v6763 = vcvt.s32.f32 %v6761
      %6764 = vmin.xlane.f32.xlu0 %v6763
      %v6765 = vpop.xlane.xlu0 %6764
      %vm6766 = vcmp.eq.f32.partialorder %v6763, %v6765
      %v6767 = vsel %vm6766, %v6762, inf
      %6768 = vmin.xlane.f32.xlu0 %v6767
      %v6769 = vpop.xlane.xlu0 %6768
      %v6770 = vcvt.f32.s32 %v6769
      %v6771 = vcvt.f32.s32 %v6765
      %v6772 = vshll.u32 %v6771, 16
      %v6773 = vadd.s32 %v6772, %v6770
      %v6774 = vand.u32 %v5550, 65535
      %v6775 = vshra.s32 %v5550, 16
      %v6776 = vcvt.s32.f32 %v6774
      %v6777 = vcvt.s32.f32 %v6775
      %6778 = vmin.xlane.f32.xlu0 %v6777
      %v6779 = vpop.xlane.xlu0 %6778
      %vm6780 = vcmp.eq.f32.partialorder %v6777, %v6779
      %v6781 = vsel %vm6780, %v6776, inf
      %6782 = vmin.xlane.f32.xlu0 %v6781
      %v6783 = vpop.xlane.xlu0 %6782
      %v6784 = vcvt.f32.s32 %v6783
      %v6785 = vcvt.f32.s32 %v6779
      %v6786 = vshll.u32 %v6785, 16
      %v6787 = vadd.s32 %v6786, %v6784
      %v6788 = vand.u32 %v5551, 65535
      %v6789 = vshra.s32 %v5551, 16
      %v6790 = vcvt.s32.f32 %v6788
      %v6791 = vcvt.s32.f32 %v6789
      %6792 = vmin.xlane.f32.xlu0 %v6791
      %v6793 = vpop.xlane.xlu0 %6792
      %vm6794 = vcmp.eq.f32.partialorder %v6791, %v6793
      %v6795 = vsel %vm6794, %v6790, inf
      %6796 = vmin.xlane.f32.xlu0 %v6795
      %v6797 = vpop.xlane.xlu0 %6796
      %v6798 = vcvt.f32.s32 %v6797
      %v6799 = vcvt.f32.s32 %v6793
      %v6800 = vshll.u32 %v6799, 16
      %v6801 = vadd.s32 %v6800, %v6798
      %v6802 = vand.u32 %v5552, 65535
      %v6803 = vshra.s32 %v5552, 16
      %v6804 = vcvt.s32.f32 %v6802
      %v6805 = vcvt.s32.f32 %v6803
      %6806 = vmin.xlane.f32.xlu0 %v6805
      %v6807 = vpop.xlane.xlu0 %6806
      %vm6808 = vcmp.eq.f32.partialorder %v6805, %v6807
      %v6809 = vsel %vm6808, %v6804, inf
      %6810 = vmin.xlane.f32.xlu0 %v6809
      %v6811 = vpop.xlane.xlu0 %6810
      %v6812 = vcvt.f32.s32 %v6811
      %v6813 = vcvt.f32.s32 %v6807
      %v6814 = vshll.u32 %v6813, 16
      %v6815 = vadd.s32 %v6814, %v6812
      %v6816 = vand.u32 %v5553, 65535
      %v6817 = vshra.s32 %v5553, 16
      %v6818 = vcvt.s32.f32 %v6816
      %v6819 = vcvt.s32.f32 %v6817
      %6820 = vmin.xlane.f32.xlu0 %v6819
      %v6821 = vpop.xlane.xlu0 %6820
      %vm6822 = vcmp.eq.f32.partialorder %v6819, %v6821
      %v6823 = vsel %vm6822, %v6818, inf
      %6824 = vmin.xlane.f32.xlu0 %v6823
      %v6825 = vpop.xlane.xlu0 %6824
      %v6826 = vcvt.f32.s32 %v6825
      %v6827 = vcvt.f32.s32 %v6821
      %v6828 = vshll.u32 %v6827, 16
      %v6829 = vadd.s32 %v6828, %v6826
      %v6830 = vand.u32 %v5554, 65535
      %v6831 = vshra.s32 %v5554, 16
      %v6832 = vcvt.s32.f32 %v6830
      %v6833 = vcvt.s32.f32 %v6831
      %6834 = vmin.xlane.f32.xlu0 %v6833
      %v6835 = vpop.xlane.xlu0 %6834
      %vm6836 = vcmp.eq.f32.partialorder %v6833, %v6835
      %v6837 = vsel %vm6836, %v6832, inf
      %6838 = vmin.xlane.f32.xlu0 %v6837
      %v6839 = vpop.xlane.xlu0 %6838
      %v6840 = vcvt.f32.s32 %v6839
      %v6841 = vcvt.f32.s32 %v6835
      %v6842 = vshll.u32 %v6841, 16
      %v6843 = vadd.s32 %v6842, %v6840
      %v6844 = vand.u32 %v5555, 65535
      %v6845 = vshra.s32 %v5555, 16
      %v6846 = vcvt.s32.f32 %v6844
      %v6847 = vcvt.s32.f32 %v6845
      %6848 = vmin.xlane.f32.xlu0 %v6847
      %v6849 = vpop.xlane.xlu0 %6848
      %vm6850 = vcmp.eq.f32.partialorder %v6847, %v6849
      %v6851 = vsel %vm6850, %v6846, inf
      %6852 = vmin.xlane.f32.xlu0 %v6851
      %v6853 = vpop.xlane.xlu0 %6852
      %v6854 = vcvt.f32.s32 %v6853
      %v6855 = vcvt.f32.s32 %v6849
      %v6856 = vshll.u32 %v6855, 16
      %v6857 = vadd.s32 %v6856, %v6854
      %v6858 = vand.u32 %v5556, 65535
      %v6859 = vshra.s32 %v5556, 16
      %v6860 = vcvt.s32.f32 %v6858
      %v6861 = vcvt.s32.f32 %v6859
      %6862 = vmin.xlane.f32.xlu0 %v6861
      %v6863 = vpop.xlane.xlu0 %6862
      %vm6864 = vcmp.eq.f32.partialorder %v6861, %v6863
      %v6865 = vsel %vm6864, %v6860, inf
      %6866 = vmin.xlane.f32.xlu0 %v6865
      %v6867 = vpop.xlane.xlu0 %6866
      %v6868 = vcvt.f32.s32 %v6867
      %v6869 = vcvt.f32.s32 %v6863
      %v6870 = vshll.u32 %v6869, 16
      %v6871 = vadd.s32 %v6870, %v6868
      %v6872 = vand.u32 %v5557, 65535
      %v6873 = vshra.s32 %v5557, 16
      %v6874 = vcvt.s32.f32 %v6872
      %v6875 = vcvt.s32.f32 %v6873
      %6876 = vmin.xlane.f32.xlu0 %v6875
      %v6877 = vpop.xlane.xlu0 %6876
      %vm6878 = vcmp.eq.f32.partialorder %v6875, %v6877
      %v6879 = vsel %vm6878, %v6874, inf
      %6880 = vmin.xlane.f32.xlu0 %v6879
      %v6881 = vpop.xlane.xlu0 %6880
      %v6882 = vcvt.f32.s32 %v6881
      %v6883 = vcvt.f32.s32 %v6877
      %v6884 = vshll.u32 %v6883, 16
      %v6885 = vadd.s32 %v6884, %v6882
      %v6886 = vand.u32 %v5558, 65535
      %v6887 = vshra.s32 %v5558, 16
      %v6888 = vcvt.s32.f32 %v6886
      %v6889 = vcvt.s32.f32 %v6887
      %6890 = vmin.xlane.f32.xlu0 %v6889
      %v6891 = vpop.xlane.xlu0 %6890
      %vm6892 = vcmp.eq.f32.partialorder %v6889, %v6891
      %v6893 = vsel %vm6892, %v6888, inf
      %6894 = vmin.xlane.f32.xlu0 %v6893
      %v6895 = vpop.xlane.xlu0 %6894
      %v6896 = vcvt.f32.s32 %v6895
      %v6897 = vcvt.f32.s32 %v6891
      %v6898 = vshll.u32 %v6897, 16
      %v6899 = vadd.s32 %v6898, %v6896
      %v6900 = vand.u32 %v5559, 65535
      %v6901 = vshra.s32 %v5559, 16
      %v6902 = vcvt.s32.f32 %v6900
      %v6903 = vcvt.s32.f32 %v6901
      %6904 = vmin.xlane.f32.xlu0 %v6903
      %v6905 = vpop.xlane.xlu0 %6904
      %vm6906 = vcmp.eq.f32.partialorder %v6903, %v6905
      %v6907 = vsel %vm6906, %v6902, inf
      %6908 = vmin.xlane.f32.xlu0 %v6907
      %v6909 = vpop.xlane.xlu0 %6908
      %v6910 = vcvt.f32.s32 %v6909
      %v6911 = vcvt.f32.s32 %v6905
      %v6912 = vshll.u32 %v6911, 16
      %v6913 = vadd.s32 %v6912, %v6910
      %v6914 = vand.u32 %v5560, 65535
      %v6915 = vshra.s32 %v5560, 16
      %v6916 = vcvt.s32.f32 %v6914
      %v6917 = vcvt.s32.f32 %v6915
      %6918 = vmin.xlane.f32.xlu0 %v6917
      %v6919 = vpop.xlane.xlu0 %6918
      %vm6920 = vcmp.eq.f32.partialorder %v6917, %v6919
      %v6921 = vsel %vm6920, %v6916, inf
      %6922 = vmin.xlane.f32.xlu0 %v6921
      %v6923 = vpop.xlane.xlu0 %6922
      %v6924 = vcvt.f32.s32 %v6923
      %v6925 = vcvt.f32.s32 %v6919
      %v6926 = vshll.u32 %v6925, 16
      %v6927 = vadd.s32 %v6926, %v6924
      %v6928 = vand.u32 %v5561, 65535
      %v6929 = vshra.s32 %v5561, 16
      %v6930 = vcvt.s32.f32 %v6928
      %v6931 = vcvt.s32.f32 %v6929
      %6932 = vmin.xlane.f32.xlu0 %v6931
      %v6933 = vpop.xlane.xlu0 %6932
      %vm6934 = vcmp.eq.f32.partialorder %v6931, %v6933
      %v6935 = vsel %vm6934, %v6930, inf
      %6936 = vmin.xlane.f32.xlu0 %v6935
      %v6937 = vpop.xlane.xlu0 %6936
      %v6938 = vcvt.f32.s32 %v6937
      %v6939 = vcvt.f32.s32 %v6933
      %v6940 = vshll.u32 %v6939, 16
      %v6941 = vadd.s32 %v6940, %v6938
      %v6942 = vand.u32 %v5562, 65535
      %v6943 = vshra.s32 %v5562, 16
      %v6944 = vcvt.s32.f32 %v6942
      %v6945 = vcvt.s32.f32 %v6943
      %6946 = vmin.xlane.f32.xlu0 %v6945
      %v6947 = vpop.xlane.xlu0 %6946
      %vm6948 = vcmp.eq.f32.partialorder %v6945, %v6947
      %v6949 = vsel %vm6948, %v6944, inf
      %6950 = vmin.xlane.f32.xlu0 %v6949
      %v6951 = vpop.xlane.xlu0 %6950
      %v6952 = vcvt.f32.s32 %v6951
      %v6953 = vcvt.f32.s32 %v6947
      %v6954 = vshll.u32 %v6953, 16
      %v6955 = vadd.s32 %v6954, %v6952
      %v6956 = vand.u32 %v5563, 65535
      %v6957 = vshra.s32 %v5563, 16
      %v6958 = vcvt.s32.f32 %v6956
      %v6959 = vcvt.s32.f32 %v6957
      %6960 = vmin.xlane.f32.xlu0 %v6959
      %v6961 = vpop.xlane.xlu0 %6960
      %vm6962 = vcmp.eq.f32.partialorder %v6959, %v6961
      %v6963 = vsel %vm6962, %v6958, inf
      %6964 = vmin.xlane.f32.xlu0 %v6963
      %v6965 = vpop.xlane.xlu0 %6964
      %v6966 = vcvt.f32.s32 %v6965
      %v6967 = vcvt.f32.s32 %v6961
      %v6968 = vshll.u32 %v6967, 16
      %v6969 = vadd.s32 %v6968, %v6966
      %v6970 = vand.u32 %v5564, 65535
      %v6971 = vshra.s32 %v5564, 16
      %v6972 = vcvt.s32.f32 %v6970
      %v6973 = vcvt.s32.f32 %v6971
      %6974 = vmin.xlane.f32.xlu0 %v6973
      %v6975 = vpop.xlane.xlu0 %6974
      %vm6976 = vcmp.eq.f32.partialorder %v6973, %v6975
      %v6977 = vsel %vm6976, %v6972, inf
      %6978 = vmin.xlane.f32.xlu0 %v6977
      %v6979 = vpop.xlane.xlu0 %6978
      %v6980 = vcvt.f32.s32 %v6979
      %v6981 = vcvt.f32.s32 %v6975
      %v6982 = vshll.u32 %v6981, 16
      %v6983 = vadd.s32 %v6982, %v6980
      %v6984 = vand.u32 %v5565, 65535
      %v6985 = vshra.s32 %v5565, 16
      %v6986 = vcvt.s32.f32 %v6984
      %v6987 = vcvt.s32.f32 %v6985
      %6988 = vmin.xlane.f32.xlu0 %v6987
      %v6989 = vpop.xlane.xlu0 %6988
      %vm6990 = vcmp.eq.f32.partialorder %v6987, %v6989
      %v6991 = vsel %vm6990, %v6986, inf
      %6992 = vmin.xlane.f32.xlu0 %v6991
      %v6993 = vpop.xlane.xlu0 %6992
      %v6994 = vcvt.f32.s32 %v6993
      %v6995 = vcvt.f32.s32 %v6989
      %v6996 = vshll.u32 %v6995, 16
      %v6997 = vadd.s32 %v6996, %v6994
      %v6998 = vand.u32 %v5566, 65535
      %v6999 = vshra.s32 %v5566, 16
      %v7000 = vcvt.s32.f32 %v6998
      %v7001 = vcvt.s32.f32 %v6999
      %7002 = vmin.xlane.f32.xlu0 %v7001
      %v7003 = vpop.xlane.xlu0 %7002
      %vm7004 = vcmp.eq.f32.partialorder %v7001, %v7003
      %v7005 = vsel %vm7004, %v7000, inf
      %7006 = vmin.xlane.f32.xlu0 %v7005
      %v7007 = vpop.xlane.xlu0 %7006
      %v7008 = vcvt.f32.s32 %v7007
      %v7009 = vcvt.f32.s32 %v7003
      %v7010 = vshll.u32 %v7009, 16
      %v7011 = vadd.s32 %v7010, %v7008
      %v7012 = vand.u32 %v5567, 65535
      %v7013 = vshra.s32 %v5567, 16
      %v7014 = vcvt.s32.f32 %v7012
      %v7015 = vcvt.s32.f32 %v7013
      %7016 = vmin.xlane.f32.xlu0 %v7015
      %v7017 = vpop.xlane.xlu0 %7016
      %vm7018 = vcmp.eq.f32.partialorder %v7015, %v7017
      %v7019 = vsel %vm7018, %v7014, inf
      %7020 = vmin.xlane.f32.xlu0 %v7019
      %v7021 = vpop.xlane.xlu0 %7020
      %v7022 = vcvt.f32.s32 %v7021
      %v7023 = vcvt.f32.s32 %v7017
      %v7024 = vshll.u32 %v7023, 16
      %v7025 = vadd.s32 %v7024, %v7022
      %v7026 = vand.u32 %v5568, 65535
      %v7027 = vshra.s32 %v5568, 16
      %v7028 = vcvt.s32.f32 %v7026
      %v7029 = vcvt.s32.f32 %v7027
      %7030 = vmin.xlane.f32.xlu0 %v7029
      %v7031 = vpop.xlane.xlu0 %7030
      %vm7032 = vcmp.eq.f32.partialorder %v7029, %v7031
      %v7033 = vsel %vm7032, %v7028, inf
      %7034 = vmin.xlane.f32.xlu0 %v7033
      %v7035 = vpop.xlane.xlu0 %7034
      %v7036 = vcvt.f32.s32 %v7035
      %v7037 = vcvt.f32.s32 %v7031
      %v7038 = vshll.u32 %v7037, 16
      %v7039 = vadd.s32 %v7038, %v7036
      %v7040 = vand.u32 %v5569, 65535
      %v7041 = vshra.s32 %v5569, 16
      %v7042 = vcvt.s32.f32 %v7040
      %v7043 = vcvt.s32.f32 %v7041
      %7044 = vmin.xlane.f32.xlu0 %v7043
      %v7045 = vpop.xlane.xlu0 %7044
      %vm7046 = vcmp.eq.f32.partialorder %v7043, %v7045
      %v7047 = vsel %vm7046, %v7042, inf
      %7048 = vmin.xlane.f32.xlu0 %v7047
      %v7049 = vpop.xlane.xlu0 %7048
      %v7050 = vcvt.f32.s32 %v7049
      %v7051 = vcvt.f32.s32 %v7045
      %v7052 = vshll.u32 %v7051, 16
      %v7053 = vadd.s32 %v7052, %v7050
      %v7054 = vand.u32 %v5570, 65535
      %v7055 = vshra.s32 %v5570, 16
      %v7056 = vcvt.s32.f32 %v7054
      %v7057 = vcvt.s32.f32 %v7055
      %7058 = vmin.xlane.f32.xlu0 %v7057
      %v7059 = vpop.xlane.xlu0 %7058
      %vm7060 = vcmp.eq.f32.partialorder %v7057, %v7059
      %v7061 = vsel %vm7060, %v7056, inf
      %7062 = vmin.xlane.f32.xlu0 %v7061
      %v7063 = vpop.xlane.xlu0 %7062
      %v7064 = vcvt.f32.s32 %v7063
      %v7065 = vcvt.f32.s32 %v7059
      %v7066 = vshll.u32 %v7065, 16
      %v7067 = vadd.s32 %v7066, %v7064
      %v7068 = vand.u32 %v5571, 65535
      %v7069 = vshra.s32 %v5571, 16
      %v7070 = vcvt.s32.f32 %v7068
      %v7071 = vcvt.s32.f32 %v7069
      %7072 = vmin.xlane.f32.xlu0 %v7071
      %v7073 = vpop.xlane.xlu0 %7072
      %vm7074 = vcmp.eq.f32.partialorder %v7071, %v7073
      %v7075 = vsel %vm7074, %v7070, inf
      %7076 = vmin.xlane.f32.xlu0 %v7075
      %v7077 = vpop.xlane.xlu0 %7076
      %v7078 = vcvt.f32.s32 %v7077
      %v7079 = vcvt.f32.s32 %v7073
      %v7080 = vshll.u32 %v7079, 16
      %v7081 = vadd.s32 %v7080, %v7078
      %v7082 = vand.u32 %v5572, 65535
      %v7083 = vshra.s32 %v5572, 16
      %v7084 = vcvt.s32.f32 %v7082
      %v7085 = vcvt.s32.f32 %v7083
      %7086 = vmin.xlane.f32.xlu0 %v7085
      %v7087 = vpop.xlane.xlu0 %7086
      %vm7088 = vcmp.eq.f32.partialorder %v7085, %v7087
      %v7089 = vsel %vm7088, %v7084, inf
      %7090 = vmin.xlane.f32.xlu0 %v7089
      %v7091 = vpop.xlane.xlu0 %7090
      %v7092 = vcvt.f32.s32 %v7091
      %v7093 = vcvt.f32.s32 %v7087
      %v7094 = vshll.u32 %v7093, 16
      %v7095 = vadd.s32 %v7094, %v7092
      %v7096 = vand.u32 %v5573, 65535
      %v7097 = vshra.s32 %v5573, 16
      %v7098 = vcvt.s32.f32 %v7096
      %v7099 = vcvt.s32.f32 %v7097
      %7100 = vmin.xlane.f32.xlu0 %v7099
      %v7101 = vpop.xlane.xlu0 %7100
      %vm7102 = vcmp.eq.f32.partialorder %v7099, %v7101
      %v7103 = vsel %vm7102, %v7098, inf
      %7104 = vmin.xlane.f32.xlu0 %v7103
      %v7105 = vpop.xlane.xlu0 %7104
      %v7106 = vcvt.f32.s32 %v7105
      %v7107 = vcvt.f32.s32 %v7101
      %v7108 = vshll.u32 %v7107, 16
      %v7109 = vadd.s32 %v7108, %v7106
      %v7110 = vand.u32 %v6675, 127
      %v7111 = vand.u32 %v6689, 127
      %v7112 = vand.u32 %v6703, 127
      %v7113 = vand.u32 %v6717, 127
      %v7114 = vand.u32 %v6731, 127
      %v7115 = vand.u32 %v6745, 127
      %v7116 = vand.u32 %v6759, 127
      %v7117 = vand.u32 %v6773, 127
      %v7118 = vand.u32 %v6787, 127
      %v7119 = vand.u32 %v6801, 127
      %v7120 = vand.u32 %v6815, 127
      %v7121 = vand.u32 %v6829, 127
      %v7122 = vand.u32 %v6843, 127
      %v7123 = vand.u32 %v6857, 127
      %v7124 = vand.u32 %v6871, 127
      %v7125 = vand.u32 %v6885, 127
      %v7126 = vand.u32 %v6899, 127
      %v7127 = vand.u32 %v6913, 127
      %v7128 = vand.u32 %v6927, 127
      %v7129 = vand.u32 %v6941, 127
      %v7130 = vand.u32 %v6955, 127
      %v7131 = vand.u32 %v6969, 127
      %v7132 = vand.u32 %v6983, 127
      %v7133 = vand.u32 %v6997, 127
      %v7134 = vand.u32 %v7011, 127
      %v7135 = vand.u32 %v7025, 127
      %v7136 = vand.u32 %v7039, 127
      %v7137 = vand.u32 %v7053, 127
      %v7138 = vand.u32 %v7067, 127
      %v7139 = vand.u32 %v7081, 127
      %v7140 = vand.u32 %v7095, 127
      %v7141 = vand.u32 %v7109, 127
      %v7142 = vand.u32 %v6675, 4294967168
      %v7143 = vand.u32 %v6689, 4294967168
      %v7144 = vand.u32 %v6703, 4294967168
      %v7145 = vand.u32 %v6717, 4294967168
      %v7146 = vand.u32 %v6731, 4294967168
      %v7147 = vand.u32 %v6745, 4294967168
      %v7148 = vand.u32 %v6759, 4294967168
      %v7149 = vand.u32 %v6773, 4294967168
      %v7150 = vand.u32 %v6787, 4294967168
      %v7151 = vand.u32 %v6801, 4294967168
      %v7152 = vand.u32 %v6815, 4294967168
      %v7153 = vand.u32 %v6829, 4294967168
      %v7154 = vand.u32 %v6843, 4294967168
      %v7155 = vand.u32 %v6857, 4294967168
      %v7156 = vand.u32 %v6871, 4294967168
      %v7157 = vand.u32 %v6885, 4294967168
      %v7158 = vand.u32 %v6899, 4294967168
      %v7159 = vand.u32 %v6913, 4294967168
      %v7160 = vand.u32 %v6927, 4294967168
      %v7161 = vand.u32 %v6941, 4294967168
      %v7162 = vand.u32 %v6955, 4294967168
      %v7163 = vand.u32 %v6969, 4294967168
      %v7164 = vand.u32 %v6983, 4294967168
      %v7165 = vand.u32 %v6997, 4294967168
      %v7166 = vand.u32 %v7011, 4294967168
      %v7167 = vand.u32 %v7025, 4294967168
      %v7168 = vand.u32 %v7039, 4294967168
      %v7169 = vand.u32 %v7053, 4294967168
      %v7170 = vand.u32 %v7067, 4294967168
      %v7171 = vand.u32 %v7081, 4294967168
      %v7172 = vand.u32 %v7095, 4294967168
      %v7173 = vand.u32 %v7109, 4294967168
      %v7174 = vadd.s32 %v7110, %v1701
      %v7175 = vadd.s32 %v7111, %v1701
      %v7176 = vadd.s32 %v7112, %v1701
      %v7177 = vadd.s32 %v7113, %v1701
      %v7178 = vadd.s32 %v7114, %v1701
      %v7179 = vadd.s32 %v7115, %v1701
      %v7180 = vadd.s32 %v7116, %v1701
      %v7181 = vadd.s32 %v7117, %v1701
      %v7182 = vadd.s32 %v7118, %v1701
      %v7183 = vadd.s32 %v7119, %v1701
      %v7184 = vadd.s32 %v7120, %v1701
      %v7185 = vadd.s32 %v7121, %v1701
      %v7186 = vadd.s32 %v7122, %v1701
      %v7187 = vadd.s32 %v7123, %v1701
      %v7188 = vadd.s32 %v7124, %v1701
      %v7189 = vadd.s32 %v7125, %v1701
      %v7190 = vadd.s32 %v7126, %v1701
      %v7191 = vadd.s32 %v7127, %v1701
      %v7192 = vadd.s32 %v7128, %v1701
      %v7193 = vadd.s32 %v7129, %v1701
      %v7194 = vadd.s32 %v7130, %v1701
      %v7195 = vadd.s32 %v7131, %v1701
      %v7196 = vadd.s32 %v7132, %v1701
      %v7197 = vadd.s32 %v7133, %v1701
      %v7198 = vadd.s32 %v7134, %v1701
      %v7199 = vadd.s32 %v7135, %v1701
      %v7200 = vadd.s32 %v7136, %v1701
      %v7201 = vadd.s32 %v7137, %v1701
      %v7202 = vadd.s32 %v7138, %v1701
      %v7203 = vadd.s32 %v7139, %v1701
      %v7204 = vadd.s32 %v7140, %v1701
      %v7205 = vadd.s32 %v7141, %v1701
      %vm7206 = vcmp.lt.s32.totalorder %v7142, %v5734
      %vm7207 = vcmp.lt.s32.totalorder %v7143, %v5735
      %vm7208 = vcmp.lt.s32.totalorder %v7144, %v5736
      %vm7209 = vcmp.lt.s32.totalorder %v7145, %v5737
      %vm7210 = vcmp.lt.s32.totalorder %v7146, %v5738
      %vm7211 = vcmp.lt.s32.totalorder %v7147, %v5739
      %vm7212 = vcmp.lt.s32.totalorder %v7148, %v5740
      %vm7213 = vcmp.lt.s32.totalorder %v7149, %v5741
      %vm7214 = vcmp.lt.s32.totalorder %v7150, %v5742
      %vm7215 = vcmp.lt.s32.totalorder %v7151, %v5743
      %vm7216 = vcmp.lt.s32.totalorder %v7152, %v5744
      %vm7217 = vcmp.lt.s32.totalorder %v7153, %v5745
      %vm7218 = vcmp.lt.s32.totalorder %v7154, %v5746
      %vm7219 = vcmp.lt.s32.totalorder %v7155, %v5747
      %vm7220 = vcmp.lt.s32.totalorder %v7156, %v5748
      %vm7221 = vcmp.lt.s32.totalorder %v7157, %v5749
      %vm7222 = vcmp.lt.s32.totalorder %v7158, %v5750
      %vm7223 = vcmp.lt.s32.totalorder %v7159, %v5751
      %vm7224 = vcmp.lt.s32.totalorder %v7160, %v5752
      %vm7225 = vcmp.lt.s32.totalorder %v7161, %v5753
      %vm7226 = vcmp.lt.s32.totalorder %v7162, %v5754
      %vm7227 = vcmp.lt.s32.totalorder %v7163, %v5755
      %vm7228 = vcmp.lt.s32.totalorder %v7164, %v5756
      %vm7229 = vcmp.lt.s32.totalorder %v7165, %v5757
      %vm7230 = vcmp.lt.s32.totalorder %v7166, %v5758
      %vm7231 = vcmp.lt.s32.totalorder %v7167, %v5759
      %vm7232 = vcmp.lt.s32.totalorder %v7168, %v5760
      %vm7233 = vcmp.lt.s32.totalorder %v7169, %v5761
      %vm7234 = vcmp.lt.s32.totalorder %v7170, %v5762
      %vm7235 = vcmp.lt.s32.totalorder %v7171, %v5763
      %vm7236 = vcmp.lt.s32.totalorder %v7172, %v5764
      %vm7237 = vcmp.lt.s32.totalorder %v7173, %v5765
      %vm7238 = vcmp.eq.s32.totalorder %v7142, %v5734
      %vm7239 = vcmp.eq.s32.totalorder %v7143, %v5735
      %vm7240 = vcmp.eq.s32.totalorder %v7144, %v5736
      %vm7241 = vcmp.eq.s32.totalorder %v7145, %v5737
      %vm7242 = vcmp.eq.s32.totalorder %v7146, %v5738
      %vm7243 = vcmp.eq.s32.totalorder %v7147, %v5739
      %vm7244 = vcmp.eq.s32.totalorder %v7148, %v5740
      %vm7245 = vcmp.eq.s32.totalorder %v7149, %v5741
      %vm7246 = vcmp.eq.s32.totalorder %v7150, %v5742
      %vm7247 = vcmp.eq.s32.totalorder %v7151, %v5743
      %vm7248 = vcmp.eq.s32.totalorder %v7152, %v5744
      %vm7249 = vcmp.eq.s32.totalorder %v7153, %v5745
      %vm7250 = vcmp.eq.s32.totalorder %v7154, %v5746
      %vm7251 = vcmp.eq.s32.totalorder %v7155, %v5747
      %vm7252 = vcmp.eq.s32.totalorder %v7156, %v5748
      %vm7253 = vcmp.eq.s32.totalorder %v7157, %v5749
      %vm7254 = vcmp.eq.s32.totalorder %v7158, %v5750
      %vm7255 = vcmp.eq.s32.totalorder %v7159, %v5751
      %vm7256 = vcmp.eq.s32.totalorder %v7160, %v5752
      %vm7257 = vcmp.eq.s32.totalorder %v7161, %v5753
      %vm7258 = vcmp.eq.s32.totalorder %v7162, %v5754
      %vm7259 = vcmp.eq.s32.totalorder %v7163, %v5755
      %vm7260 = vcmp.eq.s32.totalorder %v7164, %v5756
      %vm7261 = vcmp.eq.s32.totalorder %v7165, %v5757
      %vm7262 = vcmp.eq.s32.totalorder %v7166, %v5758
      %vm7263 = vcmp.eq.s32.totalorder %v7167, %v5759
      %vm7264 = vcmp.eq.s32.totalorder %v7168, %v5760
      %vm7265 = vcmp.eq.s32.totalorder %v7169, %v5761
      %vm7266 = vcmp.eq.s32.totalorder %v7170, %v5762
      %vm7267 = vcmp.eq.s32.totalorder %v7171, %v5763
      %vm7268 = vcmp.eq.s32.totalorder %v7172, %v5764
      %vm7269 = vcmp.eq.s32.totalorder %v7173, %v5765
      %vm7270 = vcmp.lt.s32.totalorder %v7174, %v5766
      %vm7271 = vcmp.lt.s32.totalorder %v7175, %v5767
      %vm7272 = vcmp.lt.s32.totalorder %v7176, %v5768
      %vm7273 = vcmp.lt.s32.totalorder %v7177, %v5769
      %vm7274 = vcmp.lt.s32.totalorder %v7178, %v5770
      %vm7275 = vcmp.lt.s32.totalorder %v7179, %v5771
      %vm7276 = vcmp.lt.s32.totalorder %v7180, %v5772
      %vm7277 = vcmp.lt.s32.totalorder %v7181, %v5773
      %vm7278 = vcmp.lt.s32.totalorder %v7182, %v5774
      %vm7279 = vcmp.lt.s32.totalorder %v7183, %v5775
      %vm7280 = vcmp.lt.s32.totalorder %v7184, %v5776
      %vm7281 = vcmp.lt.s32.totalorder %v7185, %v5777
      %vm7282 = vcmp.lt.s32.totalorder %v7186, %v5778
      %vm7283 = vcmp.lt.s32.totalorder %v7187, %v5779
      %vm7284 = vcmp.lt.s32.totalorder %v7188, %v5780
      %vm7285 = vcmp.lt.s32.totalorder %v7189, %v5781
      %vm7286 = vcmp.lt.s32.totalorder %v7190, %v5782
      %vm7287 = vcmp.lt.s32.totalorder %v7191, %v5783
      %vm7288 = vcmp.lt.s32.totalorder %v7192, %v5784
      %vm7289 = vcmp.lt.s32.totalorder %v7193, %v5785
      %vm7290 = vcmp.lt.s32.totalorder %v7194, %v5786
      %vm7291 = vcmp.lt.s32.totalorder %v7195, %v5787
      %vm7292 = vcmp.lt.s32.totalorder %v7196, %v5788
      %vm7293 = vcmp.lt.s32.totalorder %v7197, %v5789
      %vm7294 = vcmp.lt.s32.totalorder %v7198, %v5790
      %vm7295 = vcmp.lt.s32.totalorder %v7199, %v5791
      %vm7296 = vcmp.lt.s32.totalorder %v7200, %v5792
      %vm7297 = vcmp.lt.s32.totalorder %v7201, %v5793
      %vm7298 = vcmp.lt.s32.totalorder %v7202, %v5794
      %vm7299 = vcmp.lt.s32.totalorder %v7203, %v5795
      %vm7300 = vcmp.lt.s32.totalorder %v7204, %v5796
      %vm7301 = vcmp.lt.s32.totalorder %v7205, %v5797
      %vm7302 = vmand %vm7238, %vm7270
      %vm7303 = vmand %vm7239, %vm7271
      %vm7304 = vmand %vm7240, %vm7272
      %vm7305 = vmand %vm7241, %vm7273
      %vm7306 = vmand %vm7242, %vm7274
      %vm7307 = vmand %vm7243, %vm7275
      %vm7308 = vmand %vm7244, %vm7276
      %vm7309 = vmand %vm7245, %vm7277
      %vm7310 = vmand %vm7246, %vm7278
      %vm7311 = vmand %vm7247, %vm7279
      %vm7312 = vmand %vm7248, %vm7280
      %vm7313 = vmand %vm7249, %vm7281
      %vm7314 = vmand %vm7250, %vm7282
      %vm7315 = vmand %vm7251, %vm7283
      %vm7316 = vmand %vm7252, %vm7284
      %vm7317 = vmand %vm7253, %vm7285
      %vm7318 = vmand %vm7254, %vm7286
      %vm7319 = vmand %vm7255, %vm7287
      %vm7320 = vmand %vm7256, %vm7288
      %vm7321 = vmand %vm7257, %vm7289
      %vm7322 = vmand %vm7258, %vm7290
      %vm7323 = vmand %vm7259, %vm7291
      %vm7324 = vmand %vm7260, %vm7292
      %vm7325 = vmand %vm7261, %vm7293
      %vm7326 = vmand %vm7262, %vm7294
      %vm7327 = vmand %vm7263, %vm7295
      %vm7328 = vmand %vm7264, %vm7296
      %vm7329 = vmand %vm7265, %vm7297
      %vm7330 = vmand %vm7266, %vm7298
      %vm7331 = vmand %vm7267, %vm7299
      %vm7332 = vmand %vm7268, %vm7300
      %vm7333 = vmand %vm7269, %vm7301
      %vm7334 = vmor %vm7206, %vm7302
      %vm7335 = vmor %vm7207, %vm7303
      %vm7336 = vmor %vm7208, %vm7304
      %vm7337 = vmor %vm7209, %vm7305
      %vm7338 = vmor %vm7210, %vm7306
      %vm7339 = vmor %vm7211, %vm7307
      %vm7340 = vmor %vm7212, %vm7308
      %vm7341 = vmor %vm7213, %vm7309
      %vm7342 = vmor %vm7214, %vm7310
      %vm7343 = vmor %vm7215, %vm7311
      %vm7344 = vmor %vm7216, %vm7312
      %vm7345 = vmor %vm7217, %vm7313
      %vm7346 = vmor %vm7218, %vm7314
      %vm7347 = vmor %vm7219, %vm7315
      %vm7348 = vmor %vm7220, %vm7316
      %vm7349 = vmor %vm7221, %vm7317
      %vm7350 = vmor %vm7222, %vm7318
      %vm7351 = vmor %vm7223, %vm7319
      %vm7352 = vmor %vm7224, %vm7320
      %vm7353 = vmor %vm7225, %vm7321
      %vm7354 = vmor %vm7226, %vm7322
      %vm7355 = vmor %vm7227, %vm7323
      %vm7356 = vmor %vm7228, %vm7324
      %vm7357 = vmor %vm7229, %vm7325
      %vm7358 = vmor %vm7230, %vm7326
      %vm7359 = vmor %vm7231, %vm7327
      %vm7360 = vmor %vm7232, %vm7328
      %vm7361 = vmor %vm7233, %vm7329
      %vm7362 = vmor %vm7234, %vm7330
      %vm7363 = vmor %vm7235, %vm7331
      %vm7364 = vmor %vm7236, %vm7332
      %vm7365 = vmor %vm7237, %vm7333
      %v7366 = vsel %vm7334, %v7142, %v5734
      %v7367 = vsel %vm7335, %v7143, %v5735
      %v7368 = vsel %vm7336, %v7144, %v5736
      %v7369 = vsel %vm7337, %v7145, %v5737
      %v7370 = vsel %vm7338, %v7146, %v5738
      %v7371 = vsel %vm7339, %v7147, %v5739
      %v7372 = vsel %vm7340, %v7148, %v5740
      %v7373 = vsel %vm7341, %v7149, %v5741
      %v7374 = vsel %vm7342, %v7150, %v5742
      %v7375 = vsel %vm7343, %v7151, %v5743
      %v7376 = vsel %vm7344, %v7152, %v5744
      %v7377 = vsel %vm7345, %v7153, %v5745
      %v7378 = vsel %vm7346, %v7154, %v5746
      %v7379 = vsel %vm7347, %v7155, %v5747
      %v7380 = vsel %vm7348, %v7156, %v5748
      %v7381 = vsel %vm7349, %v7157, %v5749
      %v7382 = vsel %vm7350, %v7158, %v5750
      %v7383 = vsel %vm7351, %v7159, %v5751
      %v7384 = vsel %vm7352, %v7160, %v5752
      %v7385 = vsel %vm7353, %v7161, %v5753
      %v7386 = vsel %vm7354, %v7162, %v5754
      %v7387 = vsel %vm7355, %v7163, %v5755
      %v7388 = vsel %vm7356, %v7164, %v5756
      %v7389 = vsel %vm7357, %v7165, %v5757
      %v7390 = vsel %vm7358, %v7166, %v5758
      %v7391 = vsel %vm7359, %v7167, %v5759
      %v7392 = vsel %vm7360, %v7168, %v5760
      %v7393 = vsel %vm7361, %v7169, %v5761
      %v7394 = vsel %vm7362, %v7170, %v5762
      %v7395 = vsel %vm7363, %v7171, %v5763
      %v7396 = vsel %vm7364, %v7172, %v5764
      %v7397 = vsel %vm7365, %v7173, %v5765
      %v7398 = vsel %vm7334, %v7174, %v5766
      %v7399 = vsel %vm7335, %v7175, %v5767
      %v7400 = vsel %vm7336, %v7176, %v5768
      %v7401 = vsel %vm7337, %v7177, %v5769
      %v7402 = vsel %vm7338, %v7178, %v5770
      %v7403 = vsel %vm7339, %v7179, %v5771
      %v7404 = vsel %vm7340, %v7180, %v5772
      %v7405 = vsel %vm7341, %v7181, %v5773
      %v7406 = vsel %vm7342, %v7182, %v5774
      %v7407 = vsel %vm7343, %v7183, %v5775
      %v7408 = vsel %vm7344, %v7184, %v5776
      %v7409 = vsel %vm7345, %v7185, %v5777
      %v7410 = vsel %vm7346, %v7186, %v5778
      %v7411 = vsel %vm7347, %v7187, %v5779
      %v7412 = vsel %vm7348, %v7188, %v5780
      %v7413 = vsel %vm7349, %v7189, %v5781
      %v7414 = vsel %vm7350, %v7190, %v5782
      %v7415 = vsel %vm7351, %v7191, %v5783
      %v7416 = vsel %vm7352, %v7192, %v5784
      %v7417 = vsel %vm7353, %v7193, %v5785
      %v7418 = vsel %vm7354, %v7194, %v5786
      %v7419 = vsel %vm7355, %v7195, %v5787
      %v7420 = vsel %vm7356, %v7196, %v5788
      %v7421 = vsel %vm7357, %v7197, %v5789
      %v7422 = vsel %vm7358, %v7198, %v5790
      %v7423 = vsel %vm7359, %v7199, %v5791
      %v7424 = vsel %vm7360, %v7200, %v5792
      %v7425 = vsel %vm7361, %v7201, %v5793
      %v7426 = vsel %vm7362, %v7202, %v5794
      %v7427 = vsel %vm7363, %v7203, %v5795
      %v7428 = vsel %vm7364, %v7204, %v5796
      %v7429 = vsel %vm7365, %v7205, %v5797
      %v7430 = vsel %vm7334, %v5734, %v7142
      %v7431 = vsel %vm7335, %v5735, %v7143
      %v7432 = vsel %vm7336, %v5736, %v7144
      %v7433 = vsel %vm7337, %v5737, %v7145
      %v7434 = vsel %vm7338, %v5738, %v7146
      %v7435 = vsel %vm7339, %v5739, %v7147
      %v7436 = vsel %vm7340, %v5740, %v7148
      %v7437 = vsel %vm7341, %v5741, %v7149
      %v7438 = vsel %vm7342, %v5742, %v7150
      %v7439 = vsel %vm7343, %v5743, %v7151
      %v7440 = vsel %vm7344, %v5744, %v7152
      %v7441 = vsel %vm7345, %v5745, %v7153
      %v7442 = vsel %vm7346, %v5746, %v7154
      %v7443 = vsel %vm7347, %v5747, %v7155
      %v7444 = vsel %vm7348, %v5748, %v7156
      %v7445 = vsel %vm7349, %v5749, %v7157
      %v7446 = vsel %vm7350, %v5750, %v7158
      %v7447 = vsel %vm7351, %v5751, %v7159
      %v7448 = vsel %vm7352, %v5752, %v7160
      %v7449 = vsel %vm7353, %v5753, %v7161
      %v7450 = vsel %vm7354, %v5754, %v7162
      %v7451 = vsel %vm7355, %v5755, %v7163
      %v7452 = vsel %vm7356, %v5756, %v7164
      %v7453 = vsel %vm7357, %v5757, %v7165
      %v7454 = vsel %vm7358, %v5758, %v7166
      %v7455 = vsel %vm7359, %v5759, %v7167
      %v7456 = vsel %vm7360, %v5760, %v7168
      %v7457 = vsel %vm7361, %v5761, %v7169
      %v7458 = vsel %vm7362, %v5762, %v7170
      %v7459 = vsel %vm7363, %v5763, %v7171
      %v7460 = vsel %vm7364, %v5764, %v7172
      %v7461 = vsel %vm7365, %v5765, %v7173
      %v7462 = vsel %vm7334, %v5766, %v7174
      %v7463 = vsel %vm7335, %v5767, %v7175
      %v7464 = vsel %vm7336, %v5768, %v7176
      %v7465 = vsel %vm7337, %v5769, %v7177
      %v7466 = vsel %vm7338, %v5770, %v7178
      %v7467 = vsel %vm7339, %v5771, %v7179
      %v7468 = vsel %vm7340, %v5772, %v7180
      %v7469 = vsel %vm7341, %v5773, %v7181
      %v7470 = vsel %vm7342, %v5774, %v7182
      %v7471 = vsel %vm7343, %v5775, %v7183
      %v7472 = vsel %vm7344, %v5776, %v7184
      %v7473 = vsel %vm7345, %v5777, %v7185
      %v7474 = vsel %vm7346, %v5778, %v7186
      %v7475 = vsel %vm7347, %v5779, %v7187
      %v7476 = vsel %vm7348, %v5780, %v7188
      %v7477 = vsel %vm7349, %v5781, %v7189
      %v7478 = vsel %vm7350, %v5782, %v7190
      %v7479 = vsel %vm7351, %v5783, %v7191
      %v7480 = vsel %vm7352, %v5784, %v7192
      %v7481 = vsel %vm7353, %v5785, %v7193
      %v7482 = vsel %vm7354, %v5786, %v7194
      %v7483 = vsel %vm7355, %v5787, %v7195
      %v7484 = vsel %vm7356, %v5788, %v7196
      %v7485 = vsel %vm7357, %v5789, %v7197
      %v7486 = vsel %vm7358, %v5790, %v7198
      %v7487 = vsel %vm7359, %v5791, %v7199
      %v7488 = vsel %vm7360, %v5792, %v7200
      %v7489 = vsel %vm7361, %v5793, %v7201
      %v7490 = vsel %vm7362, %v5794, %v7202
      %v7491 = vsel %vm7363, %v5795, %v7203
      %v7492 = vsel %vm7364, %v5796, %v7204
      %v7493 = vsel %vm7365, %v5797, %v7205
      %vm7494 = vcmp.lt.s32.totalorder %v7430, %v6022
      %vm7495 = vcmp.lt.s32.totalorder %v7431, %v6023
      %vm7496 = vcmp.lt.s32.totalorder %v7432, %v6024
      %vm7497 = vcmp.lt.s32.totalorder %v7433, %v6025
      %vm7498 = vcmp.lt.s32.totalorder %v7434, %v6026
      %vm7499 = vcmp.lt.s32.totalorder %v7435, %v6027
      %vm7500 = vcmp.lt.s32.totalorder %v7436, %v6028
      %vm7501 = vcmp.lt.s32.totalorder %v7437, %v6029
      %vm7502 = vcmp.lt.s32.totalorder %v7438, %v6030
      %vm7503 = vcmp.lt.s32.totalorder %v7439, %v6031
      %vm7504 = vcmp.lt.s32.totalorder %v7440, %v6032
      %vm7505 = vcmp.lt.s32.totalorder %v7441, %v6033
      %vm7506 = vcmp.lt.s32.totalorder %v7442, %v6034
      %vm7507 = vcmp.lt.s32.totalorder %v7443, %v6035
      %vm7508 = vcmp.lt.s32.totalorder %v7444, %v6036
      %vm7509 = vcmp.lt.s32.totalorder %v7445, %v6037
      %vm7510 = vcmp.lt.s32.totalorder %v7446, %v6038
      %vm7511 = vcmp.lt.s32.totalorder %v7447, %v6039
      %vm7512 = vcmp.lt.s32.totalorder %v7448, %v6040
      %vm7513 = vcmp.lt.s32.totalorder %v7449, %v6041
      %vm7514 = vcmp.lt.s32.totalorder %v7450, %v6042
      %vm7515 = vcmp.lt.s32.totalorder %v7451, %v6043
      %vm7516 = vcmp.lt.s32.totalorder %v7452, %v6044
      %vm7517 = vcmp.lt.s32.totalorder %v7453, %v6045
      %vm7518 = vcmp.lt.s32.totalorder %v7454, %v6046
      %vm7519 = vcmp.lt.s32.totalorder %v7455, %v6047
      %vm7520 = vcmp.lt.s32.totalorder %v7456, %v6048
      %vm7521 = vcmp.lt.s32.totalorder %v7457, %v6049
      %vm7522 = vcmp.lt.s32.totalorder %v7458, %v6050
      %vm7523 = vcmp.lt.s32.totalorder %v7459, %v6051
      %vm7524 = vcmp.lt.s32.totalorder %v7460, %v6052
      %vm7525 = vcmp.lt.s32.totalorder %v7461, %v6053
      %vm7526 = vcmp.eq.s32.totalorder %v7430, %v6022
      %vm7527 = vcmp.eq.s32.totalorder %v7431, %v6023
      %vm7528 = vcmp.eq.s32.totalorder %v7432, %v6024
      %vm7529 = vcmp.eq.s32.totalorder %v7433, %v6025
      %vm7530 = vcmp.eq.s32.totalorder %v7434, %v6026
      %vm7531 = vcmp.eq.s32.totalorder %v7435, %v6027
      %vm7532 = vcmp.eq.s32.totalorder %v7436, %v6028
      %vm7533 = vcmp.eq.s32.totalorder %v7437, %v6029
      %vm7534 = vcmp.eq.s32.totalorder %v7438, %v6030
      %vm7535 = vcmp.eq.s32.totalorder %v7439, %v6031
      %vm7536 = vcmp.eq.s32.totalorder %v7440, %v6032
      %vm7537 = vcmp.eq.s32.totalorder %v7441, %v6033
      %vm7538 = vcmp.eq.s32.totalorder %v7442, %v6034
      %vm7539 = vcmp.eq.s32.totalorder %v7443, %v6035
      %vm7540 = vcmp.eq.s32.totalorder %v7444, %v6036
      %vm7541 = vcmp.eq.s32.totalorder %v7445, %v6037
      %vm7542 = vcmp.eq.s32.totalorder %v7446, %v6038
      %vm7543 = vcmp.eq.s32.totalorder %v7447, %v6039
      %vm7544 = vcmp.eq.s32.totalorder %v7448, %v6040
      %vm7545 = vcmp.eq.s32.totalorder %v7449, %v6041
      %vm7546 = vcmp.eq.s32.totalorder %v7450, %v6042
      %vm7547 = vcmp.eq.s32.totalorder %v7451, %v6043
      %vm7548 = vcmp.eq.s32.totalorder %v7452, %v6044
      %vm7549 = vcmp.eq.s32.totalorder %v7453, %v6045
      %vm7550 = vcmp.eq.s32.totalorder %v7454, %v6046
      %vm7551 = vcmp.eq.s32.totalorder %v7455, %v6047
      %vm7552 = vcmp.eq.s32.totalorder %v7456, %v6048
      %vm7553 = vcmp.eq.s32.totalorder %v7457, %v6049
      %vm7554 = vcmp.eq.s32.totalorder %v7458, %v6050
      %vm7555 = vcmp.eq.s32.totalorder %v7459, %v6051
      %vm7556 = vcmp.eq.s32.totalorder %v7460, %v6052
      %vm7557 = vcmp.eq.s32.totalorder %v7461, %v6053
      %vm7558 = vcmp.lt.s32.totalorder %v7462, %v6054
      %vm7559 = vcmp.lt.s32.totalorder %v7463, %v6055
      %vm7560 = vcmp.lt.s32.totalorder %v7464, %v6056
      %vm7561 = vcmp.lt.s32.totalorder %v7465, %v6057
      %vm7562 = vcmp.lt.s32.totalorder %v7466, %v6058
      %vm7563 = vcmp.lt.s32.totalorder %v7467, %v6059
      %vm7564 = vcmp.lt.s32.totalorder %v7468, %v6060
      %vm7565 = vcmp.lt.s32.totalorder %v7469, %v6061
      %vm7566 = vcmp.lt.s32.totalorder %v7470, %v6062
      %vm7567 = vcmp.lt.s32.totalorder %v7471, %v6063
      %vm7568 = vcmp.lt.s32.totalorder %v7472, %v6064
      %vm7569 = vcmp.lt.s32.totalorder %v7473, %v6065
      %vm7570 = vcmp.lt.s32.totalorder %v7474, %v6066
      %vm7571 = vcmp.lt.s32.totalorder %v7475, %v6067
      %vm7572 = vcmp.lt.s32.totalorder %v7476, %v6068
      %vm7573 = vcmp.lt.s32.totalorder %v7477, %v6069
      %vm7574 = vcmp.lt.s32.totalorder %v7478, %v6070
      %vm7575 = vcmp.lt.s32.totalorder %v7479, %v6071
      %vm7576 = vcmp.lt.s32.totalorder %v7480, %v6072
      %vm7577 = vcmp.lt.s32.totalorder %v7481, %v6073
      %vm7578 = vcmp.lt.s32.totalorder %v7482, %v6074
      %vm7579 = vcmp.lt.s32.totalorder %v7483, %v6075
      %vm7580 = vcmp.lt.s32.totalorder %v7484, %v6076
      %vm7581 = vcmp.lt.s32.totalorder %v7485, %v6077
      %vm7582 = vcmp.lt.s32.totalorder %v7486, %v6078
      %vm7583 = vcmp.lt.s32.totalorder %v7487, %v6079
      %vm7584 = vcmp.lt.s32.totalorder %v7488, %v6080
      %vm7585 = vcmp.lt.s32.totalorder %v7489, %v6081
      %vm7586 = vcmp.lt.s32.totalorder %v7490, %v6082
      %vm7587 = vcmp.lt.s32.totalorder %v7491, %v6083
      %vm7588 = vcmp.lt.s32.totalorder %v7492, %v6084
      %vm7589 = vcmp.lt.s32.totalorder %v7493, %v6085
      %vm7590 = vmand %vm7526, %vm7558
      %vm7591 = vmand %vm7527, %vm7559
      %vm7592 = vmand %vm7528, %vm7560
      %vm7593 = vmand %vm7529, %vm7561
      %vm7594 = vmand %vm7530, %vm7562
      %vm7595 = vmand %vm7531, %vm7563
      %vm7596 = vmand %vm7532, %vm7564
      %vm7597 = vmand %vm7533, %vm7565
      %vm7598 = vmand %vm7534, %vm7566
      %vm7599 = vmand %vm7535, %vm7567
      %vm7600 = vmand %vm7536, %vm7568
      %vm7601 = vmand %vm7537, %vm7569
      %vm7602 = vmand %vm7538, %vm7570
      %vm7603 = vmand %vm7539, %vm7571
      %vm7604 = vmand %vm7540, %vm7572
      %vm7605 = vmand %vm7541, %vm7573
      %vm7606 = vmand %vm7542, %vm7574
      %vm7607 = vmand %vm7543, %vm7575
      %vm7608 = vmand %vm7544, %vm7576
      %vm7609 = vmand %vm7545, %vm7577
      %vm7610 = vmand %vm7546, %vm7578
      %vm7611 = vmand %vm7547, %vm7579
      %vm7612 = vmand %vm7548, %vm7580
      %vm7613 = vmand %vm7549, %vm7581
      %vm7614 = vmand %vm7550, %vm7582
      %vm7615 = vmand %vm7551, %vm7583
      %vm7616 = vmand %vm7552, %vm7584
      %vm7617 = vmand %vm7553, %vm7585
      %vm7618 = vmand %vm7554, %vm7586
      %vm7619 = vmand %vm7555, %vm7587
      %vm7620 = vmand %vm7556, %vm7588
      %vm7621 = vmand %vm7557, %vm7589
      %vm7622 = vmor %vm7494, %vm7590
      %vm7623 = vmor %vm7495, %vm7591
      %vm7624 = vmor %vm7496, %vm7592
      %vm7625 = vmor %vm7497, %vm7593
      %vm7626 = vmor %vm7498, %vm7594
      %vm7627 = vmor %vm7499, %vm7595
      %vm7628 = vmor %vm7500, %vm7596
      %vm7629 = vmor %vm7501, %vm7597
      %vm7630 = vmor %vm7502, %vm7598
      %vm7631 = vmor %vm7503, %vm7599
      %vm7632 = vmor %vm7504, %vm7600
      %vm7633 = vmor %vm7505, %vm7601
      %vm7634 = vmor %vm7506, %vm7602
      %vm7635 = vmor %vm7507, %vm7603
      %vm7636 = vmor %vm7508, %vm7604
      %vm7637 = vmor %vm7509, %vm7605
      %vm7638 = vmor %vm7510, %vm7606
      %vm7639 = vmor %vm7511, %vm7607
      %vm7640 = vmor %vm7512, %vm7608
      %vm7641 = vmor %vm7513, %vm7609
      %vm7642 = vmor %vm7514, %vm7610
      %vm7643 = vmor %vm7515, %vm7611
      %vm7644 = vmor %vm7516, %vm7612
      %vm7645 = vmor %vm7517, %vm7613
      %vm7646 = vmor %vm7518, %vm7614
      %vm7647 = vmor %vm7519, %vm7615
      %vm7648 = vmor %vm7520, %vm7616
      %vm7649 = vmor %vm7521, %vm7617
      %vm7650 = vmor %vm7522, %vm7618
      %vm7651 = vmor %vm7523, %vm7619
      %vm7652 = vmor %vm7524, %vm7620
      %vm7653 = vmor %vm7525, %vm7621
      %v7654 = vsel %vm7622, %v7430, %v6022
      %v7655 = vsel %vm7623, %v7431, %v6023
      %v7656 = vsel %vm7624, %v7432, %v6024
      %v7657 = vsel %vm7625, %v7433, %v6025
      %v7658 = vsel %vm7626, %v7434, %v6026
      %v7659 = vsel %vm7627, %v7435, %v6027
      %v7660 = vsel %vm7628, %v7436, %v6028
      %v7661 = vsel %vm7629, %v7437, %v6029
      %v7662 = vsel %vm7630, %v7438, %v6030
      %v7663 = vsel %vm7631, %v7439, %v6031
      %v7664 = vsel %vm7632, %v7440, %v6032
      %v7665 = vsel %vm7633, %v7441, %v6033
      %v7666 = vsel %vm7634, %v7442, %v6034
      %v7667 = vsel %vm7635, %v7443, %v6035
      %v7668 = vsel %vm7636, %v7444, %v6036
      %v7669 = vsel %vm7637, %v7445, %v6037
      %v7670 = vsel %vm7638, %v7446, %v6038
      %v7671 = vsel %vm7639, %v7447, %v6039
      %v7672 = vsel %vm7640, %v7448, %v6040
      %v7673 = vsel %vm7641, %v7449, %v6041
      %v7674 = vsel %vm7642, %v7450, %v6042
      %v7675 = vsel %vm7643, %v7451, %v6043
      %v7676 = vsel %vm7644, %v7452, %v6044
      %v7677 = vsel %vm7645, %v7453, %v6045
      %v7678 = vsel %vm7646, %v7454, %v6046
      %v7679 = vsel %vm7647, %v7455, %v6047
      %v7680 = vsel %vm7648, %v7456, %v6048
      %v7681 = vsel %vm7649, %v7457, %v6049
      %v7682 = vsel %vm7650, %v7458, %v6050
      %v7683 = vsel %vm7651, %v7459, %v6051
      %v7684 = vsel %vm7652, %v7460, %v6052
      %v7685 = vsel %vm7653, %v7461, %v6053
      %v7686 = vsel %vm7622, %v7462, %v6054
      %v7687 = vsel %vm7623, %v7463, %v6055
      %v7688 = vsel %vm7624, %v7464, %v6056
      %v7689 = vsel %vm7625, %v7465, %v6057
      %v7690 = vsel %vm7626, %v7466, %v6058
      %v7691 = vsel %vm7627, %v7467, %v6059
      %v7692 = vsel %vm7628, %v7468, %v6060
      %v7693 = vsel %vm7629, %v7469, %v6061
      %v7694 = vsel %vm7630, %v7470, %v6062
      %v7695 = vsel %vm7631, %v7471, %v6063
      %v7696 = vsel %vm7632, %v7472, %v6064
      %v7697 = vsel %vm7633, %v7473, %v6065
      %v7698 = vsel %vm7634, %v7474, %v6066
      %v7699 = vsel %vm7635, %v7475, %v6067
      %v7700 = vsel %vm7636, %v7476, %v6068
      %v7701 = vsel %vm7637, %v7477, %v6069
      %v7702 = vsel %vm7638, %v7478, %v6070
      %v7703 = vsel %vm7639, %v7479, %v6071
      %v7704 = vsel %vm7640, %v7480, %v6072
      %v7705 = vsel %vm7641, %v7481, %v6073
      %v7706 = vsel %vm7642, %v7482, %v6074
      %v7707 = vsel %vm7643, %v7483, %v6075
      %v7708 = vsel %vm7644, %v7484, %v6076
      %v7709 = vsel %vm7645, %v7485, %v6077
      %v7710 = vsel %vm7646, %v7486, %v6078
      %v7711 = vsel %vm7647, %v7487, %v6079
      %v7712 = vsel %vm7648, %v7488, %v6080
      %v7713 = vsel %vm7649, %v7489, %v6081
      %v7714 = vsel %vm7650, %v7490, %v6082
      %v7715 = vsel %vm7651, %v7491, %v6083
      %v7716 = vsel %vm7652, %v7492, %v6084
      %v7717 = vsel %vm7653, %v7493, %v6085
      %v7718 = vsel %vm7622, %v6022, %v7430
      %v7719 = vsel %vm7623, %v6023, %v7431
      %v7720 = vsel %vm7624, %v6024, %v7432
      %v7721 = vsel %vm7625, %v6025, %v7433
      %v7722 = vsel %vm7626, %v6026, %v7434
      %v7723 = vsel %vm7627, %v6027, %v7435
      %v7724 = vsel %vm7628, %v6028, %v7436
      %v7725 = vsel %vm7629, %v6029, %v7437
      %v7726 = vsel %vm7630, %v6030, %v7438
      %v7727 = vsel %vm7631, %v6031, %v7439
      %v7728 = vsel %vm7632, %v6032, %v7440
      %v7729 = vsel %vm7633, %v6033, %v7441
      %v7730 = vsel %vm7634, %v6034, %v7442
      %v7731 = vsel %vm7635, %v6035, %v7443
      %v7732 = vsel %vm7636, %v6036, %v7444
      %v7733 = vsel %vm7637, %v6037, %v7445
      %v7734 = vsel %vm7638, %v6038, %v7446
      %v7735 = vsel %vm7639, %v6039, %v7447
      %v7736 = vsel %vm7640, %v6040, %v7448
      %v7737 = vsel %vm7641, %v6041, %v7449
      %v7738 = vsel %vm7642, %v6042, %v7450
      %v7739 = vsel %vm7643, %v6043, %v7451
      %v7740 = vsel %vm7644, %v6044, %v7452
      %v7741 = vsel %vm7645, %v6045, %v7453
      %v7742 = vsel %vm7646, %v6046, %v7454
      %v7743 = vsel %vm7647, %v6047, %v7455
      %v7744 = vsel %vm7648, %v6048, %v7456
      %v7745 = vsel %vm7649, %v6049, %v7457
      %v7746 = vsel %vm7650, %v6050, %v7458
      %v7747 = vsel %vm7651, %v6051, %v7459
      %v7748 = vsel %vm7652, %v6052, %v7460
      %v7749 = vsel %vm7653, %v6053, %v7461
      %v7750 = vsel %vm7622, %v6054, %v7462
      %v7751 = vsel %vm7623, %v6055, %v7463
      %v7752 = vsel %vm7624, %v6056, %v7464
      %v7753 = vsel %vm7625, %v6057, %v7465
      %v7754 = vsel %vm7626, %v6058, %v7466
      %v7755 = vsel %vm7627, %v6059, %v7467
      %v7756 = vsel %vm7628, %v6060, %v7468
      %v7757 = vsel %vm7629, %v6061, %v7469
      %v7758 = vsel %vm7630, %v6062, %v7470
      %v7759 = vsel %vm7631, %v6063, %v7471
      %v7760 = vsel %vm7632, %v6064, %v7472
      %v7761 = vsel %vm7633, %v6065, %v7473
      %v7762 = vsel %vm7634, %v6066, %v7474
      %v7763 = vsel %vm7635, %v6067, %v7475
      %v7764 = vsel %vm7636, %v6068, %v7476
      %v7765 = vsel %vm7637, %v6069, %v7477
      %v7766 = vsel %vm7638, %v6070, %v7478
      %v7767 = vsel %vm7639, %v6071, %v7479
      %v7768 = vsel %vm7640, %v6072, %v7480
      %v7769 = vsel %vm7641, %v6073, %v7481
      %v7770 = vsel %vm7642, %v6074, %v7482
      %v7771 = vsel %vm7643, %v6075, %v7483
      %v7772 = vsel %vm7644, %v6076, %v7484
      %v7773 = vsel %vm7645, %v6077, %v7485
      %v7774 = vsel %vm7646, %v6078, %v7486
      %v7775 = vsel %vm7647, %v6079, %v7487
      %v7776 = vsel %vm7648, %v6080, %v7488
      %v7777 = vsel %vm7649, %v6081, %v7489
      %v7778 = vsel %vm7650, %v6082, %v7490
      %v7779 = vsel %vm7651, %v6083, %v7491
      %v7780 = vsel %vm7652, %v6084, %v7492
      %v7781 = vsel %vm7653, %v6085, %v7493
      %vm7782 = vcmp.lt.s32.totalorder %v7718, %v6310
      %vm7783 = vcmp.lt.s32.totalorder %v7719, %v6311
      %vm7784 = vcmp.lt.s32.totalorder %v7720, %v6312
      %vm7785 = vcmp.lt.s32.totalorder %v7721, %v6313
      %vm7786 = vcmp.lt.s32.totalorder %v7722, %v6314
      %vm7787 = vcmp.lt.s32.totalorder %v7723, %v6315
      %vm7788 = vcmp.lt.s32.totalorder %v7724, %v6316
      %vm7789 = vcmp.lt.s32.totalorder %v7725, %v6317
      %vm7790 = vcmp.lt.s32.totalorder %v7726, %v6318
      %vm7791 = vcmp.lt.s32.totalorder %v7727, %v6319
      %vm7792 = vcmp.lt.s32.totalorder %v7728, %v6320
      %vm7793 = vcmp.lt.s32.totalorder %v7729, %v6321
      %vm7794 = vcmp.lt.s32.totalorder %v7730, %v6322
      %vm7795 = vcmp.lt.s32.totalorder %v7731, %v6323
      %vm7796 = vcmp.lt.s32.totalorder %v7732, %v6324
      %vm7797 = vcmp.lt.s32.totalorder %v7733, %v6325
      %vm7798 = vcmp.lt.s32.totalorder %v7734, %v6326
      %vm7799 = vcmp.lt.s32.totalorder %v7735, %v6327
      %vm7800 = vcmp.lt.s32.totalorder %v7736, %v6328
      %vm7801 = vcmp.lt.s32.totalorder %v7737, %v6329
      %vm7802 = vcmp.lt.s32.totalorder %v7738, %v6330
      %vm7803 = vcmp.lt.s32.totalorder %v7739, %v6331
      %vm7804 = vcmp.lt.s32.totalorder %v7740, %v6332
      %vm7805 = vcmp.lt.s32.totalorder %v7741, %v6333
      %vm7806 = vcmp.lt.s32.totalorder %v7742, %v6334
      %vm7807 = vcmp.lt.s32.totalorder %v7743, %v6335
      %vm7808 = vcmp.lt.s32.totalorder %v7744, %v6336
      %vm7809 = vcmp.lt.s32.totalorder %v7745, %v6337
      %vm7810 = vcmp.lt.s32.totalorder %v7746, %v6338
      %vm7811 = vcmp.lt.s32.totalorder %v7747, %v6339
      %vm7812 = vcmp.lt.s32.totalorder %v7748, %v6340
      %vm7813 = vcmp.lt.s32.totalorder %v7749, %v6341
      %vm7814 = vcmp.eq.s32.totalorder %v7718, %v6310
      %vm7815 = vcmp.eq.s32.totalorder %v7719, %v6311
      %vm7816 = vcmp.eq.s32.totalorder %v7720, %v6312
      %vm7817 = vcmp.eq.s32.totalorder %v7721, %v6313
      %vm7818 = vcmp.eq.s32.totalorder %v7722, %v6314
      %vm7819 = vcmp.eq.s32.totalorder %v7723, %v6315
      %vm7820 = vcmp.eq.s32.totalorder %v7724, %v6316
      %vm7821 = vcmp.eq.s32.totalorder %v7725, %v6317
      %vm7822 = vcmp.eq.s32.totalorder %v7726, %v6318
      %vm7823 = vcmp.eq.s32.totalorder %v7727, %v6319
      %vm7824 = vcmp.eq.s32.totalorder %v7728, %v6320
      %vm7825 = vcmp.eq.s32.totalorder %v7729, %v6321
      %vm7826 = vcmp.eq.s32.totalorder %v7730, %v6322
      %vm7827 = vcmp.eq.s32.totalorder %v7731, %v6323
      %vm7828 = vcmp.eq.s32.totalorder %v7732, %v6324
      %vm7829 = vcmp.eq.s32.totalorder %v7733, %v6325
      %vm7830 = vcmp.eq.s32.totalorder %v7734, %v6326
      %vm7831 = vcmp.eq.s32.totalorder %v7735, %v6327
      %vm7832 = vcmp.eq.s32.totalorder %v7736, %v6328
      %vm7833 = vcmp.eq.s32.totalorder %v7737, %v6329
      %vm7834 = vcmp.eq.s32.totalorder %v7738, %v6330
      %vm7835 = vcmp.eq.s32.totalorder %v7739, %v6331
      %vm7836 = vcmp.eq.s32.totalorder %v7740, %v6332
      %vm7837 = vcmp.eq.s32.totalorder %v7741, %v6333
      %vm7838 = vcmp.eq.s32.totalorder %v7742, %v6334
      %vm7839 = vcmp.eq.s32.totalorder %v7743, %v6335
      %vm7840 = vcmp.eq.s32.totalorder %v7744, %v6336
      %vm7841 = vcmp.eq.s32.totalorder %v7745, %v6337
      %vm7842 = vcmp.eq.s32.totalorder %v7746, %v6338
      %vm7843 = vcmp.eq.s32.totalorder %v7747, %v6339
      %vm7844 = vcmp.eq.s32.totalorder %v7748, %v6340
      %vm7845 = vcmp.eq.s32.totalorder %v7749, %v6341
      %vm7846 = vcmp.lt.s32.totalorder %v7750, %v6342
      %vm7847 = vcmp.lt.s32.totalorder %v7751, %v6343
      %vm7848 = vcmp.lt.s32.totalorder %v7752, %v6344
      %vm7849 = vcmp.lt.s32.totalorder %v7753, %v6345
      %vm7850 = vcmp.lt.s32.totalorder %v7754, %v6346
      %vm7851 = vcmp.lt.s32.totalorder %v7755, %v6347
      %vm7852 = vcmp.lt.s32.totalorder %v7756, %v6348
      %vm7853 = vcmp.lt.s32.totalorder %v7757, %v6349
      %vm7854 = vcmp.lt.s32.totalorder %v7758, %v6350
      %vm7855 = vcmp.lt.s32.totalorder %v7759, %v6351
      %vm7856 = vcmp.lt.s32.totalorder %v7760, %v6352
      %vm7857 = vcmp.lt.s32.totalorder %v7761, %v6353
      %vm7858 = vcmp.lt.s32.totalorder %v7762, %v6354
      %vm7859 = vcmp.lt.s32.totalorder %v7763, %v6355
      %vm7860 = vcmp.lt.s32.totalorder %v7764, %v6356
      %vm7861 = vcmp.lt.s32.totalorder %v7765, %v6357
      %vm7862 = vcmp.lt.s32.totalorder %v7766, %v6358
      %vm7863 = vcmp.lt.s32.totalorder %v7767, %v6359
      %vm7864 = vcmp.lt.s32.totalorder %v7768, %v6360
      %vm7865 = vcmp.lt.s32.totalorder %v7769, %v6361
      %vm7866 = vcmp.lt.s32.totalorder %v7770, %v6362
      %vm7867 = vcmp.lt.s32.totalorder %v7771, %v6363
      %vm7868 = vcmp.lt.s32.totalorder %v7772, %v6364
      %vm7869 = vcmp.lt.s32.totalorder %v7773, %v6365
      %vm7870 = vcmp.lt.s32.totalorder %v7774, %v6366
      %vm7871 = vcmp.lt.s32.totalorder %v7775, %v6367
      %vm7872 = vcmp.lt.s32.totalorder %v7776, %v6368
      %vm7873 = vcmp.lt.s32.totalorder %v7777, %v6369
      %vm7874 = vcmp.lt.s32.totalorder %v7778, %v6370
      %vm7875 = vcmp.lt.s32.totalorder %v7779, %v6371
      %vm7876 = vcmp.lt.s32.totalorder %v7780, %v6372
      %vm7877 = vcmp.lt.s32.totalorder %v7781, %v6373
      %vm7878 = vmand %vm7814, %vm7846
      %vm7879 = vmand %vm7815, %vm7847
      %vm7880 = vmand %vm7816, %vm7848
      %vm7881 = vmand %vm7817, %vm7849
      %vm7882 = vmand %vm7818, %vm7850
      %vm7883 = vmand %vm7819, %vm7851
      %vm7884 = vmand %vm7820, %vm7852
      %vm7885 = vmand %vm7821, %vm7853
      %vm7886 = vmand %vm7822, %vm7854
      %vm7887 = vmand %vm7823, %vm7855
      %vm7888 = vmand %vm7824, %vm7856
      %vm7889 = vmand %vm7825, %vm7857
      %vm7890 = vmand %vm7826, %vm7858
      %vm7891 = vmand %vm7827, %vm7859
      %vm7892 = vmand %vm7828, %vm7860
      %vm7893 = vmand %vm7829, %vm7861
      %vm7894 = vmand %vm7830, %vm7862
      %vm7895 = vmand %vm7831, %vm7863
      %vm7896 = vmand %vm7832, %vm7864
      %vm7897 = vmand %vm7833, %vm7865
      %vm7898 = vmand %vm7834, %vm7866
      %vm7899 = vmand %vm7835, %vm7867
      %vm7900 = vmand %vm7836, %vm7868
      %vm7901 = vmand %vm7837, %vm7869
      %vm7902 = vmand %vm7838, %vm7870
      %vm7903 = vmand %vm7839, %vm7871
      %vm7904 = vmand %vm7840, %vm7872
      %vm7905 = vmand %vm7841, %vm7873
      %vm7906 = vmand %vm7842, %vm7874
      %vm7907 = vmand %vm7843, %vm7875
      %vm7908 = vmand %vm7844, %vm7876
      %vm7909 = vmand %vm7845, %vm7877
      %vm7910 = vmor %vm7782, %vm7878
      %vm7911 = vmor %vm7783, %vm7879
      %vm7912 = vmor %vm7784, %vm7880
      %vm7913 = vmor %vm7785, %vm7881
      %vm7914 = vmor %vm7786, %vm7882
      %vm7915 = vmor %vm7787, %vm7883
      %vm7916 = vmor %vm7788, %vm7884
      %vm7917 = vmor %vm7789, %vm7885
      %vm7918 = vmor %vm7790, %vm7886
      %vm7919 = vmor %vm7791, %vm7887
      %vm7920 = vmor %vm7792, %vm7888
      %vm7921 = vmor %vm7793, %vm7889
      %vm7922 = vmor %vm7794, %vm7890
      %vm7923 = vmor %vm7795, %vm7891
      %vm7924 = vmor %vm7796, %vm7892
      %vm7925 = vmor %vm7797, %vm7893
      %vm7926 = vmor %vm7798, %vm7894
      %vm7927 = vmor %vm7799, %vm7895
      %vm7928 = vmor %vm7800, %vm7896
      %vm7929 = vmor %vm7801, %vm7897
      %vm7930 = vmor %vm7802, %vm7898
      %vm7931 = vmor %vm7803, %vm7899
      %vm7932 = vmor %vm7804, %vm7900
      %vm7933 = vmor %vm7805, %vm7901
      %vm7934 = vmor %vm7806, %vm7902
      %vm7935 = vmor %vm7807, %vm7903
      %vm7936 = vmor %vm7808, %vm7904
      %vm7937 = vmor %vm7809, %vm7905
      %vm7938 = vmor %vm7810, %vm7906
      %vm7939 = vmor %vm7811, %vm7907
      %vm7940 = vmor %vm7812, %vm7908
      %vm7941 = vmor %vm7813, %vm7909
      %v7942 = vsel %vm7910, %v7718, %v6310
      %v7943 = vsel %vm7911, %v7719, %v6311
      %v7944 = vsel %vm7912, %v7720, %v6312
      %v7945 = vsel %vm7913, %v7721, %v6313
      %v7946 = vsel %vm7914, %v7722, %v6314
      %v7947 = vsel %vm7915, %v7723, %v6315
      %v7948 = vsel %vm7916, %v7724, %v6316
      %v7949 = vsel %vm7917, %v7725, %v6317
      %v7950 = vsel %vm7918, %v7726, %v6318
      %v7951 = vsel %vm7919, %v7727, %v6319
      %v7952 = vsel %vm7920, %v7728, %v6320
      %v7953 = vsel %vm7921, %v7729, %v6321
      %v7954 = vsel %vm7922, %v7730, %v6322
      %v7955 = vsel %vm7923, %v7731, %v6323
      %v7956 = vsel %vm7924, %v7732, %v6324
      %v7957 = vsel %vm7925, %v7733, %v6325
      %v7958 = vsel %vm7926, %v7734, %v6326
      %v7959 = vsel %vm7927, %v7735, %v6327
      %v7960 = vsel %vm7928, %v7736, %v6328
      %v7961 = vsel %vm7929, %v7737, %v6329
      %v7962 = vsel %vm7930, %v7738, %v6330
      %v7963 = vsel %vm7931, %v7739, %v6331
      %v7964 = vsel %vm7932, %v7740, %v6332
      %v7965 = vsel %vm7933, %v7741, %v6333
      %v7966 = vsel %vm7934, %v7742, %v6334
      %v7967 = vsel %vm7935, %v7743, %v6335
      %v7968 = vsel %vm7936, %v7744, %v6336
      %v7969 = vsel %vm7937, %v7745, %v6337
      %v7970 = vsel %vm7938, %v7746, %v6338
      %v7971 = vsel %vm7939, %v7747, %v6339
      %v7972 = vsel %vm7940, %v7748, %v6340
      %v7973 = vsel %vm7941, %v7749, %v6341
      %v7974 = vsel %vm7910, %v7750, %v6342
      %v7975 = vsel %vm7911, %v7751, %v6343
      %v7976 = vsel %vm7912, %v7752, %v6344
      %v7977 = vsel %vm7913, %v7753, %v6345
      %v7978 = vsel %vm7914, %v7754, %v6346
      %v7979 = vsel %vm7915, %v7755, %v6347
      %v7980 = vsel %vm7916, %v7756, %v6348
      %v7981 = vsel %vm7917, %v7757, %v6349
      %v7982 = vsel %vm7918, %v7758, %v6350
      %v7983 = vsel %vm7919, %v7759, %v6351
      %v7984 = vsel %vm7920, %v7760, %v6352
      %v7985 = vsel %vm7921, %v7761, %v6353
      %v7986 = vsel %vm7922, %v7762, %v6354
      %v7987 = vsel %vm7923, %v7763, %v6355
      %v7988 = vsel %vm7924, %v7764, %v6356
      %v7989 = vsel %vm7925, %v7765, %v6357
      %v7990 = vsel %vm7926, %v7766, %v6358
      %v7991 = vsel %vm7927, %v7767, %v6359
      %v7992 = vsel %vm7928, %v7768, %v6360
      %v7993 = vsel %vm7929, %v7769, %v6361
      %v7994 = vsel %vm7930, %v7770, %v6362
      %v7995 = vsel %vm7931, %v7771, %v6363
      %v7996 = vsel %vm7932, %v7772, %v6364
      %v7997 = vsel %vm7933, %v7773, %v6365
      %v7998 = vsel %vm7934, %v7774, %v6366
      %v7999 = vsel %vm7935, %v7775, %v6367
      %v8000 = vsel %vm7936, %v7776, %v6368
      %v8001 = vsel %vm7937, %v7777, %v6369
      %v8002 = vsel %vm7938, %v7778, %v6370
      %v8003 = vsel %vm7939, %v7779, %v6371
      %v8004 = vsel %vm7940, %v7780, %v6372
      %v8005 = vsel %vm7941, %v7781, %v6373
      %v8006 = vsel %vm7910, %v6310, %v7718
      %v8007 = vsel %vm7911, %v6311, %v7719
      %v8008 = vsel %vm7912, %v6312, %v7720
      %v8009 = vsel %vm7913, %v6313, %v7721
      %v8010 = vsel %vm7914, %v6314, %v7722
      %v8011 = vsel %vm7915, %v6315, %v7723
      %v8012 = vsel %vm7916, %v6316, %v7724
      %v8013 = vsel %vm7917, %v6317, %v7725
      %v8014 = vsel %vm7918, %v6318, %v7726
      %v8015 = vsel %vm7919, %v6319, %v7727
      %v8016 = vsel %vm7920, %v6320, %v7728
      %v8017 = vsel %vm7921, %v6321, %v7729
      %v8018 = vsel %vm7922, %v6322, %v7730
      %v8019 = vsel %vm7923, %v6323, %v7731
      %v8020 = vsel %vm7924, %v6324, %v7732
      %v8021 = vsel %vm7925, %v6325, %v7733
      %v8022 = vsel %vm7926, %v6326, %v7734
      %v8023 = vsel %vm7927, %v6327, %v7735
      %v8024 = vsel %vm7928, %v6328, %v7736
      %v8025 = vsel %vm7929, %v6329, %v7737
      %v8026 = vsel %vm7930, %v6330, %v7738
      %v8027 = vsel %vm7931, %v6331, %v7739
      %v8028 = vsel %vm7932, %v6332, %v7740
      %v8029 = vsel %vm7933, %v6333, %v7741
      %v8030 = vsel %vm7934, %v6334, %v7742
      %v8031 = vsel %vm7935, %v6335, %v7743
      %v8032 = vsel %vm7936, %v6336, %v7744
      %v8033 = vsel %vm7937, %v6337, %v7745
      %v8034 = vsel %vm7938, %v6338, %v7746
      %v8035 = vsel %vm7939, %v6339, %v7747
      %v8036 = vsel %vm7940, %v6340, %v7748
      %v8037 = vsel %vm7941, %v6341, %v7749
      %v8038 = vsel %vm7910, %v6342, %v7750
      %v8039 = vsel %vm7911, %v6343, %v7751
      %v8040 = vsel %vm7912, %v6344, %v7752
      %v8041 = vsel %vm7913, %v6345, %v7753
      %v8042 = vsel %vm7914, %v6346, %v7754
      %v8043 = vsel %vm7915, %v6347, %v7755
      %v8044 = vsel %vm7916, %v6348, %v7756
      %v8045 = vsel %vm7917, %v6349, %v7757
      %v8046 = vsel %vm7918, %v6350, %v7758
      %v8047 = vsel %vm7919, %v6351, %v7759
      %v8048 = vsel %vm7920, %v6352, %v7760
      %v8049 = vsel %vm7921, %v6353, %v7761
      %v8050 = vsel %vm7922, %v6354, %v7762
      %v8051 = vsel %vm7923, %v6355, %v7763
      %v8052 = vsel %vm7924, %v6356, %v7764
      %v8053 = vsel %vm7925, %v6357, %v7765
      %v8054 = vsel %vm7926, %v6358, %v7766
      %v8055 = vsel %vm7927, %v6359, %v7767
      %v8056 = vsel %vm7928, %v6360, %v7768
      %v8057 = vsel %vm7929, %v6361, %v7769
      %v8058 = vsel %vm7930, %v6362, %v7770
      %v8059 = vsel %vm7931, %v6363, %v7771
      %v8060 = vsel %vm7932, %v6364, %v7772
      %v8061 = vsel %vm7933, %v6365, %v7773
      %v8062 = vsel %vm7934, %v6366, %v7774
      %v8063 = vsel %vm7935, %v6367, %v7775
      %v8064 = vsel %vm7936, %v6368, %v7776
      %v8065 = vsel %vm7937, %v6369, %v7777
      %v8066 = vsel %vm7938, %v6370, %v7778
      %v8067 = vsel %vm7939, %v6371, %v7779
      %v8068 = vsel %vm7940, %v6372, %v7780
      %v8069 = vsel %vm7941, %v6373, %v7781
      %vm8070 = vcmp.lt.s32.totalorder %v8006, %v6598
      %vm8071 = vcmp.lt.s32.totalorder %v8007, %v6599
      %vm8072 = vcmp.lt.s32.totalorder %v8008, %v6600
      %vm8073 = vcmp.lt.s32.totalorder %v8009, %v6601
      %vm8074 = vcmp.lt.s32.totalorder %v8010, %v6602
      %vm8075 = vcmp.lt.s32.totalorder %v8011, %v6603
      %vm8076 = vcmp.lt.s32.totalorder %v8012, %v6604
      %vm8077 = vcmp.lt.s32.totalorder %v8013, %v6605
      %vm8078 = vcmp.lt.s32.totalorder %v8014, %v6606
      %vm8079 = vcmp.lt.s32.totalorder %v8015, %v6607
      %vm8080 = vcmp.lt.s32.totalorder %v8016, %v6608
      %vm8081 = vcmp.lt.s32.totalorder %v8017, %v6609
      %vm8082 = vcmp.lt.s32.totalorder %v8018, %v6610
      %vm8083 = vcmp.lt.s32.totalorder %v8019, %v6611
      %vm8084 = vcmp.lt.s32.totalorder %v8020, %v6612
      %vm8085 = vcmp.lt.s32.totalorder %v8021, %v6613
      %vm8086 = vcmp.lt.s32.totalorder %v8022, %v6614
      %vm8087 = vcmp.lt.s32.totalorder %v8023, %v6615
      %vm8088 = vcmp.lt.s32.totalorder %v8024, %v6616
      %vm8089 = vcmp.lt.s32.totalorder %v8025, %v6617
      %vm8090 = vcmp.lt.s32.totalorder %v8026, %v6618
      %vm8091 = vcmp.lt.s32.totalorder %v8027, %v6619
      %vm8092 = vcmp.lt.s32.totalorder %v8028, %v6620
      %vm8093 = vcmp.lt.s32.totalorder %v8029, %v6621
      %vm8094 = vcmp.lt.s32.totalorder %v8030, %v6622
      %vm8095 = vcmp.lt.s32.totalorder %v8031, %v6623
      %vm8096 = vcmp.lt.s32.totalorder %v8032, %v6624
      %vm8097 = vcmp.lt.s32.totalorder %v8033, %v6625
      %vm8098 = vcmp.lt.s32.totalorder %v8034, %v6626
      %vm8099 = vcmp.lt.s32.totalorder %v8035, %v6627
      %vm8100 = vcmp.lt.s32.totalorder %v8036, %v6628
      %vm8101 = vcmp.lt.s32.totalorder %v8037, %v6629
      %vm8102 = vcmp.eq.s32.totalorder %v8006, %v6598
      %vm8103 = vcmp.eq.s32.totalorder %v8007, %v6599
      %vm8104 = vcmp.eq.s32.totalorder %v8008, %v6600
      %vm8105 = vcmp.eq.s32.totalorder %v8009, %v6601
      %vm8106 = vcmp.eq.s32.totalorder %v8010, %v6602
      %vm8107 = vcmp.eq.s32.totalorder %v8011, %v6603
      %vm8108 = vcmp.eq.s32.totalorder %v8012, %v6604
      %vm8109 = vcmp.eq.s32.totalorder %v8013, %v6605
      %vm8110 = vcmp.eq.s32.totalorder %v8014, %v6606
      %vm8111 = vcmp.eq.s32.totalorder %v8015, %v6607
      %vm8112 = vcmp.eq.s32.totalorder %v8016, %v6608
      %vm8113 = vcmp.eq.s32.totalorder %v8017, %v6609
      %vm8114 = vcmp.eq.s32.totalorder %v8018, %v6610
      %vm8115 = vcmp.eq.s32.totalorder %v8019, %v6611
      %vm8116 = vcmp.eq.s32.totalorder %v8020, %v6612
      %vm8117 = vcmp.eq.s32.totalorder %v8021, %v6613
      %vm8118 = vcmp.eq.s32.totalorder %v8022, %v6614
      %vm8119 = vcmp.eq.s32.totalorder %v8023, %v6615
      %vm8120 = vcmp.eq.s32.totalorder %v8024, %v6616
      %vm8121 = vcmp.eq.s32.totalorder %v8025, %v6617
      %vm8122 = vcmp.eq.s32.totalorder %v8026, %v6618
      %vm8123 = vcmp.eq.s32.totalorder %v8027, %v6619
      %vm8124 = vcmp.eq.s32.totalorder %v8028, %v6620
      %vm8125 = vcmp.eq.s32.totalorder %v8029, %v6621
      %vm8126 = vcmp.eq.s32.totalorder %v8030, %v6622
      %vm8127 = vcmp.eq.s32.totalorder %v8031, %v6623
      %vm8128 = vcmp.eq.s32.totalorder %v8032, %v6624
      %vm8129 = vcmp.eq.s32.totalorder %v8033, %v6625
      %vm8130 = vcmp.eq.s32.totalorder %v8034, %v6626
      %vm8131 = vcmp.eq.s32.totalorder %v8035, %v6627
      %vm8132 = vcmp.eq.s32.totalorder %v8036, %v6628
      %vm8133 = vcmp.eq.s32.totalorder %v8037, %v6629
      %vm8134 = vcmp.lt.s32.totalorder %v8038, %v6630
      %vm8135 = vcmp.lt.s32.totalorder %v8039, %v6631
      %vm8136 = vcmp.lt.s32.totalorder %v8040, %v6632
      %vm8137 = vcmp.lt.s32.totalorder %v8041, %v6633
      %vm8138 = vcmp.lt.s32.totalorder %v8042, %v6634
      %vm8139 = vcmp.lt.s32.totalorder %v8043, %v6635
      %vm8140 = vcmp.lt.s32.totalorder %v8044, %v6636
      %vm8141 = vcmp.lt.s32.totalorder %v8045, %v6637
      %vm8142 = vcmp.lt.s32.totalorder %v8046, %v6638
      %vm8143 = vcmp.lt.s32.totalorder %v8047, %v6639
      %vm8144 = vcmp.lt.s32.totalorder %v8048, %v6640
      %vm8145 = vcmp.lt.s32.totalorder %v8049, %v6641
      %vm8146 = vcmp.lt.s32.totalorder %v8050, %v6642
      %vm8147 = vcmp.lt.s32.totalorder %v8051, %v6643
      %vm8148 = vcmp.lt.s32.totalorder %v8052, %v6644
      %vm8149 = vcmp.lt.s32.totalorder %v8053, %v6645
      %vm8150 = vcmp.lt.s32.totalorder %v8054, %v6646
      %vm8151 = vcmp.lt.s32.totalorder %v8055, %v6647
      %vm8152 = vcmp.lt.s32.totalorder %v8056, %v6648
      %vm8153 = vcmp.lt.s32.totalorder %v8057, %v6649
      %vm8154 = vcmp.lt.s32.totalorder %v8058, %v6650
      %vm8155 = vcmp.lt.s32.totalorder %v8059, %v6651
      %vm8156 = vcmp.lt.s32.totalorder %v8060, %v6652
      %vm8157 = vcmp.lt.s32.totalorder %v8061, %v6653
      %vm8158 = vcmp.lt.s32.totalorder %v8062, %v6654
      %vm8159 = vcmp.lt.s32.totalorder %v8063, %v6655
      %vm8160 = vcmp.lt.s32.totalorder %v8064, %v6656
      %vm8161 = vcmp.lt.s32.totalorder %v8065, %v6657
      %vm8162 = vcmp.lt.s32.totalorder %v8066, %v6658
      %vm8163 = vcmp.lt.s32.totalorder %v8067, %v6659
      %vm8164 = vcmp.lt.s32.totalorder %v8068, %v6660
      %vm8165 = vcmp.lt.s32.totalorder %v8069, %v6661
      %vm8166 = vmand %vm8102, %vm8134
      %vm8167 = vmand %vm8103, %vm8135
      %vm8168 = vmand %vm8104, %vm8136
      %vm8169 = vmand %vm8105, %vm8137
      %vm8170 = vmand %vm8106, %vm8138
      %vm8171 = vmand %vm8107, %vm8139
      %vm8172 = vmand %vm8108, %vm8140
      %vm8173 = vmand %vm8109, %vm8141
      %vm8174 = vmand %vm8110, %vm8142
      %vm8175 = vmand %vm8111, %vm8143
      %vm8176 = vmand %vm8112, %vm8144
      %vm8177 = vmand %vm8113, %vm8145
      %vm8178 = vmand %vm8114, %vm8146
      %vm8179 = vmand %vm8115, %vm8147
      %vm8180 = vmand %vm8116, %vm8148
      %vm8181 = vmand %vm8117, %vm8149
      %vm8182 = vmand %vm8118, %vm8150
      %vm8183 = vmand %vm8119, %vm8151
      %vm8184 = vmand %vm8120, %vm8152
      %vm8185 = vmand %vm8121, %vm8153
      %vm8186 = vmand %vm8122, %vm8154
      %vm8187 = vmand %vm8123, %vm8155
      %vm8188 = vmand %vm8124, %vm8156
      %vm8189 = vmand %vm8125, %vm8157
      %vm8190 = vmand %vm8126, %vm8158
      %vm8191 = vmand %vm8127, %vm8159
      %vm8192 = vmand %vm8128, %vm8160
      %vm8193 = vmand %vm8129, %vm8161
      %vm8194 = vmand %vm8130, %vm8162
      %vm8195 = vmand %vm8131, %vm8163
      %vm8196 = vmand %vm8132, %vm8164
      %vm8197 = vmand %vm8133, %vm8165
      %vm8198 = vmor %vm8070, %vm8166
      %vm8199 = vmor %vm8071, %vm8167
      %vm8200 = vmor %vm8072, %vm8168
      %vm8201 = vmor %vm8073, %vm8169
      %vm8202 = vmor %vm8074, %vm8170
      %vm8203 = vmor %vm8075, %vm8171
      %vm8204 = vmor %vm8076, %vm8172
      %vm8205 = vmor %vm8077, %vm8173
      %vm8206 = vmor %vm8078, %vm8174
      %vm8207 = vmor %vm8079, %vm8175
      %vm8208 = vmor %vm8080, %vm8176
      %vm8209 = vmor %vm8081, %vm8177
      %vm8210 = vmor %vm8082, %vm8178
      %vm8211 = vmor %vm8083, %vm8179
      %vm8212 = vmor %vm8084, %vm8180
      %vm8213 = vmor %vm8085, %vm8181
      %vm8214 = vmor %vm8086, %vm8182
      %vm8215 = vmor %vm8087, %vm8183
      %vm8216 = vmor %vm8088, %vm8184
      %vm8217 = vmor %vm8089, %vm8185
      %vm8218 = vmor %vm8090, %vm8186
      %vm8219 = vmor %vm8091, %vm8187
      %vm8220 = vmor %vm8092, %vm8188
      %vm8221 = vmor %vm8093, %vm8189
      %vm8222 = vmor %vm8094, %vm8190
      %vm8223 = vmor %vm8095, %vm8191
      %vm8224 = vmor %vm8096, %vm8192
      %vm8225 = vmor %vm8097, %vm8193
      %vm8226 = vmor %vm8098, %vm8194
      %vm8227 = vmor %vm8099, %vm8195
      %vm8228 = vmor %vm8100, %vm8196
      %vm8229 = vmor %vm8101, %vm8197
      %v8230 = vsel %vm8198, %v8006, %v6598
      %v8231 = vsel %vm8199, %v8007, %v6599
      %v8232 = vsel %vm8200, %v8008, %v6600
      %v8233 = vsel %vm8201, %v8009, %v6601
      %v8234 = vsel %vm8202, %v8010, %v6602
      %v8235 = vsel %vm8203, %v8011, %v6603
      %v8236 = vsel %vm8204, %v8012, %v6604
      %v8237 = vsel %vm8205, %v8013, %v6605
      %v8238 = vsel %vm8206, %v8014, %v6606
      %v8239 = vsel %vm8207, %v8015, %v6607
      %v8240 = vsel %vm8208, %v8016, %v6608
      %v8241 = vsel %vm8209, %v8017, %v6609
      %v8242 = vsel %vm8210, %v8018, %v6610
      %v8243 = vsel %vm8211, %v8019, %v6611
      %v8244 = vsel %vm8212, %v8020, %v6612
      %v8245 = vsel %vm8213, %v8021, %v6613
      %v8246 = vsel %vm8214, %v8022, %v6614
      %v8247 = vsel %vm8215, %v8023, %v6615
      %v8248 = vsel %vm8216, %v8024, %v6616
      %v8249 = vsel %vm8217, %v8025, %v6617
      %v8250 = vsel %vm8218, %v8026, %v6618
      %v8251 = vsel %vm8219, %v8027, %v6619
      %v8252 = vsel %vm8220, %v8028, %v6620
      %v8253 = vsel %vm8221, %v8029, %v6621
      %v8254 = vsel %vm8222, %v8030, %v6622
      %v8255 = vsel %vm8223, %v8031, %v6623
      %v8256 = vsel %vm8224, %v8032, %v6624
      %v8257 = vsel %vm8225, %v8033, %v6625
      %v8258 = vsel %vm8226, %v8034, %v6626
      %v8259 = vsel %vm8227, %v8035, %v6627
      %v8260 = vsel %vm8228, %v8036, %v6628
      %v8261 = vsel %vm8229, %v8037, %v6629
      %v8262 = vsel %vm8198, %v8038, %v6630
      %v8263 = vsel %vm8199, %v8039, %v6631
      %v8264 = vsel %vm8200, %v8040, %v6632
      %v8265 = vsel %vm8201, %v8041, %v6633
      %v8266 = vsel %vm8202, %v8042, %v6634
      %v8267 = vsel %vm8203, %v8043, %v6635
      %v8268 = vsel %vm8204, %v8044, %v6636
      %v8269 = vsel %vm8205, %v8045, %v6637
      %v8270 = vsel %vm8206, %v8046, %v6638
      %v8271 = vsel %vm8207, %v8047, %v6639
      %v8272 = vsel %vm8208, %v8048, %v6640
      %v8273 = vsel %vm8209, %v8049, %v6641
      %v8274 = vsel %vm8210, %v8050, %v6642
      %v8275 = vsel %vm8211, %v8051, %v6643
      %v8276 = vsel %vm8212, %v8052, %v6644
      %v8277 = vsel %vm8213, %v8053, %v6645
      %v8278 = vsel %vm8214, %v8054, %v6646
      %v8279 = vsel %vm8215, %v8055, %v6647
      %v8280 = vsel %vm8216, %v8056, %v6648
      %v8281 = vsel %vm8217, %v8057, %v6649
      %v8282 = vsel %vm8218, %v8058, %v6650
      %v8283 = vsel %vm8219, %v8059, %v6651
      %v8284 = vsel %vm8220, %v8060, %v6652
      %v8285 = vsel %vm8221, %v8061, %v6653
      %v8286 = vsel %vm8222, %v8062, %v6654
      %v8287 = vsel %vm8223, %v8063, %v6655
      %v8288 = vsel %vm8224, %v8064, %v6656
      %v8289 = vsel %vm8225, %v8065, %v6657
      %v8290 = vsel %vm8226, %v8066, %v6658
      %v8291 = vsel %vm8227, %v8067, %v6659
      %v8292 = vsel %vm8228, %v8068, %v6660
      %v8293 = vsel %vm8229, %v8069, %v6661
      %8294 = vrot.lane.b32.xlu0 %v7654, 1
      %v8295 = vpop.permute.xlu0 %8294
      %8296 = vrot.lane.b32.xlu0 %v7655, 1
      %v8297 = vpop.permute.xlu0 %8296
      %8298 = vrot.lane.b32.xlu0 %v7656, 1
      %v8299 = vpop.permute.xlu0 %8298
      %8300 = vrot.lane.b32.xlu0 %v7657, 1
      %v8301 = vpop.permute.xlu0 %8300
      %8302 = vrot.lane.b32.xlu0 %v7658, 1
      %v8303 = vpop.permute.xlu0 %8302
      %8304 = vrot.lane.b32.xlu0 %v7659, 1
      %v8305 = vpop.permute.xlu0 %8304
      %8306 = vrot.lane.b32.xlu0 %v7660, 1
      %v8307 = vpop.permute.xlu0 %8306
      %8308 = vrot.lane.b32.xlu0 %v7661, 1
      %v8309 = vpop.permute.xlu0 %8308
      %8310 = vrot.lane.b32.xlu0 %v7662, 1
      %v8311 = vpop.permute.xlu0 %8310
      %8312 = vrot.lane.b32.xlu0 %v7663, 1
      %v8313 = vpop.permute.xlu0 %8312
      %8314 = vrot.lane.b32.xlu0 %v7664, 1
      %v8315 = vpop.permute.xlu0 %8314
      %8316 = vrot.lane.b32.xlu0 %v7665, 1
      %v8317 = vpop.permute.xlu0 %8316
      %8318 = vrot.lane.b32.xlu0 %v7666, 1
      %v8319 = vpop.permute.xlu0 %8318
      %8320 = vrot.lane.b32.xlu0 %v7667, 1
      %v8321 = vpop.permute.xlu0 %8320
      %8322 = vrot.lane.b32.xlu0 %v7668, 1
      %v8323 = vpop.permute.xlu0 %8322
      %8324 = vrot.lane.b32.xlu0 %v7669, 1
      %v8325 = vpop.permute.xlu0 %8324
      %8326 = vrot.lane.b32.xlu0 %v7670, 1
      %v8327 = vpop.permute.xlu0 %8326
      %8328 = vrot.lane.b32.xlu0 %v7671, 1
      %v8329 = vpop.permute.xlu0 %8328
      %8330 = vrot.lane.b32.xlu0 %v7672, 1
      %v8331 = vpop.permute.xlu0 %8330
      %8332 = vrot.lane.b32.xlu0 %v7673, 1
      %v8333 = vpop.permute.xlu0 %8332
      %8334 = vrot.lane.b32.xlu0 %v7674, 1
      %v8335 = vpop.permute.xlu0 %8334
      %8336 = vrot.lane.b32.xlu0 %v7675, 1
      %v8337 = vpop.permute.xlu0 %8336
      %8338 = vrot.lane.b32.xlu0 %v7676, 1
      %v8339 = vpop.permute.xlu0 %8338
      %8340 = vrot.lane.b32.xlu0 %v7677, 1
      %v8341 = vpop.permute.xlu0 %8340
      %8342 = vrot.lane.b32.xlu0 %v7678, 1
      %v8343 = vpop.permute.xlu0 %8342
      %8344 = vrot.lane.b32.xlu0 %v7679, 1
      %v8345 = vpop.permute.xlu0 %8344
      %8346 = vrot.lane.b32.xlu0 %v7680, 1
      %v8347 = vpop.permute.xlu0 %8346
      %8348 = vrot.lane.b32.xlu0 %v7681, 1
      %v8349 = vpop.permute.xlu0 %8348
      %8350 = vrot.lane.b32.xlu0 %v7682, 1
      %v8351 = vpop.permute.xlu0 %8350
      %8352 = vrot.lane.b32.xlu0 %v7683, 1
      %v8353 = vpop.permute.xlu0 %8352
      %8354 = vrot.lane.b32.xlu0 %v7684, 1
      %v8355 = vpop.permute.xlu0 %8354
      %8356 = vrot.lane.b32.xlu0 %v7685, 1
      %v8357 = vpop.permute.xlu0 %8356
      %8358 = vrot.lane.b32.xlu0 %v7942, 2
      %v8359 = vpop.permute.xlu0 %8358
      %8360 = vrot.lane.b32.xlu0 %v7943, 2
      %v8361 = vpop.permute.xlu0 %8360
      %8362 = vrot.lane.b32.xlu0 %v7944, 2
      %v8363 = vpop.permute.xlu0 %8362
      %8364 = vrot.lane.b32.xlu0 %v7945, 2
      %v8365 = vpop.permute.xlu0 %8364
      %8366 = vrot.lane.b32.xlu0 %v7946, 2
      %v8367 = vpop.permute.xlu0 %8366
      %8368 = vrot.lane.b32.xlu0 %v7947, 2
      %v8369 = vpop.permute.xlu0 %8368
      %8370 = vrot.lane.b32.xlu0 %v7948, 2
      %v8371 = vpop.permute.xlu0 %8370
      %8372 = vrot.lane.b32.xlu0 %v7949, 2
      %v8373 = vpop.permute.xlu0 %8372
      %8374 = vrot.lane.b32.xlu0 %v7950, 2
      %v8375 = vpop.permute.xlu0 %8374
      %8376 = vrot.lane.b32.xlu0 %v7951, 2
      %v8377 = vpop.permute.xlu0 %8376
      %8378 = vrot.lane.b32.xlu0 %v7952, 2
      %v8379 = vpop.permute.xlu0 %8378
      %8380 = vrot.lane.b32.xlu0 %v7953, 2
      %v8381 = vpop.permute.xlu0 %8380
      %8382 = vrot.lane.b32.xlu0 %v7954, 2
      %v8383 = vpop.permute.xlu0 %8382
      %8384 = vrot.lane.b32.xlu0 %v7955, 2
      %v8385 = vpop.permute.xlu0 %8384
      %8386 = vrot.lane.b32.xlu0 %v7956, 2
      %v8387 = vpop.permute.xlu0 %8386
      %8388 = vrot.lane.b32.xlu0 %v7957, 2
      %v8389 = vpop.permute.xlu0 %8388
      %8390 = vrot.lane.b32.xlu0 %v7958, 2
      %v8391 = vpop.permute.xlu0 %8390
      %8392 = vrot.lane.b32.xlu0 %v7959, 2
      %v8393 = vpop.permute.xlu0 %8392
      %8394 = vrot.lane.b32.xlu0 %v7960, 2
      %v8395 = vpop.permute.xlu0 %8394
      %8396 = vrot.lane.b32.xlu0 %v7961, 2
      %v8397 = vpop.permute.xlu0 %8396
      %8398 = vrot.lane.b32.xlu0 %v7962, 2
      %v8399 = vpop.permute.xlu0 %8398
      %8400 = vrot.lane.b32.xlu0 %v7963, 2
      %v8401 = vpop.permute.xlu0 %8400
      %8402 = vrot.lane.b32.xlu0 %v7964, 2
      %v8403 = vpop.permute.xlu0 %8402
      %8404 = vrot.lane.b32.xlu0 %v7965, 2
      %v8405 = vpop.permute.xlu0 %8404
      %8406 = vrot.lane.b32.xlu0 %v7966, 2
      %v8407 = vpop.permute.xlu0 %8406
      %8408 = vrot.lane.b32.xlu0 %v7967, 2
      %v8409 = vpop.permute.xlu0 %8408
      %8410 = vrot.lane.b32.xlu0 %v7968, 2
      %v8411 = vpop.permute.xlu0 %8410
      %8412 = vrot.lane.b32.xlu0 %v7969, 2
      %v8413 = vpop.permute.xlu0 %8412
      %8414 = vrot.lane.b32.xlu0 %v7970, 2
      %v8415 = vpop.permute.xlu0 %8414
      %8416 = vrot.lane.b32.xlu0 %v7971, 2
      %v8417 = vpop.permute.xlu0 %8416
      %8418 = vrot.lane.b32.xlu0 %v7972, 2
      %v8419 = vpop.permute.xlu0 %8418
      %8420 = vrot.lane.b32.xlu0 %v7973, 2
      %v8421 = vpop.permute.xlu0 %8420
      %8422 = vrot.lane.b32.xlu0 %v8230, 3
      %v8423 = vpop.permute.xlu0 %8422
      %8424 = vrot.lane.b32.xlu0 %v8231, 3
      %v8425 = vpop.permute.xlu0 %8424
      %8426 = vrot.lane.b32.xlu0 %v8232, 3
      %v8427 = vpop.permute.xlu0 %8426
      %8428 = vrot.lane.b32.xlu0 %v8233, 3
      %v8429 = vpop.permute.xlu0 %8428
      %8430 = vrot.lane.b32.xlu0 %v8234, 3
      %v8431 = vpop.permute.xlu0 %8430
      %8432 = vrot.lane.b32.xlu0 %v8235, 3
      %v8433 = vpop.permute.xlu0 %8432
      %8434 = vrot.lane.b32.xlu0 %v8236, 3
      %v8435 = vpop.permute.xlu0 %8434
      %8436 = vrot.lane.b32.xlu0 %v8237, 3
      %v8437 = vpop.permute.xlu0 %8436
      %8438 = vrot.lane.b32.xlu0 %v8238, 3
      %v8439 = vpop.permute.xlu0 %8438
      %8440 = vrot.lane.b32.xlu0 %v8239, 3
      %v8441 = vpop.permute.xlu0 %8440
      %8442 = vrot.lane.b32.xlu0 %v8240, 3
      %v8443 = vpop.permute.xlu0 %8442
      %8444 = vrot.lane.b32.xlu0 %v8241, 3
      %v8445 = vpop.permute.xlu0 %8444
      %8446 = vrot.lane.b32.xlu0 %v8242, 3
      %v8447 = vpop.permute.xlu0 %8446
      %8448 = vrot.lane.b32.xlu0 %v8243, 3
      %v8449 = vpop.permute.xlu0 %8448
      %8450 = vrot.lane.b32.xlu0 %v8244, 3
      %v8451 = vpop.permute.xlu0 %8450
      %8452 = vrot.lane.b32.xlu0 %v8245, 3
      %v8453 = vpop.permute.xlu0 %8452
      %8454 = vrot.lane.b32.xlu0 %v8246, 3
      %v8455 = vpop.permute.xlu0 %8454
      %8456 = vrot.lane.b32.xlu0 %v8247, 3
      %v8457 = vpop.permute.xlu0 %8456
      %8458 = vrot.lane.b32.xlu0 %v8248, 3
      %v8459 = vpop.permute.xlu0 %8458
      %8460 = vrot.lane.b32.xlu0 %v8249, 3
      %v8461 = vpop.permute.xlu0 %8460
      %8462 = vrot.lane.b32.xlu0 %v8250, 3
      %v8463 = vpop.permute.xlu0 %8462
      %8464 = vrot.lane.b32.xlu0 %v8251, 3
      %v8465 = vpop.permute.xlu0 %8464
      %8466 = vrot.lane.b32.xlu0 %v8252, 3
      %v8467 = vpop.permute.xlu0 %8466
      %8468 = vrot.lane.b32.xlu0 %v8253, 3
      %v8469 = vpop.permute.xlu0 %8468
      %8470 = vrot.lane.b32.xlu0 %v8254, 3
      %v8471 = vpop.permute.xlu0 %8470
      %8472 = vrot.lane.b32.xlu0 %v8255, 3
      %v8473 = vpop.permute.xlu0 %8472
      %8474 = vrot.lane.b32.xlu0 %v8256, 3
      %v8475 = vpop.permute.xlu0 %8474
      %8476 = vrot.lane.b32.xlu0 %v8257, 3
      %v8477 = vpop.permute.xlu0 %8476
      %8478 = vrot.lane.b32.xlu0 %v8258, 3
      %v8479 = vpop.permute.xlu0 %8478
      %8480 = vrot.lane.b32.xlu0 %v8259, 3
      %v8481 = vpop.permute.xlu0 %8480
      %8482 = vrot.lane.b32.xlu0 %v8260, 3
      %v8483 = vpop.permute.xlu0 %8482
      %8484 = vrot.lane.b32.xlu0 %v8261, 3
      %v8485 = vpop.permute.xlu0 %8484
      %vm8486 = vcmask 7168
      %v8487 = vsel %vm8486, %v7366, %v8295
      %v8488 = vsel %vm8486, %v7367, %v8297
      %v8489 = vsel %vm8486, %v7368, %v8299
      %v8490 = vsel %vm8486, %v7369, %v8301
      %v8491 = vsel %vm8486, %v7370, %v8303
      %v8492 = vsel %vm8486, %v7371, %v8305
      %v8493 = vsel %vm8486, %v7372, %v8307
      %v8494 = vsel %vm8486, %v7373, %v8309
      %v8495 = vsel %vm8486, %v7374, %v8311
      %v8496 = vsel %vm8486, %v7375, %v8313
      %v8497 = vsel %vm8486, %v7376, %v8315
      %v8498 = vsel %vm8486, %v7377, %v8317
      %v8499 = vsel %vm8486, %v7378, %v8319
      %v8500 = vsel %vm8486, %v7379, %v8321
      %v8501 = vsel %vm8486, %v7380, %v8323
      %v8502 = vsel %vm8486, %v7381, %v8325
      %v8503 = vsel %vm8486, %v7382, %v8327
      %v8504 = vsel %vm8486, %v7383, %v8329
      %v8505 = vsel %vm8486, %v7384, %v8331
      %v8506 = vsel %vm8486, %v7385, %v8333
      %v8507 = vsel %vm8486, %v7386, %v8335
      %v8508 = vsel %vm8486, %v7387, %v8337
      %v8509 = vsel %vm8486, %v7388, %v8339
      %v8510 = vsel %vm8486, %v7389, %v8341
      %v8511 = vsel %vm8486, %v7390, %v8343
      %v8512 = vsel %vm8486, %v7391, %v8345
      %v8513 = vsel %vm8486, %v7392, %v8347
      %v8514 = vsel %vm8486, %v7393, %v8349
      %v8515 = vsel %vm8486, %v7394, %v8351
      %v8516 = vsel %vm8486, %v7395, %v8353
      %v8517 = vsel %vm8486, %v7396, %v8355
      %v8518 = vsel %vm8486, %v7397, %v8357
      %vm8519 = vcmask 15360
      %v8520 = vsel %vm8519, %v8487, %v8359
      %v8521 = vsel %vm8519, %v8488, %v8361
      %v8522 = vsel %vm8519, %v8489, %v8363
      %v8523 = vsel %vm8519, %v8490, %v8365
      %v8524 = vsel %vm8519, %v8491, %v8367
      %v8525 = vsel %vm8519, %v8492, %v8369
      %v8526 = vsel %vm8519, %v8493, %v8371
      %v8527 = vsel %vm8519, %v8494, %v8373
      %v8528 = vsel %vm8519, %v8495, %v8375
      %v8529 = vsel %vm8519, %v8496, %v8377
      %v8530 = vsel %vm8519, %v8497, %v8379
      %v8531 = vsel %vm8519, %v8498, %v8381
      %v8532 = vsel %vm8519, %v8499, %v8383
      %v8533 = vsel %vm8519, %v8500, %v8385
      %v8534 = vsel %vm8519, %v8501, %v8387
      %v8535 = vsel %vm8519, %v8502, %v8389
      %v8536 = vsel %vm8519, %v8503, %v8391
      %v8537 = vsel %vm8519, %v8504, %v8393
      %v8538 = vsel %vm8519, %v8505, %v8395
      %v8539 = vsel %vm8519, %v8506, %v8397
      %v8540 = vsel %vm8519, %v8507, %v8399
      %v8541 = vsel %vm8519, %v8508, %v8401
      %v8542 = vsel %vm8519, %v8509, %v8403
      %v8543 = vsel %vm8519, %v8510, %v8405
      %v8544 = vsel %vm8519, %v8511, %v8407
      %v8545 = vsel %vm8519, %v8512, %v8409
      %v8546 = vsel %vm8519, %v8513, %v8411
      %v8547 = vsel %vm8519, %v8514, %v8413
      %v8548 = vsel %vm8519, %v8515, %v8415
      %v8549 = vsel %vm8519, %v8516, %v8417
      %v8550 = vsel %vm8519, %v8517, %v8419
      %v8551 = vsel %vm8519, %v8518, %v8421
      %vm8552 = vcmask 23552
      %v8553 = vsel %vm8552, %v8520, %v8423
      %v8554 = vsel %vm8552, %v8521, %v8425
      %v8555 = vsel %vm8552, %v8522, %v8427
      %v8556 = vsel %vm8552, %v8523, %v8429
      %v8557 = vsel %vm8552, %v8524, %v8431
      %v8558 = vsel %vm8552, %v8525, %v8433
      %v8559 = vsel %vm8552, %v8526, %v8435
      %v8560 = vsel %vm8552, %v8527, %v8437
      %v8561 = vsel %vm8552, %v8528, %v8439
      %v8562 = vsel %vm8552, %v8529, %v8441
      %v8563 = vsel %vm8552, %v8530, %v8443
      %v8564 = vsel %vm8552, %v8531, %v8445
      %v8565 = vsel %vm8552, %v8532, %v8447
      %v8566 = vsel %vm8552, %v8533, %v8449
      %v8567 = vsel %vm8552, %v8534, %v8451
      %v8568 = vsel %vm8552, %v8535, %v8453
      %v8569 = vsel %vm8552, %v8536, %v8455
      %v8570 = vsel %vm8552, %v8537, %v8457
      %v8571 = vsel %vm8552, %v8538, %v8459
      %v8572 = vsel %vm8552, %v8539, %v8461
      %v8573 = vsel %vm8552, %v8540, %v8463
      %v8574 = vsel %vm8552, %v8541, %v8465
      %v8575 = vsel %vm8552, %v8542, %v8467
      %v8576 = vsel %vm8552, %v8543, %v8469
      %v8577 = vsel %vm8552, %v8544, %v8471
      %v8578 = vsel %vm8552, %v8545, %v8473
      %v8579 = vsel %vm8552, %v8546, %v8475
      %v8580 = vsel %vm8552, %v8547, %v8477
      %v8581 = vsel %vm8552, %v8548, %v8479
      %v8582 = vsel %vm8552, %v8549, %v8481
      %v8583 = vsel %vm8552, %v8550, %v8483
      %v8584 = vsel %vm8552, %v8551, %v8485
      %8585 = vrot.lane.b32.xlu0 %v7686, 1
      %v8586 = vpop.permute.xlu0 %8585
      %8587 = vrot.lane.b32.xlu0 %v7687, 1
      %v8588 = vpop.permute.xlu0 %8587
      %8589 = vrot.lane.b32.xlu0 %v7688, 1
      %v8590 = vpop.permute.xlu0 %8589
      %8591 = vrot.lane.b32.xlu0 %v7689, 1
      %v8592 = vpop.permute.xlu0 %8591
      %8593 = vrot.lane.b32.xlu0 %v7690, 1
      %v8594 = vpop.permute.xlu0 %8593
      %8595 = vrot.lane.b32.xlu0 %v7691, 1
      %v8596 = vpop.permute.xlu0 %8595
      %8597 = vrot.lane.b32.xlu0 %v7692, 1
      %v8598 = vpop.permute.xlu0 %8597
      %8599 = vrot.lane.b32.xlu0 %v7693, 1
      %v8600 = vpop.permute.xlu0 %8599
      %8601 = vrot.lane.b32.xlu0 %v7694, 1
      %v8602 = vpop.permute.xlu0 %8601
      %8603 = vrot.lane.b32.xlu0 %v7695, 1
      %v8604 = vpop.permute.xlu0 %8603
      %8605 = vrot.lane.b32.xlu0 %v7696, 1
      %v8606 = vpop.permute.xlu0 %8605
      %8607 = vrot.lane.b32.xlu0 %v7697, 1
      %v8608 = vpop.permute.xlu0 %8607
      %8609 = vrot.lane.b32.xlu0 %v7698, 1
      %v8610 = vpop.permute.xlu0 %8609
      %8611 = vrot.lane.b32.xlu0 %v7699, 1
      %v8612 = vpop.permute.xlu0 %8611
      %8613 = vrot.lane.b32.xlu0 %v7700, 1
      %v8614 = vpop.permute.xlu0 %8613
      %8615 = vrot.lane.b32.xlu0 %v7701, 1
      %v8616 = vpop.permute.xlu0 %8615
      %8617 = vrot.lane.b32.xlu0 %v7702, 1
      %v8618 = vpop.permute.xlu0 %8617
      %8619 = vrot.lane.b32.xlu0 %v7703, 1
      %v8620 = vpop.permute.xlu0 %8619
      %8621 = vrot.lane.b32.xlu0 %v7704, 1
      %v8622 = vpop.permute.xlu0 %8621
      %8623 = vrot.lane.b32.xlu0 %v7705, 1
      %v8624 = vpop.permute.xlu0 %8623
      %8625 = vrot.lane.b32.xlu0 %v7706, 1
      %v8626 = vpop.permute.xlu0 %8625
      %8627 = vrot.lane.b32.xlu0 %v7707, 1
      %v8628 = vpop.permute.xlu0 %8627
      %8629 = vrot.lane.b32.xlu0 %v7708, 1
      %v8630 = vpop.permute.xlu0 %8629
      %8631 = vrot.lane.b32.xlu0 %v7709, 1
      %v8632 = vpop.permute.xlu0 %8631
      %8633 = vrot.lane.b32.xlu0 %v7710, 1
      %v8634 = vpop.permute.xlu0 %8633
      %8635 = vrot.lane.b32.xlu0 %v7711, 1
      %v8636 = vpop.permute.xlu0 %8635
      %8637 = vrot.lane.b32.xlu0 %v7712, 1
      %v8638 = vpop.permute.xlu0 %8637
      %8639 = vrot.lane.b32.xlu0 %v7713, 1
      %v8640 = vpop.permute.xlu0 %8639
      %8641 = vrot.lane.b32.xlu0 %v7714, 1
      %v8642 = vpop.permute.xlu0 %8641
      %8643 = vrot.lane.b32.xlu0 %v7715, 1
      %v8644 = vpop.permute.xlu0 %8643
      %8645 = vrot.lane.b32.xlu0 %v7716, 1
      %v8646 = vpop.permute.xlu0 %8645
      %8647 = vrot.lane.b32.xlu0 %v7717, 1
      %v8648 = vpop.permute.xlu0 %8647
      %8649 = vrot.lane.b32.xlu0 %v7974, 2
      %v8650 = vpop.permute.xlu0 %8649
      %8651 = vrot.lane.b32.xlu0 %v7975, 2
      %v8652 = vpop.permute.xlu0 %8651
      %8653 = vrot.lane.b32.xlu0 %v7976, 2
      %v8654 = vpop.permute.xlu0 %8653
      %8655 = vrot.lane.b32.xlu0 %v7977, 2
      %v8656 = vpop.permute.xlu0 %8655
      %8657 = vrot.lane.b32.xlu0 %v7978, 2
      %v8658 = vpop.permute.xlu0 %8657
      %8659 = vrot.lane.b32.xlu0 %v7979, 2
      %v8660 = vpop.permute.xlu0 %8659
      %8661 = vrot.lane.b32.xlu0 %v7980, 2
      %v8662 = vpop.permute.xlu0 %8661
      %8663 = vrot.lane.b32.xlu0 %v7981, 2
      %v8664 = vpop.permute.xlu0 %8663
      %8665 = vrot.lane.b32.xlu0 %v7982, 2
      %v8666 = vpop.permute.xlu0 %8665
      %8667 = vrot.lane.b32.xlu0 %v7983, 2
      %v8668 = vpop.permute.xlu0 %8667
      %8669 = vrot.lane.b32.xlu0 %v7984, 2
      %v8670 = vpop.permute.xlu0 %8669
      %8671 = vrot.lane.b32.xlu0 %v7985, 2
      %v8672 = vpop.permute.xlu0 %8671
      %8673 = vrot.lane.b32.xlu0 %v7986, 2
      %v8674 = vpop.permute.xlu0 %8673
      %8675 = vrot.lane.b32.xlu0 %v7987, 2
      %v8676 = vpop.permute.xlu0 %8675
      %8677 = vrot.lane.b32.xlu0 %v7988, 2
      %v8678 = vpop.permute.xlu0 %8677
      %8679 = vrot.lane.b32.xlu0 %v7989, 2
      %v8680 = vpop.permute.xlu0 %8679
      %8681 = vrot.lane.b32.xlu0 %v7990, 2
      %v8682 = vpop.permute.xlu0 %8681
      %8683 = vrot.lane.b32.xlu0 %v7991, 2
      %v8684 = vpop.permute.xlu0 %8683
      %8685 = vrot.lane.b32.xlu0 %v7992, 2
      %v8686 = vpop.permute.xlu0 %8685
      %8687 = vrot.lane.b32.xlu0 %v7993, 2
      %v8688 = vpop.permute.xlu0 %8687
      %8689 = vrot.lane.b32.xlu0 %v7994, 2
      %v8690 = vpop.permute.xlu0 %8689
      %8691 = vrot.lane.b32.xlu0 %v7995, 2
      %v8692 = vpop.permute.xlu0 %8691
      %8693 = vrot.lane.b32.xlu0 %v7996, 2
      %v8694 = vpop.permute.xlu0 %8693
      %8695 = vrot.lane.b32.xlu0 %v7997, 2
      %v8696 = vpop.permute.xlu0 %8695
      %8697 = vrot.lane.b32.xlu0 %v7998, 2
      %v8698 = vpop.permute.xlu0 %8697
      %8699 = vrot.lane.b32.xlu0 %v7999, 2
      %v8700 = vpop.permute.xlu0 %8699
      %8701 = vrot.lane.b32.xlu0 %v8000, 2
      %v8702 = vpop.permute.xlu0 %8701
      %8703 = vrot.lane.b32.xlu0 %v8001, 2
      %v8704 = vpop.permute.xlu0 %8703
      %8705 = vrot.lane.b32.xlu0 %v8002, 2
      %v8706 = vpop.permute.xlu0 %8705
      %8707 = vrot.lane.b32.xlu0 %v8003, 2
      %v8708 = vpop.permute.xlu0 %8707
      %8709 = vrot.lane.b32.xlu0 %v8004, 2
      %v8710 = vpop.permute.xlu0 %8709
      %8711 = vrot.lane.b32.xlu0 %v8005, 2
      %v8712 = vpop.permute.xlu0 %8711
      %8713 = vrot.lane.b32.xlu0 %v8262, 3
      %v8714 = vpop.permute.xlu0 %8713
      %8715 = vrot.lane.b32.xlu0 %v8263, 3
      %v8716 = vpop.permute.xlu0 %8715
      %8717 = vrot.lane.b32.xlu0 %v8264, 3
      %v8718 = vpop.permute.xlu0 %8717
      %8719 = vrot.lane.b32.xlu0 %v8265, 3
      %v8720 = vpop.permute.xlu0 %8719
      %8721 = vrot.lane.b32.xlu0 %v8266, 3
      %v8722 = vpop.permute.xlu0 %8721
      %8723 = vrot.lane.b32.xlu0 %v8267, 3
      %v8724 = vpop.permute.xlu0 %8723
      %8725 = vrot.lane.b32.xlu0 %v8268, 3
      %v8726 = vpop.permute.xlu0 %8725
      %8727 = vrot.lane.b32.xlu0 %v8269, 3
      %v8728 = vpop.permute.xlu0 %8727
      %8729 = vrot.lane.b32.xlu0 %v8270, 3
      %v8730 = vpop.permute.xlu0 %8729
      %8731 = vrot.lane.b32.xlu0 %v8271, 3
      %v8732 = vpop.permute.xlu0 %8731
      %8733 = vrot.lane.b32.xlu0 %v8272, 3
      %v8734 = vpop.permute.xlu0 %8733
      %8735 = vrot.lane.b32.xlu0 %v8273, 3
      %v8736 = vpop.permute.xlu0 %8735
      %8737 = vrot.lane.b32.xlu0 %v8274, 3
      %v8738 = vpop.permute.xlu0 %8737
      %8739 = vrot.lane.b32.xlu0 %v8275, 3
      %v8740 = vpop.permute.xlu0 %8739
      %8741 = vrot.lane.b32.xlu0 %v8276, 3
      %v8742 = vpop.permute.xlu0 %8741
      %8743 = vrot.lane.b32.xlu0 %v8277, 3
      %v8744 = vpop.permute.xlu0 %8743
      %8745 = vrot.lane.b32.xlu0 %v8278, 3
      %v8746 = vpop.permute.xlu0 %8745
      %8747 = vrot.lane.b32.xlu0 %v8279, 3
      %v8748 = vpop.permute.xlu0 %8747
      %8749 = vrot.lane.b32.xlu0 %v8280, 3
      %v8750 = vpop.permute.xlu0 %8749
      %8751 = vrot.lane.b32.xlu0 %v8281, 3
      %v8752 = vpop.permute.xlu0 %8751
      %8753 = vrot.lane.b32.xlu0 %v8282, 3
      %v8754 = vpop.permute.xlu0 %8753
      %8755 = vrot.lane.b32.xlu0 %v8283, 3
      %v8756 = vpop.permute.xlu0 %8755
      %8757 = vrot.lane.b32.xlu0 %v8284, 3
      %v8758 = vpop.permute.xlu0 %8757
      %8759 = vrot.lane.b32.xlu0 %v8285, 3
      %v8760 = vpop.permute.xlu0 %8759
      %8761 = vrot.lane.b32.xlu0 %v8286, 3
      %v8762 = vpop.permute.xlu0 %8761
      %8763 = vrot.lane.b32.xlu0 %v8287, 3
      %v8764 = vpop.permute.xlu0 %8763
      %8765 = vrot.lane.b32.xlu0 %v8288, 3
      %v8766 = vpop.permute.xlu0 %8765
      %8767 = vrot.lane.b32.xlu0 %v8289, 3
      %v8768 = vpop.permute.xlu0 %8767
      %8769 = vrot.lane.b32.xlu0 %v8290, 3
      %v8770 = vpop.permute.xlu0 %8769
      %8771 = vrot.lane.b32.xlu0 %v8291, 3
      %v8772 = vpop.permute.xlu0 %8771
      %8773 = vrot.lane.b32.xlu0 %v8292, 3
      %v8774 = vpop.permute.xlu0 %8773
      %8775 = vrot.lane.b32.xlu0 %v8293, 3
      %v8776 = vpop.permute.xlu0 %8775
      %v8777 = vsel %vm8486, %v7398, %v8586
      %v8778 = vsel %vm8486, %v7399, %v8588
      %v8779 = vsel %vm8486, %v7400, %v8590
      %v8780 = vsel %vm8486, %v7401, %v8592
      %v8781 = vsel %vm8486, %v7402, %v8594
      %v8782 = vsel %vm8486, %v7403, %v8596
      %v8783 = vsel %vm8486, %v7404, %v8598
      %v8784 = vsel %vm8486, %v7405, %v8600
      %v8785 = vsel %vm8486, %v7406, %v8602
      %v8786 = vsel %vm8486, %v7407, %v8604
      %v8787 = vsel %vm8486, %v7408, %v8606
      %v8788 = vsel %vm8486, %v7409, %v8608
      %v8789 = vsel %vm8486, %v7410, %v8610
      %v8790 = vsel %vm8486, %v7411, %v8612
      %v8791 = vsel %vm8486, %v7412, %v8614
      %v8792 = vsel %vm8486, %v7413, %v8616
      %v8793 = vsel %vm8486, %v7414, %v8618
      %v8794 = vsel %vm8486, %v7415, %v8620
      %v8795 = vsel %vm8486, %v7416, %v8622
      %v8796 = vsel %vm8486, %v7417, %v8624
      %v8797 = vsel %vm8486, %v7418, %v8626
      %v8798 = vsel %vm8486, %v7419, %v8628
      %v8799 = vsel %vm8486, %v7420, %v8630
      %v8800 = vsel %vm8486, %v7421, %v8632
      %v8801 = vsel %vm8486, %v7422, %v8634
      %v8802 = vsel %vm8486, %v7423, %v8636
      %v8803 = vsel %vm8486, %v7424, %v8638
      %v8804 = vsel %vm8486, %v7425, %v8640
      %v8805 = vsel %vm8486, %v7426, %v8642
      %v8806 = vsel %vm8486, %v7427, %v8644
      %v8807 = vsel %vm8486, %v7428, %v8646
      %v8808 = vsel %vm8486, %v7429, %v8648
      %v8809 = vsel %vm8519, %v8777, %v8650
      %v8810 = vsel %vm8519, %v8778, %v8652
      %v8811 = vsel %vm8519, %v8779, %v8654
      %v8812 = vsel %vm8519, %v8780, %v8656
      %v8813 = vsel %vm8519, %v8781, %v8658
      %v8814 = vsel %vm8519, %v8782, %v8660
      %v8815 = vsel %vm8519, %v8783, %v8662
      %v8816 = vsel %vm8519, %v8784, %v8664
      %v8817 = vsel %vm8519, %v8785, %v8666
      %v8818 = vsel %vm8519, %v8786, %v8668
      %v8819 = vsel %vm8519, %v8787, %v8670
      %v8820 = vsel %vm8519, %v8788, %v8672
      %v8821 = vsel %vm8519, %v8789, %v8674
      %v8822 = vsel %vm8519, %v8790, %v8676
      %v8823 = vsel %vm8519, %v8791, %v8678
      %v8824 = vsel %vm8519, %v8792, %v8680
      %v8825 = vsel %vm8519, %v8793, %v8682
      %v8826 = vsel %vm8519, %v8794, %v8684
      %v8827 = vsel %vm8519, %v8795, %v8686
      %v8828 = vsel %vm8519, %v8796, %v8688
      %v8829 = vsel %vm8519, %v8797, %v8690
      %v8830 = vsel %vm8519, %v8798, %v8692
      %v8831 = vsel %vm8519, %v8799, %v8694
      %v8832 = vsel %vm8519, %v8800, %v8696
      %v8833 = vsel %vm8519, %v8801, %v8698
      %v8834 = vsel %vm8519, %v8802, %v8700
      %v8835 = vsel %vm8519, %v8803, %v8702
      %v8836 = vsel %vm8519, %v8804, %v8704
      %v8837 = vsel %vm8519, %v8805, %v8706
      %v8838 = vsel %vm8519, %v8806, %v8708
      %v8839 = vsel %vm8519, %v8807, %v8710
      %v8840 = vsel %vm8519, %v8808, %v8712
      %v8841 = vsel %vm8552, %v8809, %v8714
      %v8842 = vsel %vm8552, %v8810, %v8716
      %v8843 = vsel %vm8552, %v8811, %v8718
      %v8844 = vsel %vm8552, %v8812, %v8720
      %v8845 = vsel %vm8552, %v8813, %v8722
      %v8846 = vsel %vm8552, %v8814, %v8724
      %v8847 = vsel %vm8552, %v8815, %v8726
      %v8848 = vsel %vm8552, %v8816, %v8728
      %v8849 = vsel %vm8552, %v8817, %v8730
      %v8850 = vsel %vm8552, %v8818, %v8732
      %v8851 = vsel %vm8552, %v8819, %v8734
      %v8852 = vsel %vm8552, %v8820, %v8736
      %v8853 = vsel %vm8552, %v8821, %v8738
      %v8854 = vsel %vm8552, %v8822, %v8740
      %v8855 = vsel %vm8552, %v8823, %v8742
      %v8856 = vsel %vm8552, %v8824, %v8744
      %v8857 = vsel %vm8552, %v8825, %v8746
      %v8858 = vsel %vm8552, %v8826, %v8748
      %v8859 = vsel %vm8552, %v8827, %v8750
      %v8860 = vsel %vm8552, %v8828, %v8752
      %v8861 = vsel %vm8552, %v8829, %v8754
      %v8862 = vsel %vm8552, %v8830, %v8756
      %v8863 = vsel %vm8552, %v8831, %v8758
      %v8864 = vsel %vm8552, %v8832, %v8760
      %v8865 = vsel %vm8552, %v8833, %v8762
      %v8866 = vsel %vm8552, %v8834, %v8764
      %v8867 = vsel %vm8552, %v8835, %v8766
      %v8868 = vsel %vm8552, %v8836, %v8768
      %v8869 = vsel %vm8552, %v8837, %v8770
      %v8870 = vsel %vm8552, %v8838, %v8772
      %v8871 = vsel %vm8552, %v8839, %v8774
      %v8872 = vsel %vm8552, %v8840, %v8776
      %vm8873 = vcmask 31744
      %8874 = vst.msk [vmem:[#allocation2] sm:$0xff] %vm8873, %v8553
      %8875 = vst.msk [vmem:[#allocation2 + $0x8] sm:$0xff] %vm8873, %v8554
      %8876 = vst.msk [vmem:[#allocation2 + $0x10] sm:$0xff] %vm8873, %v8555
      %8877 = vst.msk [vmem:[#allocation2 + $0x18] sm:$0xff] %vm8873, %v8556
      %8878 = vst.msk [vmem:[#allocation2 + $0x20] sm:$0xff] %vm8873, %v8557
      %8879 = vst.msk [vmem:[#allocation2 + $0x28] sm:$0xff] %vm8873, %v8558
      %8880 = vst.msk [vmem:[#allocation2 + $0x30] sm:$0xff] %vm8873, %v8559
      %8881 = vst.msk [vmem:[#allocation2 + $0x38] sm:$0xff] %vm8873, %v8560
      %8882 = vst.msk [vmem:[#allocation2 + $0x40] sm:$0xff] %vm8873, %v8561
      %8883 = vst.msk [vmem:[#allocation2 + $0x48] sm:$0xff] %vm8873, %v8562
      %8884 = vst.msk [vmem:[#allocation2 + $0x50] sm:$0xff] %vm8873, %v8563
      %8885 = vst.msk [vmem:[#allocation2 + $0x58] sm:$0xff] %vm8873, %v8564
      %8886 = vst.msk [vmem:[#allocation2 + $0x60] sm:$0xff] %vm8873, %v8565
      %8887 = vst.msk [vmem:[#allocation2 + $0x68] sm:$0xff] %vm8873, %v8566
      %8888 = vst.msk [vmem:[#allocation2 + $0x70] sm:$0xff] %vm8873, %v8567
      %8889 = vst.msk [vmem:[#allocation2 + $0x78] sm:$0xff] %vm8873, %v8568
      %8890 = vst.msk [vmem:[#allocation2 + $0x80] sm:$0xff] %vm8873, %v8569
      %8891 = vst.msk [vmem:[#allocation2 + $0x88] sm:$0xff] %vm8873, %v8570
      %8892 = vst.msk [vmem:[#allocation2 + $0x90] sm:$0xff] %vm8873, %v8571
      %8893 = vst.msk [vmem:[#allocation2 + $0x98] sm:$0xff] %vm8873, %v8572
      %8894 = vst.msk [vmem:[#allocation2 + $0xa0] sm:$0xff] %vm8873, %v8573
      %8895 = vst.msk [vmem:[#allocation2 + $0xa8] sm:$0xff] %vm8873, %v8574
      %8896 = vst.msk [vmem:[#allocation2 + $0xb0] sm:$0xff] %vm8873, %v8575
      %8897 = vst.msk [vmem:[#allocation2 + $0xb8] sm:$0xff] %vm8873, %v8576
      %8898 = vst.msk [vmem:[#allocation2 + $0xc0] sm:$0xff] %vm8873, %v8577
      %8899 = vst.msk [vmem:[#allocation2 + $0xc8] sm:$0xff] %vm8873, %v8578
      %8900 = vst.msk [vmem:[#allocation2 + $0xd0] sm:$0xff] %vm8873, %v8579
      %8901 = vst.msk [vmem:[#allocation2 + $0xd8] sm:$0xff] %vm8873, %v8580
      %8902 = vst.msk [vmem:[#allocation2 + $0xe0] sm:$0xff] %vm8873, %v8581
      %8903 = vst.msk [vmem:[#allocation2 + $0xe8] sm:$0xff] %vm8873, %v8582
      %8904 = vst.msk [vmem:[#allocation2 + $0xf0] sm:$0xff] %vm8873, %v8583
      %8905 = vst.msk [vmem:[#allocation2 + $0xf8] sm:$0xff] %vm8873, %v8584
      %8906 = vst.msk [vmem:[#allocation3] sm:$0xff] %vm8873, %v8841
      %8907 = vst.msk [vmem:[#allocation3 + $0x8] sm:$0xff] %vm8873, %v8842
      %8908 = vst.msk [vmem:[#allocation3 + $0x10] sm:$0xff] %vm8873, %v8843
      %8909 = vst.msk [vmem:[#allocation3 + $0x18] sm:$0xff] %vm8873, %v8844
      %8910 = vst.msk [vmem:[#allocation3 + $0x20] sm:$0xff] %vm8873, %v8845
      %8911 = vst.msk [vmem:[#allocation3 + $0x28] sm:$0xff] %vm8873, %v8846
      %8912 = vst.msk [vmem:[#allocation3 + $0x30] sm:$0xff] %vm8873, %v8847
      %8913 = vst.msk [vmem:[#allocation3 + $0x38] sm:$0xff] %vm8873, %v8848
      %8914 = vst.msk [vmem:[#allocation3 + $0x40] sm:$0xff] %vm8873, %v8849
      %8915 = vst.msk [vmem:[#allocation3 + $0x48] sm:$0xff] %vm8873, %v8850
      %8916 = vst.msk [vmem:[#allocation3 + $0x50] sm:$0xff] %vm8873, %v8851
      %8917 = vst.msk [vmem:[#allocation3 + $0x58] sm:$0xff] %vm8873, %v8852
      %8918 = vst.msk [vmem:[#allocation3 + $0x60] sm:$0xff] %vm8873, %v8853
      %8919 = vst.msk [vmem:[#allocation3 + $0x68] sm:$0xff] %vm8873, %v8854
      %8920 = vst.msk [vmem:[#allocation3 + $0x70] sm:$0xff] %vm8873, %v8855
      %8921 = vst.msk [vmem:[#allocation3 + $0x78] sm:$0xff] %vm8873, %v8856
      %8922 = vst.msk [vmem:[#allocation3 + $0x80] sm:$0xff] %vm8873, %v8857
      %8923 = vst.msk [vmem:[#allocation3 + $0x88] sm:$0xff] %vm8873, %v8858
      %8924 = vst.msk [vmem:[#allocation3 + $0x90] sm:$0xff] %vm8873, %v8859
      %8925 = vst.msk [vmem:[#allocation3 + $0x98] sm:$0xff] %vm8873, %v8860
      %8926 = vst.msk [vmem:[#allocation3 + $0xa0] sm:$0xff] %vm8873, %v8861
      %8927 = vst.msk [vmem:[#allocation3 + $0xa8] sm:$0xff] %vm8873, %v8862
      %8928 = vst.msk [vmem:[#allocation3 + $0xb0] sm:$0xff] %vm8873, %v8863
      %8929 = vst.msk [vmem:[#allocation3 + $0xb8] sm:$0xff] %vm8873, %v8864
      %8930 = vst.msk [vmem:[#allocation3 + $0xc0] sm:$0xff] %vm8873, %v8865
      %8931 = vst.msk [vmem:[#allocation3 + $0xc8] sm:$0xff] %vm8873, %v8866
      %8932 = vst.msk [vmem:[#allocation3 + $0xd0] sm:$0xff] %vm8873, %v8867
      %8933 = vst.msk [vmem:[#allocation3 + $0xd8] sm:$0xff] %vm8873, %v8868
      %8934 = vst.msk [vmem:[#allocation3 + $0xe0] sm:$0xff] %vm8873, %v8869
      %8935 = vst.msk [vmem:[#allocation3 + $0xe8] sm:$0xff] %vm8873, %v8870
      %8936 = vst.msk [vmem:[#allocation3 + $0xf0] sm:$0xff] %vm8873, %v8871
      %8937 = vst.msk [vmem:[#allocation3 + $0xf8] sm:$0xff] %vm8873, %v8872
      // Predicated region
      $region33: #{tpu_custom_call.1} parent=27 // pred_check
        %p8938 = pneg %p176
      $region34: #{tpu_custom_call.1} parent=27 // pred_check_branch
        %8940 = sbr.rel (%p8938) target = $region36
      $region35: #{tpu_custom_call.1} parent=27 // pred_region
        %vm8941 = vcmp.lt.s32.totalorder %v8553, 2130706432
        %vm8942 = vcmp.lt.s32.totalorder %v8554, 2130706432
        %vm8943 = vcmp.lt.s32.totalorder %v8555, 2130706432
        %vm8944 = vcmp.lt.s32.totalorder %v8556, 2130706432
        %vm8945 = vcmp.lt.s32.totalorder %v8557, 2130706432
        %vm8946 = vcmp.lt.s32.totalorder %v8558, 2130706432
        %vm8947 = vcmp.lt.s32.totalorder %v8559, 2130706432
        %vm8948 = vcmp.lt.s32.totalorder %v8560, 2130706432
        %vm8949 = vcmp.lt.s32.totalorder %v8561, 2130706432
        %vm8950 = vcmp.lt.s32.totalorder %v8562, 2130706432
        %vm8951 = vcmp.lt.s32.totalorder %v8563, 2130706432
        %vm8952 = vcmp.lt.s32.totalorder %v8564, 2130706432
        %vm8953 = vcmp.lt.s32.totalorder %v8565, 2130706432
        %vm8954 = vcmp.lt.s32.totalorder %v8566, 2130706432
        %vm8955 = vcmp.lt.s32.totalorder %v8567, 2130706432
        %vm8956 = vcmp.lt.s32.totalorder %v8568, 2130706432
        %vm8957 = vcmp.lt.s32.totalorder %v8569, 2130706432
        %vm8958 = vcmp.lt.s32.totalorder %v8570, 2130706432
        %vm8959 = vcmp.lt.s32.totalorder %v8571, 2130706432
        %vm8960 = vcmp.lt.s32.totalorder %v8572, 2130706432
        %vm8961 = vcmp.lt.s32.totalorder %v8573, 2130706432
        %vm8962 = vcmp.lt.s32.totalorder %v8574, 2130706432
        %vm8963 = vcmp.lt.s32.totalorder %v8575, 2130706432
        %vm8964 = vcmp.lt.s32.totalorder %v8576, 2130706432
        %vm8965 = vcmp.lt.s32.totalorder %v8577, 2130706432
        %vm8966 = vcmp.lt.s32.totalorder %v8578, 2130706432
        %vm8967 = vcmp.lt.s32.totalorder %v8579, 2130706432
        %vm8968 = vcmp.lt.s32.totalorder %v8580, 2130706432
        %vm8969 = vcmp.lt.s32.totalorder %v8581, 2130706432
        %vm8970 = vcmp.lt.s32.totalorder %v8582, 2130706432
        %vm8971 = vcmp.lt.s32.totalorder %v8583, 2130706432
        %vm8972 = vcmp.lt.s32.totalorder %v8584, 2130706432
        %v8973 = vsel %vm8941, %v8841, 4294967295
        %v8974 = vsel %vm8942, %v8842, 4294967295
        %v8975 = vsel %vm8943, %v8843, 4294967295
        %v8976 = vsel %vm8944, %v8844, 4294967295
        %v8977 = vsel %vm8945, %v8845, 4294967295
        %v8978 = vsel %vm8946, %v8846, 4294967295
        %v8979 = vsel %vm8947, %v8847, 4294967295
        %v8980 = vsel %vm8948, %v8848, 4294967295
        %v8981 = vsel %vm8949, %v8849, 4294967295
        %v8982 = vsel %vm8950, %v8850, 4294967295
        %v8983 = vsel %vm8951, %v8851, 4294967295
        %v8984 = vsel %vm8952, %v8852, 4294967295
        %v8985 = vsel %vm8953, %v8853, 4294967295
        %v8986 = vsel %vm8954, %v8854, 4294967295
        %v8987 = vsel %vm8955, %v8855, 4294967295
        %v8988 = vsel %vm8956, %v8856, 4294967295
        %v8989 = vsel %vm8957, %v8857, 4294967295
        %v8990 = vsel %vm8958, %v8858, 4294967295
        %v8991 = vsel %vm8959, %v8859, 4294967295
        %v8992 = vsel %vm8960, %v8860, 4294967295
        %v8993 = vsel %vm8961, %v8861, 4294967295
        %v8994 = vsel %vm8962, %v8862, 4294967295
        %v8995 = vsel %vm8963, %v8863, 4294967295
        %v8996 = vsel %vm8964, %v8864, 4294967295
        %v8997 = vsel %vm8965, %v8865, 4294967295
        %v8998 = vsel %vm8966, %v8866, 4294967295
        %v8999 = vsel %vm8967, %v8867, 4294967295
        %v9000 = vsel %vm8968, %v8868, 4294967295
        %v9001 = vsel %vm8969, %v8869, 4294967295
        %v9002 = vsel %vm8970, %v8870, 4294967295
        %v9003 = vsel %vm8971, %v8871, 4294967295
        %v9004 = vsel %vm8972, %v8872, 4294967295
        %9005 = vst.msk [vmem:[%s174] sm:$0xff] %vm8873, %v8973
        %9006 = vst.msk [vmem:[%s174 + $0x8] sm:$0xff] %vm8873, %v8974
        %9007 = vst.msk [vmem:[%s174 + $0x10] sm:$0xff] %vm8873, %v8975
        %9008 = vst.msk [vmem:[%s174 + $0x18] sm:$0xff] %vm8873, %v8976
        %9009 = vst.msk [vmem:[%s174 + $0x20] sm:$0xff] %vm8873, %v8977
        %9010 = vst.msk [vmem:[%s174 + $0x28] sm:$0xff] %vm8873, %v8978
        %9011 = vst.msk [vmem:[%s174 + $0x30] sm:$0xff] %vm8873, %v8979
        %9012 = vst.msk [vmem:[%s174 + $0x38] sm:$0xff] %vm8873, %v8980
        %9013 = vst.msk [vmem:[%s174 + $0x40] sm:$0xff] %vm8873, %v8981
        %9014 = vst.msk [vmem:[%s174 + $0x48] sm:$0xff] %vm8873, %v8982
        %9015 = vst.msk [vmem:[%s174 + $0x50] sm:$0xff] %vm8873, %v8983
        %9016 = vst.msk [vmem:[%s174 + $0x58] sm:$0xff] %vm8873, %v8984
        %9017 = vst.msk [vmem:[%s174 + $0x60] sm:$0xff] %vm8873, %v8985
        %9018 = vst.msk [vmem:[%s174 + $0x68] sm:$0xff] %vm8873, %v8986
        %9019 = vst.msk [vmem:[%s174 + $0x70] sm:$0xff] %vm8873, %v8987
        %9020 = vst.msk [vmem:[%s174 + $0x78] sm:$0xff] %vm8873, %v8988
        %9021 = vst.msk [vmem:[%s174 + $0x80] sm:$0xff] %vm8873, %v8989
        %9022 = vst.msk [vmem:[%s174 + $0x88] sm:$0xff] %vm8873, %v8990
        %9023 = vst.msk [vmem:[%s174 + $0x90] sm:$0xff] %vm8873, %v8991
        %9024 = vst.msk [vmem:[%s174 + $0x98] sm:$0xff] %vm8873, %v8992
        %9025 = vst.msk [vmem:[%s174 + $0xa0] sm:$0xff] %vm8873, %v8993
        %9026 = vst.msk [vmem:[%s174 + $0xa8] sm:$0xff] %vm8873, %v8994
        %9027 = vst.msk [vmem:[%s174 + $0xb0] sm:$0xff] %vm8873, %v8995
        %9028 = vst.msk [vmem:[%s174 + $0xb8] sm:$0xff] %vm8873, %v8996
        %9029 = vst.msk [vmem:[%s174 + $0xc0] sm:$0xff] %vm8873, %v8997
        %9030 = vst.msk [vmem:[%s174 + $0xc8] sm:$0xff] %vm8873, %v8998
        %9031 = vst.msk [vmem:[%s174 + $0xd0] sm:$0xff] %vm8873, %v8999
        %9032 = vst.msk [vmem:[%s174 + $0xd8] sm:$0xff] %vm8873, %v9000
        %9033 = vst.msk [vmem:[%s174 + $0xe0] sm:$0xff] %vm8873, %v9001
        %9034 = vst.msk [vmem:[%s174 + $0xe8] sm:$0xff] %vm8873, %v9002
        %9035 = vst.msk [vmem:[%s174 + $0xf0] sm:$0xff] %vm8873, %v9003
        %9036 = vst.msk [vmem:[%s174 + $0xf8] sm:$0xff] %vm8873, %v9004
      $region36: #{tpu_custom_call.1} parent=27 // pred_fallthru
        _
      %s9037 = smul.u32 32, %s17
      %p9038 = scmp.lt.s32.totalorder %s9037, 63
      %s9039 = scalar_select %p9038, %s9037, 63
      %s9040 = smul.addr %s9039, 8
      %s9041 = scalar_lea.vmem %s2, %s9040
      // Predicated region
      $region37: #{tpu_custom_call.1} parent=27 // pred_check
        %p9042 = pneg %p95
      $region38: #{tpu_custom_call.1} parent=27 // pred_check_branch
        %9044 = sbr.rel (%p9042) target = $region40
      $region39: #{tpu_custom_call.1} parent=27 // pred_region
        %s9045 = smul.u32 32, %s17
      $region40: #{tpu_custom_call.1} parent=27 // pred_fallthru
        _
    $region28: #{tpu_custom_call.1} parent=5 // pred_fallthru
      _
    %p9046 = scmp.le.s32.totalorder 2, %s8
    // Predicated region
    $region41: #{tpu_custom_call.1} parent=5 // pred_check
      %p9047 = pneg %p9046
    $region42: #{tpu_custom_call.1} parent=5 // pred_check_branch
      %9049 = sbr.rel (%p9047) target = $region44
    $region43: #{tpu_custom_call.1} parent=5 // pred_region
      %s9050 = ssub.s32 %s8, 2
      // Predicated region
      $region45: #{tpu_custom_call.1} parent=43 // pred_check
        %p9051 = pneg %p101
      $region46: #{tpu_custom_call.1} parent=43 // pred_check_branch
        %9053 = sbr.rel (%p9051) target = $region48
      $region47: #{tpu_custom_call.1} parent=43 // pred_region
        %s9054 = smul.u32 32, %s19
        %p9055 = scmp.lt.s32.totalorder %s9054, 63
        %s9056 = scalar_select %p9055, %s9054, 63
        %s9057 = smul.addr %s9056, 8
        %s9058 = scalar_lea.vmem %s2, %s9057
      $region48: #{tpu_custom_call.1} parent=43 // pred_fallthru
        _
    $region44: #{tpu_custom_call.1} parent=5 // pred_fallthru
      _
  $region6: #{tpu_custom_call.1} parent=0 // loop_footer
    %s12 = sadd.s32 1, %s8
  $region7: #{tpu_custom_call.1} parent=0 // loop_footer_branch
    %7 = sbr.rel target = $region3
  $region8: #{tpu_custom_call.1} parent=0 // loop_exit
    _

</llo_original>
